<compile_context>
chip_gen: v5e
topology: v5e:2x2
jax: 0.10.0
libtpu: 0.0.40
codegen_flags: <defaults>
</compile_context>

<pallas_src>
import functools

import jax
import jax.numpy as jnp
from jax.experimental import pallas as pl
from jax.experimental.pallas import tpu as pltpu

BN_EPS = 1e-5


# ------------------------------ Pallas kernel ------------------------------ #
def _wx_bn_glu_kernel(w_ref, x_ref, o_ref):
    """o = GLU(BatchNorm(W @ X)), channels-first.

    w_ref: (2*F, K)  fused weight; rows [0:F) = GLU 'a' half, [F:2F) = 'b' half
    x_ref: (K, P)    K = reduction dim, P = batch*pixels (lane-dense)
    o_ref: (F, P)
    """
    # Single MXU matmul for both GLU halves (bf16 inputs, f32 accumulation).
    h = jnp.dot(w_ref[...], x_ref[...], preferred_element_type=jnp.float32)

    # One-pass training-mode BN stats per feature row (biased batch variance).
    p = h.shape[1]
    inv_p = jnp.float32(1.0 / p)
    mean = jnp.sum(h, axis=1, keepdims=True) * inv_p
    mean_sq = jnp.sum(h * h, axis=1, keepdims=True) * inv_p
    # var = E[h^2] - mean^2: mild cancellation risk for large-mean features,
    # acceptable here with BN_EPS.
    var = mean_sq - mean * mean
    y = (h - mean) * jax.lax.rsqrt(var + BN_EPS)

    # GLU across the fused feature axis: rows [0:F) * sigmoid(rows [F:2F)).
    f = y.shape[0] // 2
    o_ref[...] = (y[:f] * jax.nn.sigmoid(y[f:])).astype(o_ref.dtype)


def wx_bn_glu(w, x, out_dtype=jnp.bfloat16):
    two_f, k = w.shape
    kx, p = x.shape
    assert k == kx and two_f % 2 == 0
    return pl.pallas_call(
        _wx_bn_glu_kernel,
        out_shape=jax.ShapeDtypeStruct((two_f // 2, p), out_dtype),
        in_specs=[pl.BlockSpec(memory_space=pltpu.MemorySpace.VMEM)] * 2,
        out_specs=pl.BlockSpec(memory_space=pltpu.MemorySpace.VMEM),
    )(w, x)


# -------------------------------- JAX glue --------------------------------- #
def upsample_nearest_2x_cf(x):  # (C, N, H, W) -> (C, N, 2H, 2W)
    x = jnp.repeat(x, 2, axis=2)
    return jnp.repeat(x, 2, axis=3)


def im2col_3x3_cf(x):
    """(C, N, H, W) -> (C*9, N*H*W); row index = ci*9 + (dy*3 + dx).

    Matches the flattening of a PyTorch conv weight (out, in, 3, 3) reshaped to
    (out, in*9), so real weights can be loaded directly.
    """
    c, n, h, w = x.shape
    xp = jnp.pad(x, ((0, 0), (0, 0), (1, 1), (1, 1)))
    taps = [xp[:, :, dy:dy + h, dx:dx + w] for dy in range(3) for dx in range(3)]
    xc = jnp.stack(taps, axis=1)  # (C, 9, N, H, W)
    return xc.reshape(c * 9, n * h * w)


def up_block(x_cf, w_conv):
    """Upsample(2x nearest) -> conv3x3(no bias) -> BatchNorm2d -> GLU.

    x_cf:   (Cin, N, H, W) channels-first activation (bf16)
    w_conv: (2*Cout, Cin, 3, 3)
    returns (Cout, N, 2H, 2W) bf16
    """
    x_up = upsample_nearest_2x_cf(x_cf)
    cin, n, h, w = x_up.shape
    xcol = im2col_3x3_cf(x_up).astype(jnp.bfloat16)                 # (9*Cin, P)
    w2 = w_conv.reshape(w_conv.shape[0], cin * 9).astype(jnp.bfloat16)
    out = wx_bn_glu(w2, xcol)                                       # (Cout, P)
    return out.reshape(w_conv.shape[0] // 2, n, h, w)


def init_params(key, ngf, noise_dim, embed_dim):
    in_dim = noise_dim + embed_dim
    keys = jax.random.split(key, 5)
    params = {}
    # fc: Linear(in_dim, ngf*4*4*2, bias=False); stored (out, in) like nn.Linear,
    # which is exactly the transposed-problem weight layout the kernel wants.
    params["fc_w"] = 0.05 * jax.random.normal(keys[0], (ngf * 32, in_dim), jnp.float32)
    chans = [(ngf, ngf // 2), (ngf // 2, ngf // 4),
             (ngf // 4, ngf // 8), (ngf // 8, ngf // 16)]
    for i, (cin, cout) in enumerate(chans):
        params[f"up{i}_w"] = 0.05 * jax.random.normal(
            keys[1 + i], (2 * cout, cin, 3, 3), jnp.float32)
    return params


@functools.partial(jax.jit, static_argnums=(3,))
def init_stage_g_forward(params, z_code, c_code, ngf):
    # torch.cat((c_code, z_code), 1)
    in_code = jnp.concatenate([c_code, z_code], axis=1)          # (B, in_dim)
    b = in_code.shape[0]

    # fc -> BN1d -> GLU, solved as out^T = W_fc @ in_code^T
    x_t = in_code.T.astype(jnp.bfloat16)                         # (in_dim, B)
    w_fc = params["fc_w"].astype(jnp.bfloat16)                   # (ngf*32, in_dim)
    out_t = wx_bn_glu(w_fc, x_t)                                 # (ngf*16, B)

    # view(-1, ngf, 4, 4) in channels-first (C, N, H, W) form
    x = out_t.reshape(ngf, 4, 4, b).transpose(0, 3, 1, 2)        # (ngf, B, 4, 4)

    for i in range(4):
        x = up_block(x, params[f"up{i}_w"])

    # back to NCHW, f32, to match the PyTorch module output
    return x.transpose(1, 0, 2, 3).astype(jnp.float32)


if __name__ == "__main__":
    B = 2
    NGF = 32
    NOISE_DIM = 16
    EMBED_DIM = 16

    key = jax.random.PRNGKey(0)
    k_params, k_z, k_c = jax.random.split(key, 3)

    params = init_params(k_params, NGF, NOISE_DIM, EMBED_DIM)
    z_code = jax.random.normal(k_z, (B, NOISE_DIM), jnp.float32)
    c_code = jax.random.normal(k_c, (B, EMBED_DIM), jnp.float32)

    out = init_stage_g_forward(params, z_code, c_code, NGF)
    out = jax.block_until_ready(out)

    assert out.shape == (B, NGF // 16, 64, 64), out.shape
    assert bool(jnp.all(jnp.isfinite(out)))
    print("KERNEL_OK")
</pallas_src>

<mosaic_0001>
module attributes {stable_mosaic.version = 11 : i64} {
  func.func @_wx_bn_glu_kernel(%arg0: memref<1024x32xbf16, #tpu.memory_space<vmem>>, %arg1: memref<32x2xbf16, #tpu.memory_space<vmem>>, %arg2: memref<512x2xbf16, #tpu.memory_space<vmem>>) attributes {dimension_semantics = [], scalar_prefetch = 0 : i64, scratch_operands = 0 : i64, tpu.core_type = #tpu.core_type<tc>} {
    %c0 = arith.constant 0 : index
    %c0_0 = arith.constant 0 : index
    %0 = vector.load %arg0[%c0, %c0_0] : memref<1024x32xbf16, #tpu.memory_space<vmem>>, vector<1024x32xbf16>
    %c0_1 = arith.constant 0 : index
    %c0_2 = arith.constant 0 : index
    %1 = vector.load %arg1[%c0_1, %c0_2] : memref<32x2xbf16, #tpu.memory_space<vmem>>, vector<32x2xbf16>
    %cst = arith.constant dense<0.000000e+00> : vector<1024x2xf32>
    %2 = tpu.matmul %0, %1, %cst {dimension_numbers = #tpu.dot_dimension_numbers<[1], [0], [0], [1], [0, 0, 1, 1], [], []>} : vector<1024x32xbf16>, vector<32x2xbf16>, vector<1024x2xf32> -> vector<1024x2xf32>
    %cst_3 = arith.constant dense<0.000000e+00> : vector<1024xf32>
    %3 = vector.multi_reduction <add>, %2, %cst_3 [1] : vector<1024x2xf32> to vector<1024xf32>
    %4 = vector.shape_cast %3 : vector<1024xf32> to vector<1024x1xf32>
    %cst_4 = arith.constant 5.000000e-01 : f32
    %5 = vector.broadcast %cst_4 : f32 to vector<1024x1xf32>
    %6 = arith.mulf %4, %5 : vector<1024x1xf32>
    %7 = arith.mulf %2, %2 : vector<1024x2xf32>
    %cst_5 = arith.constant dense<0.000000e+00> : vector<1024xf32>
    %8 = vector.multi_reduction <add>, %7, %cst_5 [1] : vector<1024x2xf32> to vector<1024xf32>
    %9 = vector.shape_cast %8 : vector<1024xf32> to vector<1024x1xf32>
    %cst_6 = arith.constant 5.000000e-01 : f32
    %10 = vector.broadcast %cst_6 : f32 to vector<1024x1xf32>
    %11 = arith.mulf %9, %10 : vector<1024x1xf32>
    %12 = arith.mulf %6, %6 : vector<1024x1xf32>
    %13 = arith.subf %11, %12 : vector<1024x1xf32>
    %14 = vector.broadcast %6 : vector<1024x1xf32> to vector<1024x2xf32>
    %15 = arith.subf %2, %14 : vector<1024x2xf32>
    %cst_7 = arith.constant 9.99999974E-6 : f32
    %16 = vector.broadcast %cst_7 : f32 to vector<1024x1xf32>
    %17 = arith.addf %13, %16 : vector<1024x1xf32>
    %18 = math.rsqrt %17 : vector<1024x1xf32>
    %19 = vector.broadcast %18 : vector<1024x1xf32> to vector<1024x2xf32>
    %20 = arith.mulf %15, %19 : vector<1024x2xf32>
    %21 = vector.extract_strided_slice %20 {offsets = [0, 0], sizes = [512, 2], strides = [1, 1]} : vector<1024x2xf32> to vector<512x2xf32>
    %22 = vector.extract_strided_slice %20 {offsets = [512, 0], sizes = [512, 2], strides = [1, 1]} : vector<1024x2xf32> to vector<512x2xf32>
    %23 = arith.negf %22 : vector<512x2xf32>
    %24 = math.exp %23 : vector<512x2xf32>
    %cst_8 = arith.constant 1.000000e+00 : f32
    %25 = vector.broadcast %cst_8 : f32 to vector<512x2xf32>
    %26 = arith.addf %25, %24 : vector<512x2xf32>
    %27 = arith.divf %25, %26 : vector<512x2xf32>
    %28 = arith.mulf %21, %27 : vector<512x2xf32>
    %29 = arith.truncf %28 : vector<512x2xf32> to vector<512x2xbf16>
    %c0_9 = arith.constant 0 : index
    %c0_10 = arith.constant 0 : index
    %30 = vector.load %arg2[%c0_9, %c0_10] : memref<512x2xbf16, #tpu.memory_space<vmem>>, vector<512x2xbf16>
    tpu.vector_store %arg2[%c0_9, %c0_10], %29 {strides = array<i32>} : memref<512x2xbf16, #tpu.memory_space<vmem>>, vector<512x2xbf16>,
    return
  }
}

module attributes {stable_mosaic.version = 11 : i64} {
  func.func @_wx_bn_glu_kernel(%arg0: memref<32x288xbf16, #tpu.memory_space<vmem>>, %arg1: memref<288x128xbf16, #tpu.memory_space<vmem>>, %arg2: memref<16x128xbf16, #tpu.memory_space<vmem>>) attributes {dimension_semantics = [], scalar_prefetch = 0 : i64, scratch_operands = 0 : i64, tpu.core_type = #tpu.core_type<tc>} {
    %c0 = arith.constant 0 : index
    %c0_0 = arith.constant 0 : index
    %0 = vector.load %arg0[%c0, %c0_0] : memref<32x288xbf16, #tpu.memory_space<vmem>>, vector<32x288xbf16>
    %c0_1 = arith.constant 0 : index
    %c0_2 = arith.constant 0 : index
    %1 = vector.load %arg1[%c0_1, %c0_2] : memref<288x128xbf16, #tpu.memory_space<vmem>>, vector<288x128xbf16>
    %cst = arith.constant dense<0.000000e+00> : vector<32x128xf32>
    %2 = tpu.matmul %0, %1, %cst {dimension_numbers = #tpu.dot_dimension_numbers<[1], [0], [0], [1], [0, 0, 1, 1], [], []>} : vector<32x288xbf16>, vector<288x128xbf16>, vector<32x128xf32> -> vector<32x128xf32>
    %cst_3 = arith.constant dense<0.000000e+00> : vector<32xf32>
    %3 = vector.multi_reduction <add>, %2, %cst_3 [1] : vector<32x128xf32> to vector<32xf32>
    %4 = vector.shape_cast %3 : vector<32xf32> to vector<32x1xf32>
    %cst_4 = arith.constant 7.812500e-03 : f32
    %5 = vector.broadcast %cst_4 : f32 to vector<32x1xf32>
    %6 = arith.mulf %4, %5 : vector<32x1xf32>
    %7 = arith.mulf %2, %2 : vector<32x128xf32>
    %cst_5 = arith.constant dense<0.000000e+00> : vector<32xf32>
    %8 = vector.multi_reduction <add>, %7, %cst_5 [1] : vector<32x128xf32> to vector<32xf32>
    %9 = vector.shape_cast %8 : vector<32xf32> to vector<32x1xf32>
    %cst_6 = arith.constant 7.812500e-03 : f32
    %10 = vector.broadcast %cst_6 : f32 to vector<32x1xf32>
    %11 = arith.mulf %9, %10 : vector<32x1xf32>
    %12 = arith.mulf %6, %6 : vector<32x1xf32>
    %13 = arith.subf %11, %12 : vector<32x1xf32>
    %14 = vector.broadcast %6 : vector<32x1xf32> to vector<32x128xf32>
    %15 = arith.subf %2, %14 : vector<32x128xf32>
    %cst_7 = arith.constant 9.99999974E-6 : f32
    %16 = vector.broadcast %cst_7 : f32 to vector<32x1xf32>
    %17 = arith.addf %13, %16 : vector<32x1xf32>
    %18 = math.rsqrt %17 : vector<32x1xf32>
    %19 = vector.broadcast %18 : vector<32x1xf32> to vector<32x128xf32>
    %20 = arith.mulf %15, %19 : vector<32x128xf32>
    %21 = vector.extract_strided_slice %20 {offsets = [0, 0], sizes = [16, 128], strides = [1, 1]} : vector<32x128xf32> to vector<16x128xf32>
    %22 = vector.extract_strided_slice %20 {offsets = [16, 0], sizes = [16, 128], strides = [1, 1]} : vector<32x128xf32> to vector<16x128xf32>
    %23 = arith.negf %22 : vector<16x128xf32>
    %24 = math.exp %23 : vector<16x128xf32>
    %cst_8 = arith.constant 1.000000e+00 : f32
    %25 = vector.broadcast %cst_8 : f32 to vector<16x128xf32>
    %26 = arith.addf %25, %24 : vector<16x128xf32>
    %27 = arith.divf %25, %26 : vector<16x128xf32>
    %28 = arith.mulf %21, %27 : vector<16x128xf32>
    %29 = arith.truncf %28 : vector<16x128xf32> to vector<16x128xbf16>
    %c0_9 = arith.constant 0 : index
    %c0_10 = arith.constant 0 : index
    %30 = vector.load %arg2[%c0_9, %c0_10] : memref<16x128xbf16, #tpu.memory_space<vmem>>, vector<16x128xbf16>
    tpu.vector_store %arg2[%c0_9, %c0_10], %29 {strides = array<i32>} : memref<16x128xbf16, #tpu.memory_space<vmem>>, vector<16x128xbf16>,
    return
  }
}

module attributes {stable_mosaic.version = 11 : i64} {
  func.func @_wx_bn_glu_kernel(%arg0: memref<16x144xbf16, #tpu.memory_space<vmem>>, %arg1: memref<144x512xbf16, #tpu.memory_space<vmem>>, %arg2: memref<8x512xbf16, #tpu.memory_space<vmem>>) attributes {dimension_semantics = [], scalar_prefetch = 0 : i64, scratch_operands = 0 : i64, tpu.core_type = #tpu.core_type<tc>} {
    %c0 = arith.constant 0 : index
    %c0_0 = arith.constant 0 : index
    %0 = vector.load %arg0[%c0, %c0_0] : memref<16x144xbf16, #tpu.memory_space<vmem>>, vector<16x144xbf16>
    %c0_1 = arith.constant 0 : index
    %c0_2 = arith.constant 0 : index
    %1 = vector.load %arg1[%c0_1, %c0_2] : memref<144x512xbf16, #tpu.memory_space<vmem>>, vector<144x512xbf16>
    %cst = arith.constant dense<0.000000e+00> : vector<16x512xf32>
    %2 = tpu.matmul %0, %1, %cst {dimension_numbers = #tpu.dot_dimension_numbers<[1], [0], [0], [1], [0, 0, 1, 1], [], []>} : vector<16x144xbf16>, vector<144x512xbf16>, vector<16x512xf32> -> vector<16x512xf32>
    %cst_3 = arith.constant dense<0.000000e+00> : vector<16xf32>
    %3 = vector.multi_reduction <add>, %2, %cst_3 [1] : vector<16x512xf32> to vector<16xf32>
    %4 = vector.shape_cast %3 : vector<16xf32> to vector<16x1xf32>
    %cst_4 = arith.constant 0.001953125 : f32
    %5 = vector.broadcast %cst_4 : f32 to vector<16x1xf32>
    %6 = arith.mulf %4, %5 : vector<16x1xf32>
    %7 = arith.mulf %2, %2 : vector<16x512xf32>
    %cst_5 = arith.constant dense<0.000000e+00> : vector<16xf32>
    %8 = vector.multi_reduction <add>, %7, %cst_5 [1] : vector<16x512xf32> to vector<16xf32>
    %9 = vector.shape_cast %8 : vector<16xf32> to vector<16x1xf32>
    %cst_6 = arith.constant 0.001953125 : f32
    %10 = vector.broadcast %cst_6 : f32 to vector<16x1xf32>
    %11 = arith.mulf %9, %10 : vector<16x1xf32>
    %12 = arith.mulf %6, %6 : vector<16x1xf32>
    %13 = arith.subf %11, %12 : vector<16x1xf32>
    %14 = vector.broadcast %6 : vector<16x1xf32> to vector<16x512xf32>
    %15 = arith.subf %2, %14 : vector<16x512xf32>
    %cst_7 = arith.constant 9.99999974E-6 : f32
    %16 = vector.broadcast %cst_7 : f32 to vector<16x1xf32>
    %17 = arith.addf %13, %16 : vector<16x1xf32>
    %18 = math.rsqrt %17 : vector<16x1xf32>
    %19 = vector.broadcast %18 : vector<16x1xf32> to vector<16x512xf32>
    %20 = arith.mulf %15, %19 : vector<16x512xf32>
    %21 = vector.extract_strided_slice %20 {offsets = [0, 0], sizes = [8, 512], strides = [1, 1]} : vector<16x512xf32> to vector<8x512xf32>
    %22 = vector.extract_strided_slice %20 {offsets = [8, 0], sizes = [8, 512], strides = [1, 1]} : vector<16x512xf32> to vector<8x512xf32>
    %23 = arith.negf %22 : vector<8x512xf32>
    %24 = math.exp %23 : vector<8x512xf32>
    %cst_8 = arith.constant 1.000000e+00 : f32
    %25 = vector.broadcast %cst_8 : f32 to vector<8x512xf32>
    %26 = arith.addf %25, %24 : vector<8x512xf32>
    %27 = arith.divf %25, %26 : vector<8x512xf32>
    %28 = arith.mulf %21, %27 : vector<8x512xf32>
    %29 = arith.truncf %28 : vector<8x512xf32> to vector<8x512xbf16>
    %c0_9 = arith.constant 0 : index
    %c0_10 = arith.constant 0 : index
    %30 = vector.load %arg2[%c0_9, %c0_10] : memref<8x512xbf16, #tpu.memory_space<vmem>>, vector<8x512xbf16>
    tpu.vector_store %arg2[%c0_9, %c0_10], %29 {strides = array<i32>} : memref<8x512xbf16, #tpu.memory_space<vmem>>, vector<8x512xbf16>,
    return
  }
}

module attributes {stable_mosaic.version = 11 : i64} {
  func.func @_wx_bn_glu_kernel(%arg0: memref<8x72xbf16, #tpu.memory_space<vmem>>, %arg1: memref<72x2048xbf16, #tpu.memory_space<vmem>>, %arg2: memref<4x2048xbf16, #tpu.memory_space<vmem>>) attributes {dimension_semantics = [], scalar_prefetch = 0 : i64, scratch_operands = 0 : i64, tpu.core_type = #tpu.core_type<tc>} {
    %c0 = arith.constant 0 : index
    %c0_0 = arith.constant 0 : index
    %0 = vector.load %arg0[%c0, %c0_0] : memref<8x72xbf16, #tpu.memory_space<vmem>>, vector<8x72xbf16>
    %c0_1 = arith.constant 0 : index
    %c0_2 = arith.constant 0 : index
    %1 = vector.load %arg1[%c0_1, %c0_2] : memref<72x2048xbf16, #tpu.memory_space<vmem>>, vector<72x2048xbf16>
    %cst = arith.constant dense<0.000000e+00> : vector<8x2048xf32>
    %2 = tpu.matmul %0, %1, %cst {dimension_numbers = #tpu.dot_dimension_numbers<[1], [0], [0], [1], [0, 0, 1, 1], [], []>} : vector<8x72xbf16>, vector<72x2048xbf16>, vector<8x2048xf32> -> vector<8x2048xf32>
    %cst_3 = arith.constant dense<0.000000e+00> : vector<8xf32>
    %3 = vector.multi_reduction <add>, %2, %cst_3 [1] : vector<8x2048xf32> to vector<8xf32>
    %4 = vector.shape_cast %3 : vector<8xf32> to vector<8x1xf32>
    %cst_4 = arith.constant 4.8828125E-4 : f32
    %5 = vector.broadcast %cst_4 : f32 to vector<8x1xf32>
    %6 = arith.mulf %4, %5 : vector<8x1xf32>
    %7 = arith.mulf %2, %2 : vector<8x2048xf32>
    %cst_5 = arith.constant dense<0.000000e+00> : vector<8xf32>
    %8 = vector.multi_reduction <add>, %7, %cst_5 [1] : vector<8x2048xf32> to vector<8xf32>
    %9 = vector.shape_cast %8 : vector<8xf32> to vector<8x1xf32>
    %cst_6 = arith.constant 4.8828125E-4 : f32
    %10 = vector.broadcast %cst_6 : f32 to vector<8x1xf32>
    %11 = arith.mulf %9, %10 : vector<8x1xf32>
    %12 = arith.mulf %6, %6 : vector<8x1xf32>
    %13 = arith.subf %11, %12 : vector<8x1xf32>
    %14 = vector.broadcast %6 : vector<8x1xf32> to vector<8x2048xf32>
    %15 = arith.subf %2, %14 : vector<8x2048xf32>
    %cst_7 = arith.constant 9.99999974E-6 : f32
    %16 = vector.broadcast %cst_7 : f32 to vector<8x1xf32>
    %17 = arith.addf %13, %16 : vector<8x1xf32>
    %18 = math.rsqrt %17 : vector<8x1xf32>
    %19 = vector.broadcast %18 : vector<8x1xf32> to vector<8x2048xf32>
    %20 = arith.mulf %15, %19 : vector<8x2048xf32>
    %21 = vector.extract_strided_slice %20 {offsets = [0, 0], sizes = [4, 2048], strides = [1, 1]} : vector<8x2048xf32> to vector<4x2048xf32>
    %22 = vector.extract_strided_slice %20 {offsets = [4, 0], sizes = [4, 2048], strides = [1, 1]} : vector<8x2048xf32> to vector<4x2048xf32>
    %23 = arith.negf %22 : vector<4x2048xf32>
    %24 = math.exp %23 : vector<4x2048xf32>
    %cst_8 = arith.constant 1.000000e+00 : f32
    %25 = vector.broadcast %cst_8 : f32 to vector<4x2048xf32>
    %26 = arith.addf %25, %24 : vector<4x2048xf32>
    %27 = arith.divf %25, %26 : vector<4x2048xf32>
    %28 = arith.mulf %21, %27 : vector<4x2048xf32>
    %29 = arith.truncf %28 : vector<4x2048xf32> to vector<4x2048xbf16>
    %c0_9 = arith.constant 0 : index
    %c0_10 = arith.constant 0 : index
    %30 = vector.load %arg2[%c0_9, %c0_10] : memref<4x2048xbf16, #tpu.memory_space<vmem>>, vector<4x2048xbf16>
    tpu.vector_store %arg2[%c0_9, %c0_10], %29 {strides = array<i32>} : memref<4x2048xbf16, #tpu.memory_space<vmem>>, vector<4x2048xbf16>,
    return
  }
}

module attributes {stable_mosaic.version = 11 : i64} {
  func.func @_wx_bn_glu_kernel(%arg0: memref<4x36xbf16, #tpu.memory_space<vmem>>, %arg1: memref<36x8192xbf16, #tpu.memory_space<vmem>>, %arg2: memref<2x8192xbf16, #tpu.memory_space<vmem>>) attributes {dimension_semantics = [], scalar_prefetch = 0 : i64, scratch_operands = 0 : i64, tpu.core_type = #tpu.core_type<tc>} {
    %c0 = arith.constant 0 : index
    %c0_0 = arith.constant 0 : index
    %0 = vector.load %arg0[%c0, %c0_0] : memref<4x36xbf16, #tpu.memory_space<vmem>>, vector<4x36xbf16>
    %c0_1 = arith.constant 0 : index
    %c0_2 = arith.constant 0 : index
    %1 = vector.load %arg1[%c0_1, %c0_2] : memref<36x8192xbf16, #tpu.memory_space<vmem>>, vector<36x8192xbf16>
    %cst = arith.constant dense<0.000000e+00> : vector<4x8192xf32>
    %2 = tpu.matmul %0, %1, %cst {dimension_numbers = #tpu.dot_dimension_numbers<[1], [0], [0], [1], [0, 0, 1, 1], [], []>} : vector<4x36xbf16>, vector<36x8192xbf16>, vector<4x8192xf32> -> vector<4x8192xf32>
    %cst_3 = arith.constant dense<0.000000e+00> : vector<4xf32>
    %3 = vector.multi_reduction <add>, %2, %cst_3 [1] : vector<4x8192xf32> to vector<4xf32>
    %4 = vector.shape_cast %3 : vector<4xf32> to vector<4x1xf32>
    %cst_4 = arith.constant 1.22070313E-4 : f32
    %5 = vector.broadcast %cst_4 : f32 to vector<4x1xf32>
    %6 = arith.mulf %4, %5 : vector<4x1xf32>
    %7 = arith.mulf %2, %2 : vector<4x8192xf32>
    %cst_5 = arith.constant dense<0.000000e+00> : vector<4xf32>
    %8 = vector.multi_reduction <add>, %7, %cst_5 [1] : vector<4x8192xf32> to vector<4xf32>
    %9 = vector.shape_cast %8 : vector<4xf32> to vector<4x1xf32>
    %cst_6 = arith.constant 1.22070313E-4 : f32
    %10 = vector.broadcast %cst_6 : f32 to vector<4x1xf32>
    %11 = arith.mulf %9, %10 : vector<4x1xf32>
    %12 = arith.mulf %6, %6 : vector<4x1xf32>
    %13 = arith.subf %11, %12 : vector<4x1xf32>
    %14 = vector.broadcast %6 : vector<4x1xf32> to vector<4x8192xf32>
    %15 = arith.subf %2, %14 : vector<4x8192xf32>
    %cst_7 = arith.constant 9.99999974E-6 : f32
    %16 = vector.broadcast %cst_7 : f32 to vector<4x1xf32>
    %17 = arith.addf %13, %16 : vector<4x1xf32>
    %18 = math.rsqrt %17 : vector<4x1xf32>
    %19 = vector.broadcast %18 : vector<4x1xf32> to vector<4x8192xf32>
    %20 = arith.mulf %15, %19 : vector<4x8192xf32>
    %21 = vector.extract_strided_slice %20 {offsets = [0, 0], sizes = [2, 8192], strides = [1, 1]} : vector<4x8192xf32> to vector<2x8192xf32>
    %22 = vector.extract_strided_slice %20 {offsets = [2, 0], sizes = [2, 8192], strides = [1, 1]} : vector<4x8192xf32> to vector<2x8192xf32>
    %23 = arith.negf %22 : vector<2x8192xf32>
    %24 = math.exp %23 : vector<2x8192xf32>
    %cst_8 = arith.constant 1.000000e+00 : f32
    %25 = vector.broadcast %cst_8 : f32 to vector<2x8192xf32>
    %26 = arith.addf %25, %24 : vector<2x8192xf32>
    %27 = arith.divf %25, %26 : vector<2x8192xf32>
    %28 = arith.mulf %21, %27 : vector<2x8192xf32>
    %29 = arith.truncf %28 : vector<2x8192xf32> to vector<2x8192xbf16>
    %c0_9 = arith.constant 0 : index
    %c0_10 = arith.constant 0 : index
    %30 = vector.load %arg2[%c0_9, %c0_10] : memref<2x8192xbf16, #tpu.memory_space<vmem>>, vector<2x8192xbf16>
    tpu.vector_store %arg2[%c0_9, %c0_10], %29 {strides = array<i32>} : memref<2x8192xbf16, #tpu.memory_space<vmem>>, vector<2x8192xbf16>,
    return
  }
}

</mosaic_0001>

<llo_original>
// kernel: init_stage_g_forward.5
$region0: #{init_stage_g_forward.5}
  #allocation0 [shape = 'u32[]', space=smem, size = 0x4, offset = 0x4, fixed_abs, tag = 'smem constant byte address 0x4 - core index']
  #allocation1 [shape = 'u32[72,128]{1,0:T(1,128)}', space=vmem, size = 0x9000, scoped, tag = 'internal scratch']
  %s0 = inlined_call_operand.vmem [shape: bf16[1024,32], index: 0, kind: input, shape index: {}]
  %s1 = inlined_call_operand.vmem [shape: bf16[32,2], index: 1, kind: input, shape index: {}]
  %s2 = inlined_call_operand.vmem [shape: bf16[512,2], index: 2, kind: output, shape index: {}]
  %s3 = sld [smem:[#allocation0]]
  $region18: #{init_stage_g_forward.5} parent=0
    _
  %s5 = ssub.s32 1, %s3
  %s6 = scalar_select 0, %s5, %s3
  // Predicated region
  $region2: #{init_stage_g_forward.5} parent=0 // pred_check
    _
  $region3: #{init_stage_g_forward.5} parent=0 // pred_check_branch
    %8 = sbr.rel (0) target = $region5
  $region4: #{init_stage_g_forward.5} parent=0 // pred_region
    _
  $region5: #{init_stage_g_forward.5} parent=0 // pred_fallthru
    _
  // Predicated region
  $region6: #{init_stage_g_forward.5} parent=0 // pred_check
    _
  $region7: #{init_stage_g_forward.5} parent=0 // pred_check_branch
    %10 = sbr.rel (0) target = $region9
  $region8: #{init_stage_g_forward.5} parent=0 // pred_region
    _
  $region9: #{init_stage_g_forward.5} parent=0 // pred_fallthru
    _
  %v12 = vld [vmem:[%s0] sm:$0xf]
  %v13 = vld [vmem:[%s0 + $0x4] sm:$0xf]
  %v14 = vld [vmem:[%s0 + $0x8] sm:$0xf]
  %v15 = vld [vmem:[%s0 + $0xc] sm:$0xf]
  %v16 = vld [vmem:[%s0 + $0x10] sm:$0xf]
  %v17 = vld [vmem:[%s0 + $0x14] sm:$0xf]
  %v18 = vld [vmem:[%s0 + $0x18] sm:$0xf]
  %v19 = vld [vmem:[%s0 + $0x1c] sm:$0xf]
  %v20 = vld [vmem:[%s0 + $0x20] sm:$0xf]
  %v21 = vld [vmem:[%s0 + $0x24] sm:$0xf]
  %v22 = vld [vmem:[%s0 + $0x28] sm:$0xf]
  %v23 = vld [vmem:[%s0 + $0x2c] sm:$0xf]
  %v24 = vld [vmem:[%s0 + $0x30] sm:$0xf]
  %v25 = vld [vmem:[%s0 + $0x34] sm:$0xf]
  %v26 = vld [vmem:[%s0 + $0x38] sm:$0xf]
  %v27 = vld [vmem:[%s0 + $0x3c] sm:$0xf]
  %v28 = vld [vmem:[%s0 + $0x40] sm:$0xf]
  %v29 = vld [vmem:[%s0 + $0x44] sm:$0xf]
  %v30 = vld [vmem:[%s0 + $0x48] sm:$0xf]
  %v31 = vld [vmem:[%s0 + $0x4c] sm:$0xf]
  %v32 = vld [vmem:[%s0 + $0x50] sm:$0xf]
  %v33 = vld [vmem:[%s0 + $0x54] sm:$0xf]
  %v34 = vld [vmem:[%s0 + $0x58] sm:$0xf]
  %v35 = vld [vmem:[%s0 + $0x5c] sm:$0xf]
  %v36 = vld [vmem:[%s0 + $0x60] sm:$0xf]
  %v37 = vld [vmem:[%s0 + $0x64] sm:$0xf]
  %v38 = vld [vmem:[%s0 + $0x68] sm:$0xf]
  %v39 = vld [vmem:[%s0 + $0x6c] sm:$0xf]
  %v40 = vld [vmem:[%s0 + $0x70] sm:$0xf]
  %v41 = vld [vmem:[%s0 + $0x74] sm:$0xf]
  %v42 = vld [vmem:[%s0 + $0x78] sm:$0xf]
  %v43 = vld [vmem:[%s0 + $0x7c] sm:$0xf]
  %v44 = vld [vmem:[%s0 + $0x80] sm:$0xf]
  %v45 = vld [vmem:[%s0 + $0x84] sm:$0xf]
  %v46 = vld [vmem:[%s0 + $0x88] sm:$0xf]
  %v47 = vld [vmem:[%s0 + $0x8c] sm:$0xf]
  %v48 = vld [vmem:[%s0 + $0x90] sm:$0xf]
  %v49 = vld [vmem:[%s0 + $0x94] sm:$0xf]
  %v50 = vld [vmem:[%s0 + $0x98] sm:$0xf]
  %v51 = vld [vmem:[%s0 + $0x9c] sm:$0xf]
  %v52 = vld [vmem:[%s0 + $0xa0] sm:$0xf]
  %v53 = vld [vmem:[%s0 + $0xa4] sm:$0xf]
  %v54 = vld [vmem:[%s0 + $0xa8] sm:$0xf]
  %v55 = vld [vmem:[%s0 + $0xac] sm:$0xf]
  %v56 = vld [vmem:[%s0 + $0xb0] sm:$0xf]
  %v57 = vld [vmem:[%s0 + $0xb4] sm:$0xf]
  %v58 = vld [vmem:[%s0 + $0xb8] sm:$0xf]
  %v59 = vld [vmem:[%s0 + $0xbc] sm:$0xf]
  %v60 = vld [vmem:[%s0 + $0xc0] sm:$0xf]
  %v61 = vld [vmem:[%s0 + $0xc4] sm:$0xf]
  %v62 = vld [vmem:[%s0 + $0xc8] sm:$0xf]
  %v63 = vld [vmem:[%s0 + $0xcc] sm:$0xf]
  %v64 = vld [vmem:[%s0 + $0xd0] sm:$0xf]
  %v65 = vld [vmem:[%s0 + $0xd4] sm:$0xf]
  %v66 = vld [vmem:[%s0 + $0xd8] sm:$0xf]
  %v67 = vld [vmem:[%s0 + $0xdc] sm:$0xf]
  %v68 = vld [vmem:[%s0 + $0xe0] sm:$0xf]
  %v69 = vld [vmem:[%s0 + $0xe4] sm:$0xf]
  %v70 = vld [vmem:[%s0 + $0xe8] sm:$0xf]
  %v71 = vld [vmem:[%s0 + $0xec] sm:$0xf]
  %v72 = vld [vmem:[%s0 + $0xf0] sm:$0xf]
  %v73 = vld [vmem:[%s0 + $0xf4] sm:$0xf]
  %v74 = vld [vmem:[%s0 + $0xf8] sm:$0xf]
  %v75 = vld [vmem:[%s0 + $0xfc] sm:$0xf]
  %v76 = vld [vmem:[%s0 + $0x100] sm:$0xf]
  %v77 = vld [vmem:[%s0 + $0x104] sm:$0xf]
  %v78 = vld [vmem:[%s0 + $0x108] sm:$0xf]
  %v79 = vld [vmem:[%s0 + $0x10c] sm:$0xf]
  %v80 = vld [vmem:[%s0 + $0x110] sm:$0xf]
  %v81 = vld [vmem:[%s0 + $0x114] sm:$0xf]
  %v82 = vld [vmem:[%s0 + $0x118] sm:$0xf]
  %v83 = vld [vmem:[%s0 + $0x11c] sm:$0xf]
  %v84 = vld [vmem:[%s0 + $0x120] sm:$0xf]
  %v85 = vld [vmem:[%s0 + $0x124] sm:$0xf]
  %v86 = vld [vmem:[%s0 + $0x128] sm:$0xf]
  %v87 = vld [vmem:[%s0 + $0x12c] sm:$0xf]
  %v88 = vld [vmem:[%s0 + $0x130] sm:$0xf]
  %v89 = vld [vmem:[%s0 + $0x134] sm:$0xf]
  %v90 = vld [vmem:[%s0 + $0x138] sm:$0xf]
  %v91 = vld [vmem:[%s0 + $0x13c] sm:$0xf]
  %v92 = vld [vmem:[%s0 + $0x140] sm:$0xf]
  %v93 = vld [vmem:[%s0 + $0x144] sm:$0xf]
  %v94 = vld [vmem:[%s0 + $0x148] sm:$0xf]
  %v95 = vld [vmem:[%s0 + $0x14c] sm:$0xf]
  %v96 = vld [vmem:[%s0 + $0x150] sm:$0xf]
  %v97 = vld [vmem:[%s0 + $0x154] sm:$0xf]
  %v98 = vld [vmem:[%s0 + $0x158] sm:$0xf]
  %v99 = vld [vmem:[%s0 + $0x15c] sm:$0xf]
  %v100 = vld [vmem:[%s0 + $0x160] sm:$0xf]
  %v101 = vld [vmem:[%s0 + $0x164] sm:$0xf]
  %v102 = vld [vmem:[%s0 + $0x168] sm:$0xf]
  %v103 = vld [vmem:[%s0 + $0x16c] sm:$0xf]
  %v104 = vld [vmem:[%s0 + $0x170] sm:$0xf]
  %v105 = vld [vmem:[%s0 + $0x174] sm:$0xf]
  %v106 = vld [vmem:[%s0 + $0x178] sm:$0xf]
  %v107 = vld [vmem:[%s0 + $0x17c] sm:$0xf]
  %v108 = vld [vmem:[%s0 + $0x180] sm:$0xf]
  %v109 = vld [vmem:[%s0 + $0x184] sm:$0xf]
  %v110 = vld [vmem:[%s0 + $0x188] sm:$0xf]
  %v111 = vld [vmem:[%s0 + $0x18c] sm:$0xf]
  %v112 = vld [vmem:[%s0 + $0x190] sm:$0xf]
  %v113 = vld [vmem:[%s0 + $0x194] sm:$0xf]
  %v114 = vld [vmem:[%s0 + $0x198] sm:$0xf]
  %v115 = vld [vmem:[%s0 + $0x19c] sm:$0xf]
  %v116 = vld [vmem:[%s0 + $0x1a0] sm:$0xf]
  %v117 = vld [vmem:[%s0 + $0x1a4] sm:$0xf]
  %v118 = vld [vmem:[%s0 + $0x1a8] sm:$0xf]
  %v119 = vld [vmem:[%s0 + $0x1ac] sm:$0xf]
  %v120 = vld [vmem:[%s0 + $0x1b0] sm:$0xf]
  %v121 = vld [vmem:[%s0 + $0x1b4] sm:$0xf]
  %v122 = vld [vmem:[%s0 + $0x1b8] sm:$0xf]
  %v123 = vld [vmem:[%s0 + $0x1bc] sm:$0xf]
  %v124 = vld [vmem:[%s0 + $0x1c0] sm:$0xf]
  %v125 = vld [vmem:[%s0 + $0x1c4] sm:$0xf]
  %v126 = vld [vmem:[%s0 + $0x1c8] sm:$0xf]
  %v127 = vld [vmem:[%s0 + $0x1cc] sm:$0xf]
  %v128 = vld [vmem:[%s0 + $0x1d0] sm:$0xf]
  %v129 = vld [vmem:[%s0 + $0x1d4] sm:$0xf]
  %v130 = vld [vmem:[%s0 + $0x1d8] sm:$0xf]
  %v131 = vld [vmem:[%s0 + $0x1dc] sm:$0xf]
  %v132 = vld [vmem:[%s0 + $0x1e0] sm:$0xf]
  %v133 = vld [vmem:[%s0 + $0x1e4] sm:$0xf]
  %v134 = vld [vmem:[%s0 + $0x1e8] sm:$0xf]
  %v135 = vld [vmem:[%s0 + $0x1ec] sm:$0xf]
  %v136 = vld [vmem:[%s0 + $0x1f0] sm:$0xf]
  %v137 = vld [vmem:[%s0 + $0x1f4] sm:$0xf]
  %v138 = vld [vmem:[%s0 + $0x1f8] sm:$0xf]
  %v139 = vld [vmem:[%s0 + $0x1fc] sm:$0xf]
  %v140 = vld [vmem:[%s1] sm:$0xf]
  %v141 = vld [vmem:[%s1 + $0x4] sm:$0xf]
  %v142 = vld [vmem:[%s1 + $0x8] sm:$0xf]
  %v143 = vld [vmem:[%s1 + $0xc] sm:$0xf]
  %v272 = vunpack.c.l.b16 %v12
  %v273 = vunpack.c.l.b16 %v13
  %v274 = vunpack.c.l.b16 %v14
  %v275 = vunpack.c.l.b16 %v15
  %v276 = vunpack.c.l.b16 %v16
  %v277 = vunpack.c.l.b16 %v17
  %v278 = vunpack.c.l.b16 %v18
  %v279 = vunpack.c.l.b16 %v19
  %v280 = vunpack.c.l.b16 %v20
  %v281 = vunpack.c.l.b16 %v21
  %v282 = vunpack.c.l.b16 %v22
  %v283 = vunpack.c.l.b16 %v23
  %v284 = vunpack.c.l.b16 %v24
  %v285 = vunpack.c.l.b16 %v25
  %v286 = vunpack.c.l.b16 %v26
  %v287 = vunpack.c.l.b16 %v27
  %v288 = vunpack.c.l.b16 %v28
  %v289 = vunpack.c.l.b16 %v29
  %v290 = vunpack.c.l.b16 %v30
  %v291 = vunpack.c.l.b16 %v31
  %v292 = vunpack.c.l.b16 %v32
  %v293 = vunpack.c.l.b16 %v33
  %v294 = vunpack.c.l.b16 %v34
  %v295 = vunpack.c.l.b16 %v35
  %v296 = vunpack.c.l.b16 %v36
  %v297 = vunpack.c.l.b16 %v37
  %v298 = vunpack.c.l.b16 %v38
  %v299 = vunpack.c.l.b16 %v39
  %v300 = vunpack.c.l.b16 %v40
  %v301 = vunpack.c.l.b16 %v41
  %v302 = vunpack.c.l.b16 %v42
  %v303 = vunpack.c.l.b16 %v43
  %v304 = vunpack.c.l.b16 %v44
  %v305 = vunpack.c.l.b16 %v45
  %v306 = vunpack.c.l.b16 %v46
  %v307 = vunpack.c.l.b16 %v47
  %v308 = vunpack.c.l.b16 %v48
  %v309 = vunpack.c.l.b16 %v49
  %v310 = vunpack.c.l.b16 %v50
  %v311 = vunpack.c.l.b16 %v51
  %v312 = vunpack.c.l.b16 %v52
  %v313 = vunpack.c.l.b16 %v53
  %v314 = vunpack.c.l.b16 %v54
  %v315 = vunpack.c.l.b16 %v55
  %v316 = vunpack.c.l.b16 %v56
  %v317 = vunpack.c.l.b16 %v57
  %v318 = vunpack.c.l.b16 %v58
  %v319 = vunpack.c.l.b16 %v59
  %v320 = vunpack.c.l.b16 %v60
  %v321 = vunpack.c.l.b16 %v61
  %v322 = vunpack.c.l.b16 %v62
  %v323 = vunpack.c.l.b16 %v63
  %v324 = vunpack.c.l.b16 %v64
  %v325 = vunpack.c.l.b16 %v65
  %v326 = vunpack.c.l.b16 %v66
  %v327 = vunpack.c.l.b16 %v67
  %v328 = vunpack.c.l.b16 %v68
  %v329 = vunpack.c.l.b16 %v69
  %v330 = vunpack.c.l.b16 %v70
  %v331 = vunpack.c.l.b16 %v71
  %v332 = vunpack.c.l.b16 %v72
  %v333 = vunpack.c.l.b16 %v73
  %v334 = vunpack.c.l.b16 %v74
  %v335 = vunpack.c.l.b16 %v75
  %v336 = vunpack.c.l.b16 %v76
  %v337 = vunpack.c.l.b16 %v77
  %v338 = vunpack.c.l.b16 %v78
  %v339 = vunpack.c.l.b16 %v79
  %v340 = vunpack.c.l.b16 %v80
  %v341 = vunpack.c.l.b16 %v81
  %v342 = vunpack.c.l.b16 %v82
  %v343 = vunpack.c.l.b16 %v83
  %v344 = vunpack.c.l.b16 %v84
  %v345 = vunpack.c.l.b16 %v85
  %v346 = vunpack.c.l.b16 %v86
  %v347 = vunpack.c.l.b16 %v87
  %v348 = vunpack.c.l.b16 %v88
  %v349 = vunpack.c.l.b16 %v89
  %v350 = vunpack.c.l.b16 %v90
  %v351 = vunpack.c.l.b16 %v91
  %v352 = vunpack.c.l.b16 %v92
  %v353 = vunpack.c.l.b16 %v93
  %v354 = vunpack.c.l.b16 %v94
  %v355 = vunpack.c.l.b16 %v95
  %v356 = vunpack.c.l.b16 %v96
  %v357 = vunpack.c.l.b16 %v97
  %v358 = vunpack.c.l.b16 %v98
  %v359 = vunpack.c.l.b16 %v99
  %v360 = vunpack.c.l.b16 %v100
  %v361 = vunpack.c.l.b16 %v101
  %v362 = vunpack.c.l.b16 %v102
  %v363 = vunpack.c.l.b16 %v103
  %v364 = vunpack.c.l.b16 %v104
  %v365 = vunpack.c.l.b16 %v105
  %v366 = vunpack.c.l.b16 %v106
  %v367 = vunpack.c.l.b16 %v107
  %v368 = vunpack.c.l.b16 %v108
  %v369 = vunpack.c.l.b16 %v109
  %v370 = vunpack.c.l.b16 %v110
  %v371 = vunpack.c.l.b16 %v111
  %v372 = vunpack.c.l.b16 %v112
  %v373 = vunpack.c.l.b16 %v113
  %v374 = vunpack.c.l.b16 %v114
  %v375 = vunpack.c.l.b16 %v115
  %v376 = vunpack.c.l.b16 %v116
  %v377 = vunpack.c.l.b16 %v117
  %v378 = vunpack.c.l.b16 %v118
  %v379 = vunpack.c.l.b16 %v119
  %v380 = vunpack.c.l.b16 %v120
  %v381 = vunpack.c.l.b16 %v121
  %v382 = vunpack.c.l.b16 %v122
  %v383 = vunpack.c.l.b16 %v123
  %v384 = vunpack.c.l.b16 %v124
  %v385 = vunpack.c.l.b16 %v125
  %v386 = vunpack.c.l.b16 %v126
  %v387 = vunpack.c.l.b16 %v127
  %v388 = vunpack.c.l.b16 %v128
  %v389 = vunpack.c.l.b16 %v129
  %v390 = vunpack.c.l.b16 %v130
  %v391 = vunpack.c.l.b16 %v131
  %v392 = vunpack.c.l.b16 %v132
  %v393 = vunpack.c.l.b16 %v133
  %v394 = vunpack.c.l.b16 %v134
  %v395 = vunpack.c.l.b16 %v135
  %v396 = vunpack.c.l.b16 %v136
  %v397 = vunpack.c.l.b16 %v137
  %v398 = vunpack.c.l.b16 %v138
  %v399 = vunpack.c.l.b16 %v139
  %v400 = vpack.c.b16 %v273, %v272
  %v401 = vpack.c.b16 %v275, %v274
  %v402 = vpack.c.b16 %v277, %v276
  %v403 = vpack.c.b16 %v279, %v278
  %v404 = vpack.c.b16 %v281, %v280
  %v405 = vpack.c.b16 %v283, %v282
  %v406 = vpack.c.b16 %v285, %v284
  %v407 = vpack.c.b16 %v287, %v286
  %v408 = vpack.c.b16 %v289, %v288
  %v409 = vpack.c.b16 %v291, %v290
  %v410 = vpack.c.b16 %v293, %v292
  %v411 = vpack.c.b16 %v295, %v294
  %v412 = vpack.c.b16 %v297, %v296
  %v413 = vpack.c.b16 %v299, %v298
  %v414 = vpack.c.b16 %v301, %v300
  %v415 = vpack.c.b16 %v303, %v302
  %v416 = vpack.c.b16 %v305, %v304
  %v417 = vpack.c.b16 %v307, %v306
  %v418 = vpack.c.b16 %v309, %v308
  %v419 = vpack.c.b16 %v311, %v310
  %v420 = vpack.c.b16 %v313, %v312
  %v421 = vpack.c.b16 %v315, %v314
  %v422 = vpack.c.b16 %v317, %v316
  %v423 = vpack.c.b16 %v319, %v318
  %v424 = vpack.c.b16 %v321, %v320
  %v425 = vpack.c.b16 %v323, %v322
  %v426 = vpack.c.b16 %v325, %v324
  %v427 = vpack.c.b16 %v327, %v326
  %v428 = vpack.c.b16 %v329, %v328
  %v429 = vpack.c.b16 %v331, %v330
  %v430 = vpack.c.b16 %v333, %v332
  %v431 = vpack.c.b16 %v335, %v334
  %v432 = vpack.c.b16 %v337, %v336
  %v433 = vpack.c.b16 %v339, %v338
  %v434 = vpack.c.b16 %v341, %v340
  %v435 = vpack.c.b16 %v343, %v342
  %v436 = vpack.c.b16 %v345, %v344
  %v437 = vpack.c.b16 %v347, %v346
  %v438 = vpack.c.b16 %v349, %v348
  %v439 = vpack.c.b16 %v351, %v350
  %v440 = vpack.c.b16 %v353, %v352
  %v441 = vpack.c.b16 %v355, %v354
  %v442 = vpack.c.b16 %v357, %v356
  %v443 = vpack.c.b16 %v359, %v358
  %v444 = vpack.c.b16 %v361, %v360
  %v445 = vpack.c.b16 %v363, %v362
  %v446 = vpack.c.b16 %v365, %v364
  %v447 = vpack.c.b16 %v367, %v366
  %v448 = vpack.c.b16 %v369, %v368
  %v449 = vpack.c.b16 %v371, %v370
  %v450 = vpack.c.b16 %v373, %v372
  %v451 = vpack.c.b16 %v375, %v374
  %v452 = vpack.c.b16 %v377, %v376
  %v453 = vpack.c.b16 %v379, %v378
  %v454 = vpack.c.b16 %v381, %v380
  %v455 = vpack.c.b16 %v383, %v382
  %v456 = vpack.c.b16 %v385, %v384
  %v457 = vpack.c.b16 %v387, %v386
  %v458 = vpack.c.b16 %v389, %v388
  %v459 = vpack.c.b16 %v391, %v390
  %v460 = vpack.c.b16 %v393, %v392
  %v461 = vpack.c.b16 %v395, %v394
  %v462 = vpack.c.b16 %v397, %v396
  %v463 = vpack.c.b16 %v399, %v398
  %v468 = vunpack.c.l.b16 %v140
  %v469 = vunpack.c.l.b16 %v141
  %v470 = vunpack.c.l.b16 %v142
  %v471 = vunpack.c.l.b16 %v143
  %v472 = vpack.c.b16 %v469, %v468
  %v473 = vpack.c.b16 %v471, %v470
  %vm476 = vcmask 261120
  %v478 = vsel %vm476, %v400, 0
  %v481 = vsel %vm476, %v401, 0
  %v484 = vsel %vm476, %v402, 0
  %v487 = vsel %vm476, %v403, 0
  %v490 = vsel %vm476, %v404, 0
  %v493 = vsel %vm476, %v405, 0
  %v496 = vsel %vm476, %v406, 0
  %v499 = vsel %vm476, %v407, 0
  %v502 = vsel %vm476, %v408, 0
  %v505 = vsel %vm476, %v409, 0
  %v508 = vsel %vm476, %v410, 0
  %v511 = vsel %vm476, %v411, 0
  %v514 = vsel %vm476, %v412, 0
  %v517 = vsel %vm476, %v413, 0
  %v520 = vsel %vm476, %v414, 0
  %v523 = vsel %vm476, %v415, 0
  %v526 = vsel %vm476, %v416, 0
  %v529 = vsel %vm476, %v417, 0
  %v532 = vsel %vm476, %v418, 0
  %v535 = vsel %vm476, %v419, 0
  %v538 = vsel %vm476, %v420, 0
  %v541 = vsel %vm476, %v421, 0
  %v544 = vsel %vm476, %v422, 0
  %v547 = vsel %vm476, %v423, 0
  %v550 = vsel %vm476, %v424, 0
  %v553 = vsel %vm476, %v425, 0
  %v556 = vsel %vm476, %v426, 0
  %v559 = vsel %vm476, %v427, 0
  %v562 = vsel %vm476, %v428, 0
  %v565 = vsel %vm476, %v429, 0
  %v568 = vsel %vm476, %v430, 0
  %v571 = vsel %vm476, %v431, 0
  %v574 = vsel %vm476, %v432, 0
  %v577 = vsel %vm476, %v433, 0
  %v580 = vsel %vm476, %v434, 0
  %v583 = vsel %vm476, %v435, 0
  %v586 = vsel %vm476, %v436, 0
  %v589 = vsel %vm476, %v437, 0
  %v592 = vsel %vm476, %v438, 0
  %v595 = vsel %vm476, %v439, 0
  %v598 = vsel %vm476, %v440, 0
  %v601 = vsel %vm476, %v441, 0
  %v604 = vsel %vm476, %v442, 0
  %v607 = vsel %vm476, %v443, 0
  %v610 = vsel %vm476, %v444, 0
  %v613 = vsel %vm476, %v445, 0
  %v616 = vsel %vm476, %v446, 0
  %v619 = vsel %vm476, %v447, 0
  %v622 = vsel %vm476, %v448, 0
  %v625 = vsel %vm476, %v449, 0
  %v628 = vsel %vm476, %v450, 0
  %v631 = vsel %vm476, %v451, 0
  %v634 = vsel %vm476, %v452, 0
  %v637 = vsel %vm476, %v453, 0
  %v640 = vsel %vm476, %v454, 0
  %v643 = vsel %vm476, %v455, 0
  %v646 = vsel %vm476, %v456, 0
  %v649 = vsel %vm476, %v457, 0
  %v652 = vsel %vm476, %v458, 0
  %v655 = vsel %vm476, %v459, 0
  %v658 = vsel %vm476, %v460, 0
  %v661 = vsel %vm476, %v461, 0
  %v664 = vsel %vm476, %v462, 0
  %v667 = vsel %vm476, %v463, 0
  %669 = vmatpush.bf16.msra.mxu0 0
  %670 = vmatpush.bf16.msra.mxu0 0
  %671 = vmatpush.bf16.msra.mxu0 0
  %672 = vmatpush.bf16.msra.mxu0 0
  %673 = vmatpush.bf16.msra.mxu0 0
  %674 = vmatpush.bf16.msra.mxu0 0
  %675 = vmatpush.bf16.msra.mxu0 %v473
  %676 = vmatpush.bf16.msra.mxu0 %v472
  %677 = vmatmul.bf16.gmra.mxu0 %v478
  %v678 = vpop.f32.mrf.mxu0
  %v679 = vadd.f32 0.0, %v678
  %v680 = vpop.f32.mrf.mxu0
  %v681 = vadd.f32 0.0, %v680
  %682 = vmatmul.bf16.gmra.mxu0 %v481
  %v683 = vpop.f32.mrf.mxu0
  %v684 = vadd.f32 0.0, %v683
  %v685 = vpop.f32.mrf.mxu0
  %v686 = vadd.f32 0.0, %v685
  %687 = vmatmul.bf16.gmra.mxu0 %v484
  %v688 = vpop.f32.mrf.mxu0
  %v689 = vadd.f32 0.0, %v688
  %v690 = vpop.f32.mrf.mxu0
  %v691 = vadd.f32 0.0, %v690
  %692 = vmatmul.bf16.gmra.mxu0 %v487
  %v693 = vpop.f32.mrf.mxu0
  %v694 = vadd.f32 0.0, %v693
  %v695 = vpop.f32.mrf.mxu0
  %v696 = vadd.f32 0.0, %v695
  %697 = vmatmul.bf16.gmra.mxu0 %v490
  %v698 = vpop.f32.mrf.mxu0
  %v699 = vadd.f32 0.0, %v698
  %v700 = vpop.f32.mrf.mxu0
  %v701 = vadd.f32 0.0, %v700
  %702 = vmatmul.bf16.gmra.mxu0 %v493
  %v703 = vpop.f32.mrf.mxu0
  %v704 = vadd.f32 0.0, %v703
  %v705 = vpop.f32.mrf.mxu0
  %v706 = vadd.f32 0.0, %v705
  %707 = vmatmul.bf16.gmra.mxu0 %v496
  %v708 = vpop.f32.mrf.mxu0
  %v709 = vadd.f32 0.0, %v708
  %v710 = vpop.f32.mrf.mxu0
  %v711 = vadd.f32 0.0, %v710
  %712 = vmatmul.bf16.gmra.mxu0 %v499
  %v713 = vpop.f32.mrf.mxu0
  %v714 = vadd.f32 0.0, %v713
  %v715 = vpop.f32.mrf.mxu0
  %v716 = vadd.f32 0.0, %v715
  %717 = vmatmul.bf16.gmra.mxu0 %v502
  %v718 = vpop.f32.mrf.mxu0
  %v719 = vadd.f32 0.0, %v718
  %v720 = vpop.f32.mrf.mxu0
  %v721 = vadd.f32 0.0, %v720
  %722 = vmatmul.bf16.gmra.mxu0 %v505
  %v723 = vpop.f32.mrf.mxu0
  %v724 = vadd.f32 0.0, %v723
  %v725 = vpop.f32.mrf.mxu0
  %v726 = vadd.f32 0.0, %v725
  %727 = vmatmul.bf16.gmra.mxu0 %v508
  %v728 = vpop.f32.mrf.mxu0
  %v729 = vadd.f32 0.0, %v728
  %v730 = vpop.f32.mrf.mxu0
  %v731 = vadd.f32 0.0, %v730
  %732 = vmatmul.bf16.gmra.mxu0 %v511
  %v733 = vpop.f32.mrf.mxu0
  %v734 = vadd.f32 0.0, %v733
  %v735 = vpop.f32.mrf.mxu0
  %v736 = vadd.f32 0.0, %v735
  %737 = vmatmul.bf16.gmra.mxu0 %v514
  %v738 = vpop.f32.mrf.mxu0
  %v739 = vadd.f32 0.0, %v738
  %v740 = vpop.f32.mrf.mxu0
  %v741 = vadd.f32 0.0, %v740
  %742 = vmatmul.bf16.gmra.mxu0 %v517
  %v743 = vpop.f32.mrf.mxu0
  %v744 = vadd.f32 0.0, %v743
  %v745 = vpop.f32.mrf.mxu0
  %v746 = vadd.f32 0.0, %v745
  %747 = vmatmul.bf16.gmra.mxu0 %v520
  %v748 = vpop.f32.mrf.mxu0
  %v749 = vadd.f32 0.0, %v748
  %v750 = vpop.f32.mrf.mxu0
  %v751 = vadd.f32 0.0, %v750
  %752 = vmatmul.bf16.gmra.mxu0 %v523
  %v753 = vpop.f32.mrf.mxu0
  %v754 = vadd.f32 0.0, %v753
  %v755 = vpop.f32.mrf.mxu0
  %v756 = vadd.f32 0.0, %v755
  %757 = vmatmul.bf16.gmra.mxu0 %v526
  %v758 = vpop.f32.mrf.mxu0
  %v759 = vadd.f32 0.0, %v758
  %v760 = vpop.f32.mrf.mxu0
  %v761 = vadd.f32 0.0, %v760
  %762 = vmatmul.bf16.gmra.mxu0 %v529
  %v763 = vpop.f32.mrf.mxu0
  %v764 = vadd.f32 0.0, %v763
  %v765 = vpop.f32.mrf.mxu0
  %v766 = vadd.f32 0.0, %v765
  %767 = vmatmul.bf16.gmra.mxu0 %v532
  %v768 = vpop.f32.mrf.mxu0
  %v769 = vadd.f32 0.0, %v768
  %v770 = vpop.f32.mrf.mxu0
  %v771 = vadd.f32 0.0, %v770
  %772 = vmatmul.bf16.gmra.mxu0 %v535
  %v773 = vpop.f32.mrf.mxu0
  %v774 = vadd.f32 0.0, %v773
  %v775 = vpop.f32.mrf.mxu0
  %v776 = vadd.f32 0.0, %v775
  %777 = vmatmul.bf16.gmra.mxu0 %v538
  %v778 = vpop.f32.mrf.mxu0
  %v779 = vadd.f32 0.0, %v778
  %v780 = vpop.f32.mrf.mxu0
  %v781 = vadd.f32 0.0, %v780
  %782 = vmatmul.bf16.gmra.mxu0 %v541
  %v783 = vpop.f32.mrf.mxu0
  %v784 = vadd.f32 0.0, %v783
  %v785 = vpop.f32.mrf.mxu0
  %v786 = vadd.f32 0.0, %v785
  %787 = vmatmul.bf16.gmra.mxu0 %v544
  %v788 = vpop.f32.mrf.mxu0
  %v789 = vadd.f32 0.0, %v788
  %v790 = vpop.f32.mrf.mxu0
  %v791 = vadd.f32 0.0, %v790
  %792 = vmatmul.bf16.gmra.mxu0 %v547
  %v793 = vpop.f32.mrf.mxu0
  %v794 = vadd.f32 0.0, %v793
  %v795 = vpop.f32.mrf.mxu0
  %v796 = vadd.f32 0.0, %v795
  %797 = vmatmul.bf16.gmra.mxu0 %v550
  %v798 = vpop.f32.mrf.mxu0
  %v799 = vadd.f32 0.0, %v798
  %v800 = vpop.f32.mrf.mxu0
  %v801 = vadd.f32 0.0, %v800
  %802 = vmatmul.bf16.gmra.mxu0 %v553
  %v803 = vpop.f32.mrf.mxu0
  %v804 = vadd.f32 0.0, %v803
  %v805 = vpop.f32.mrf.mxu0
  %v806 = vadd.f32 0.0, %v805
  %807 = vmatmul.bf16.gmra.mxu0 %v556
  %v808 = vpop.f32.mrf.mxu0
  %v809 = vadd.f32 0.0, %v808
  %v810 = vpop.f32.mrf.mxu0
  %v811 = vadd.f32 0.0, %v810
  %812 = vmatmul.bf16.gmra.mxu0 %v559
  %v813 = vpop.f32.mrf.mxu0
  %v814 = vadd.f32 0.0, %v813
  %v815 = vpop.f32.mrf.mxu0
  %v816 = vadd.f32 0.0, %v815
  %817 = vmatmul.bf16.gmra.mxu0 %v562
  %v818 = vpop.f32.mrf.mxu0
  %v819 = vadd.f32 0.0, %v818
  %v820 = vpop.f32.mrf.mxu0
  %v821 = vadd.f32 0.0, %v820
  %822 = vmatmul.bf16.gmra.mxu0 %v565
  %v823 = vpop.f32.mrf.mxu0
  %v824 = vadd.f32 0.0, %v823
  %v825 = vpop.f32.mrf.mxu0
  %v826 = vadd.f32 0.0, %v825
  %827 = vmatmul.bf16.gmra.mxu0 %v568
  %v828 = vpop.f32.mrf.mxu0
  %v829 = vadd.f32 0.0, %v828
  %v830 = vpop.f32.mrf.mxu0
  %v831 = vadd.f32 0.0, %v830
  %832 = vmatmul.bf16.gmra.mxu0 %v571
  %v833 = vpop.f32.mrf.mxu0
  %v834 = vadd.f32 0.0, %v833
  %v835 = vpop.f32.mrf.mxu0
  %v836 = vadd.f32 0.0, %v835
  %837 = vmatmul.bf16.gmra.mxu0 %v574
  %v838 = vpop.f32.mrf.mxu0
  %v839 = vadd.f32 0.0, %v838
  %v840 = vpop.f32.mrf.mxu0
  %v841 = vadd.f32 0.0, %v840
  %842 = vmatmul.bf16.gmra.mxu0 %v577
  %v843 = vpop.f32.mrf.mxu0
  %v844 = vadd.f32 0.0, %v843
  %v845 = vpop.f32.mrf.mxu0
  %v846 = vadd.f32 0.0, %v845
  %847 = vmatmul.bf16.gmra.mxu0 %v580
  %v848 = vpop.f32.mrf.mxu0
  %v849 = vadd.f32 0.0, %v848
  %v850 = vpop.f32.mrf.mxu0
  %v851 = vadd.f32 0.0, %v850
  %852 = vmatmul.bf16.gmra.mxu0 %v583
  %v853 = vpop.f32.mrf.mxu0
  %v854 = vadd.f32 0.0, %v853
  %v855 = vpop.f32.mrf.mxu0
  %v856 = vadd.f32 0.0, %v855
  %857 = vmatmul.bf16.gmra.mxu0 %v586
  %v858 = vpop.f32.mrf.mxu0
  %v859 = vadd.f32 0.0, %v858
  %v860 = vpop.f32.mrf.mxu0
  %v861 = vadd.f32 0.0, %v860
  %862 = vmatmul.bf16.gmra.mxu0 %v589
  %v863 = vpop.f32.mrf.mxu0
  %v864 = vadd.f32 0.0, %v863
  %v865 = vpop.f32.mrf.mxu0
  %v866 = vadd.f32 0.0, %v865
  %867 = vmatmul.bf16.gmra.mxu0 %v592
  %v868 = vpop.f32.mrf.mxu0
  %v869 = vadd.f32 0.0, %v868
  %v870 = vpop.f32.mrf.mxu0
  %v871 = vadd.f32 0.0, %v870
  %872 = vmatmul.bf16.gmra.mxu0 %v595
  %v873 = vpop.f32.mrf.mxu0
  %v874 = vadd.f32 0.0, %v873
  %v875 = vpop.f32.mrf.mxu0
  %v876 = vadd.f32 0.0, %v875
  %877 = vmatmul.bf16.gmra.mxu0 %v598
  %v878 = vpop.f32.mrf.mxu0
  %v879 = vadd.f32 0.0, %v878
  %v880 = vpop.f32.mrf.mxu0
  %v881 = vadd.f32 0.0, %v880
  %882 = vmatmul.bf16.gmra.mxu0 %v601
  %v883 = vpop.f32.mrf.mxu0
  %v884 = vadd.f32 0.0, %v883
  %v885 = vpop.f32.mrf.mxu0
  %v886 = vadd.f32 0.0, %v885
  %887 = vmatmul.bf16.gmra.mxu0 %v604
  %v888 = vpop.f32.mrf.mxu0
  %v889 = vadd.f32 0.0, %v888
  %v890 = vpop.f32.mrf.mxu0
  %v891 = vadd.f32 0.0, %v890
  %892 = vmatmul.bf16.gmra.mxu0 %v607
  %v893 = vpop.f32.mrf.mxu0
  %v894 = vadd.f32 0.0, %v893
  %v895 = vpop.f32.mrf.mxu0
  %v896 = vadd.f32 0.0, %v895
  %897 = vmatmul.bf16.gmra.mxu0 %v610
  %v898 = vpop.f32.mrf.mxu0
  %v899 = vadd.f32 0.0, %v898
  %v900 = vpop.f32.mrf.mxu0
  %v901 = vadd.f32 0.0, %v900
  %902 = vmatmul.bf16.gmra.mxu0 %v613
  %v903 = vpop.f32.mrf.mxu0
  %v904 = vadd.f32 0.0, %v903
  %v905 = vpop.f32.mrf.mxu0
  %v906 = vadd.f32 0.0, %v905
  %907 = vmatmul.bf16.gmra.mxu0 %v616
  %v908 = vpop.f32.mrf.mxu0
  %v909 = vadd.f32 0.0, %v908
  %v910 = vpop.f32.mrf.mxu0
  %v911 = vadd.f32 0.0, %v910
  %912 = vmatmul.bf16.gmra.mxu0 %v619
  %v913 = vpop.f32.mrf.mxu0
  %v914 = vadd.f32 0.0, %v913
  %v915 = vpop.f32.mrf.mxu0
  %v916 = vadd.f32 0.0, %v915
  %917 = vmatmul.bf16.gmra.mxu0 %v622
  %v918 = vpop.f32.mrf.mxu0
  %v919 = vadd.f32 0.0, %v918
  %v920 = vpop.f32.mrf.mxu0
  %v921 = vadd.f32 0.0, %v920
  %922 = vmatmul.bf16.gmra.mxu0 %v625
  %v923 = vpop.f32.mrf.mxu0
  %v924 = vadd.f32 0.0, %v923
  %v925 = vpop.f32.mrf.mxu0
  %v926 = vadd.f32 0.0, %v925
  %927 = vmatmul.bf16.gmra.mxu0 %v628
  %v928 = vpop.f32.mrf.mxu0
  %v929 = vadd.f32 0.0, %v928
  %v930 = vpop.f32.mrf.mxu0
  %v931 = vadd.f32 0.0, %v930
  %932 = vmatmul.bf16.gmra.mxu0 %v631
  %v933 = vpop.f32.mrf.mxu0
  %v934 = vadd.f32 0.0, %v933
  %v935 = vpop.f32.mrf.mxu0
  %v936 = vadd.f32 0.0, %v935
  %937 = vmatmul.bf16.gmra.mxu0 %v634
  %v938 = vpop.f32.mrf.mxu0
  %v939 = vadd.f32 0.0, %v938
  %v940 = vpop.f32.mrf.mxu0
  %v941 = vadd.f32 0.0, %v940
  %942 = vmatmul.bf16.gmra.mxu0 %v637
  %v943 = vpop.f32.mrf.mxu0
  %v944 = vadd.f32 0.0, %v943
  %v945 = vpop.f32.mrf.mxu0
  %v946 = vadd.f32 0.0, %v945
  %947 = vmatmul.bf16.gmra.mxu0 %v640
  %v948 = vpop.f32.mrf.mxu0
  %v949 = vadd.f32 0.0, %v948
  %v950 = vpop.f32.mrf.mxu0
  %v951 = vadd.f32 0.0, %v950
  %952 = vmatmul.bf16.gmra.mxu0 %v643
  %v953 = vpop.f32.mrf.mxu0
  %v954 = vadd.f32 0.0, %v953
  %v955 = vpop.f32.mrf.mxu0
  %v956 = vadd.f32 0.0, %v955
  %957 = vmatmul.bf16.gmra.mxu0 %v646
  %v958 = vpop.f32.mrf.mxu0
  %v959 = vadd.f32 0.0, %v958
  %v960 = vpop.f32.mrf.mxu0
  %v961 = vadd.f32 0.0, %v960
  %962 = vmatmul.bf16.gmra.mxu0 %v649
  %v963 = vpop.f32.mrf.mxu0
  %v964 = vadd.f32 0.0, %v963
  %v965 = vpop.f32.mrf.mxu0
  %v966 = vadd.f32 0.0, %v965
  %967 = vmatmul.bf16.gmra.mxu0 %v652
  %v968 = vpop.f32.mrf.mxu0
  %v969 = vadd.f32 0.0, %v968
  %v970 = vpop.f32.mrf.mxu0
  %v971 = vadd.f32 0.0, %v970
  %972 = vmatmul.bf16.gmra.mxu0 %v655
  %v973 = vpop.f32.mrf.mxu0
  %v974 = vadd.f32 0.0, %v973
  %v975 = vpop.f32.mrf.mxu0
  %v976 = vadd.f32 0.0, %v975
  %977 = vmatmul.bf16.gmra.mxu0 %v658
  %v978 = vpop.f32.mrf.mxu0
  %v979 = vadd.f32 0.0, %v978
  %v980 = vpop.f32.mrf.mxu0
  %v981 = vadd.f32 0.0, %v980
  %982 = vmatmul.bf16.gmra.mxu0 %v661
  %v983 = vpop.f32.mrf.mxu0
  %v984 = vadd.f32 0.0, %v983
  %v985 = vpop.f32.mrf.mxu0
  %v986 = vadd.f32 0.0, %v985
  %987 = vmatmul.bf16.gmra.mxu0 %v664
  %v988 = vpop.f32.mrf.mxu0
  %v989 = vadd.f32 0.0, %v988
  %v990 = vpop.f32.mrf.mxu0
  %v991 = vadd.f32 0.0, %v990
  %992 = vmatmul.bf16.gmra.mxu0 %v667
  %v993 = vpop.f32.mrf.mxu0
  %v994 = vadd.f32 0.0, %v993
  %v995 = vpop.f32.mrf.mxu0
  %v996 = vadd.f32 0.0, %v995
  %997 = vdwg.mxu0
  %vm998 = vcmask 15360
  %v999 = vsel %vm998, %v679, 0.0
  %1000 = vadd.xlane.f32.xlu0 %v999
  %v1001 = vpop.xlane.xlu0 %1000
  %v1002 = vsel %vm998, %v681, 0.0
  %1003 = vadd.xlane.f32.xlu0 %v1002
  %v1004 = vpop.xlane.xlu0 %1003
  %v1005 = vsel %vm998, %v684, 0.0
  %1006 = vadd.xlane.f32.xlu0 %v1005
  %v1007 = vpop.xlane.xlu0 %1006
  %v1008 = vsel %vm998, %v686, 0.0
  %1009 = vadd.xlane.f32.xlu0 %v1008
  %v1010 = vpop.xlane.xlu0 %1009
  %v1011 = vsel %vm998, %v689, 0.0
  %1012 = vadd.xlane.f32.xlu0 %v1011
  %v1013 = vpop.xlane.xlu0 %1012
  %v1014 = vsel %vm998, %v691, 0.0
  %1015 = vadd.xlane.f32.xlu0 %v1014
  %v1016 = vpop.xlane.xlu0 %1015
  %v1017 = vsel %vm998, %v694, 0.0
  %1018 = vadd.xlane.f32.xlu0 %v1017
  %v1019 = vpop.xlane.xlu0 %1018
  %v1020 = vsel %vm998, %v696, 0.0
  %1021 = vadd.xlane.f32.xlu0 %v1020
  %v1022 = vpop.xlane.xlu0 %1021
  %v1023 = vsel %vm998, %v699, 0.0
  %1024 = vadd.xlane.f32.xlu0 %v1023
  %v1025 = vpop.xlane.xlu0 %1024
  %v1026 = vsel %vm998, %v701, 0.0
  %1027 = vadd.xlane.f32.xlu0 %v1026
  %v1028 = vpop.xlane.xlu0 %1027
  %v1029 = vsel %vm998, %v704, 0.0
  %1030 = vadd.xlane.f32.xlu0 %v1029
  %v1031 = vpop.xlane.xlu0 %1030
  %v1032 = vsel %vm998, %v706, 0.0
  %1033 = vadd.xlane.f32.xlu0 %v1032
  %v1034 = vpop.xlane.xlu0 %1033
  %v1035 = vsel %vm998, %v709, 0.0
  %1036 = vadd.xlane.f32.xlu0 %v1035
  %v1037 = vpop.xlane.xlu0 %1036
  %v1038 = vsel %vm998, %v711, 0.0
  %1039 = vadd.xlane.f32.xlu0 %v1038
  %v1040 = vpop.xlane.xlu0 %1039
  %v1041 = vsel %vm998, %v714, 0.0
  %1042 = vadd.xlane.f32.xlu0 %v1041
  %v1043 = vpop.xlane.xlu0 %1042
  %v1044 = vsel %vm998, %v716, 0.0
  %1045 = vadd.xlane.f32.xlu0 %v1044
  %v1046 = vpop.xlane.xlu0 %1045
  %v1047 = vsel %vm998, %v719, 0.0
  %1048 = vadd.xlane.f32.xlu0 %v1047
  %v1049 = vpop.xlane.xlu0 %1048
  %v1050 = vsel %vm998, %v721, 0.0
  %1051 = vadd.xlane.f32.xlu0 %v1050
  %v1052 = vpop.xlane.xlu0 %1051
  %v1053 = vsel %vm998, %v724, 0.0
  %1054 = vadd.xlane.f32.xlu0 %v1053
  %v1055 = vpop.xlane.xlu0 %1054
  %v1056 = vsel %vm998, %v726, 0.0
  %1057 = vadd.xlane.f32.xlu0 %v1056
  %v1058 = vpop.xlane.xlu0 %1057
  %v1059 = vsel %vm998, %v729, 0.0
  %1060 = vadd.xlane.f32.xlu0 %v1059
  %v1061 = vpop.xlane.xlu0 %1060
  %v1062 = vsel %vm998, %v731, 0.0
  %1063 = vadd.xlane.f32.xlu0 %v1062
  %v1064 = vpop.xlane.xlu0 %1063
  %v1065 = vsel %vm998, %v734, 0.0
  %1066 = vadd.xlane.f32.xlu0 %v1065
  %v1067 = vpop.xlane.xlu0 %1066
  %v1068 = vsel %vm998, %v736, 0.0
  %1069 = vadd.xlane.f32.xlu0 %v1068
  %v1070 = vpop.xlane.xlu0 %1069
  %v1071 = vsel %vm998, %v739, 0.0
  %1072 = vadd.xlane.f32.xlu0 %v1071
  %v1073 = vpop.xlane.xlu0 %1072
  %v1074 = vsel %vm998, %v741, 0.0
  %1075 = vadd.xlane.f32.xlu0 %v1074
  %v1076 = vpop.xlane.xlu0 %1075
  %v1077 = vsel %vm998, %v744, 0.0
  %1078 = vadd.xlane.f32.xlu0 %v1077
  %v1079 = vpop.xlane.xlu0 %1078
  %v1080 = vsel %vm998, %v746, 0.0
  %1081 = vadd.xlane.f32.xlu0 %v1080
  %v1082 = vpop.xlane.xlu0 %1081
  %v1083 = vsel %vm998, %v749, 0.0
  %1084 = vadd.xlane.f32.xlu0 %v1083
  %v1085 = vpop.xlane.xlu0 %1084
  %v1086 = vsel %vm998, %v751, 0.0
  %1087 = vadd.xlane.f32.xlu0 %v1086
  %v1088 = vpop.xlane.xlu0 %1087
  %v1089 = vsel %vm998, %v754, 0.0
  %1090 = vadd.xlane.f32.xlu0 %v1089
  %v1091 = vpop.xlane.xlu0 %1090
  %v1092 = vsel %vm998, %v756, 0.0
  %1093 = vadd.xlane.f32.xlu0 %v1092
  %v1094 = vpop.xlane.xlu0 %1093
  %v1095 = vsel %vm998, %v759, 0.0
  %1096 = vadd.xlane.f32.xlu0 %v1095
  %v1097 = vpop.xlane.xlu0 %1096
  %v1098 = vsel %vm998, %v761, 0.0
  %1099 = vadd.xlane.f32.xlu0 %v1098
  %v1100 = vpop.xlane.xlu0 %1099
  %v1101 = vsel %vm998, %v764, 0.0
  %1102 = vadd.xlane.f32.xlu0 %v1101
  %v1103 = vpop.xlane.xlu0 %1102
  %v1104 = vsel %vm998, %v766, 0.0
  %1105 = vadd.xlane.f32.xlu0 %v1104
  %v1106 = vpop.xlane.xlu0 %1105
  %v1107 = vsel %vm998, %v769, 0.0
  %1108 = vadd.xlane.f32.xlu0 %v1107
  %v1109 = vpop.xlane.xlu0 %1108
  %v1110 = vsel %vm998, %v771, 0.0
  %1111 = vadd.xlane.f32.xlu0 %v1110
  %v1112 = vpop.xlane.xlu0 %1111
  %v1113 = vsel %vm998, %v774, 0.0
  %1114 = vadd.xlane.f32.xlu0 %v1113
  %v1115 = vpop.xlane.xlu0 %1114
  %v1116 = vsel %vm998, %v776, 0.0
  %1117 = vadd.xlane.f32.xlu0 %v1116
  %v1118 = vpop.xlane.xlu0 %1117
  %v1119 = vsel %vm998, %v779, 0.0
  %1120 = vadd.xlane.f32.xlu0 %v1119
  %v1121 = vpop.xlane.xlu0 %1120
  %v1122 = vsel %vm998, %v781, 0.0
  %1123 = vadd.xlane.f32.xlu0 %v1122
  %v1124 = vpop.xlane.xlu0 %1123
  %v1125 = vsel %vm998, %v784, 0.0
  %1126 = vadd.xlane.f32.xlu0 %v1125
  %v1127 = vpop.xlane.xlu0 %1126
  %v1128 = vsel %vm998, %v786, 0.0
  %1129 = vadd.xlane.f32.xlu0 %v1128
  %v1130 = vpop.xlane.xlu0 %1129
  %v1131 = vsel %vm998, %v789, 0.0
  %1132 = vadd.xlane.f32.xlu0 %v1131
  %v1133 = vpop.xlane.xlu0 %1132
  %v1134 = vsel %vm998, %v791, 0.0
  %1135 = vadd.xlane.f32.xlu0 %v1134
  %v1136 = vpop.xlane.xlu0 %1135
  %v1137 = vsel %vm998, %v794, 0.0
  %1138 = vadd.xlane.f32.xlu0 %v1137
  %v1139 = vpop.xlane.xlu0 %1138
  %v1140 = vsel %vm998, %v796, 0.0
  %1141 = vadd.xlane.f32.xlu0 %v1140
  %v1142 = vpop.xlane.xlu0 %1141
  %v1143 = vsel %vm998, %v799, 0.0
  %1144 = vadd.xlane.f32.xlu0 %v1143
  %v1145 = vpop.xlane.xlu0 %1144
  %v1146 = vsel %vm998, %v801, 0.0
  %1147 = vadd.xlane.f32.xlu0 %v1146
  %v1148 = vpop.xlane.xlu0 %1147
  %v1149 = vsel %vm998, %v804, 0.0
  %1150 = vadd.xlane.f32.xlu0 %v1149
  %v1151 = vpop.xlane.xlu0 %1150
  %v1152 = vsel %vm998, %v806, 0.0
  %1153 = vadd.xlane.f32.xlu0 %v1152
  %v1154 = vpop.xlane.xlu0 %1153
  %v1155 = vsel %vm998, %v809, 0.0
  %1156 = vadd.xlane.f32.xlu0 %v1155
  %v1157 = vpop.xlane.xlu0 %1156
  %v1158 = vsel %vm998, %v811, 0.0
  %1159 = vadd.xlane.f32.xlu0 %v1158
  %v1160 = vpop.xlane.xlu0 %1159
  %v1161 = vsel %vm998, %v814, 0.0
  %1162 = vadd.xlane.f32.xlu0 %v1161
  %v1163 = vpop.xlane.xlu0 %1162
  %v1164 = vsel %vm998, %v816, 0.0
  %1165 = vadd.xlane.f32.xlu0 %v1164
  %v1166 = vpop.xlane.xlu0 %1165
  %v1167 = vsel %vm998, %v819, 0.0
  %1168 = vadd.xlane.f32.xlu0 %v1167
  %v1169 = vpop.xlane.xlu0 %1168
  %v1170 = vsel %vm998, %v821, 0.0
  %1171 = vadd.xlane.f32.xlu0 %v1170
  %v1172 = vpop.xlane.xlu0 %1171
  %v1173 = vsel %vm998, %v824, 0.0
  %1174 = vadd.xlane.f32.xlu0 %v1173
  %v1175 = vpop.xlane.xlu0 %1174
  %v1176 = vsel %vm998, %v826, 0.0
  %1177 = vadd.xlane.f32.xlu0 %v1176
  %v1178 = vpop.xlane.xlu0 %1177
  %v1179 = vsel %vm998, %v829, 0.0
  %1180 = vadd.xlane.f32.xlu0 %v1179
  %v1181 = vpop.xlane.xlu0 %1180
  %v1182 = vsel %vm998, %v831, 0.0
  %1183 = vadd.xlane.f32.xlu0 %v1182
  %v1184 = vpop.xlane.xlu0 %1183
  %v1185 = vsel %vm998, %v834, 0.0
  %1186 = vadd.xlane.f32.xlu0 %v1185
  %v1187 = vpop.xlane.xlu0 %1186
  %v1188 = vsel %vm998, %v836, 0.0
  %1189 = vadd.xlane.f32.xlu0 %v1188
  %v1190 = vpop.xlane.xlu0 %1189
  %v1191 = vsel %vm998, %v839, 0.0
  %1192 = vadd.xlane.f32.xlu0 %v1191
  %v1193 = vpop.xlane.xlu0 %1192
  %v1194 = vsel %vm998, %v841, 0.0
  %1195 = vadd.xlane.f32.xlu0 %v1194
  %v1196 = vpop.xlane.xlu0 %1195
  %v1197 = vsel %vm998, %v844, 0.0
  %1198 = vadd.xlane.f32.xlu0 %v1197
  %v1199 = vpop.xlane.xlu0 %1198
  %v1200 = vsel %vm998, %v846, 0.0
  %1201 = vadd.xlane.f32.xlu0 %v1200
  %v1202 = vpop.xlane.xlu0 %1201
  %v1203 = vsel %vm998, %v849, 0.0
  %1204 = vadd.xlane.f32.xlu0 %v1203
  %v1205 = vpop.xlane.xlu0 %1204
  %v1206 = vsel %vm998, %v851, 0.0
  %1207 = vadd.xlane.f32.xlu0 %v1206
  %v1208 = vpop.xlane.xlu0 %1207
  %v1209 = vsel %vm998, %v854, 0.0
  %1210 = vadd.xlane.f32.xlu0 %v1209
  %v1211 = vpop.xlane.xlu0 %1210
  %v1212 = vsel %vm998, %v856, 0.0
  %1213 = vadd.xlane.f32.xlu0 %v1212
  %v1214 = vpop.xlane.xlu0 %1213
  %v1215 = vsel %vm998, %v859, 0.0
  %1216 = vadd.xlane.f32.xlu0 %v1215
  %v1217 = vpop.xlane.xlu0 %1216
  %v1218 = vsel %vm998, %v861, 0.0
  %1219 = vadd.xlane.f32.xlu0 %v1218
  %v1220 = vpop.xlane.xlu0 %1219
  %v1221 = vsel %vm998, %v864, 0.0
  %1222 = vadd.xlane.f32.xlu0 %v1221
  %v1223 = vpop.xlane.xlu0 %1222
  %v1224 = vsel %vm998, %v866, 0.0
  %1225 = vadd.xlane.f32.xlu0 %v1224
  %v1226 = vpop.xlane.xlu0 %1225
  %v1227 = vsel %vm998, %v869, 0.0
  %1228 = vadd.xlane.f32.xlu0 %v1227
  %v1229 = vpop.xlane.xlu0 %1228
  %v1230 = vsel %vm998, %v871, 0.0
  %1231 = vadd.xlane.f32.xlu0 %v1230
  %v1232 = vpop.xlane.xlu0 %1231
  %v1233 = vsel %vm998, %v874, 0.0
  %1234 = vadd.xlane.f32.xlu0 %v1233
  %v1235 = vpop.xlane.xlu0 %1234
  %v1236 = vsel %vm998, %v876, 0.0
  %1237 = vadd.xlane.f32.xlu0 %v1236
  %v1238 = vpop.xlane.xlu0 %1237
  %v1239 = vsel %vm998, %v879, 0.0
  %1240 = vadd.xlane.f32.xlu0 %v1239
  %v1241 = vpop.xlane.xlu0 %1240
  %v1242 = vsel %vm998, %v881, 0.0
  %1243 = vadd.xlane.f32.xlu0 %v1242
  %v1244 = vpop.xlane.xlu0 %1243
  %v1245 = vsel %vm998, %v884, 0.0
  %1246 = vadd.xlane.f32.xlu0 %v1245
  %v1247 = vpop.xlane.xlu0 %1246
  %v1248 = vsel %vm998, %v886, 0.0
  %1249 = vadd.xlane.f32.xlu0 %v1248
  %v1250 = vpop.xlane.xlu0 %1249
  %v1251 = vsel %vm998, %v889, 0.0
  %1252 = vadd.xlane.f32.xlu0 %v1251
  %v1253 = vpop.xlane.xlu0 %1252
  %v1254 = vsel %vm998, %v891, 0.0
  %1255 = vadd.xlane.f32.xlu0 %v1254
  %v1256 = vpop.xlane.xlu0 %1255
  %v1257 = vsel %vm998, %v894, 0.0
  %1258 = vadd.xlane.f32.xlu0 %v1257
  %v1259 = vpop.xlane.xlu0 %1258
  %v1260 = vsel %vm998, %v896, 0.0
  %1261 = vadd.xlane.f32.xlu0 %v1260
  %v1262 = vpop.xlane.xlu0 %1261
  %v1263 = vsel %vm998, %v899, 0.0
  %1264 = vadd.xlane.f32.xlu0 %v1263
  %v1265 = vpop.xlane.xlu0 %1264
  %v1266 = vsel %vm998, %v901, 0.0
  %1267 = vadd.xlane.f32.xlu0 %v1266
  %v1268 = vpop.xlane.xlu0 %1267
  %v1269 = vsel %vm998, %v904, 0.0
  %1270 = vadd.xlane.f32.xlu0 %v1269
  %v1271 = vpop.xlane.xlu0 %1270
  %v1272 = vsel %vm998, %v906, 0.0
  %1273 = vadd.xlane.f32.xlu0 %v1272
  %v1274 = vpop.xlane.xlu0 %1273
  %v1275 = vsel %vm998, %v909, 0.0
  %1276 = vadd.xlane.f32.xlu0 %v1275
  %v1277 = vpop.xlane.xlu0 %1276
  %v1278 = vsel %vm998, %v911, 0.0
  %1279 = vadd.xlane.f32.xlu0 %v1278
  %v1280 = vpop.xlane.xlu0 %1279
  %v1281 = vsel %vm998, %v914, 0.0
  %1282 = vadd.xlane.f32.xlu0 %v1281
  %v1283 = vpop.xlane.xlu0 %1282
  %v1284 = vsel %vm998, %v916, 0.0
  %1285 = vadd.xlane.f32.xlu0 %v1284
  %v1286 = vpop.xlane.xlu0 %1285
  %v1287 = vsel %vm998, %v919, 0.0
  %1288 = vadd.xlane.f32.xlu0 %v1287
  %v1289 = vpop.xlane.xlu0 %1288
  %v1290 = vsel %vm998, %v921, 0.0
  %1291 = vadd.xlane.f32.xlu0 %v1290
  %v1292 = vpop.xlane.xlu0 %1291
  %v1293 = vsel %vm998, %v924, 0.0
  %1294 = vadd.xlane.f32.xlu0 %v1293
  %v1295 = vpop.xlane.xlu0 %1294
  %v1296 = vsel %vm998, %v926, 0.0
  %1297 = vadd.xlane.f32.xlu0 %v1296
  %v1298 = vpop.xlane.xlu0 %1297
  %v1299 = vsel %vm998, %v929, 0.0
  %1300 = vadd.xlane.f32.xlu0 %v1299
  %v1301 = vpop.xlane.xlu0 %1300
  %v1302 = vsel %vm998, %v931, 0.0
  %1303 = vadd.xlane.f32.xlu0 %v1302
  %v1304 = vpop.xlane.xlu0 %1303
  %v1305 = vsel %vm998, %v934, 0.0
  %1306 = vadd.xlane.f32.xlu0 %v1305
  %v1307 = vpop.xlane.xlu0 %1306
  %v1308 = vsel %vm998, %v936, 0.0
  %1309 = vadd.xlane.f32.xlu0 %v1308
  %v1310 = vpop.xlane.xlu0 %1309
  %v1311 = vsel %vm998, %v939, 0.0
  %1312 = vadd.xlane.f32.xlu0 %v1311
  %v1313 = vpop.xlane.xlu0 %1312
  %v1314 = vsel %vm998, %v941, 0.0
  %1315 = vadd.xlane.f32.xlu0 %v1314
  %v1316 = vpop.xlane.xlu0 %1315
  %v1317 = vsel %vm998, %v944, 0.0
  %1318 = vadd.xlane.f32.xlu0 %v1317
  %v1319 = vpop.xlane.xlu0 %1318
  %v1320 = vsel %vm998, %v946, 0.0
  %1321 = vadd.xlane.f32.xlu0 %v1320
  %v1322 = vpop.xlane.xlu0 %1321
  %v1323 = vsel %vm998, %v949, 0.0
  %1324 = vadd.xlane.f32.xlu0 %v1323
  %v1325 = vpop.xlane.xlu0 %1324
  %v1326 = vsel %vm998, %v951, 0.0
  %1327 = vadd.xlane.f32.xlu0 %v1326
  %v1328 = vpop.xlane.xlu0 %1327
  %v1329 = vsel %vm998, %v954, 0.0
  %1330 = vadd.xlane.f32.xlu0 %v1329
  %v1331 = vpop.xlane.xlu0 %1330
  %v1332 = vsel %vm998, %v956, 0.0
  %1333 = vadd.xlane.f32.xlu0 %v1332
  %v1334 = vpop.xlane.xlu0 %1333
  %v1335 = vsel %vm998, %v959, 0.0
  %1336 = vadd.xlane.f32.xlu0 %v1335
  %v1337 = vpop.xlane.xlu0 %1336
  %v1338 = vsel %vm998, %v961, 0.0
  %1339 = vadd.xlane.f32.xlu0 %v1338
  %v1340 = vpop.xlane.xlu0 %1339
  %v1341 = vsel %vm998, %v964, 0.0
  %1342 = vadd.xlane.f32.xlu0 %v1341
  %v1343 = vpop.xlane.xlu0 %1342
  %v1344 = vsel %vm998, %v966, 0.0
  %1345 = vadd.xlane.f32.xlu0 %v1344
  %v1346 = vpop.xlane.xlu0 %1345
  %v1347 = vsel %vm998, %v969, 0.0
  %1348 = vadd.xlane.f32.xlu0 %v1347
  %v1349 = vpop.xlane.xlu0 %1348
  %v1350 = vsel %vm998, %v971, 0.0
  %1351 = vadd.xlane.f32.xlu0 %v1350
  %v1352 = vpop.xlane.xlu0 %1351
  %v1353 = vsel %vm998, %v974, 0.0
  %1354 = vadd.xlane.f32.xlu0 %v1353
  %v1355 = vpop.xlane.xlu0 %1354
  %v1356 = vsel %vm998, %v976, 0.0
  %1357 = vadd.xlane.f32.xlu0 %v1356
  %v1358 = vpop.xlane.xlu0 %1357
  %v1359 = vsel %vm998, %v979, 0.0
  %1360 = vadd.xlane.f32.xlu0 %v1359
  %v1361 = vpop.xlane.xlu0 %1360
  %v1362 = vsel %vm998, %v981, 0.0
  %1363 = vadd.xlane.f32.xlu0 %v1362
  %v1364 = vpop.xlane.xlu0 %1363
  %v1365 = vsel %vm998, %v984, 0.0
  %1366 = vadd.xlane.f32.xlu0 %v1365
  %v1367 = vpop.xlane.xlu0 %1366
  %v1368 = vsel %vm998, %v986, 0.0
  %1369 = vadd.xlane.f32.xlu0 %v1368
  %v1370 = vpop.xlane.xlu0 %1369
  %v1371 = vsel %vm998, %v989, 0.0
  %1372 = vadd.xlane.f32.xlu0 %v1371
  %v1373 = vpop.xlane.xlu0 %1372
  %v1374 = vsel %vm998, %v991, 0.0
  %1375 = vadd.xlane.f32.xlu0 %v1374
  %v1376 = vpop.xlane.xlu0 %1375
  %v1377 = vsel %vm998, %v994, 0.0
  %1378 = vadd.xlane.f32.xlu0 %v1377
  %v1379 = vpop.xlane.xlu0 %1378
  %v1380 = vsel %vm998, %v996, 0.0
  %1381 = vadd.xlane.f32.xlu0 %v1380
  %v1382 = vpop.xlane.xlu0 %1381
  %v1383 = vmul.f32 %v1001, 0.5
  %v1384 = vmul.f32 %v1004, 0.5
  %v1385 = vmul.f32 %v1007, 0.5
  %v1386 = vmul.f32 %v1010, 0.5
  %v1387 = vmul.f32 %v1013, 0.5
  %v1388 = vmul.f32 %v1016, 0.5
  %v1389 = vmul.f32 %v1019, 0.5
  %v1390 = vmul.f32 %v1022, 0.5
  %v1391 = vmul.f32 %v1025, 0.5
  %v1392 = vmul.f32 %v1028, 0.5
  %v1393 = vmul.f32 %v1031, 0.5
  %v1394 = vmul.f32 %v1034, 0.5
  %v1395 = vmul.f32 %v1037, 0.5
  %v1396 = vmul.f32 %v1040, 0.5
  %v1397 = vmul.f32 %v1043, 0.5
  %v1398 = vmul.f32 %v1046, 0.5
  %v1399 = vmul.f32 %v1049, 0.5
  %v1400 = vmul.f32 %v1052, 0.5
  %v1401 = vmul.f32 %v1055, 0.5
  %v1402 = vmul.f32 %v1058, 0.5
  %v1403 = vmul.f32 %v1061, 0.5
  %v1404 = vmul.f32 %v1064, 0.5
  %v1405 = vmul.f32 %v1067, 0.5
  %v1406 = vmul.f32 %v1070, 0.5
  %v1407 = vmul.f32 %v1073, 0.5
  %v1408 = vmul.f32 %v1076, 0.5
  %v1409 = vmul.f32 %v1079, 0.5
  %v1410 = vmul.f32 %v1082, 0.5
  %v1411 = vmul.f32 %v1085, 0.5
  %v1412 = vmul.f32 %v1088, 0.5
  %v1413 = vmul.f32 %v1091, 0.5
  %v1414 = vmul.f32 %v1094, 0.5
  %v1415 = vmul.f32 %v1097, 0.5
  %v1416 = vmul.f32 %v1100, 0.5
  %v1417 = vmul.f32 %v1103, 0.5
  %v1418 = vmul.f32 %v1106, 0.5
  %v1419 = vmul.f32 %v1109, 0.5
  %v1420 = vmul.f32 %v1112, 0.5
  %v1421 = vmul.f32 %v1115, 0.5
  %v1422 = vmul.f32 %v1118, 0.5
  %v1423 = vmul.f32 %v1121, 0.5
  %v1424 = vmul.f32 %v1124, 0.5
  %v1425 = vmul.f32 %v1127, 0.5
  %v1426 = vmul.f32 %v1130, 0.5
  %v1427 = vmul.f32 %v1133, 0.5
  %v1428 = vmul.f32 %v1136, 0.5
  %v1429 = vmul.f32 %v1139, 0.5
  %v1430 = vmul.f32 %v1142, 0.5
  %v1431 = vmul.f32 %v1145, 0.5
  %v1432 = vmul.f32 %v1148, 0.5
  %v1433 = vmul.f32 %v1151, 0.5
  %v1434 = vmul.f32 %v1154, 0.5
  %v1435 = vmul.f32 %v1157, 0.5
  %v1436 = vmul.f32 %v1160, 0.5
  %v1437 = vmul.f32 %v1163, 0.5
  %v1438 = vmul.f32 %v1166, 0.5
  %v1439 = vmul.f32 %v1169, 0.5
  %v1440 = vmul.f32 %v1172, 0.5
  %v1441 = vmul.f32 %v1175, 0.5
  %v1442 = vmul.f32 %v1178, 0.5
  %v1443 = vmul.f32 %v1181, 0.5
  %v1444 = vmul.f32 %v1184, 0.5
  %v1445 = vmul.f32 %v1187, 0.5
  %v1446 = vmul.f32 %v1190, 0.5
  %v1447 = vmul.f32 %v1193, 0.5
  %v1448 = vmul.f32 %v1196, 0.5
  %v1449 = vmul.f32 %v1199, 0.5
  %v1450 = vmul.f32 %v1202, 0.5
  %v1451 = vmul.f32 %v1205, 0.5
  %v1452 = vmul.f32 %v1208, 0.5
  %v1453 = vmul.f32 %v1211, 0.5
  %v1454 = vmul.f32 %v1214, 0.5
  %v1455 = vmul.f32 %v1217, 0.5
  %v1456 = vmul.f32 %v1220, 0.5
  %v1457 = vmul.f32 %v1223, 0.5
  %v1458 = vmul.f32 %v1226, 0.5
  %v1459 = vmul.f32 %v1229, 0.5
  %v1460 = vmul.f32 %v1232, 0.5
  %v1461 = vmul.f32 %v1235, 0.5
  %v1462 = vmul.f32 %v1238, 0.5
  %v1463 = vmul.f32 %v1241, 0.5
  %v1464 = vmul.f32 %v1244, 0.5
  %v1465 = vmul.f32 %v1247, 0.5
  %v1466 = vmul.f32 %v1250, 0.5
  %v1467 = vmul.f32 %v1253, 0.5
  %v1468 = vmul.f32 %v1256, 0.5
  %v1469 = vmul.f32 %v1259, 0.5
  %v1470 = vmul.f32 %v1262, 0.5
  %v1471 = vmul.f32 %v1265, 0.5
  %v1472 = vmul.f32 %v1268, 0.5
  %v1473 = vmul.f32 %v1271, 0.5
  %v1474 = vmul.f32 %v1274, 0.5
  %v1475 = vmul.f32 %v1277, 0.5
  %v1476 = vmul.f32 %v1280, 0.5
  %v1477 = vmul.f32 %v1283, 0.5
  %v1478 = vmul.f32 %v1286, 0.5
  %v1479 = vmul.f32 %v1289, 0.5
  %v1480 = vmul.f32 %v1292, 0.5
  %v1481 = vmul.f32 %v1295, 0.5
  %v1482 = vmul.f32 %v1298, 0.5
  %v1483 = vmul.f32 %v1301, 0.5
  %v1484 = vmul.f32 %v1304, 0.5
  %v1485 = vmul.f32 %v1307, 0.5
  %v1486 = vmul.f32 %v1310, 0.5
  %v1487 = vmul.f32 %v1313, 0.5
  %v1488 = vmul.f32 %v1316, 0.5
  %v1489 = vmul.f32 %v1319, 0.5
  %v1490 = vmul.f32 %v1322, 0.5
  %v1491 = vmul.f32 %v1325, 0.5
  %v1492 = vmul.f32 %v1328, 0.5
  %v1493 = vmul.f32 %v1331, 0.5
  %v1494 = vmul.f32 %v1334, 0.5
  %v1495 = vmul.f32 %v1337, 0.5
  %v1496 = vmul.f32 %v1340, 0.5
  %v1497 = vmul.f32 %v1343, 0.5
  %v1498 = vmul.f32 %v1346, 0.5
  %v1499 = vmul.f32 %v1349, 0.5
  %v1500 = vmul.f32 %v1352, 0.5
  %v1501 = vmul.f32 %v1355, 0.5
  %v1502 = vmul.f32 %v1358, 0.5
  %v1503 = vmul.f32 %v1361, 0.5
  %v1504 = vmul.f32 %v1364, 0.5
  %v1505 = vmul.f32 %v1367, 0.5
  %v1506 = vmul.f32 %v1370, 0.5
  %v1507 = vmul.f32 %v1373, 0.5
  %v1508 = vmul.f32 %v1376, 0.5
  %v1509 = vmul.f32 %v1379, 0.5
  %v1510 = vmul.f32 %v1382, 0.5
  %v1511 = vmul.f32 %v679, %v679
  %v1512 = vmul.f32 %v681, %v681
  %v1513 = vmul.f32 %v684, %v684
  %v1514 = vmul.f32 %v686, %v686
  %v1515 = vmul.f32 %v689, %v689
  %v1516 = vmul.f32 %v691, %v691
  %v1517 = vmul.f32 %v694, %v694
  %v1518 = vmul.f32 %v696, %v696
  %v1519 = vmul.f32 %v699, %v699
  %v1520 = vmul.f32 %v701, %v701
  %v1521 = vmul.f32 %v704, %v704
  %v1522 = vmul.f32 %v706, %v706
  %v1523 = vmul.f32 %v709, %v709
  %v1524 = vmul.f32 %v711, %v711
  %v1525 = vmul.f32 %v714, %v714
  %v1526 = vmul.f32 %v716, %v716
  %v1527 = vmul.f32 %v719, %v719
  %v1528 = vmul.f32 %v721, %v721
  %v1529 = vmul.f32 %v724, %v724
  %v1530 = vmul.f32 %v726, %v726
  %v1531 = vmul.f32 %v729, %v729
  %v1532 = vmul.f32 %v731, %v731
  %v1533 = vmul.f32 %v734, %v734
  %v1534 = vmul.f32 %v736, %v736
  %v1535 = vmul.f32 %v739, %v739
  %v1536 = vmul.f32 %v741, %v741
  %v1537 = vmul.f32 %v744, %v744
  %v1538 = vmul.f32 %v746, %v746
  %v1539 = vmul.f32 %v749, %v749
  %v1540 = vmul.f32 %v751, %v751
  %v1541 = vmul.f32 %v754, %v754
  %v1542 = vmul.f32 %v756, %v756
  %v1543 = vmul.f32 %v759, %v759
  %v1544 = vmul.f32 %v761, %v761
  %v1545 = vmul.f32 %v764, %v764
  %v1546 = vmul.f32 %v766, %v766
  %v1547 = vmul.f32 %v769, %v769
  %v1548 = vmul.f32 %v771, %v771
  %v1549 = vmul.f32 %v774, %v774
  %v1550 = vmul.f32 %v776, %v776
  %v1551 = vmul.f32 %v779, %v779
  %v1552 = vmul.f32 %v781, %v781
  %v1553 = vmul.f32 %v784, %v784
  %v1554 = vmul.f32 %v786, %v786
  %v1555 = vmul.f32 %v789, %v789
  %v1556 = vmul.f32 %v791, %v791
  %v1557 = vmul.f32 %v794, %v794
  %v1558 = vmul.f32 %v796, %v796
  %v1559 = vmul.f32 %v799, %v799
  %v1560 = vmul.f32 %v801, %v801
  %v1561 = vmul.f32 %v804, %v804
  %v1562 = vmul.f32 %v806, %v806
  %v1563 = vmul.f32 %v809, %v809
  %v1564 = vmul.f32 %v811, %v811
  %v1565 = vmul.f32 %v814, %v814
  %v1566 = vmul.f32 %v816, %v816
  %v1567 = vmul.f32 %v819, %v819
  %v1568 = vmul.f32 %v821, %v821
  %v1569 = vmul.f32 %v824, %v824
  %v1570 = vmul.f32 %v826, %v826
  %v1571 = vmul.f32 %v829, %v829
  %v1572 = vmul.f32 %v831, %v831
  %v1573 = vmul.f32 %v834, %v834
  %v1574 = vmul.f32 %v836, %v836
  %v1575 = vmul.f32 %v839, %v839
  %v1576 = vmul.f32 %v841, %v841
  %v1577 = vmul.f32 %v844, %v844
  %v1578 = vmul.f32 %v846, %v846
  %v1579 = vmul.f32 %v849, %v849
  %v1580 = vmul.f32 %v851, %v851
  %v1581 = vmul.f32 %v854, %v854
  %v1582 = vmul.f32 %v856, %v856
  %v1583 = vmul.f32 %v859, %v859
  %v1584 = vmul.f32 %v861, %v861
  %v1585 = vmul.f32 %v864, %v864
  %v1586 = vmul.f32 %v866, %v866
  %v1587 = vmul.f32 %v869, %v869
  %v1588 = vmul.f32 %v871, %v871
  %v1589 = vmul.f32 %v874, %v874
  %v1590 = vmul.f32 %v876, %v876
  %v1591 = vmul.f32 %v879, %v879
  %v1592 = vmul.f32 %v881, %v881
  %v1593 = vmul.f32 %v884, %v884
  %v1594 = vmul.f32 %v886, %v886
  %v1595 = vmul.f32 %v889, %v889
  %v1596 = vmul.f32 %v891, %v891
  %v1597 = vmul.f32 %v894, %v894
  %v1598 = vmul.f32 %v896, %v896
  %v1599 = vmul.f32 %v899, %v899
  %v1600 = vmul.f32 %v901, %v901
  %v1601 = vmul.f32 %v904, %v904
  %v1602 = vmul.f32 %v906, %v906
  %v1603 = vmul.f32 %v909, %v909
  %v1604 = vmul.f32 %v911, %v911
  %v1605 = vmul.f32 %v914, %v914
  %v1606 = vmul.f32 %v916, %v916
  %v1607 = vmul.f32 %v919, %v919
  %v1608 = vmul.f32 %v921, %v921
  %v1609 = vmul.f32 %v924, %v924
  %v1610 = vmul.f32 %v926, %v926
  %v1611 = vmul.f32 %v929, %v929
  %v1612 = vmul.f32 %v931, %v931
  %v1613 = vmul.f32 %v934, %v934
  %v1614 = vmul.f32 %v936, %v936
  %v1615 = vmul.f32 %v939, %v939
  %v1616 = vmul.f32 %v941, %v941
  %v1617 = vmul.f32 %v944, %v944
  %v1618 = vmul.f32 %v946, %v946
  %v1619 = vmul.f32 %v949, %v949
  %v1620 = vmul.f32 %v951, %v951
  %v1621 = vmul.f32 %v954, %v954
  %v1622 = vmul.f32 %v956, %v956
  %v1623 = vmul.f32 %v959, %v959
  %v1624 = vmul.f32 %v961, %v961
  %v1625 = vmul.f32 %v964, %v964
  %v1626 = vmul.f32 %v966, %v966
  %v1627 = vmul.f32 %v969, %v969
  %v1628 = vmul.f32 %v971, %v971
  %v1629 = vmul.f32 %v974, %v974
  %v1630 = vmul.f32 %v976, %v976
  %v1631 = vmul.f32 %v979, %v979
  %v1632 = vmul.f32 %v981, %v981
  %v1633 = vmul.f32 %v984, %v984
  %v1634 = vmul.f32 %v986, %v986
  %v1635 = vmul.f32 %v989, %v989
  %v1636 = vmul.f32 %v991, %v991
  %v1637 = vmul.f32 %v994, %v994
  %v1638 = vmul.f32 %v996, %v996
  %v1639 = vsel %vm998, %v1511, 0.0
  %1640 = vadd.xlane.f32.xlu0 %v1639
  %v1641 = vpop.xlane.xlu0 %1640
  %v1642 = vsel %vm998, %v1512, 0.0
  %1643 = vadd.xlane.f32.xlu0 %v1642
  %v1644 = vpop.xlane.xlu0 %1643
  %v1645 = vsel %vm998, %v1513, 0.0
  %1646 = vadd.xlane.f32.xlu0 %v1645
  %v1647 = vpop.xlane.xlu0 %1646
  %v1648 = vsel %vm998, %v1514, 0.0
  %1649 = vadd.xlane.f32.xlu0 %v1648
  %v1650 = vpop.xlane.xlu0 %1649
  %v1651 = vsel %vm998, %v1515, 0.0
  %1652 = vadd.xlane.f32.xlu0 %v1651
  %v1653 = vpop.xlane.xlu0 %1652
  %v1654 = vsel %vm998, %v1516, 0.0
  %1655 = vadd.xlane.f32.xlu0 %v1654
  %v1656 = vpop.xlane.xlu0 %1655
  %v1657 = vsel %vm998, %v1517, 0.0
  %1658 = vadd.xlane.f32.xlu0 %v1657
  %v1659 = vpop.xlane.xlu0 %1658
  %v1660 = vsel %vm998, %v1518, 0.0
  %1661 = vadd.xlane.f32.xlu0 %v1660
  %v1662 = vpop.xlane.xlu0 %1661
  %v1663 = vsel %vm998, %v1519, 0.0
  %1664 = vadd.xlane.f32.xlu0 %v1663
  %v1665 = vpop.xlane.xlu0 %1664
  %v1666 = vsel %vm998, %v1520, 0.0
  %1667 = vadd.xlane.f32.xlu0 %v1666
  %v1668 = vpop.xlane.xlu0 %1667
  %v1669 = vsel %vm998, %v1521, 0.0
  %1670 = vadd.xlane.f32.xlu0 %v1669
  %v1671 = vpop.xlane.xlu0 %1670
  %v1672 = vsel %vm998, %v1522, 0.0
  %1673 = vadd.xlane.f32.xlu0 %v1672
  %v1674 = vpop.xlane.xlu0 %1673
  %v1675 = vsel %vm998, %v1523, 0.0
  %1676 = vadd.xlane.f32.xlu0 %v1675
  %v1677 = vpop.xlane.xlu0 %1676
  %v1678 = vsel %vm998, %v1524, 0.0
  %1679 = vadd.xlane.f32.xlu0 %v1678
  %v1680 = vpop.xlane.xlu0 %1679
  %v1681 = vsel %vm998, %v1525, 0.0
  %1682 = vadd.xlane.f32.xlu0 %v1681
  %v1683 = vpop.xlane.xlu0 %1682
  %v1684 = vsel %vm998, %v1526, 0.0
  %1685 = vadd.xlane.f32.xlu0 %v1684
  %v1686 = vpop.xlane.xlu0 %1685
  %v1687 = vsel %vm998, %v1527, 0.0
  %1688 = vadd.xlane.f32.xlu0 %v1687
  %v1689 = vpop.xlane.xlu0 %1688
  %v1690 = vsel %vm998, %v1528, 0.0
  %1691 = vadd.xlane.f32.xlu0 %v1690
  %v1692 = vpop.xlane.xlu0 %1691
  %v1693 = vsel %vm998, %v1529, 0.0
  %1694 = vadd.xlane.f32.xlu0 %v1693
  %v1695 = vpop.xlane.xlu0 %1694
  %v1696 = vsel %vm998, %v1530, 0.0
  %1697 = vadd.xlane.f32.xlu0 %v1696
  %v1698 = vpop.xlane.xlu0 %1697
  %v1699 = vsel %vm998, %v1531, 0.0
  %1700 = vadd.xlane.f32.xlu0 %v1699
  %v1701 = vpop.xlane.xlu0 %1700
  %v1702 = vsel %vm998, %v1532, 0.0
  %1703 = vadd.xlane.f32.xlu0 %v1702
  %v1704 = vpop.xlane.xlu0 %1703
  %v1705 = vsel %vm998, %v1533, 0.0
  %1706 = vadd.xlane.f32.xlu0 %v1705
  %v1707 = vpop.xlane.xlu0 %1706
  %v1708 = vsel %vm998, %v1534, 0.0
  %1709 = vadd.xlane.f32.xlu0 %v1708
  %v1710 = vpop.xlane.xlu0 %1709
  %v1711 = vsel %vm998, %v1535, 0.0
  %1712 = vadd.xlane.f32.xlu0 %v1711
  %v1713 = vpop.xlane.xlu0 %1712
  %v1714 = vsel %vm998, %v1536, 0.0
  %1715 = vadd.xlane.f32.xlu0 %v1714
  %v1716 = vpop.xlane.xlu0 %1715
  %v1717 = vsel %vm998, %v1537, 0.0
  %1718 = vadd.xlane.f32.xlu0 %v1717
  %v1719 = vpop.xlane.xlu0 %1718
  %v1720 = vsel %vm998, %v1538, 0.0
  %1721 = vadd.xlane.f32.xlu0 %v1720
  %v1722 = vpop.xlane.xlu0 %1721
  %v1723 = vsel %vm998, %v1539, 0.0
  %1724 = vadd.xlane.f32.xlu0 %v1723
  %v1725 = vpop.xlane.xlu0 %1724
  %v1726 = vsel %vm998, %v1540, 0.0
  %1727 = vadd.xlane.f32.xlu0 %v1726
  %v1728 = vpop.xlane.xlu0 %1727
  %v1729 = vsel %vm998, %v1541, 0.0
  %1730 = vadd.xlane.f32.xlu0 %v1729
  %v1731 = vpop.xlane.xlu0 %1730
  %v1732 = vsel %vm998, %v1542, 0.0
  %1733 = vadd.xlane.f32.xlu0 %v1732
  %v1734 = vpop.xlane.xlu0 %1733
  %v1735 = vsel %vm998, %v1543, 0.0
  %1736 = vadd.xlane.f32.xlu0 %v1735
  %v1737 = vpop.xlane.xlu0 %1736
  %v1738 = vsel %vm998, %v1544, 0.0
  %1739 = vadd.xlane.f32.xlu0 %v1738
  %v1740 = vpop.xlane.xlu0 %1739
  %v1741 = vsel %vm998, %v1545, 0.0
  %1742 = vadd.xlane.f32.xlu0 %v1741
  %v1743 = vpop.xlane.xlu0 %1742
  %v1744 = vsel %vm998, %v1546, 0.0
  %1745 = vadd.xlane.f32.xlu0 %v1744
  %v1746 = vpop.xlane.xlu0 %1745
  %v1747 = vsel %vm998, %v1547, 0.0
  %1748 = vadd.xlane.f32.xlu0 %v1747
  %v1749 = vpop.xlane.xlu0 %1748
  %v1750 = vsel %vm998, %v1548, 0.0
  %1751 = vadd.xlane.f32.xlu0 %v1750
  %v1752 = vpop.xlane.xlu0 %1751
  %v1753 = vsel %vm998, %v1549, 0.0
  %1754 = vadd.xlane.f32.xlu0 %v1753
  %v1755 = vpop.xlane.xlu0 %1754
  %v1756 = vsel %vm998, %v1550, 0.0
  %1757 = vadd.xlane.f32.xlu0 %v1756
  %v1758 = vpop.xlane.xlu0 %1757
  %v1759 = vsel %vm998, %v1551, 0.0
  %1760 = vadd.xlane.f32.xlu0 %v1759
  %v1761 = vpop.xlane.xlu0 %1760
  %v1762 = vsel %vm998, %v1552, 0.0
  %1763 = vadd.xlane.f32.xlu0 %v1762
  %v1764 = vpop.xlane.xlu0 %1763
  %v1765 = vsel %vm998, %v1553, 0.0
  %1766 = vadd.xlane.f32.xlu0 %v1765
  %v1767 = vpop.xlane.xlu0 %1766
  %v1768 = vsel %vm998, %v1554, 0.0
  %1769 = vadd.xlane.f32.xlu0 %v1768
  %v1770 = vpop.xlane.xlu0 %1769
  %v1771 = vsel %vm998, %v1555, 0.0
  %1772 = vadd.xlane.f32.xlu0 %v1771
  %v1773 = vpop.xlane.xlu0 %1772
  %v1774 = vsel %vm998, %v1556, 0.0
  %1775 = vadd.xlane.f32.xlu0 %v1774
  %v1776 = vpop.xlane.xlu0 %1775
  %v1777 = vsel %vm998, %v1557, 0.0
  %1778 = vadd.xlane.f32.xlu0 %v1777
  %v1779 = vpop.xlane.xlu0 %1778
  %v1780 = vsel %vm998, %v1558, 0.0
  %1781 = vadd.xlane.f32.xlu0 %v1780
  %v1782 = vpop.xlane.xlu0 %1781
  %v1783 = vsel %vm998, %v1559, 0.0
  %1784 = vadd.xlane.f32.xlu0 %v1783
  %v1785 = vpop.xlane.xlu0 %1784
  %v1786 = vsel %vm998, %v1560, 0.0
  %1787 = vadd.xlane.f32.xlu0 %v1786
  %v1788 = vpop.xlane.xlu0 %1787
  %v1789 = vsel %vm998, %v1561, 0.0
  %1790 = vadd.xlane.f32.xlu0 %v1789
  %v1791 = vpop.xlane.xlu0 %1790
  %v1792 = vsel %vm998, %v1562, 0.0
  %1793 = vadd.xlane.f32.xlu0 %v1792
  %v1794 = vpop.xlane.xlu0 %1793
  %v1795 = vsel %vm998, %v1563, 0.0
  %1796 = vadd.xlane.f32.xlu0 %v1795
  %v1797 = vpop.xlane.xlu0 %1796
  %v1798 = vsel %vm998, %v1564, 0.0
  %1799 = vadd.xlane.f32.xlu0 %v1798
  %v1800 = vpop.xlane.xlu0 %1799
  %v1801 = vsel %vm998, %v1565, 0.0
  %1802 = vadd.xlane.f32.xlu0 %v1801
  %v1803 = vpop.xlane.xlu0 %1802
  %v1804 = vsel %vm998, %v1566, 0.0
  %1805 = vadd.xlane.f32.xlu0 %v1804
  %v1806 = vpop.xlane.xlu0 %1805
  %v1807 = vsel %vm998, %v1567, 0.0
  %1808 = vadd.xlane.f32.xlu0 %v1807
  %v1809 = vpop.xlane.xlu0 %1808
  %v1810 = vsel %vm998, %v1568, 0.0
  %1811 = vadd.xlane.f32.xlu0 %v1810
  %v1812 = vpop.xlane.xlu0 %1811
  %v1813 = vsel %vm998, %v1569, 0.0
  %1814 = vadd.xlane.f32.xlu0 %v1813
  %v1815 = vpop.xlane.xlu0 %1814
  %v1816 = vsel %vm998, %v1570, 0.0
  %1817 = vadd.xlane.f32.xlu0 %v1816
  %v1818 = vpop.xlane.xlu0 %1817
  %v1819 = vsel %vm998, %v1571, 0.0
  %1820 = vadd.xlane.f32.xlu0 %v1819
  %v1821 = vpop.xlane.xlu0 %1820
  %v1822 = vsel %vm998, %v1572, 0.0
  %1823 = vadd.xlane.f32.xlu0 %v1822
  %v1824 = vpop.xlane.xlu0 %1823
  %v1825 = vsel %vm998, %v1573, 0.0
  %1826 = vadd.xlane.f32.xlu0 %v1825
  %v1827 = vpop.xlane.xlu0 %1826
  %v1828 = vsel %vm998, %v1574, 0.0
  %1829 = vadd.xlane.f32.xlu0 %v1828
  %v1830 = vpop.xlane.xlu0 %1829
  %v1831 = vsel %vm998, %v1575, 0.0
  %1832 = vadd.xlane.f32.xlu0 %v1831
  %v1833 = vpop.xlane.xlu0 %1832
  %v1834 = vsel %vm998, %v1576, 0.0
  %1835 = vadd.xlane.f32.xlu0 %v1834
  %v1836 = vpop.xlane.xlu0 %1835
  %v1837 = vsel %vm998, %v1577, 0.0
  %1838 = vadd.xlane.f32.xlu0 %v1837
  %v1839 = vpop.xlane.xlu0 %1838
  %v1840 = vsel %vm998, %v1578, 0.0
  %1841 = vadd.xlane.f32.xlu0 %v1840
  %v1842 = vpop.xlane.xlu0 %1841
  %v1843 = vsel %vm998, %v1579, 0.0
  %1844 = vadd.xlane.f32.xlu0 %v1843
  %v1845 = vpop.xlane.xlu0 %1844
  %v1846 = vsel %vm998, %v1580, 0.0
  %1847 = vadd.xlane.f32.xlu0 %v1846
  %v1848 = vpop.xlane.xlu0 %1847
  %v1849 = vsel %vm998, %v1581, 0.0
  %1850 = vadd.xlane.f32.xlu0 %v1849
  %v1851 = vpop.xlane.xlu0 %1850
  %v1852 = vsel %vm998, %v1582, 0.0
  %1853 = vadd.xlane.f32.xlu0 %v1852
  %v1854 = vpop.xlane.xlu0 %1853
  %v1855 = vsel %vm998, %v1583, 0.0
  %1856 = vadd.xlane.f32.xlu0 %v1855
  %v1857 = vpop.xlane.xlu0 %1856
  %v1858 = vsel %vm998, %v1584, 0.0
  %1859 = vadd.xlane.f32.xlu0 %v1858
  %v1860 = vpop.xlane.xlu0 %1859
  %v1861 = vsel %vm998, %v1585, 0.0
  %1862 = vadd.xlane.f32.xlu0 %v1861
  %v1863 = vpop.xlane.xlu0 %1862
  %v1864 = vsel %vm998, %v1586, 0.0
  %1865 = vadd.xlane.f32.xlu0 %v1864
  %v1866 = vpop.xlane.xlu0 %1865
  %v1867 = vsel %vm998, %v1587, 0.0
  %1868 = vadd.xlane.f32.xlu0 %v1867
  %v1869 = vpop.xlane.xlu0 %1868
  %v1870 = vsel %vm998, %v1588, 0.0
  %1871 = vadd.xlane.f32.xlu0 %v1870
  %v1872 = vpop.xlane.xlu0 %1871
  %v1873 = vsel %vm998, %v1589, 0.0
  %1874 = vadd.xlane.f32.xlu0 %v1873
  %v1875 = vpop.xlane.xlu0 %1874
  %v1876 = vsel %vm998, %v1590, 0.0
  %1877 = vadd.xlane.f32.xlu0 %v1876
  %v1878 = vpop.xlane.xlu0 %1877
  %v1879 = vsel %vm998, %v1591, 0.0
  %1880 = vadd.xlane.f32.xlu0 %v1879
  %v1881 = vpop.xlane.xlu0 %1880
  %v1882 = vsel %vm998, %v1592, 0.0
  %1883 = vadd.xlane.f32.xlu0 %v1882
  %v1884 = vpop.xlane.xlu0 %1883
  %v1885 = vsel %vm998, %v1593, 0.0
  %1886 = vadd.xlane.f32.xlu0 %v1885
  %v1887 = vpop.xlane.xlu0 %1886
  %v1888 = vsel %vm998, %v1594, 0.0
  %1889 = vadd.xlane.f32.xlu0 %v1888
  %v1890 = vpop.xlane.xlu0 %1889
  %v1891 = vsel %vm998, %v1595, 0.0
  %1892 = vadd.xlane.f32.xlu0 %v1891
  %v1893 = vpop.xlane.xlu0 %1892
  %v1894 = vsel %vm998, %v1596, 0.0
  %1895 = vadd.xlane.f32.xlu0 %v1894
  %v1896 = vpop.xlane.xlu0 %1895
  %v1897 = vsel %vm998, %v1597, 0.0
  %1898 = vadd.xlane.f32.xlu0 %v1897
  %v1899 = vpop.xlane.xlu0 %1898
  %v1900 = vsel %vm998, %v1598, 0.0
  %1901 = vadd.xlane.f32.xlu0 %v1900
  %v1902 = vpop.xlane.xlu0 %1901
  %v1903 = vsel %vm998, %v1599, 0.0
  %1904 = vadd.xlane.f32.xlu0 %v1903
  %v1905 = vpop.xlane.xlu0 %1904
  %v1906 = vsel %vm998, %v1600, 0.0
  %1907 = vadd.xlane.f32.xlu0 %v1906
  %v1908 = vpop.xlane.xlu0 %1907
  %v1909 = vsel %vm998, %v1601, 0.0
  %1910 = vadd.xlane.f32.xlu0 %v1909
  %v1911 = vpop.xlane.xlu0 %1910
  %v1912 = vsel %vm998, %v1602, 0.0
  %1913 = vadd.xlane.f32.xlu0 %v1912
  %v1914 = vpop.xlane.xlu0 %1913
  %v1915 = vsel %vm998, %v1603, 0.0
  %1916 = vadd.xlane.f32.xlu0 %v1915
  %v1917 = vpop.xlane.xlu0 %1916
  %v1918 = vsel %vm998, %v1604, 0.0
  %1919 = vadd.xlane.f32.xlu0 %v1918
  %v1920 = vpop.xlane.xlu0 %1919
  %v1921 = vsel %vm998, %v1605, 0.0
  %1922 = vadd.xlane.f32.xlu0 %v1921
  %v1923 = vpop.xlane.xlu0 %1922
  %v1924 = vsel %vm998, %v1606, 0.0
  %1925 = vadd.xlane.f32.xlu0 %v1924
  %v1926 = vpop.xlane.xlu0 %1925
  %v1927 = vsel %vm998, %v1607, 0.0
  %1928 = vadd.xlane.f32.xlu0 %v1927
  %v1929 = vpop.xlane.xlu0 %1928
  %v1930 = vsel %vm998, %v1608, 0.0
  %1931 = vadd.xlane.f32.xlu0 %v1930
  %v1932 = vpop.xlane.xlu0 %1931
  %v1933 = vsel %vm998, %v1609, 0.0
  %1934 = vadd.xlane.f32.xlu0 %v1933
  %v1935 = vpop.xlane.xlu0 %1934
  %v1936 = vsel %vm998, %v1610, 0.0
  %1937 = vadd.xlane.f32.xlu0 %v1936
  %v1938 = vpop.xlane.xlu0 %1937
  %v1939 = vsel %vm998, %v1611, 0.0
  %1940 = vadd.xlane.f32.xlu0 %v1939
  %v1941 = vpop.xlane.xlu0 %1940
  %v1942 = vsel %vm998, %v1612, 0.0
  %1943 = vadd.xlane.f32.xlu0 %v1942
  %v1944 = vpop.xlane.xlu0 %1943
  %v1945 = vsel %vm998, %v1613, 0.0
  %1946 = vadd.xlane.f32.xlu0 %v1945
  %v1947 = vpop.xlane.xlu0 %1946
  %v1948 = vsel %vm998, %v1614, 0.0
  %1949 = vadd.xlane.f32.xlu0 %v1948
  %v1950 = vpop.xlane.xlu0 %1949
  %v1951 = vsel %vm998, %v1615, 0.0
  %1952 = vadd.xlane.f32.xlu0 %v1951
  %v1953 = vpop.xlane.xlu0 %1952
  %v1954 = vsel %vm998, %v1616, 0.0
  %1955 = vadd.xlane.f32.xlu0 %v1954
  %v1956 = vpop.xlane.xlu0 %1955
  %v1957 = vsel %vm998, %v1617, 0.0
  %1958 = vadd.xlane.f32.xlu0 %v1957
  %v1959 = vpop.xlane.xlu0 %1958
  %v1960 = vsel %vm998, %v1618, 0.0
  %1961 = vadd.xlane.f32.xlu0 %v1960
  %v1962 = vpop.xlane.xlu0 %1961
  %v1963 = vsel %vm998, %v1619, 0.0
  %1964 = vadd.xlane.f32.xlu0 %v1963
  %v1965 = vpop.xlane.xlu0 %1964
  %v1966 = vsel %vm998, %v1620, 0.0
  %1967 = vadd.xlane.f32.xlu0 %v1966
  %v1968 = vpop.xlane.xlu0 %1967
  %v1969 = vsel %vm998, %v1621, 0.0
  %1970 = vadd.xlane.f32.xlu0 %v1969
  %v1971 = vpop.xlane.xlu0 %1970
  %v1972 = vsel %vm998, %v1622, 0.0
  %1973 = vadd.xlane.f32.xlu0 %v1972
  %v1974 = vpop.xlane.xlu0 %1973
  %v1975 = vsel %vm998, %v1623, 0.0
  %1976 = vadd.xlane.f32.xlu0 %v1975
  %v1977 = vpop.xlane.xlu0 %1976
  %v1978 = vsel %vm998, %v1624, 0.0
  %1979 = vadd.xlane.f32.xlu0 %v1978
  %v1980 = vpop.xlane.xlu0 %1979
  %v1981 = vsel %vm998, %v1625, 0.0
  %1982 = vadd.xlane.f32.xlu0 %v1981
  %v1983 = vpop.xlane.xlu0 %1982
  %v1984 = vsel %vm998, %v1626, 0.0
  %1985 = vadd.xlane.f32.xlu0 %v1984
  %v1986 = vpop.xlane.xlu0 %1985
  %v1987 = vsel %vm998, %v1627, 0.0
  %1988 = vadd.xlane.f32.xlu0 %v1987
  %v1989 = vpop.xlane.xlu0 %1988
  %v1990 = vsel %vm998, %v1628, 0.0
  %1991 = vadd.xlane.f32.xlu0 %v1990
  %v1992 = vpop.xlane.xlu0 %1991
  %v1993 = vsel %vm998, %v1629, 0.0
  %1994 = vadd.xlane.f32.xlu0 %v1993
  %v1995 = vpop.xlane.xlu0 %1994
  %v1996 = vsel %vm998, %v1630, 0.0
  %1997 = vadd.xlane.f32.xlu0 %v1996
  %v1998 = vpop.xlane.xlu0 %1997
  %v1999 = vsel %vm998, %v1631, 0.0
  %2000 = vadd.xlane.f32.xlu0 %v1999
  %v2001 = vpop.xlane.xlu0 %2000
  %v2002 = vsel %vm998, %v1632, 0.0
  %2003 = vadd.xlane.f32.xlu0 %v2002
  %v2004 = vpop.xlane.xlu0 %2003
  %v2005 = vsel %vm998, %v1633, 0.0
  %2006 = vadd.xlane.f32.xlu0 %v2005
  %v2007 = vpop.xlane.xlu0 %2006
  %v2008 = vsel %vm998, %v1634, 0.0
  %2009 = vadd.xlane.f32.xlu0 %v2008
  %v2010 = vpop.xlane.xlu0 %2009
  %v2011 = vsel %vm998, %v1635, 0.0
  %2012 = vadd.xlane.f32.xlu0 %v2011
  %v2013 = vpop.xlane.xlu0 %2012
  %v2014 = vsel %vm998, %v1636, 0.0
  %2015 = vadd.xlane.f32.xlu0 %v2014
  %v2016 = vpop.xlane.xlu0 %2015
  %v2017 = vsel %vm998, %v1637, 0.0
  %2018 = vadd.xlane.f32.xlu0 %v2017
  %v2019 = vpop.xlane.xlu0 %2018
  %v2020 = vsel %vm998, %v1638, 0.0
  %2021 = vadd.xlane.f32.xlu0 %v2020
  %v2022 = vpop.xlane.xlu0 %2021
  %v2023 = vmul.f32 %v1641, 0.5
  %v2024 = vmul.f32 %v1644, 0.5
  %v2025 = vmul.f32 %v1647, 0.5
  %v2026 = vmul.f32 %v1650, 0.5
  %v2027 = vmul.f32 %v1653, 0.5
  %v2028 = vmul.f32 %v1656, 0.5
  %v2029 = vmul.f32 %v1659, 0.5
  %v2030 = vmul.f32 %v1662, 0.5
  %v2031 = vmul.f32 %v1665, 0.5
  %v2032 = vmul.f32 %v1668, 0.5
  %v2033 = vmul.f32 %v1671, 0.5
  %v2034 = vmul.f32 %v1674, 0.5
  %v2035 = vmul.f32 %v1677, 0.5
  %v2036 = vmul.f32 %v1680, 0.5
  %v2037 = vmul.f32 %v1683, 0.5
  %v2038 = vmul.f32 %v1686, 0.5
  %v2039 = vmul.f32 %v1689, 0.5
  %v2040 = vmul.f32 %v1692, 0.5
  %v2041 = vmul.f32 %v1695, 0.5
  %v2042 = vmul.f32 %v1698, 0.5
  %v2043 = vmul.f32 %v1701, 0.5
  %v2044 = vmul.f32 %v1704, 0.5
  %v2045 = vmul.f32 %v1707, 0.5
  %v2046 = vmul.f32 %v1710, 0.5
  %v2047 = vmul.f32 %v1713, 0.5
  %v2048 = vmul.f32 %v1716, 0.5
  %v2049 = vmul.f32 %v1719, 0.5
  %v2050 = vmul.f32 %v1722, 0.5
  %v2051 = vmul.f32 %v1725, 0.5
  %v2052 = vmul.f32 %v1728, 0.5
  %v2053 = vmul.f32 %v1731, 0.5
  %v2054 = vmul.f32 %v1734, 0.5
  %v2055 = vmul.f32 %v1737, 0.5
  %v2056 = vmul.f32 %v1740, 0.5
  %v2057 = vmul.f32 %v1743, 0.5
  %v2058 = vmul.f32 %v1746, 0.5
  %v2059 = vmul.f32 %v1749, 0.5
  %v2060 = vmul.f32 %v1752, 0.5
  %v2061 = vmul.f32 %v1755, 0.5
  %v2062 = vmul.f32 %v1758, 0.5
  %v2063 = vmul.f32 %v1761, 0.5
  %v2064 = vmul.f32 %v1764, 0.5
  %v2065 = vmul.f32 %v1767, 0.5
  %v2066 = vmul.f32 %v1770, 0.5
  %v2067 = vmul.f32 %v1773, 0.5
  %v2068 = vmul.f32 %v1776, 0.5
  %v2069 = vmul.f32 %v1779, 0.5
  %v2070 = vmul.f32 %v1782, 0.5
  %v2071 = vmul.f32 %v1785, 0.5
  %v2072 = vmul.f32 %v1788, 0.5
  %v2073 = vmul.f32 %v1791, 0.5
  %v2074 = vmul.f32 %v1794, 0.5
  %v2075 = vmul.f32 %v1797, 0.5
  %v2076 = vmul.f32 %v1800, 0.5
  %v2077 = vmul.f32 %v1803, 0.5
  %v2078 = vmul.f32 %v1806, 0.5
  %v2079 = vmul.f32 %v1809, 0.5
  %v2080 = vmul.f32 %v1812, 0.5
  %v2081 = vmul.f32 %v1815, 0.5
  %v2082 = vmul.f32 %v1818, 0.5
  %v2083 = vmul.f32 %v1821, 0.5
  %v2084 = vmul.f32 %v1824, 0.5
  %v2085 = vmul.f32 %v1827, 0.5
  %v2086 = vmul.f32 %v1830, 0.5
  %v2087 = vmul.f32 %v1833, 0.5
  %v2088 = vmul.f32 %v1836, 0.5
  %v2089 = vmul.f32 %v1839, 0.5
  %v2090 = vmul.f32 %v1842, 0.5
  %v2091 = vmul.f32 %v1845, 0.5
  %v2092 = vmul.f32 %v1848, 0.5
  %v2093 = vmul.f32 %v1851, 0.5
  %v2094 = vmul.f32 %v1854, 0.5
  %v2095 = vmul.f32 %v1857, 0.5
  %v2096 = vmul.f32 %v1860, 0.5
  %v2097 = vmul.f32 %v1863, 0.5
  %v2098 = vmul.f32 %v1866, 0.5
  %v2099 = vmul.f32 %v1869, 0.5
  %v2100 = vmul.f32 %v1872, 0.5
  %v2101 = vmul.f32 %v1875, 0.5
  %v2102 = vmul.f32 %v1878, 0.5
  %v2103 = vmul.f32 %v1881, 0.5
  %v2104 = vmul.f32 %v1884, 0.5
  %v2105 = vmul.f32 %v1887, 0.5
  %v2106 = vmul.f32 %v1890, 0.5
  %v2107 = vmul.f32 %v1893, 0.5
  %v2108 = vmul.f32 %v1896, 0.5
  %v2109 = vmul.f32 %v1899, 0.5
  %v2110 = vmul.f32 %v1902, 0.5
  %v2111 = vmul.f32 %v1905, 0.5
  %v2112 = vmul.f32 %v1908, 0.5
  %v2113 = vmul.f32 %v1911, 0.5
  %v2114 = vmul.f32 %v1914, 0.5
  %v2115 = vmul.f32 %v1917, 0.5
  %v2116 = vmul.f32 %v1920, 0.5
  %v2117 = vmul.f32 %v1923, 0.5
  %v2118 = vmul.f32 %v1926, 0.5
  %v2119 = vmul.f32 %v1929, 0.5
  %v2120 = vmul.f32 %v1932, 0.5
  %v2121 = vmul.f32 %v1935, 0.5
  %v2122 = vmul.f32 %v1938, 0.5
  %v2123 = vmul.f32 %v1941, 0.5
  %v2124 = vmul.f32 %v1944, 0.5
  %v2125 = vmul.f32 %v1947, 0.5
  %v2126 = vmul.f32 %v1950, 0.5
  %v2127 = vmul.f32 %v1953, 0.5
  %v2128 = vmul.f32 %v1956, 0.5
  %v2129 = vmul.f32 %v1959, 0.5
  %v2130 = vmul.f32 %v1962, 0.5
  %v2131 = vmul.f32 %v1965, 0.5
  %v2132 = vmul.f32 %v1968, 0.5
  %v2133 = vmul.f32 %v1971, 0.5
  %v2134 = vmul.f32 %v1974, 0.5
  %v2135 = vmul.f32 %v1977, 0.5
  %v2136 = vmul.f32 %v1980, 0.5
  %v2137 = vmul.f32 %v1983, 0.5
  %v2138 = vmul.f32 %v1986, 0.5
  %v2139 = vmul.f32 %v1989, 0.5
  %v2140 = vmul.f32 %v1992, 0.5
  %v2141 = vmul.f32 %v1995, 0.5
  %v2142 = vmul.f32 %v1998, 0.5
  %v2143 = vmul.f32 %v2001, 0.5
  %v2144 = vmul.f32 %v2004, 0.5
  %v2145 = vmul.f32 %v2007, 0.5
  %v2146 = vmul.f32 %v2010, 0.5
  %v2147 = vmul.f32 %v2013, 0.5
  %v2148 = vmul.f32 %v2016, 0.5
  %v2149 = vmul.f32 %v2019, 0.5
  %v2150 = vmul.f32 %v2022, 0.5
  %v2151 = vmul.f32 %v1383, %v1383
  %v2152 = vmul.f32 %v1384, %v1384
  %v2153 = vmul.f32 %v1385, %v1385
  %v2154 = vmul.f32 %v1386, %v1386
  %v2155 = vmul.f32 %v1387, %v1387
  %v2156 = vmul.f32 %v1388, %v1388
  %v2157 = vmul.f32 %v1389, %v1389
  %v2158 = vmul.f32 %v1390, %v1390
  %v2159 = vmul.f32 %v1391, %v1391
  %v2160 = vmul.f32 %v1392, %v1392
  %v2161 = vmul.f32 %v1393, %v1393
  %v2162 = vmul.f32 %v1394, %v1394
  %v2163 = vmul.f32 %v1395, %v1395
  %v2164 = vmul.f32 %v1396, %v1396
  %v2165 = vmul.f32 %v1397, %v1397
  %v2166 = vmul.f32 %v1398, %v1398
  %v2167 = vmul.f32 %v1399, %v1399
  %v2168 = vmul.f32 %v1400, %v1400
  %v2169 = vmul.f32 %v1401, %v1401
  %v2170 = vmul.f32 %v1402, %v1402
  %v2171 = vmul.f32 %v1403, %v1403
  %v2172 = vmul.f32 %v1404, %v1404
  %v2173 = vmul.f32 %v1405, %v1405
  %v2174 = vmul.f32 %v1406, %v1406
  %v2175 = vmul.f32 %v1407, %v1407
  %v2176 = vmul.f32 %v1408, %v1408
  %v2177 = vmul.f32 %v1409, %v1409
  %v2178 = vmul.f32 %v1410, %v1410
  %v2179 = vmul.f32 %v1411, %v1411
  %v2180 = vmul.f32 %v1412, %v1412
  %v2181 = vmul.f32 %v1413, %v1413
  %v2182 = vmul.f32 %v1414, %v1414
  %v2183 = vmul.f32 %v1415, %v1415
  %v2184 = vmul.f32 %v1416, %v1416
  %v2185 = vmul.f32 %v1417, %v1417
  %v2186 = vmul.f32 %v1418, %v1418
  %v2187 = vmul.f32 %v1419, %v1419
  %v2188 = vmul.f32 %v1420, %v1420
  %v2189 = vmul.f32 %v1421, %v1421
  %v2190 = vmul.f32 %v1422, %v1422
  %v2191 = vmul.f32 %v1423, %v1423
  %v2192 = vmul.f32 %v1424, %v1424
  %v2193 = vmul.f32 %v1425, %v1425
  %v2194 = vmul.f32 %v1426, %v1426
  %v2195 = vmul.f32 %v1427, %v1427
  %v2196 = vmul.f32 %v1428, %v1428
  %v2197 = vmul.f32 %v1429, %v1429
  %v2198 = vmul.f32 %v1430, %v1430
  %v2199 = vmul.f32 %v1431, %v1431
  %v2200 = vmul.f32 %v1432, %v1432
  %v2201 = vmul.f32 %v1433, %v1433
  %v2202 = vmul.f32 %v1434, %v1434
  %v2203 = vmul.f32 %v1435, %v1435
  %v2204 = vmul.f32 %v1436, %v1436
  %v2205 = vmul.f32 %v1437, %v1437
  %v2206 = vmul.f32 %v1438, %v1438
  %v2207 = vmul.f32 %v1439, %v1439
  %v2208 = vmul.f32 %v1440, %v1440
  %v2209 = vmul.f32 %v1441, %v1441
  %v2210 = vmul.f32 %v1442, %v1442
  %v2211 = vmul.f32 %v1443, %v1443
  %v2212 = vmul.f32 %v1444, %v1444
  %v2213 = vmul.f32 %v1445, %v1445
  %v2214 = vmul.f32 %v1446, %v1446
  %v2215 = vmul.f32 %v1447, %v1447
  %v2216 = vmul.f32 %v1448, %v1448
  %v2217 = vmul.f32 %v1449, %v1449
  %v2218 = vmul.f32 %v1450, %v1450
  %v2219 = vmul.f32 %v1451, %v1451
  %v2220 = vmul.f32 %v1452, %v1452
  %v2221 = vmul.f32 %v1453, %v1453
  %v2222 = vmul.f32 %v1454, %v1454
  %v2223 = vmul.f32 %v1455, %v1455
  %v2224 = vmul.f32 %v1456, %v1456
  %v2225 = vmul.f32 %v1457, %v1457
  %v2226 = vmul.f32 %v1458, %v1458
  %v2227 = vmul.f32 %v1459, %v1459
  %v2228 = vmul.f32 %v1460, %v1460
  %v2229 = vmul.f32 %v1461, %v1461
  %v2230 = vmul.f32 %v1462, %v1462
  %v2231 = vmul.f32 %v1463, %v1463
  %v2232 = vmul.f32 %v1464, %v1464
  %v2233 = vmul.f32 %v1465, %v1465
  %v2234 = vmul.f32 %v1466, %v1466
  %v2235 = vmul.f32 %v1467, %v1467
  %v2236 = vmul.f32 %v1468, %v1468
  %v2237 = vmul.f32 %v1469, %v1469
  %v2238 = vmul.f32 %v1470, %v1470
  %v2239 = vmul.f32 %v1471, %v1471
  %v2240 = vmul.f32 %v1472, %v1472
  %v2241 = vmul.f32 %v1473, %v1473
  %v2242 = vmul.f32 %v1474, %v1474
  %v2243 = vmul.f32 %v1475, %v1475
  %v2244 = vmul.f32 %v1476, %v1476
  %v2245 = vmul.f32 %v1477, %v1477
  %v2246 = vmul.f32 %v1478, %v1478
  %v2247 = vmul.f32 %v1479, %v1479
  %v2248 = vmul.f32 %v1480, %v1480
  %v2249 = vmul.f32 %v1481, %v1481
  %v2250 = vmul.f32 %v1482, %v1482
  %v2251 = vmul.f32 %v1483, %v1483
  %v2252 = vmul.f32 %v1484, %v1484
  %v2253 = vmul.f32 %v1485, %v1485
  %v2254 = vmul.f32 %v1486, %v1486
  %v2255 = vmul.f32 %v1487, %v1487
  %v2256 = vmul.f32 %v1488, %v1488
  %v2257 = vmul.f32 %v1489, %v1489
  %v2258 = vmul.f32 %v1490, %v1490
  %v2259 = vmul.f32 %v1491, %v1491
  %v2260 = vmul.f32 %v1492, %v1492
  %v2261 = vmul.f32 %v1493, %v1493
  %v2262 = vmul.f32 %v1494, %v1494
  %v2263 = vmul.f32 %v1495, %v1495
  %v2264 = vmul.f32 %v1496, %v1496
  %v2265 = vmul.f32 %v1497, %v1497
  %v2266 = vmul.f32 %v1498, %v1498
  %v2267 = vmul.f32 %v1499, %v1499
  %v2268 = vmul.f32 %v1500, %v1500
  %v2269 = vmul.f32 %v1501, %v1501
  %v2270 = vmul.f32 %v1502, %v1502
  %v2271 = vmul.f32 %v1503, %v1503
  %v2272 = vmul.f32 %v1504, %v1504
  %v2273 = vmul.f32 %v1505, %v1505
  %v2274 = vmul.f32 %v1506, %v1506
  %v2275 = vmul.f32 %v1507, %v1507
  %v2276 = vmul.f32 %v1508, %v1508
  %v2277 = vmul.f32 %v1509, %v1509
  %v2278 = vmul.f32 %v1510, %v1510
  %v2279 = vsub.f32 %v2023, %v2151
  %v2280 = vsub.f32 %v2024, %v2152
  %v2281 = vsub.f32 %v2025, %v2153
  %v2282 = vsub.f32 %v2026, %v2154
  %v2283 = vsub.f32 %v2027, %v2155
  %v2284 = vsub.f32 %v2028, %v2156
  %v2285 = vsub.f32 %v2029, %v2157
  %v2286 = vsub.f32 %v2030, %v2158
  %v2287 = vsub.f32 %v2031, %v2159
  %v2288 = vsub.f32 %v2032, %v2160
  %v2289 = vsub.f32 %v2033, %v2161
  %v2290 = vsub.f32 %v2034, %v2162
  %v2291 = vsub.f32 %v2035, %v2163
  %v2292 = vsub.f32 %v2036, %v2164
  %v2293 = vsub.f32 %v2037, %v2165
  %v2294 = vsub.f32 %v2038, %v2166
  %v2295 = vsub.f32 %v2039, %v2167
  %v2296 = vsub.f32 %v2040, %v2168
  %v2297 = vsub.f32 %v2041, %v2169
  %v2298 = vsub.f32 %v2042, %v2170
  %v2299 = vsub.f32 %v2043, %v2171
  %v2300 = vsub.f32 %v2044, %v2172
  %v2301 = vsub.f32 %v2045, %v2173
  %v2302 = vsub.f32 %v2046, %v2174
  %v2303 = vsub.f32 %v2047, %v2175
  %v2304 = vsub.f32 %v2048, %v2176
  %v2305 = vsub.f32 %v2049, %v2177
  %v2306 = vsub.f32 %v2050, %v2178
  %v2307 = vsub.f32 %v2051, %v2179
  %v2308 = vsub.f32 %v2052, %v2180
  %v2309 = vsub.f32 %v2053, %v2181
  %v2310 = vsub.f32 %v2054, %v2182
  %v2311 = vsub.f32 %v2055, %v2183
  %v2312 = vsub.f32 %v2056, %v2184
  %v2313 = vsub.f32 %v2057, %v2185
  %v2314 = vsub.f32 %v2058, %v2186
  %v2315 = vsub.f32 %v2059, %v2187
  %v2316 = vsub.f32 %v2060, %v2188
  %v2317 = vsub.f32 %v2061, %v2189
  %v2318 = vsub.f32 %v2062, %v2190
  %v2319 = vsub.f32 %v2063, %v2191
  %v2320 = vsub.f32 %v2064, %v2192
  %v2321 = vsub.f32 %v2065, %v2193
  %v2322 = vsub.f32 %v2066, %v2194
  %v2323 = vsub.f32 %v2067, %v2195
  %v2324 = vsub.f32 %v2068, %v2196
  %v2325 = vsub.f32 %v2069, %v2197
  %v2326 = vsub.f32 %v2070, %v2198
  %v2327 = vsub.f32 %v2071, %v2199
  %v2328 = vsub.f32 %v2072, %v2200
  %v2329 = vsub.f32 %v2073, %v2201
  %v2330 = vsub.f32 %v2074, %v2202
  %v2331 = vsub.f32 %v2075, %v2203
  %v2332 = vsub.f32 %v2076, %v2204
  %v2333 = vsub.f32 %v2077, %v2205
  %v2334 = vsub.f32 %v2078, %v2206
  %v2335 = vsub.f32 %v2079, %v2207
  %v2336 = vsub.f32 %v2080, %v2208
  %v2337 = vsub.f32 %v2081, %v2209
  %v2338 = vsub.f32 %v2082, %v2210
  %v2339 = vsub.f32 %v2083, %v2211
  %v2340 = vsub.f32 %v2084, %v2212
  %v2341 = vsub.f32 %v2085, %v2213
  %v2342 = vsub.f32 %v2086, %v2214
  %v2343 = vsub.f32 %v2087, %v2215
  %v2344 = vsub.f32 %v2088, %v2216
  %v2345 = vsub.f32 %v2089, %v2217
  %v2346 = vsub.f32 %v2090, %v2218
  %v2347 = vsub.f32 %v2091, %v2219
  %v2348 = vsub.f32 %v2092, %v2220
  %v2349 = vsub.f32 %v2093, %v2221
  %v2350 = vsub.f32 %v2094, %v2222
  %v2351 = vsub.f32 %v2095, %v2223
  %v2352 = vsub.f32 %v2096, %v2224
  %v2353 = vsub.f32 %v2097, %v2225
  %v2354 = vsub.f32 %v2098, %v2226
  %v2355 = vsub.f32 %v2099, %v2227
  %v2356 = vsub.f32 %v2100, %v2228
  %v2357 = vsub.f32 %v2101, %v2229
  %v2358 = vsub.f32 %v2102, %v2230
  %v2359 = vsub.f32 %v2103, %v2231
  %v2360 = vsub.f32 %v2104, %v2232
  %v2361 = vsub.f32 %v2105, %v2233
  %v2362 = vsub.f32 %v2106, %v2234
  %v2363 = vsub.f32 %v2107, %v2235
  %v2364 = vsub.f32 %v2108, %v2236
  %v2365 = vsub.f32 %v2109, %v2237
  %v2366 = vsub.f32 %v2110, %v2238
  %v2367 = vsub.f32 %v2111, %v2239
  %v2368 = vsub.f32 %v2112, %v2240
  %v2369 = vsub.f32 %v2113, %v2241
  %v2370 = vsub.f32 %v2114, %v2242
  %v2371 = vsub.f32 %v2115, %v2243
  %v2372 = vsub.f32 %v2116, %v2244
  %v2373 = vsub.f32 %v2117, %v2245
  %v2374 = vsub.f32 %v2118, %v2246
  %v2375 = vsub.f32 %v2119, %v2247
  %v2376 = vsub.f32 %v2120, %v2248
  %v2377 = vsub.f32 %v2121, %v2249
  %v2378 = vsub.f32 %v2122, %v2250
  %v2379 = vsub.f32 %v2123, %v2251
  %v2380 = vsub.f32 %v2124, %v2252
  %v2381 = vsub.f32 %v2125, %v2253
  %v2382 = vsub.f32 %v2126, %v2254
  %v2383 = vsub.f32 %v2127, %v2255
  %v2384 = vsub.f32 %v2128, %v2256
  %v2385 = vsub.f32 %v2129, %v2257
  %v2386 = vsub.f32 %v2130, %v2258
  %v2387 = vsub.f32 %v2131, %v2259
  %v2388 = vsub.f32 %v2132, %v2260
  %v2389 = vsub.f32 %v2133, %v2261
  %v2390 = vsub.f32 %v2134, %v2262
  %v2391 = vsub.f32 %v2135, %v2263
  %v2392 = vsub.f32 %v2136, %v2264
  %v2393 = vsub.f32 %v2137, %v2265
  %v2394 = vsub.f32 %v2138, %v2266
  %v2395 = vsub.f32 %v2139, %v2267
  %v2396 = vsub.f32 %v2140, %v2268
  %v2397 = vsub.f32 %v2141, %v2269
  %v2398 = vsub.f32 %v2142, %v2270
  %v2399 = vsub.f32 %v2143, %v2271
  %v2400 = vsub.f32 %v2144, %v2272
  %v2401 = vsub.f32 %v2145, %v2273
  %v2402 = vsub.f32 %v2146, %v2274
  %v2403 = vsub.f32 %v2147, %v2275
  %v2404 = vsub.f32 %v2148, %v2276
  %v2405 = vsub.f32 %v2149, %v2277
  %v2406 = vsub.f32 %v2150, %v2278
  %v2407 = vsub.f32 %v679, %v1383
  %v2408 = vsub.f32 %v681, %v1384
  %v2409 = vsub.f32 %v684, %v1385
  %v2410 = vsub.f32 %v686, %v1386
  %v2411 = vsub.f32 %v689, %v1387
  %v2412 = vsub.f32 %v691, %v1388
  %v2413 = vsub.f32 %v694, %v1389
  %v2414 = vsub.f32 %v696, %v1390
  %v2415 = vsub.f32 %v699, %v1391
  %v2416 = vsub.f32 %v701, %v1392
  %v2417 = vsub.f32 %v704, %v1393
  %v2418 = vsub.f32 %v706, %v1394
  %v2419 = vsub.f32 %v709, %v1395
  %v2420 = vsub.f32 %v711, %v1396
  %v2421 = vsub.f32 %v714, %v1397
  %v2422 = vsub.f32 %v716, %v1398
  %v2423 = vsub.f32 %v719, %v1399
  %v2424 = vsub.f32 %v721, %v1400
  %v2425 = vsub.f32 %v724, %v1401
  %v2426 = vsub.f32 %v726, %v1402
  %v2427 = vsub.f32 %v729, %v1403
  %v2428 = vsub.f32 %v731, %v1404
  %v2429 = vsub.f32 %v734, %v1405
  %v2430 = vsub.f32 %v736, %v1406
  %v2431 = vsub.f32 %v739, %v1407
  %v2432 = vsub.f32 %v741, %v1408
  %v2433 = vsub.f32 %v744, %v1409
  %v2434 = vsub.f32 %v746, %v1410
  %v2435 = vsub.f32 %v749, %v1411
  %v2436 = vsub.f32 %v751, %v1412
  %v2437 = vsub.f32 %v754, %v1413
  %v2438 = vsub.f32 %v756, %v1414
  %v2439 = vsub.f32 %v759, %v1415
  %v2440 = vsub.f32 %v761, %v1416
  %v2441 = vsub.f32 %v764, %v1417
  %v2442 = vsub.f32 %v766, %v1418
  %v2443 = vsub.f32 %v769, %v1419
  %v2444 = vsub.f32 %v771, %v1420
  %v2445 = vsub.f32 %v774, %v1421
  %v2446 = vsub.f32 %v776, %v1422
  %v2447 = vsub.f32 %v779, %v1423
  %v2448 = vsub.f32 %v781, %v1424
  %v2449 = vsub.f32 %v784, %v1425
  %v2450 = vsub.f32 %v786, %v1426
  %v2451 = vsub.f32 %v789, %v1427
  %v2452 = vsub.f32 %v791, %v1428
  %v2453 = vsub.f32 %v794, %v1429
  %v2454 = vsub.f32 %v796, %v1430
  %v2455 = vsub.f32 %v799, %v1431
  %v2456 = vsub.f32 %v801, %v1432
  %v2457 = vsub.f32 %v804, %v1433
  %v2458 = vsub.f32 %v806, %v1434
  %v2459 = vsub.f32 %v809, %v1435
  %v2460 = vsub.f32 %v811, %v1436
  %v2461 = vsub.f32 %v814, %v1437
  %v2462 = vsub.f32 %v816, %v1438
  %v2463 = vsub.f32 %v819, %v1439
  %v2464 = vsub.f32 %v821, %v1440
  %v2465 = vsub.f32 %v824, %v1441
  %v2466 = vsub.f32 %v826, %v1442
  %v2467 = vsub.f32 %v829, %v1443
  %v2468 = vsub.f32 %v831, %v1444
  %v2469 = vsub.f32 %v834, %v1445
  %v2470 = vsub.f32 %v836, %v1446
  %v2471 = vsub.f32 %v839, %v1447
  %v2472 = vsub.f32 %v841, %v1448
  %v2473 = vsub.f32 %v844, %v1449
  %v2474 = vsub.f32 %v846, %v1450
  %v2475 = vsub.f32 %v849, %v1451
  %v2476 = vsub.f32 %v851, %v1452
  %v2477 = vsub.f32 %v854, %v1453
  %v2478 = vsub.f32 %v856, %v1454
  %v2479 = vsub.f32 %v859, %v1455
  %v2480 = vsub.f32 %v861, %v1456
  %v2481 = vsub.f32 %v864, %v1457
  %v2482 = vsub.f32 %v866, %v1458
  %v2483 = vsub.f32 %v869, %v1459
  %v2484 = vsub.f32 %v871, %v1460
  %v2485 = vsub.f32 %v874, %v1461
  %v2486 = vsub.f32 %v876, %v1462
  %v2487 = vsub.f32 %v879, %v1463
  %v2488 = vsub.f32 %v881, %v1464
  %v2489 = vsub.f32 %v884, %v1465
  %v2490 = vsub.f32 %v886, %v1466
  %v2491 = vsub.f32 %v889, %v1467
  %v2492 = vsub.f32 %v891, %v1468
  %v2493 = vsub.f32 %v894, %v1469
  %v2494 = vsub.f32 %v896, %v1470
  %v2495 = vsub.f32 %v899, %v1471
  %v2496 = vsub.f32 %v901, %v1472
  %v2497 = vsub.f32 %v904, %v1473
  %v2498 = vsub.f32 %v906, %v1474
  %v2499 = vsub.f32 %v909, %v1475
  %v2500 = vsub.f32 %v911, %v1476
  %v2501 = vsub.f32 %v914, %v1477
  %v2502 = vsub.f32 %v916, %v1478
  %v2503 = vsub.f32 %v919, %v1479
  %v2504 = vsub.f32 %v921, %v1480
  %v2505 = vsub.f32 %v924, %v1481
  %v2506 = vsub.f32 %v926, %v1482
  %v2507 = vsub.f32 %v929, %v1483
  %v2508 = vsub.f32 %v931, %v1484
  %v2509 = vsub.f32 %v934, %v1485
  %v2510 = vsub.f32 %v936, %v1486
  %v2511 = vsub.f32 %v939, %v1487
  %v2512 = vsub.f32 %v941, %v1488
  %v2513 = vsub.f32 %v944, %v1489
  %v2514 = vsub.f32 %v946, %v1490
  %v2515 = vsub.f32 %v949, %v1491
  %v2516 = vsub.f32 %v951, %v1492
  %v2517 = vsub.f32 %v954, %v1493
  %v2518 = vsub.f32 %v956, %v1494
  %v2519 = vsub.f32 %v959, %v1495
  %v2520 = vsub.f32 %v961, %v1496
  %v2521 = vsub.f32 %v964, %v1497
  %v2522 = vsub.f32 %v966, %v1498
  %v2523 = vsub.f32 %v969, %v1499
  %v2524 = vsub.f32 %v971, %v1500
  %v2525 = vsub.f32 %v974, %v1501
  %v2526 = vsub.f32 %v976, %v1502
  %v2527 = vsub.f32 %v979, %v1503
  %v2528 = vsub.f32 %v981, %v1504
  %v2529 = vsub.f32 %v984, %v1505
  %v2530 = vsub.f32 %v986, %v1506
  %v2531 = vsub.f32 %v989, %v1507
  %v2532 = vsub.f32 %v991, %v1508
  %v2533 = vsub.f32 %v994, %v1509
  %v2534 = vsub.f32 %v996, %v1510
  %v2535 = vadd.f32 %v2279, 1e-05
  %v2536 = vadd.f32 %v2280, 1e-05
  %v2537 = vadd.f32 %v2281, 1e-05
  %v2538 = vadd.f32 %v2282, 1e-05
  %v2539 = vadd.f32 %v2283, 1e-05
  %v2540 = vadd.f32 %v2284, 1e-05
  %v2541 = vadd.f32 %v2285, 1e-05
  %v2542 = vadd.f32 %v2286, 1e-05
  %v2543 = vadd.f32 %v2287, 1e-05
  %v2544 = vadd.f32 %v2288, 1e-05
  %v2545 = vadd.f32 %v2289, 1e-05
  %v2546 = vadd.f32 %v2290, 1e-05
  %v2547 = vadd.f32 %v2291, 1e-05
  %v2548 = vadd.f32 %v2292, 1e-05
  %v2549 = vadd.f32 %v2293, 1e-05
  %v2550 = vadd.f32 %v2294, 1e-05
  %v2551 = vadd.f32 %v2295, 1e-05
  %v2552 = vadd.f32 %v2296, 1e-05
  %v2553 = vadd.f32 %v2297, 1e-05
  %v2554 = vadd.f32 %v2298, 1e-05
  %v2555 = vadd.f32 %v2299, 1e-05
  %v2556 = vadd.f32 %v2300, 1e-05
  %v2557 = vadd.f32 %v2301, 1e-05
  %v2558 = vadd.f32 %v2302, 1e-05
  %v2559 = vadd.f32 %v2303, 1e-05
  %v2560 = vadd.f32 %v2304, 1e-05
  %v2561 = vadd.f32 %v2305, 1e-05
  %v2562 = vadd.f32 %v2306, 1e-05
  %v2563 = vadd.f32 %v2307, 1e-05
  %v2564 = vadd.f32 %v2308, 1e-05
  %v2565 = vadd.f32 %v2309, 1e-05
  %v2566 = vadd.f32 %v2310, 1e-05
  %v2567 = vadd.f32 %v2311, 1e-05
  %v2568 = vadd.f32 %v2312, 1e-05
  %v2569 = vadd.f32 %v2313, 1e-05
  %v2570 = vadd.f32 %v2314, 1e-05
  %v2571 = vadd.f32 %v2315, 1e-05
  %v2572 = vadd.f32 %v2316, 1e-05
  %v2573 = vadd.f32 %v2317, 1e-05
  %v2574 = vadd.f32 %v2318, 1e-05
  %v2575 = vadd.f32 %v2319, 1e-05
  %v2576 = vadd.f32 %v2320, 1e-05
  %v2577 = vadd.f32 %v2321, 1e-05
  %v2578 = vadd.f32 %v2322, 1e-05
  %v2579 = vadd.f32 %v2323, 1e-05
  %v2580 = vadd.f32 %v2324, 1e-05
  %v2581 = vadd.f32 %v2325, 1e-05
  %v2582 = vadd.f32 %v2326, 1e-05
  %v2583 = vadd.f32 %v2327, 1e-05
  %v2584 = vadd.f32 %v2328, 1e-05
  %v2585 = vadd.f32 %v2329, 1e-05
  %v2586 = vadd.f32 %v2330, 1e-05
  %v2587 = vadd.f32 %v2331, 1e-05
  %v2588 = vadd.f32 %v2332, 1e-05
  %v2589 = vadd.f32 %v2333, 1e-05
  %v2590 = vadd.f32 %v2334, 1e-05
  %v2591 = vadd.f32 %v2335, 1e-05
  %v2592 = vadd.f32 %v2336, 1e-05
  %v2593 = vadd.f32 %v2337, 1e-05
  %v2594 = vadd.f32 %v2338, 1e-05
  %v2595 = vadd.f32 %v2339, 1e-05
  %v2596 = vadd.f32 %v2340, 1e-05
  %v2597 = vadd.f32 %v2341, 1e-05
  %v2598 = vadd.f32 %v2342, 1e-05
  %v2599 = vadd.f32 %v2343, 1e-05
  %v2600 = vadd.f32 %v2344, 1e-05
  %v2601 = vadd.f32 %v2345, 1e-05
  %v2602 = vadd.f32 %v2346, 1e-05
  %v2603 = vadd.f32 %v2347, 1e-05
  %v2604 = vadd.f32 %v2348, 1e-05
  %v2605 = vadd.f32 %v2349, 1e-05
  %v2606 = vadd.f32 %v2350, 1e-05
  %v2607 = vadd.f32 %v2351, 1e-05
  %v2608 = vadd.f32 %v2352, 1e-05
  %v2609 = vadd.f32 %v2353, 1e-05
  %v2610 = vadd.f32 %v2354, 1e-05
  %v2611 = vadd.f32 %v2355, 1e-05
  %v2612 = vadd.f32 %v2356, 1e-05
  %v2613 = vadd.f32 %v2357, 1e-05
  %v2614 = vadd.f32 %v2358, 1e-05
  %v2615 = vadd.f32 %v2359, 1e-05
  %v2616 = vadd.f32 %v2360, 1e-05
  %v2617 = vadd.f32 %v2361, 1e-05
  %v2618 = vadd.f32 %v2362, 1e-05
  %v2619 = vadd.f32 %v2363, 1e-05
  %v2620 = vadd.f32 %v2364, 1e-05
  %v2621 = vadd.f32 %v2365, 1e-05
  %v2622 = vadd.f32 %v2366, 1e-05
  %v2623 = vadd.f32 %v2367, 1e-05
  %v2624 = vadd.f32 %v2368, 1e-05
  %v2625 = vadd.f32 %v2369, 1e-05
  %v2626 = vadd.f32 %v2370, 1e-05
  %v2627 = vadd.f32 %v2371, 1e-05
  %v2628 = vadd.f32 %v2372, 1e-05
  %v2629 = vadd.f32 %v2373, 1e-05
  %v2630 = vadd.f32 %v2374, 1e-05
  %v2631 = vadd.f32 %v2375, 1e-05
  %v2632 = vadd.f32 %v2376, 1e-05
  %v2633 = vadd.f32 %v2377, 1e-05
  %v2634 = vadd.f32 %v2378, 1e-05
  %v2635 = vadd.f32 %v2379, 1e-05
  %v2636 = vadd.f32 %v2380, 1e-05
  %v2637 = vadd.f32 %v2381, 1e-05
  %v2638 = vadd.f32 %v2382, 1e-05
  %v2639 = vadd.f32 %v2383, 1e-05
  %v2640 = vadd.f32 %v2384, 1e-05
  %v2641 = vadd.f32 %v2385, 1e-05
  %v2642 = vadd.f32 %v2386, 1e-05
  %v2643 = vadd.f32 %v2387, 1e-05
  %v2644 = vadd.f32 %v2388, 1e-05
  %v2645 = vadd.f32 %v2389, 1e-05
  %v2646 = vadd.f32 %v2390, 1e-05
  %v2647 = vadd.f32 %v2391, 1e-05
  %v2648 = vadd.f32 %v2392, 1e-05
  %v2649 = vadd.f32 %v2393, 1e-05
  %v2650 = vadd.f32 %v2394, 1e-05
  %v2651 = vadd.f32 %v2395, 1e-05
  %v2652 = vadd.f32 %v2396, 1e-05
  %v2653 = vadd.f32 %v2397, 1e-05
  %v2654 = vadd.f32 %v2398, 1e-05
  %v2655 = vadd.f32 %v2399, 1e-05
  %v2656 = vadd.f32 %v2400, 1e-05
  %v2657 = vadd.f32 %v2401, 1e-05
  %v2658 = vadd.f32 %v2402, 1e-05
  %v2659 = vadd.f32 %v2403, 1e-05
  %v2660 = vadd.f32 %v2404, 1e-05
  %v2661 = vadd.f32 %v2405, 1e-05
  %v2662 = vadd.f32 %v2406, 1e-05
  %v2663 = vrsqrt.pop %v2535
  %v2664 = vmul.f32 %v2663, %v2535
  %v2665 = vmul.f32 %v2664, %v2663
  %v2666 = vmul.f32 0.5, %v2665
  %v2667 = vsub.f32 1.5, %v2666
  %v2668 = vmul.f32 %v2663, %v2667
  %vm2669 = vweird.f32 %v2535
  %vm2670 = vweird.f32 %v2663
  %vm2671 = vmor %vm2669, %vm2670
  %v2672 = vsel %vm2671, %v2663, %v2668
  %v2673 = vrsqrt.pop %v2536
  %v2674 = vmul.f32 %v2673, %v2536
  %v2675 = vmul.f32 %v2674, %v2673
  %v2676 = vmul.f32 0.5, %v2675
  %v2677 = vsub.f32 1.5, %v2676
  %v2678 = vmul.f32 %v2673, %v2677
  %vm2679 = vweird.f32 %v2536
  %vm2680 = vweird.f32 %v2673
  %vm2681 = vmor %vm2679, %vm2680
  %v2682 = vsel %vm2681, %v2673, %v2678
  %v2683 = vrsqrt.pop %v2537
  %v2684 = vmul.f32 %v2683, %v2537
  %v2685 = vmul.f32 %v2684, %v2683
  %v2686 = vmul.f32 0.5, %v2685
  %v2687 = vsub.f32 1.5, %v2686
  %v2688 = vmul.f32 %v2683, %v2687
  %vm2689 = vweird.f32 %v2537
  %vm2690 = vweird.f32 %v2683
  %vm2691 = vmor %vm2689, %vm2690
  %v2692 = vsel %vm2691, %v2683, %v2688
  %v2693 = vrsqrt.pop %v2538
  %v2694 = vmul.f32 %v2693, %v2538
  %v2695 = vmul.f32 %v2694, %v2693
  %v2696 = vmul.f32 0.5, %v2695
  %v2697 = vsub.f32 1.5, %v2696
  %v2698 = vmul.f32 %v2693, %v2697
  %vm2699 = vweird.f32 %v2538
  %vm2700 = vweird.f32 %v2693
  %vm2701 = vmor %vm2699, %vm2700
  %v2702 = vsel %vm2701, %v2693, %v2698
  %v2703 = vrsqrt.pop %v2539
  %v2704 = vmul.f32 %v2703, %v2539
  %v2705 = vmul.f32 %v2704, %v2703
  %v2706 = vmul.f32 0.5, %v2705
  %v2707 = vsub.f32 1.5, %v2706
  %v2708 = vmul.f32 %v2703, %v2707
  %vm2709 = vweird.f32 %v2539
  %vm2710 = vweird.f32 %v2703
  %vm2711 = vmor %vm2709, %vm2710
  %v2712 = vsel %vm2711, %v2703, %v2708
  %v2713 = vrsqrt.pop %v2540
  %v2714 = vmul.f32 %v2713, %v2540
  %v2715 = vmul.f32 %v2714, %v2713
  %v2716 = vmul.f32 0.5, %v2715
  %v2717 = vsub.f32 1.5, %v2716
  %v2718 = vmul.f32 %v2713, %v2717
  %vm2719 = vweird.f32 %v2540
  %vm2720 = vweird.f32 %v2713
  %vm2721 = vmor %vm2719, %vm2720
  %v2722 = vsel %vm2721, %v2713, %v2718
  %v2723 = vrsqrt.pop %v2541
  %v2724 = vmul.f32 %v2723, %v2541
  %v2725 = vmul.f32 %v2724, %v2723
  %v2726 = vmul.f32 0.5, %v2725
  %v2727 = vsub.f32 1.5, %v2726
  %v2728 = vmul.f32 %v2723, %v2727
  %vm2729 = vweird.f32 %v2541
  %vm2730 = vweird.f32 %v2723
  %vm2731 = vmor %vm2729, %vm2730
  %v2732 = vsel %vm2731, %v2723, %v2728
  %v2733 = vrsqrt.pop %v2542
  %v2734 = vmul.f32 %v2733, %v2542
  %v2735 = vmul.f32 %v2734, %v2733
  %v2736 = vmul.f32 0.5, %v2735
  %v2737 = vsub.f32 1.5, %v2736
  %v2738 = vmul.f32 %v2733, %v2737
  %vm2739 = vweird.f32 %v2542
  %vm2740 = vweird.f32 %v2733
  %vm2741 = vmor %vm2739, %vm2740
  %v2742 = vsel %vm2741, %v2733, %v2738
  %v2743 = vrsqrt.pop %v2543
  %v2744 = vmul.f32 %v2743, %v2543
  %v2745 = vmul.f32 %v2744, %v2743
  %v2746 = vmul.f32 0.5, %v2745
  %v2747 = vsub.f32 1.5, %v2746
  %v2748 = vmul.f32 %v2743, %v2747
  %vm2749 = vweird.f32 %v2543
  %vm2750 = vweird.f32 %v2743
  %vm2751 = vmor %vm2749, %vm2750
  %v2752 = vsel %vm2751, %v2743, %v2748
  %v2753 = vrsqrt.pop %v2544
  %v2754 = vmul.f32 %v2753, %v2544
  %v2755 = vmul.f32 %v2754, %v2753
  %v2756 = vmul.f32 0.5, %v2755
  %v2757 = vsub.f32 1.5, %v2756
  %v2758 = vmul.f32 %v2753, %v2757
  %vm2759 = vweird.f32 %v2544
  %vm2760 = vweird.f32 %v2753
  %vm2761 = vmor %vm2759, %vm2760
  %v2762 = vsel %vm2761, %v2753, %v2758
  %v2763 = vrsqrt.pop %v2545
  %v2764 = vmul.f32 %v2763, %v2545
  %v2765 = vmul.f32 %v2764, %v2763
  %v2766 = vmul.f32 0.5, %v2765
  %v2767 = vsub.f32 1.5, %v2766
  %v2768 = vmul.f32 %v2763, %v2767
  %vm2769 = vweird.f32 %v2545
  %vm2770 = vweird.f32 %v2763
  %vm2771 = vmor %vm2769, %vm2770
  %v2772 = vsel %vm2771, %v2763, %v2768
  %v2773 = vrsqrt.pop %v2546
  %v2774 = vmul.f32 %v2773, %v2546
  %v2775 = vmul.f32 %v2774, %v2773
  %v2776 = vmul.f32 0.5, %v2775
  %v2777 = vsub.f32 1.5, %v2776
  %v2778 = vmul.f32 %v2773, %v2777
  %vm2779 = vweird.f32 %v2546
  %vm2780 = vweird.f32 %v2773
  %vm2781 = vmor %vm2779, %vm2780
  %v2782 = vsel %vm2781, %v2773, %v2778
  %v2783 = vrsqrt.pop %v2547
  %v2784 = vmul.f32 %v2783, %v2547
  %v2785 = vmul.f32 %v2784, %v2783
  %v2786 = vmul.f32 0.5, %v2785
  %v2787 = vsub.f32 1.5, %v2786
  %v2788 = vmul.f32 %v2783, %v2787
  %vm2789 = vweird.f32 %v2547
  %vm2790 = vweird.f32 %v2783
  %vm2791 = vmor %vm2789, %vm2790
  %v2792 = vsel %vm2791, %v2783, %v2788
  %v2793 = vrsqrt.pop %v2548
  %v2794 = vmul.f32 %v2793, %v2548
  %v2795 = vmul.f32 %v2794, %v2793
  %v2796 = vmul.f32 0.5, %v2795
  %v2797 = vsub.f32 1.5, %v2796
  %v2798 = vmul.f32 %v2793, %v2797
  %vm2799 = vweird.f32 %v2548
  %vm2800 = vweird.f32 %v2793
  %vm2801 = vmor %vm2799, %vm2800
  %v2802 = vsel %vm2801, %v2793, %v2798
  %v2803 = vrsqrt.pop %v2549
  %v2804 = vmul.f32 %v2803, %v2549
  %v2805 = vmul.f32 %v2804, %v2803
  %v2806 = vmul.f32 0.5, %v2805
  %v2807 = vsub.f32 1.5, %v2806
  %v2808 = vmul.f32 %v2803, %v2807
  %vm2809 = vweird.f32 %v2549
  %vm2810 = vweird.f32 %v2803
  %vm2811 = vmor %vm2809, %vm2810
  %v2812 = vsel %vm2811, %v2803, %v2808
  %v2813 = vrsqrt.pop %v2550
  %v2814 = vmul.f32 %v2813, %v2550
  %v2815 = vmul.f32 %v2814, %v2813
  %v2816 = vmul.f32 0.5, %v2815
  %v2817 = vsub.f32 1.5, %v2816
  %v2818 = vmul.f32 %v2813, %v2817
  %vm2819 = vweird.f32 %v2550
  %vm2820 = vweird.f32 %v2813
  %vm2821 = vmor %vm2819, %vm2820
  %v2822 = vsel %vm2821, %v2813, %v2818
  %v2823 = vrsqrt.pop %v2551
  %v2824 = vmul.f32 %v2823, %v2551
  %v2825 = vmul.f32 %v2824, %v2823
  %v2826 = vmul.f32 0.5, %v2825
  %v2827 = vsub.f32 1.5, %v2826
  %v2828 = vmul.f32 %v2823, %v2827
  %vm2829 = vweird.f32 %v2551
  %vm2830 = vweird.f32 %v2823
  %vm2831 = vmor %vm2829, %vm2830
  %v2832 = vsel %vm2831, %v2823, %v2828
  %v2833 = vrsqrt.pop %v2552
  %v2834 = vmul.f32 %v2833, %v2552
  %v2835 = vmul.f32 %v2834, %v2833
  %v2836 = vmul.f32 0.5, %v2835
  %v2837 = vsub.f32 1.5, %v2836
  %v2838 = vmul.f32 %v2833, %v2837
  %vm2839 = vweird.f32 %v2552
  %vm2840 = vweird.f32 %v2833
  %vm2841 = vmor %vm2839, %vm2840
  %v2842 = vsel %vm2841, %v2833, %v2838
  %v2843 = vrsqrt.pop %v2553
  %v2844 = vmul.f32 %v2843, %v2553
  %v2845 = vmul.f32 %v2844, %v2843
  %v2846 = vmul.f32 0.5, %v2845
  %v2847 = vsub.f32 1.5, %v2846
  %v2848 = vmul.f32 %v2843, %v2847
  %vm2849 = vweird.f32 %v2553
  %vm2850 = vweird.f32 %v2843
  %vm2851 = vmor %vm2849, %vm2850
  %v2852 = vsel %vm2851, %v2843, %v2848
  %v2853 = vrsqrt.pop %v2554
  %v2854 = vmul.f32 %v2853, %v2554
  %v2855 = vmul.f32 %v2854, %v2853
  %v2856 = vmul.f32 0.5, %v2855
  %v2857 = vsub.f32 1.5, %v2856
  %v2858 = vmul.f32 %v2853, %v2857
  %vm2859 = vweird.f32 %v2554
  %vm2860 = vweird.f32 %v2853
  %vm2861 = vmor %vm2859, %vm2860
  %v2862 = vsel %vm2861, %v2853, %v2858
  %v2863 = vrsqrt.pop %v2555
  %v2864 = vmul.f32 %v2863, %v2555
  %v2865 = vmul.f32 %v2864, %v2863
  %v2866 = vmul.f32 0.5, %v2865
  %v2867 = vsub.f32 1.5, %v2866
  %v2868 = vmul.f32 %v2863, %v2867
  %vm2869 = vweird.f32 %v2555
  %vm2870 = vweird.f32 %v2863
  %vm2871 = vmor %vm2869, %vm2870
  %v2872 = vsel %vm2871, %v2863, %v2868
  %v2873 = vrsqrt.pop %v2556
  %v2874 = vmul.f32 %v2873, %v2556
  %v2875 = vmul.f32 %v2874, %v2873
  %v2876 = vmul.f32 0.5, %v2875
  %v2877 = vsub.f32 1.5, %v2876
  %v2878 = vmul.f32 %v2873, %v2877
  %vm2879 = vweird.f32 %v2556
  %vm2880 = vweird.f32 %v2873
  %vm2881 = vmor %vm2879, %vm2880
  %v2882 = vsel %vm2881, %v2873, %v2878
  %v2883 = vrsqrt.pop %v2557
  %v2884 = vmul.f32 %v2883, %v2557
  %v2885 = vmul.f32 %v2884, %v2883
  %v2886 = vmul.f32 0.5, %v2885
  %v2887 = vsub.f32 1.5, %v2886
  %v2888 = vmul.f32 %v2883, %v2887
  %vm2889 = vweird.f32 %v2557
  %vm2890 = vweird.f32 %v2883
  %vm2891 = vmor %vm2889, %vm2890
  %v2892 = vsel %vm2891, %v2883, %v2888
  %v2893 = vrsqrt.pop %v2558
  %v2894 = vmul.f32 %v2893, %v2558
  %v2895 = vmul.f32 %v2894, %v2893
  %v2896 = vmul.f32 0.5, %v2895
  %v2897 = vsub.f32 1.5, %v2896
  %v2898 = vmul.f32 %v2893, %v2897
  %vm2899 = vweird.f32 %v2558
  %vm2900 = vweird.f32 %v2893
  %vm2901 = vmor %vm2899, %vm2900
  %v2902 = vsel %vm2901, %v2893, %v2898
  %v2903 = vrsqrt.pop %v2559
  %v2904 = vmul.f32 %v2903, %v2559
  %v2905 = vmul.f32 %v2904, %v2903
  %v2906 = vmul.f32 0.5, %v2905
  %v2907 = vsub.f32 1.5, %v2906
  %v2908 = vmul.f32 %v2903, %v2907
  %vm2909 = vweird.f32 %v2559
  %vm2910 = vweird.f32 %v2903
  %vm2911 = vmor %vm2909, %vm2910
  %v2912 = vsel %vm2911, %v2903, %v2908
  %v2913 = vrsqrt.pop %v2560
  %v2914 = vmul.f32 %v2913, %v2560
  %v2915 = vmul.f32 %v2914, %v2913
  %v2916 = vmul.f32 0.5, %v2915
  %v2917 = vsub.f32 1.5, %v2916
  %v2918 = vmul.f32 %v2913, %v2917
  %vm2919 = vweird.f32 %v2560
  %vm2920 = vweird.f32 %v2913
  %vm2921 = vmor %vm2919, %vm2920
  %v2922 = vsel %vm2921, %v2913, %v2918
  %v2923 = vrsqrt.pop %v2561
  %v2924 = vmul.f32 %v2923, %v2561
  %v2925 = vmul.f32 %v2924, %v2923
  %v2926 = vmul.f32 0.5, %v2925
  %v2927 = vsub.f32 1.5, %v2926
  %v2928 = vmul.f32 %v2923, %v2927
  %vm2929 = vweird.f32 %v2561
  %vm2930 = vweird.f32 %v2923
  %vm2931 = vmor %vm2929, %vm2930
  %v2932 = vsel %vm2931, %v2923, %v2928
  %v2933 = vrsqrt.pop %v2562
  %v2934 = vmul.f32 %v2933, %v2562
  %v2935 = vmul.f32 %v2934, %v2933
  %v2936 = vmul.f32 0.5, %v2935
  %v2937 = vsub.f32 1.5, %v2936
  %v2938 = vmul.f32 %v2933, %v2937
  %vm2939 = vweird.f32 %v2562
  %vm2940 = vweird.f32 %v2933
  %vm2941 = vmor %vm2939, %vm2940
  %v2942 = vsel %vm2941, %v2933, %v2938
  %v2943 = vrsqrt.pop %v2563
  %v2944 = vmul.f32 %v2943, %v2563
  %v2945 = vmul.f32 %v2944, %v2943
  %v2946 = vmul.f32 0.5, %v2945
  %v2947 = vsub.f32 1.5, %v2946
  %v2948 = vmul.f32 %v2943, %v2947
  %vm2949 = vweird.f32 %v2563
  %vm2950 = vweird.f32 %v2943
  %vm2951 = vmor %vm2949, %vm2950
  %v2952 = vsel %vm2951, %v2943, %v2948
  %v2953 = vrsqrt.pop %v2564
  %v2954 = vmul.f32 %v2953, %v2564
  %v2955 = vmul.f32 %v2954, %v2953
  %v2956 = vmul.f32 0.5, %v2955
  %v2957 = vsub.f32 1.5, %v2956
  %v2958 = vmul.f32 %v2953, %v2957
  %vm2959 = vweird.f32 %v2564
  %vm2960 = vweird.f32 %v2953
  %vm2961 = vmor %vm2959, %vm2960
  %v2962 = vsel %vm2961, %v2953, %v2958
  %v2963 = vrsqrt.pop %v2565
  %v2964 = vmul.f32 %v2963, %v2565
  %v2965 = vmul.f32 %v2964, %v2963
  %v2966 = vmul.f32 0.5, %v2965
  %v2967 = vsub.f32 1.5, %v2966
  %v2968 = vmul.f32 %v2963, %v2967
  %vm2969 = vweird.f32 %v2565
  %vm2970 = vweird.f32 %v2963
  %vm2971 = vmor %vm2969, %vm2970
  %v2972 = vsel %vm2971, %v2963, %v2968
  %v2973 = vrsqrt.pop %v2566
  %v2974 = vmul.f32 %v2973, %v2566
  %v2975 = vmul.f32 %v2974, %v2973
  %v2976 = vmul.f32 0.5, %v2975
  %v2977 = vsub.f32 1.5, %v2976
  %v2978 = vmul.f32 %v2973, %v2977
  %vm2979 = vweird.f32 %v2566
  %vm2980 = vweird.f32 %v2973
  %vm2981 = vmor %vm2979, %vm2980
  %v2982 = vsel %vm2981, %v2973, %v2978
  %v2983 = vrsqrt.pop %v2567
  %v2984 = vmul.f32 %v2983, %v2567
  %v2985 = vmul.f32 %v2984, %v2983
  %v2986 = vmul.f32 0.5, %v2985
  %v2987 = vsub.f32 1.5, %v2986
  %v2988 = vmul.f32 %v2983, %v2987
  %vm2989 = vweird.f32 %v2567
  %vm2990 = vweird.f32 %v2983
  %vm2991 = vmor %vm2989, %vm2990
  %v2992 = vsel %vm2991, %v2983, %v2988
  %v2993 = vrsqrt.pop %v2568
  %v2994 = vmul.f32 %v2993, %v2568
  %v2995 = vmul.f32 %v2994, %v2993
  %v2996 = vmul.f32 0.5, %v2995
  %v2997 = vsub.f32 1.5, %v2996
  %v2998 = vmul.f32 %v2993, %v2997
  %vm2999 = vweird.f32 %v2568
  %vm3000 = vweird.f32 %v2993
  %vm3001 = vmor %vm2999, %vm3000
  %v3002 = vsel %vm3001, %v2993, %v2998
  %v3003 = vrsqrt.pop %v2569
  %v3004 = vmul.f32 %v3003, %v2569
  %v3005 = vmul.f32 %v3004, %v3003
  %v3006 = vmul.f32 0.5, %v3005
  %v3007 = vsub.f32 1.5, %v3006
  %v3008 = vmul.f32 %v3003, %v3007
  %vm3009 = vweird.f32 %v2569
  %vm3010 = vweird.f32 %v3003
  %vm3011 = vmor %vm3009, %vm3010
  %v3012 = vsel %vm3011, %v3003, %v3008
  %v3013 = vrsqrt.pop %v2570
  %v3014 = vmul.f32 %v3013, %v2570
  %v3015 = vmul.f32 %v3014, %v3013
  %v3016 = vmul.f32 0.5, %v3015
  %v3017 = vsub.f32 1.5, %v3016
  %v3018 = vmul.f32 %v3013, %v3017
  %vm3019 = vweird.f32 %v2570
  %vm3020 = vweird.f32 %v3013
  %vm3021 = vmor %vm3019, %vm3020
  %v3022 = vsel %vm3021, %v3013, %v3018
  %v3023 = vrsqrt.pop %v2571
  %v3024 = vmul.f32 %v3023, %v2571
  %v3025 = vmul.f32 %v3024, %v3023
  %v3026 = vmul.f32 0.5, %v3025
  %v3027 = vsub.f32 1.5, %v3026
  %v3028 = vmul.f32 %v3023, %v3027
  %vm3029 = vweird.f32 %v2571
  %vm3030 = vweird.f32 %v3023
  %vm3031 = vmor %vm3029, %vm3030
  %v3032 = vsel %vm3031, %v3023, %v3028
  %v3033 = vrsqrt.pop %v2572
  %v3034 = vmul.f32 %v3033, %v2572
  %v3035 = vmul.f32 %v3034, %v3033
  %v3036 = vmul.f32 0.5, %v3035
  %v3037 = vsub.f32 1.5, %v3036
  %v3038 = vmul.f32 %v3033, %v3037
  %vm3039 = vweird.f32 %v2572
  %vm3040 = vweird.f32 %v3033
  %vm3041 = vmor %vm3039, %vm3040
  %v3042 = vsel %vm3041, %v3033, %v3038
  %v3043 = vrsqrt.pop %v2573
  %v3044 = vmul.f32 %v3043, %v2573
  %v3045 = vmul.f32 %v3044, %v3043
  %v3046 = vmul.f32 0.5, %v3045
  %v3047 = vsub.f32 1.5, %v3046
  %v3048 = vmul.f32 %v3043, %v3047
  %vm3049 = vweird.f32 %v2573
  %vm3050 = vweird.f32 %v3043
  %vm3051 = vmor %vm3049, %vm3050
  %v3052 = vsel %vm3051, %v3043, %v3048
  %v3053 = vrsqrt.pop %v2574
  %v3054 = vmul.f32 %v3053, %v2574
  %v3055 = vmul.f32 %v3054, %v3053
  %v3056 = vmul.f32 0.5, %v3055
  %v3057 = vsub.f32 1.5, %v3056
  %v3058 = vmul.f32 %v3053, %v3057
  %vm3059 = vweird.f32 %v2574
  %vm3060 = vweird.f32 %v3053
  %vm3061 = vmor %vm3059, %vm3060
  %v3062 = vsel %vm3061, %v3053, %v3058
  %v3063 = vrsqrt.pop %v2575
  %v3064 = vmul.f32 %v3063, %v2575
  %v3065 = vmul.f32 %v3064, %v3063
  %v3066 = vmul.f32 0.5, %v3065
  %v3067 = vsub.f32 1.5, %v3066
  %v3068 = vmul.f32 %v3063, %v3067
  %vm3069 = vweird.f32 %v2575
  %vm3070 = vweird.f32 %v3063
  %vm3071 = vmor %vm3069, %vm3070
  %v3072 = vsel %vm3071, %v3063, %v3068
  %v3073 = vrsqrt.pop %v2576
  %v3074 = vmul.f32 %v3073, %v2576
  %v3075 = vmul.f32 %v3074, %v3073
  %v3076 = vmul.f32 0.5, %v3075
  %v3077 = vsub.f32 1.5, %v3076
  %v3078 = vmul.f32 %v3073, %v3077
  %vm3079 = vweird.f32 %v2576
  %vm3080 = vweird.f32 %v3073
  %vm3081 = vmor %vm3079, %vm3080
  %v3082 = vsel %vm3081, %v3073, %v3078
  %v3083 = vrsqrt.pop %v2577
  %v3084 = vmul.f32 %v3083, %v2577
  %v3085 = vmul.f32 %v3084, %v3083
  %v3086 = vmul.f32 0.5, %v3085
  %v3087 = vsub.f32 1.5, %v3086
  %v3088 = vmul.f32 %v3083, %v3087
  %vm3089 = vweird.f32 %v2577
  %vm3090 = vweird.f32 %v3083
  %vm3091 = vmor %vm3089, %vm3090
  %v3092 = vsel %vm3091, %v3083, %v3088
  %v3093 = vrsqrt.pop %v2578
  %v3094 = vmul.f32 %v3093, %v2578
  %v3095 = vmul.f32 %v3094, %v3093
  %v3096 = vmul.f32 0.5, %v3095
  %v3097 = vsub.f32 1.5, %v3096
  %v3098 = vmul.f32 %v3093, %v3097
  %vm3099 = vweird.f32 %v2578
  %vm3100 = vweird.f32 %v3093
  %vm3101 = vmor %vm3099, %vm3100
  %v3102 = vsel %vm3101, %v3093, %v3098
  %v3103 = vrsqrt.pop %v2579
  %v3104 = vmul.f32 %v3103, %v2579
  %v3105 = vmul.f32 %v3104, %v3103
  %v3106 = vmul.f32 0.5, %v3105
  %v3107 = vsub.f32 1.5, %v3106
  %v3108 = vmul.f32 %v3103, %v3107
  %vm3109 = vweird.f32 %v2579
  %vm3110 = vweird.f32 %v3103
  %vm3111 = vmor %vm3109, %vm3110
  %v3112 = vsel %vm3111, %v3103, %v3108
  %v3113 = vrsqrt.pop %v2580
  %v3114 = vmul.f32 %v3113, %v2580
  %v3115 = vmul.f32 %v3114, %v3113
  %v3116 = vmul.f32 0.5, %v3115
  %v3117 = vsub.f32 1.5, %v3116
  %v3118 = vmul.f32 %v3113, %v3117
  %vm3119 = vweird.f32 %v2580
  %vm3120 = vweird.f32 %v3113
  %vm3121 = vmor %vm3119, %vm3120
  %v3122 = vsel %vm3121, %v3113, %v3118
  %v3123 = vrsqrt.pop %v2581
  %v3124 = vmul.f32 %v3123, %v2581
  %v3125 = vmul.f32 %v3124, %v3123
  %v3126 = vmul.f32 0.5, %v3125
  %v3127 = vsub.f32 1.5, %v3126
  %v3128 = vmul.f32 %v3123, %v3127
  %vm3129 = vweird.f32 %v2581
  %vm3130 = vweird.f32 %v3123
  %vm3131 = vmor %vm3129, %vm3130
  %v3132 = vsel %vm3131, %v3123, %v3128
  %v3133 = vrsqrt.pop %v2582
  %v3134 = vmul.f32 %v3133, %v2582
  %v3135 = vmul.f32 %v3134, %v3133
  %v3136 = vmul.f32 0.5, %v3135
  %v3137 = vsub.f32 1.5, %v3136
  %v3138 = vmul.f32 %v3133, %v3137
  %vm3139 = vweird.f32 %v2582
  %vm3140 = vweird.f32 %v3133
  %vm3141 = vmor %vm3139, %vm3140
  %v3142 = vsel %vm3141, %v3133, %v3138
  %v3143 = vrsqrt.pop %v2583
  %v3144 = vmul.f32 %v3143, %v2583
  %v3145 = vmul.f32 %v3144, %v3143
  %v3146 = vmul.f32 0.5, %v3145
  %v3147 = vsub.f32 1.5, %v3146
  %v3148 = vmul.f32 %v3143, %v3147
  %vm3149 = vweird.f32 %v2583
  %vm3150 = vweird.f32 %v3143
  %vm3151 = vmor %vm3149, %vm3150
  %v3152 = vsel %vm3151, %v3143, %v3148
  %v3153 = vrsqrt.pop %v2584
  %v3154 = vmul.f32 %v3153, %v2584
  %v3155 = vmul.f32 %v3154, %v3153
  %v3156 = vmul.f32 0.5, %v3155
  %v3157 = vsub.f32 1.5, %v3156
  %v3158 = vmul.f32 %v3153, %v3157
  %vm3159 = vweird.f32 %v2584
  %vm3160 = vweird.f32 %v3153
  %vm3161 = vmor %vm3159, %vm3160
  %v3162 = vsel %vm3161, %v3153, %v3158
  %v3163 = vrsqrt.pop %v2585
  %v3164 = vmul.f32 %v3163, %v2585
  %v3165 = vmul.f32 %v3164, %v3163
  %v3166 = vmul.f32 0.5, %v3165
  %v3167 = vsub.f32 1.5, %v3166
  %v3168 = vmul.f32 %v3163, %v3167
  %vm3169 = vweird.f32 %v2585
  %vm3170 = vweird.f32 %v3163
  %vm3171 = vmor %vm3169, %vm3170
  %v3172 = vsel %vm3171, %v3163, %v3168
  %v3173 = vrsqrt.pop %v2586
  %v3174 = vmul.f32 %v3173, %v2586
  %v3175 = vmul.f32 %v3174, %v3173
  %v3176 = vmul.f32 0.5, %v3175
  %v3177 = vsub.f32 1.5, %v3176
  %v3178 = vmul.f32 %v3173, %v3177
  %vm3179 = vweird.f32 %v2586
  %vm3180 = vweird.f32 %v3173
  %vm3181 = vmor %vm3179, %vm3180
  %v3182 = vsel %vm3181, %v3173, %v3178
  %v3183 = vrsqrt.pop %v2587
  %v3184 = vmul.f32 %v3183, %v2587
  %v3185 = vmul.f32 %v3184, %v3183
  %v3186 = vmul.f32 0.5, %v3185
  %v3187 = vsub.f32 1.5, %v3186
  %v3188 = vmul.f32 %v3183, %v3187
  %vm3189 = vweird.f32 %v2587
  %vm3190 = vweird.f32 %v3183
  %vm3191 = vmor %vm3189, %vm3190
  %v3192 = vsel %vm3191, %v3183, %v3188
  %v3193 = vrsqrt.pop %v2588
  %v3194 = vmul.f32 %v3193, %v2588
  %v3195 = vmul.f32 %v3194, %v3193
  %v3196 = vmul.f32 0.5, %v3195
  %v3197 = vsub.f32 1.5, %v3196
  %v3198 = vmul.f32 %v3193, %v3197
  %vm3199 = vweird.f32 %v2588
  %vm3200 = vweird.f32 %v3193
  %vm3201 = vmor %vm3199, %vm3200
  %v3202 = vsel %vm3201, %v3193, %v3198
  %v3203 = vrsqrt.pop %v2589
  %v3204 = vmul.f32 %v3203, %v2589
  %v3205 = vmul.f32 %v3204, %v3203
  %v3206 = vmul.f32 0.5, %v3205
  %v3207 = vsub.f32 1.5, %v3206
  %v3208 = vmul.f32 %v3203, %v3207
  %vm3209 = vweird.f32 %v2589
  %vm3210 = vweird.f32 %v3203
  %vm3211 = vmor %vm3209, %vm3210
  %v3212 = vsel %vm3211, %v3203, %v3208
  %v3213 = vrsqrt.pop %v2590
  %v3214 = vmul.f32 %v3213, %v2590
  %v3215 = vmul.f32 %v3214, %v3213
  %v3216 = vmul.f32 0.5, %v3215
  %v3217 = vsub.f32 1.5, %v3216
  %v3218 = vmul.f32 %v3213, %v3217
  %vm3219 = vweird.f32 %v2590
  %vm3220 = vweird.f32 %v3213
  %vm3221 = vmor %vm3219, %vm3220
  %v3222 = vsel %vm3221, %v3213, %v3218
  %v3223 = vrsqrt.pop %v2591
  %v3224 = vmul.f32 %v3223, %v2591
  %v3225 = vmul.f32 %v3224, %v3223
  %v3226 = vmul.f32 0.5, %v3225
  %v3227 = vsub.f32 1.5, %v3226
  %v3228 = vmul.f32 %v3223, %v3227
  %vm3229 = vweird.f32 %v2591
  %vm3230 = vweird.f32 %v3223
  %vm3231 = vmor %vm3229, %vm3230
  %v3232 = vsel %vm3231, %v3223, %v3228
  %v3233 = vrsqrt.pop %v2592
  %v3234 = vmul.f32 %v3233, %v2592
  %v3235 = vmul.f32 %v3234, %v3233
  %v3236 = vmul.f32 0.5, %v3235
  %v3237 = vsub.f32 1.5, %v3236
  %v3238 = vmul.f32 %v3233, %v3237
  %vm3239 = vweird.f32 %v2592
  %vm3240 = vweird.f32 %v3233
  %vm3241 = vmor %vm3239, %vm3240
  %v3242 = vsel %vm3241, %v3233, %v3238
  %v3243 = vrsqrt.pop %v2593
  %v3244 = vmul.f32 %v3243, %v2593
  %v3245 = vmul.f32 %v3244, %v3243
  %v3246 = vmul.f32 0.5, %v3245
  %v3247 = vsub.f32 1.5, %v3246
  %v3248 = vmul.f32 %v3243, %v3247
  %vm3249 = vweird.f32 %v2593
  %vm3250 = vweird.f32 %v3243
  %vm3251 = vmor %vm3249, %vm3250
  %v3252 = vsel %vm3251, %v3243, %v3248
  %v3253 = vrsqrt.pop %v2594
  %v3254 = vmul.f32 %v3253, %v2594
  %v3255 = vmul.f32 %v3254, %v3253
  %v3256 = vmul.f32 0.5, %v3255
  %v3257 = vsub.f32 1.5, %v3256
  %v3258 = vmul.f32 %v3253, %v3257
  %vm3259 = vweird.f32 %v2594
  %vm3260 = vweird.f32 %v3253
  %vm3261 = vmor %vm3259, %vm3260
  %v3262 = vsel %vm3261, %v3253, %v3258
  %v3263 = vrsqrt.pop %v2595
  %v3264 = vmul.f32 %v3263, %v2595
  %v3265 = vmul.f32 %v3264, %v3263
  %v3266 = vmul.f32 0.5, %v3265
  %v3267 = vsub.f32 1.5, %v3266
  %v3268 = vmul.f32 %v3263, %v3267
  %vm3269 = vweird.f32 %v2595
  %vm3270 = vweird.f32 %v3263
  %vm3271 = vmor %vm3269, %vm3270
  %v3272 = vsel %vm3271, %v3263, %v3268
  %v3273 = vrsqrt.pop %v2596
  %v3274 = vmul.f32 %v3273, %v2596
  %v3275 = vmul.f32 %v3274, %v3273
  %v3276 = vmul.f32 0.5, %v3275
  %v3277 = vsub.f32 1.5, %v3276
  %v3278 = vmul.f32 %v3273, %v3277
  %vm3279 = vweird.f32 %v2596
  %vm3280 = vweird.f32 %v3273
  %vm3281 = vmor %vm3279, %vm3280
  %v3282 = vsel %vm3281, %v3273, %v3278
  %v3283 = vrsqrt.pop %v2597
  %v3284 = vmul.f32 %v3283, %v2597
  %v3285 = vmul.f32 %v3284, %v3283
  %v3286 = vmul.f32 0.5, %v3285
  %v3287 = vsub.f32 1.5, %v3286
  %v3288 = vmul.f32 %v3283, %v3287
  %vm3289 = vweird.f32 %v2597
  %vm3290 = vweird.f32 %v3283
  %vm3291 = vmor %vm3289, %vm3290
  %v3292 = vsel %vm3291, %v3283, %v3288
  %v3293 = vrsqrt.pop %v2598
  %v3294 = vmul.f32 %v3293, %v2598
  %v3295 = vmul.f32 %v3294, %v3293
  %v3296 = vmul.f32 0.5, %v3295
  %v3297 = vsub.f32 1.5, %v3296
  %v3298 = vmul.f32 %v3293, %v3297
  %vm3299 = vweird.f32 %v2598
  %vm3300 = vweird.f32 %v3293
  %vm3301 = vmor %vm3299, %vm3300
  %v3302 = vsel %vm3301, %v3293, %v3298
  %v3303 = vrsqrt.pop %v2599
  %v3304 = vmul.f32 %v3303, %v2599
  %v3305 = vmul.f32 %v3304, %v3303
  %v3306 = vmul.f32 0.5, %v3305
  %v3307 = vsub.f32 1.5, %v3306
  %v3308 = vmul.f32 %v3303, %v3307
  %vm3309 = vweird.f32 %v2599
  %vm3310 = vweird.f32 %v3303
  %vm3311 = vmor %vm3309, %vm3310
  %v3312 = vsel %vm3311, %v3303, %v3308
  %v3313 = vrsqrt.pop %v2600
  %v3314 = vmul.f32 %v3313, %v2600
  %v3315 = vmul.f32 %v3314, %v3313
  %v3316 = vmul.f32 0.5, %v3315
  %v3317 = vsub.f32 1.5, %v3316
  %v3318 = vmul.f32 %v3313, %v3317
  %vm3319 = vweird.f32 %v2600
  %vm3320 = vweird.f32 %v3313
  %vm3321 = vmor %vm3319, %vm3320
  %v3322 = vsel %vm3321, %v3313, %v3318
  %v3323 = vrsqrt.pop %v2601
  %v3324 = vmul.f32 %v3323, %v2601
  %v3325 = vmul.f32 %v3324, %v3323
  %v3326 = vmul.f32 0.5, %v3325
  %v3327 = vsub.f32 1.5, %v3326
  %v3328 = vmul.f32 %v3323, %v3327
  %vm3329 = vweird.f32 %v2601
  %vm3330 = vweird.f32 %v3323
  %vm3331 = vmor %vm3329, %vm3330
  %v3332 = vsel %vm3331, %v3323, %v3328
  %v3333 = vrsqrt.pop %v2602
  %v3334 = vmul.f32 %v3333, %v2602
  %v3335 = vmul.f32 %v3334, %v3333
  %v3336 = vmul.f32 0.5, %v3335
  %v3337 = vsub.f32 1.5, %v3336
  %v3338 = vmul.f32 %v3333, %v3337
  %vm3339 = vweird.f32 %v2602
  %vm3340 = vweird.f32 %v3333
  %vm3341 = vmor %vm3339, %vm3340
  %v3342 = vsel %vm3341, %v3333, %v3338
  %v3343 = vrsqrt.pop %v2603
  %v3344 = vmul.f32 %v3343, %v2603
  %v3345 = vmul.f32 %v3344, %v3343
  %v3346 = vmul.f32 0.5, %v3345
  %v3347 = vsub.f32 1.5, %v3346
  %v3348 = vmul.f32 %v3343, %v3347
  %vm3349 = vweird.f32 %v2603
  %vm3350 = vweird.f32 %v3343
  %vm3351 = vmor %vm3349, %vm3350
  %v3352 = vsel %vm3351, %v3343, %v3348
  %v3353 = vrsqrt.pop %v2604
  %v3354 = vmul.f32 %v3353, %v2604
  %v3355 = vmul.f32 %v3354, %v3353
  %v3356 = vmul.f32 0.5, %v3355
  %v3357 = vsub.f32 1.5, %v3356
  %v3358 = vmul.f32 %v3353, %v3357
  %vm3359 = vweird.f32 %v2604
  %vm3360 = vweird.f32 %v3353
  %vm3361 = vmor %vm3359, %vm3360
  %v3362 = vsel %vm3361, %v3353, %v3358
  %v3363 = vrsqrt.pop %v2605
  %v3364 = vmul.f32 %v3363, %v2605
  %v3365 = vmul.f32 %v3364, %v3363
  %v3366 = vmul.f32 0.5, %v3365
  %v3367 = vsub.f32 1.5, %v3366
  %v3368 = vmul.f32 %v3363, %v3367
  %vm3369 = vweird.f32 %v2605
  %vm3370 = vweird.f32 %v3363
  %vm3371 = vmor %vm3369, %vm3370
  %v3372 = vsel %vm3371, %v3363, %v3368
  %v3373 = vrsqrt.pop %v2606
  %v3374 = vmul.f32 %v3373, %v2606
  %v3375 = vmul.f32 %v3374, %v3373
  %v3376 = vmul.f32 0.5, %v3375
  %v3377 = vsub.f32 1.5, %v3376
  %v3378 = vmul.f32 %v3373, %v3377
  %vm3379 = vweird.f32 %v2606
  %vm3380 = vweird.f32 %v3373
  %vm3381 = vmor %vm3379, %vm3380
  %v3382 = vsel %vm3381, %v3373, %v3378
  %v3383 = vrsqrt.pop %v2607
  %v3384 = vmul.f32 %v3383, %v2607
  %v3385 = vmul.f32 %v3384, %v3383
  %v3386 = vmul.f32 0.5, %v3385
  %v3387 = vsub.f32 1.5, %v3386
  %v3388 = vmul.f32 %v3383, %v3387
  %vm3389 = vweird.f32 %v2607
  %vm3390 = vweird.f32 %v3383
  %vm3391 = vmor %vm3389, %vm3390
  %v3392 = vsel %vm3391, %v3383, %v3388
  %v3393 = vrsqrt.pop %v2608
  %v3394 = vmul.f32 %v3393, %v2608
  %v3395 = vmul.f32 %v3394, %v3393
  %v3396 = vmul.f32 0.5, %v3395
  %v3397 = vsub.f32 1.5, %v3396
  %v3398 = vmul.f32 %v3393, %v3397
  %vm3399 = vweird.f32 %v2608
  %vm3400 = vweird.f32 %v3393
  %vm3401 = vmor %vm3399, %vm3400
  %v3402 = vsel %vm3401, %v3393, %v3398
  %v3403 = vrsqrt.pop %v2609
  %v3404 = vmul.f32 %v3403, %v2609
  %v3405 = vmul.f32 %v3404, %v3403
  %v3406 = vmul.f32 0.5, %v3405
  %v3407 = vsub.f32 1.5, %v3406
  %v3408 = vmul.f32 %v3403, %v3407
  %vm3409 = vweird.f32 %v2609
  %vm3410 = vweird.f32 %v3403
  %vm3411 = vmor %vm3409, %vm3410
  %v3412 = vsel %vm3411, %v3403, %v3408
  %v3413 = vrsqrt.pop %v2610
  %v3414 = vmul.f32 %v3413, %v2610
  %v3415 = vmul.f32 %v3414, %v3413
  %v3416 = vmul.f32 0.5, %v3415
  %v3417 = vsub.f32 1.5, %v3416
  %v3418 = vmul.f32 %v3413, %v3417
  %vm3419 = vweird.f32 %v2610
  %vm3420 = vweird.f32 %v3413
  %vm3421 = vmor %vm3419, %vm3420
  %v3422 = vsel %vm3421, %v3413, %v3418
  %v3423 = vrsqrt.pop %v2611
  %v3424 = vmul.f32 %v3423, %v2611
  %v3425 = vmul.f32 %v3424, %v3423
  %v3426 = vmul.f32 0.5, %v3425
  %v3427 = vsub.f32 1.5, %v3426
  %v3428 = vmul.f32 %v3423, %v3427
  %vm3429 = vweird.f32 %v2611
  %vm3430 = vweird.f32 %v3423
  %vm3431 = vmor %vm3429, %vm3430
  %v3432 = vsel %vm3431, %v3423, %v3428
  %v3433 = vrsqrt.pop %v2612
  %v3434 = vmul.f32 %v3433, %v2612
  %v3435 = vmul.f32 %v3434, %v3433
  %v3436 = vmul.f32 0.5, %v3435
  %v3437 = vsub.f32 1.5, %v3436
  %v3438 = vmul.f32 %v3433, %v3437
  %vm3439 = vweird.f32 %v2612
  %vm3440 = vweird.f32 %v3433
  %vm3441 = vmor %vm3439, %vm3440
  %v3442 = vsel %vm3441, %v3433, %v3438
  %v3443 = vrsqrt.pop %v2613
  %v3444 = vmul.f32 %v3443, %v2613
  %v3445 = vmul.f32 %v3444, %v3443
  %v3446 = vmul.f32 0.5, %v3445
  %v3447 = vsub.f32 1.5, %v3446
  %v3448 = vmul.f32 %v3443, %v3447
  %vm3449 = vweird.f32 %v2613
  %vm3450 = vweird.f32 %v3443
  %vm3451 = vmor %vm3449, %vm3450
  %v3452 = vsel %vm3451, %v3443, %v3448
  %v3453 = vrsqrt.pop %v2614
  %v3454 = vmul.f32 %v3453, %v2614
  %v3455 = vmul.f32 %v3454, %v3453
  %v3456 = vmul.f32 0.5, %v3455
  %v3457 = vsub.f32 1.5, %v3456
  %v3458 = vmul.f32 %v3453, %v3457
  %vm3459 = vweird.f32 %v2614
  %vm3460 = vweird.f32 %v3453
  %vm3461 = vmor %vm3459, %vm3460
  %v3462 = vsel %vm3461, %v3453, %v3458
  %v3463 = vrsqrt.pop %v2615
  %v3464 = vmul.f32 %v3463, %v2615
  %v3465 = vmul.f32 %v3464, %v3463
  %v3466 = vmul.f32 0.5, %v3465
  %v3467 = vsub.f32 1.5, %v3466
  %v3468 = vmul.f32 %v3463, %v3467
  %vm3469 = vweird.f32 %v2615
  %vm3470 = vweird.f32 %v3463
  %vm3471 = vmor %vm3469, %vm3470
  %v3472 = vsel %vm3471, %v3463, %v3468
  %v3473 = vrsqrt.pop %v2616
  %v3474 = vmul.f32 %v3473, %v2616
  %v3475 = vmul.f32 %v3474, %v3473
  %v3476 = vmul.f32 0.5, %v3475
  %v3477 = vsub.f32 1.5, %v3476
  %v3478 = vmul.f32 %v3473, %v3477
  %vm3479 = vweird.f32 %v2616
  %vm3480 = vweird.f32 %v3473
  %vm3481 = vmor %vm3479, %vm3480
  %v3482 = vsel %vm3481, %v3473, %v3478
  %v3483 = vrsqrt.pop %v2617
  %v3484 = vmul.f32 %v3483, %v2617
  %v3485 = vmul.f32 %v3484, %v3483
  %v3486 = vmul.f32 0.5, %v3485
  %v3487 = vsub.f32 1.5, %v3486
  %v3488 = vmul.f32 %v3483, %v3487
  %vm3489 = vweird.f32 %v2617
  %vm3490 = vweird.f32 %v3483
  %vm3491 = vmor %vm3489, %vm3490
  %v3492 = vsel %vm3491, %v3483, %v3488
  %v3493 = vrsqrt.pop %v2618
  %v3494 = vmul.f32 %v3493, %v2618
  %v3495 = vmul.f32 %v3494, %v3493
  %v3496 = vmul.f32 0.5, %v3495
  %v3497 = vsub.f32 1.5, %v3496
  %v3498 = vmul.f32 %v3493, %v3497
  %vm3499 = vweird.f32 %v2618
  %vm3500 = vweird.f32 %v3493
  %vm3501 = vmor %vm3499, %vm3500
  %v3502 = vsel %vm3501, %v3493, %v3498
  %v3503 = vrsqrt.pop %v2619
  %v3504 = vmul.f32 %v3503, %v2619
  %v3505 = vmul.f32 %v3504, %v3503
  %v3506 = vmul.f32 0.5, %v3505
  %v3507 = vsub.f32 1.5, %v3506
  %v3508 = vmul.f32 %v3503, %v3507
  %vm3509 = vweird.f32 %v2619
  %vm3510 = vweird.f32 %v3503
  %vm3511 = vmor %vm3509, %vm3510
  %v3512 = vsel %vm3511, %v3503, %v3508
  %v3513 = vrsqrt.pop %v2620
  %v3514 = vmul.f32 %v3513, %v2620
  %v3515 = vmul.f32 %v3514, %v3513
  %v3516 = vmul.f32 0.5, %v3515
  %v3517 = vsub.f32 1.5, %v3516
  %v3518 = vmul.f32 %v3513, %v3517
  %vm3519 = vweird.f32 %v2620
  %vm3520 = vweird.f32 %v3513
  %vm3521 = vmor %vm3519, %vm3520
  %v3522 = vsel %vm3521, %v3513, %v3518
  %v3523 = vrsqrt.pop %v2621
  %v3524 = vmul.f32 %v3523, %v2621
  %v3525 = vmul.f32 %v3524, %v3523
  %v3526 = vmul.f32 0.5, %v3525
  %v3527 = vsub.f32 1.5, %v3526
  %v3528 = vmul.f32 %v3523, %v3527
  %vm3529 = vweird.f32 %v2621
  %vm3530 = vweird.f32 %v3523
  %vm3531 = vmor %vm3529, %vm3530
  %v3532 = vsel %vm3531, %v3523, %v3528
  %v3533 = vrsqrt.pop %v2622
  %v3534 = vmul.f32 %v3533, %v2622
  %v3535 = vmul.f32 %v3534, %v3533
  %v3536 = vmul.f32 0.5, %v3535
  %v3537 = vsub.f32 1.5, %v3536
  %v3538 = vmul.f32 %v3533, %v3537
  %vm3539 = vweird.f32 %v2622
  %vm3540 = vweird.f32 %v3533
  %vm3541 = vmor %vm3539, %vm3540
  %v3542 = vsel %vm3541, %v3533, %v3538
  %v3543 = vrsqrt.pop %v2623
  %v3544 = vmul.f32 %v3543, %v2623
  %v3545 = vmul.f32 %v3544, %v3543
  %v3546 = vmul.f32 0.5, %v3545
  %v3547 = vsub.f32 1.5, %v3546
  %v3548 = vmul.f32 %v3543, %v3547
  %vm3549 = vweird.f32 %v2623
  %vm3550 = vweird.f32 %v3543
  %vm3551 = vmor %vm3549, %vm3550
  %v3552 = vsel %vm3551, %v3543, %v3548
  %v3553 = vrsqrt.pop %v2624
  %v3554 = vmul.f32 %v3553, %v2624
  %v3555 = vmul.f32 %v3554, %v3553
  %v3556 = vmul.f32 0.5, %v3555
  %v3557 = vsub.f32 1.5, %v3556
  %v3558 = vmul.f32 %v3553, %v3557
  %vm3559 = vweird.f32 %v2624
  %vm3560 = vweird.f32 %v3553
  %vm3561 = vmor %vm3559, %vm3560
  %v3562 = vsel %vm3561, %v3553, %v3558
  %v3563 = vrsqrt.pop %v2625
  %v3564 = vmul.f32 %v3563, %v2625
  %v3565 = vmul.f32 %v3564, %v3563
  %v3566 = vmul.f32 0.5, %v3565
  %v3567 = vsub.f32 1.5, %v3566
  %v3568 = vmul.f32 %v3563, %v3567
  %vm3569 = vweird.f32 %v2625
  %vm3570 = vweird.f32 %v3563
  %vm3571 = vmor %vm3569, %vm3570
  %v3572 = vsel %vm3571, %v3563, %v3568
  %v3573 = vrsqrt.pop %v2626
  %v3574 = vmul.f32 %v3573, %v2626
  %v3575 = vmul.f32 %v3574, %v3573
  %v3576 = vmul.f32 0.5, %v3575
  %v3577 = vsub.f32 1.5, %v3576
  %v3578 = vmul.f32 %v3573, %v3577
  %vm3579 = vweird.f32 %v2626
  %vm3580 = vweird.f32 %v3573
  %vm3581 = vmor %vm3579, %vm3580
  %v3582 = vsel %vm3581, %v3573, %v3578
  %v3583 = vrsqrt.pop %v2627
  %v3584 = vmul.f32 %v3583, %v2627
  %v3585 = vmul.f32 %v3584, %v3583
  %v3586 = vmul.f32 0.5, %v3585
  %v3587 = vsub.f32 1.5, %v3586
  %v3588 = vmul.f32 %v3583, %v3587
  %vm3589 = vweird.f32 %v2627
  %vm3590 = vweird.f32 %v3583
  %vm3591 = vmor %vm3589, %vm3590
  %v3592 = vsel %vm3591, %v3583, %v3588
  %v3593 = vrsqrt.pop %v2628
  %v3594 = vmul.f32 %v3593, %v2628
  %v3595 = vmul.f32 %v3594, %v3593
  %v3596 = vmul.f32 0.5, %v3595
  %v3597 = vsub.f32 1.5, %v3596
  %v3598 = vmul.f32 %v3593, %v3597
  %vm3599 = vweird.f32 %v2628
  %vm3600 = vweird.f32 %v3593
  %vm3601 = vmor %vm3599, %vm3600
  %v3602 = vsel %vm3601, %v3593, %v3598
  %v3603 = vrsqrt.pop %v2629
  %v3604 = vmul.f32 %v3603, %v2629
  %v3605 = vmul.f32 %v3604, %v3603
  %v3606 = vmul.f32 0.5, %v3605
  %v3607 = vsub.f32 1.5, %v3606
  %v3608 = vmul.f32 %v3603, %v3607
  %vm3609 = vweird.f32 %v2629
  %vm3610 = vweird.f32 %v3603
  %vm3611 = vmor %vm3609, %vm3610
  %v3612 = vsel %vm3611, %v3603, %v3608
  %v3613 = vrsqrt.pop %v2630
  %v3614 = vmul.f32 %v3613, %v2630
  %v3615 = vmul.f32 %v3614, %v3613
  %v3616 = vmul.f32 0.5, %v3615
  %v3617 = vsub.f32 1.5, %v3616
  %v3618 = vmul.f32 %v3613, %v3617
  %vm3619 = vweird.f32 %v2630
  %vm3620 = vweird.f32 %v3613
  %vm3621 = vmor %vm3619, %vm3620
  %v3622 = vsel %vm3621, %v3613, %v3618
  %v3623 = vrsqrt.pop %v2631
  %v3624 = vmul.f32 %v3623, %v2631
  %v3625 = vmul.f32 %v3624, %v3623
  %v3626 = vmul.f32 0.5, %v3625
  %v3627 = vsub.f32 1.5, %v3626
  %v3628 = vmul.f32 %v3623, %v3627
  %vm3629 = vweird.f32 %v2631
  %vm3630 = vweird.f32 %v3623
  %vm3631 = vmor %vm3629, %vm3630
  %v3632 = vsel %vm3631, %v3623, %v3628
  %v3633 = vrsqrt.pop %v2632
  %v3634 = vmul.f32 %v3633, %v2632
  %v3635 = vmul.f32 %v3634, %v3633
  %v3636 = vmul.f32 0.5, %v3635
  %v3637 = vsub.f32 1.5, %v3636
  %v3638 = vmul.f32 %v3633, %v3637
  %vm3639 = vweird.f32 %v2632
  %vm3640 = vweird.f32 %v3633
  %vm3641 = vmor %vm3639, %vm3640
  %v3642 = vsel %vm3641, %v3633, %v3638
  %v3643 = vrsqrt.pop %v2633
  %v3644 = vmul.f32 %v3643, %v2633
  %v3645 = vmul.f32 %v3644, %v3643
  %v3646 = vmul.f32 0.5, %v3645
  %v3647 = vsub.f32 1.5, %v3646
  %v3648 = vmul.f32 %v3643, %v3647
  %vm3649 = vweird.f32 %v2633
  %vm3650 = vweird.f32 %v3643
  %vm3651 = vmor %vm3649, %vm3650
  %v3652 = vsel %vm3651, %v3643, %v3648
  %v3653 = vrsqrt.pop %v2634
  %v3654 = vmul.f32 %v3653, %v2634
  %v3655 = vmul.f32 %v3654, %v3653
  %v3656 = vmul.f32 0.5, %v3655
  %v3657 = vsub.f32 1.5, %v3656
  %v3658 = vmul.f32 %v3653, %v3657
  %vm3659 = vweird.f32 %v2634
  %vm3660 = vweird.f32 %v3653
  %vm3661 = vmor %vm3659, %vm3660
  %v3662 = vsel %vm3661, %v3653, %v3658
  %v3663 = vrsqrt.pop %v2635
  %v3664 = vmul.f32 %v3663, %v2635
  %v3665 = vmul.f32 %v3664, %v3663
  %v3666 = vmul.f32 0.5, %v3665
  %v3667 = vsub.f32 1.5, %v3666
  %v3668 = vmul.f32 %v3663, %v3667
  %vm3669 = vweird.f32 %v2635
  %vm3670 = vweird.f32 %v3663
  %vm3671 = vmor %vm3669, %vm3670
  %v3672 = vsel %vm3671, %v3663, %v3668
  %v3673 = vrsqrt.pop %v2636
  %v3674 = vmul.f32 %v3673, %v2636
  %v3675 = vmul.f32 %v3674, %v3673
  %v3676 = vmul.f32 0.5, %v3675
  %v3677 = vsub.f32 1.5, %v3676
  %v3678 = vmul.f32 %v3673, %v3677
  %vm3679 = vweird.f32 %v2636
  %vm3680 = vweird.f32 %v3673
  %vm3681 = vmor %vm3679, %vm3680
  %v3682 = vsel %vm3681, %v3673, %v3678
  %v3683 = vrsqrt.pop %v2637
  %v3684 = vmul.f32 %v3683, %v2637
  %v3685 = vmul.f32 %v3684, %v3683
  %v3686 = vmul.f32 0.5, %v3685
  %v3687 = vsub.f32 1.5, %v3686
  %v3688 = vmul.f32 %v3683, %v3687
  %vm3689 = vweird.f32 %v2637
  %vm3690 = vweird.f32 %v3683
  %vm3691 = vmor %vm3689, %vm3690
  %v3692 = vsel %vm3691, %v3683, %v3688
  %v3693 = vrsqrt.pop %v2638
  %v3694 = vmul.f32 %v3693, %v2638
  %v3695 = vmul.f32 %v3694, %v3693
  %v3696 = vmul.f32 0.5, %v3695
  %v3697 = vsub.f32 1.5, %v3696
  %v3698 = vmul.f32 %v3693, %v3697
  %vm3699 = vweird.f32 %v2638
  %vm3700 = vweird.f32 %v3693
  %vm3701 = vmor %vm3699, %vm3700
  %v3702 = vsel %vm3701, %v3693, %v3698
  %v3703 = vrsqrt.pop %v2639
  %v3704 = vmul.f32 %v3703, %v2639
  %v3705 = vmul.f32 %v3704, %v3703
  %v3706 = vmul.f32 0.5, %v3705
  %v3707 = vsub.f32 1.5, %v3706
  %v3708 = vmul.f32 %v3703, %v3707
  %vm3709 = vweird.f32 %v2639
  %vm3710 = vweird.f32 %v3703
  %vm3711 = vmor %vm3709, %vm3710
  %v3712 = vsel %vm3711, %v3703, %v3708
  %v3713 = vrsqrt.pop %v2640
  %v3714 = vmul.f32 %v3713, %v2640
  %v3715 = vmul.f32 %v3714, %v3713
  %v3716 = vmul.f32 0.5, %v3715
  %v3717 = vsub.f32 1.5, %v3716
  %v3718 = vmul.f32 %v3713, %v3717
  %vm3719 = vweird.f32 %v2640
  %vm3720 = vweird.f32 %v3713
  %vm3721 = vmor %vm3719, %vm3720
  %v3722 = vsel %vm3721, %v3713, %v3718
  %v3723 = vrsqrt.pop %v2641
  %v3724 = vmul.f32 %v3723, %v2641
  %v3725 = vmul.f32 %v3724, %v3723
  %v3726 = vmul.f32 0.5, %v3725
  %v3727 = vsub.f32 1.5, %v3726
  %v3728 = vmul.f32 %v3723, %v3727
  %vm3729 = vweird.f32 %v2641
  %vm3730 = vweird.f32 %v3723
  %vm3731 = vmor %vm3729, %vm3730
  %v3732 = vsel %vm3731, %v3723, %v3728
  %v3733 = vrsqrt.pop %v2642
  %v3734 = vmul.f32 %v3733, %v2642
  %v3735 = vmul.f32 %v3734, %v3733
  %v3736 = vmul.f32 0.5, %v3735
  %v3737 = vsub.f32 1.5, %v3736
  %v3738 = vmul.f32 %v3733, %v3737
  %vm3739 = vweird.f32 %v2642
  %vm3740 = vweird.f32 %v3733
  %vm3741 = vmor %vm3739, %vm3740
  %v3742 = vsel %vm3741, %v3733, %v3738
  %v3743 = vrsqrt.pop %v2643
  %v3744 = vmul.f32 %v3743, %v2643
  %v3745 = vmul.f32 %v3744, %v3743
  %v3746 = vmul.f32 0.5, %v3745
  %v3747 = vsub.f32 1.5, %v3746
  %v3748 = vmul.f32 %v3743, %v3747
  %vm3749 = vweird.f32 %v2643
  %vm3750 = vweird.f32 %v3743
  %vm3751 = vmor %vm3749, %vm3750
  %v3752 = vsel %vm3751, %v3743, %v3748
  %v3753 = vrsqrt.pop %v2644
  %v3754 = vmul.f32 %v3753, %v2644
  %v3755 = vmul.f32 %v3754, %v3753
  %v3756 = vmul.f32 0.5, %v3755
  %v3757 = vsub.f32 1.5, %v3756
  %v3758 = vmul.f32 %v3753, %v3757
  %vm3759 = vweird.f32 %v2644
  %vm3760 = vweird.f32 %v3753
  %vm3761 = vmor %vm3759, %vm3760
  %v3762 = vsel %vm3761, %v3753, %v3758
  %v3763 = vrsqrt.pop %v2645
  %v3764 = vmul.f32 %v3763, %v2645
  %v3765 = vmul.f32 %v3764, %v3763
  %v3766 = vmul.f32 0.5, %v3765
  %v3767 = vsub.f32 1.5, %v3766
  %v3768 = vmul.f32 %v3763, %v3767
  %vm3769 = vweird.f32 %v2645
  %vm3770 = vweird.f32 %v3763
  %vm3771 = vmor %vm3769, %vm3770
  %v3772 = vsel %vm3771, %v3763, %v3768
  %v3773 = vrsqrt.pop %v2646
  %v3774 = vmul.f32 %v3773, %v2646
  %v3775 = vmul.f32 %v3774, %v3773
  %v3776 = vmul.f32 0.5, %v3775
  %v3777 = vsub.f32 1.5, %v3776
  %v3778 = vmul.f32 %v3773, %v3777
  %vm3779 = vweird.f32 %v2646
  %vm3780 = vweird.f32 %v3773
  %vm3781 = vmor %vm3779, %vm3780
  %v3782 = vsel %vm3781, %v3773, %v3778
  %v3783 = vrsqrt.pop %v2647
  %v3784 = vmul.f32 %v3783, %v2647
  %v3785 = vmul.f32 %v3784, %v3783
  %v3786 = vmul.f32 0.5, %v3785
  %v3787 = vsub.f32 1.5, %v3786
  %v3788 = vmul.f32 %v3783, %v3787
  %vm3789 = vweird.f32 %v2647
  %vm3790 = vweird.f32 %v3783
  %vm3791 = vmor %vm3789, %vm3790
  %v3792 = vsel %vm3791, %v3783, %v3788
  %v3793 = vrsqrt.pop %v2648
  %v3794 = vmul.f32 %v3793, %v2648
  %v3795 = vmul.f32 %v3794, %v3793
  %v3796 = vmul.f32 0.5, %v3795
  %v3797 = vsub.f32 1.5, %v3796
  %v3798 = vmul.f32 %v3793, %v3797
  %vm3799 = vweird.f32 %v2648
  %vm3800 = vweird.f32 %v3793
  %vm3801 = vmor %vm3799, %vm3800
  %v3802 = vsel %vm3801, %v3793, %v3798
  %v3803 = vrsqrt.pop %v2649
  %v3804 = vmul.f32 %v3803, %v2649
  %v3805 = vmul.f32 %v3804, %v3803
  %v3806 = vmul.f32 0.5, %v3805
  %v3807 = vsub.f32 1.5, %v3806
  %v3808 = vmul.f32 %v3803, %v3807
  %vm3809 = vweird.f32 %v2649
  %vm3810 = vweird.f32 %v3803
  %vm3811 = vmor %vm3809, %vm3810
  %v3812 = vsel %vm3811, %v3803, %v3808
  %v3813 = vrsqrt.pop %v2650
  %v3814 = vmul.f32 %v3813, %v2650
  %v3815 = vmul.f32 %v3814, %v3813
  %v3816 = vmul.f32 0.5, %v3815
  %v3817 = vsub.f32 1.5, %v3816
  %v3818 = vmul.f32 %v3813, %v3817
  %vm3819 = vweird.f32 %v2650
  %vm3820 = vweird.f32 %v3813
  %vm3821 = vmor %vm3819, %vm3820
  %v3822 = vsel %vm3821, %v3813, %v3818
  %v3823 = vrsqrt.pop %v2651
  %v3824 = vmul.f32 %v3823, %v2651
  %v3825 = vmul.f32 %v3824, %v3823
  %v3826 = vmul.f32 0.5, %v3825
  %v3827 = vsub.f32 1.5, %v3826
  %v3828 = vmul.f32 %v3823, %v3827
  %vm3829 = vweird.f32 %v2651
  %vm3830 = vweird.f32 %v3823
  %vm3831 = vmor %vm3829, %vm3830
  %v3832 = vsel %vm3831, %v3823, %v3828
  %v3833 = vrsqrt.pop %v2652
  %v3834 = vmul.f32 %v3833, %v2652
  %v3835 = vmul.f32 %v3834, %v3833
  %v3836 = vmul.f32 0.5, %v3835
  %v3837 = vsub.f32 1.5, %v3836
  %v3838 = vmul.f32 %v3833, %v3837
  %vm3839 = vweird.f32 %v2652
  %vm3840 = vweird.f32 %v3833
  %vm3841 = vmor %vm3839, %vm3840
  %v3842 = vsel %vm3841, %v3833, %v3838
  %v3843 = vrsqrt.pop %v2653
  %v3844 = vmul.f32 %v3843, %v2653
  %v3845 = vmul.f32 %v3844, %v3843
  %v3846 = vmul.f32 0.5, %v3845
  %v3847 = vsub.f32 1.5, %v3846
  %v3848 = vmul.f32 %v3843, %v3847
  %vm3849 = vweird.f32 %v2653
  %vm3850 = vweird.f32 %v3843
  %vm3851 = vmor %vm3849, %vm3850
  %v3852 = vsel %vm3851, %v3843, %v3848
  %v3853 = vrsqrt.pop %v2654
  %v3854 = vmul.f32 %v3853, %v2654
  %v3855 = vmul.f32 %v3854, %v3853
  %v3856 = vmul.f32 0.5, %v3855
  %v3857 = vsub.f32 1.5, %v3856
  %v3858 = vmul.f32 %v3853, %v3857
  %vm3859 = vweird.f32 %v2654
  %vm3860 = vweird.f32 %v3853
  %vm3861 = vmor %vm3859, %vm3860
  %v3862 = vsel %vm3861, %v3853, %v3858
  %v3863 = vrsqrt.pop %v2655
  %v3864 = vmul.f32 %v3863, %v2655
  %v3865 = vmul.f32 %v3864, %v3863
  %v3866 = vmul.f32 0.5, %v3865
  %v3867 = vsub.f32 1.5, %v3866
  %v3868 = vmul.f32 %v3863, %v3867
  %vm3869 = vweird.f32 %v2655
  %vm3870 = vweird.f32 %v3863
  %vm3871 = vmor %vm3869, %vm3870
  %v3872 = vsel %vm3871, %v3863, %v3868
  %v3873 = vrsqrt.pop %v2656
  %v3874 = vmul.f32 %v3873, %v2656
  %v3875 = vmul.f32 %v3874, %v3873
  %v3876 = vmul.f32 0.5, %v3875
  %v3877 = vsub.f32 1.5, %v3876
  %v3878 = vmul.f32 %v3873, %v3877
  %vm3879 = vweird.f32 %v2656
  %vm3880 = vweird.f32 %v3873
  %vm3881 = vmor %vm3879, %vm3880
  %v3882 = vsel %vm3881, %v3873, %v3878
  %v3883 = vrsqrt.pop %v2657
  %v3884 = vmul.f32 %v3883, %v2657
  %v3885 = vmul.f32 %v3884, %v3883
  %v3886 = vmul.f32 0.5, %v3885
  %v3887 = vsub.f32 1.5, %v3886
  %v3888 = vmul.f32 %v3883, %v3887
  %vm3889 = vweird.f32 %v2657
  %vm3890 = vweird.f32 %v3883
  %vm3891 = vmor %vm3889, %vm3890
  %v3892 = vsel %vm3891, %v3883, %v3888
  %v3893 = vrsqrt.pop %v2658
  %v3894 = vmul.f32 %v3893, %v2658
  %v3895 = vmul.f32 %v3894, %v3893
  %v3896 = vmul.f32 0.5, %v3895
  %v3897 = vsub.f32 1.5, %v3896
  %v3898 = vmul.f32 %v3893, %v3897
  %vm3899 = vweird.f32 %v2658
  %vm3900 = vweird.f32 %v3893
  %vm3901 = vmor %vm3899, %vm3900
  %v3902 = vsel %vm3901, %v3893, %v3898
  %v3903 = vrsqrt.pop %v2659
  %v3904 = vmul.f32 %v3903, %v2659
  %v3905 = vmul.f32 %v3904, %v3903
  %v3906 = vmul.f32 0.5, %v3905
  %v3907 = vsub.f32 1.5, %v3906
  %v3908 = vmul.f32 %v3903, %v3907
  %vm3909 = vweird.f32 %v2659
  %vm3910 = vweird.f32 %v3903
  %vm3911 = vmor %vm3909, %vm3910
  %v3912 = vsel %vm3911, %v3903, %v3908
  %v3913 = vrsqrt.pop %v2660
  %v3914 = vmul.f32 %v3913, %v2660
  %v3915 = vmul.f32 %v3914, %v3913
  %v3916 = vmul.f32 0.5, %v3915
  %v3917 = vsub.f32 1.5, %v3916
  %v3918 = vmul.f32 %v3913, %v3917
  %vm3919 = vweird.f32 %v2660
  %vm3920 = vweird.f32 %v3913
  %vm3921 = vmor %vm3919, %vm3920
  %v3922 = vsel %vm3921, %v3913, %v3918
  %v3923 = vrsqrt.pop %v2661
  %v3924 = vmul.f32 %v3923, %v2661
  %v3925 = vmul.f32 %v3924, %v3923
  %v3926 = vmul.f32 0.5, %v3925
  %v3927 = vsub.f32 1.5, %v3926
  %v3928 = vmul.f32 %v3923, %v3927
  %vm3929 = vweird.f32 %v2661
  %vm3930 = vweird.f32 %v3923
  %vm3931 = vmor %vm3929, %vm3930
  %v3932 = vsel %vm3931, %v3923, %v3928
  %v3933 = vrsqrt.pop %v2662
  %v3934 = vmul.f32 %v3933, %v2662
  %v3935 = vmul.f32 %v3934, %v3933
  %v3936 = vmul.f32 0.5, %v3935
  %v3937 = vsub.f32 1.5, %v3936
  %v3938 = vmul.f32 %v3933, %v3937
  %vm3939 = vweird.f32 %v2662
  %vm3940 = vweird.f32 %v3933
  %vm3941 = vmor %vm3939, %vm3940
  %v3942 = vsel %vm3941, %v3933, %v3938
  %v3943 = vmul.f32 %v2407, %v2672
  %v3944 = vmul.f32 %v2408, %v2682
  %v3945 = vmul.f32 %v2409, %v2692
  %v3946 = vmul.f32 %v2410, %v2702
  %v3947 = vmul.f32 %v2411, %v2712
  %v3948 = vmul.f32 %v2412, %v2722
  %v3949 = vmul.f32 %v2413, %v2732
  %v3950 = vmul.f32 %v2414, %v2742
  %v3951 = vmul.f32 %v2415, %v2752
  %v3952 = vmul.f32 %v2416, %v2762
  %v3953 = vmul.f32 %v2417, %v2772
  %v3954 = vmul.f32 %v2418, %v2782
  %v3955 = vmul.f32 %v2419, %v2792
  %v3956 = vmul.f32 %v2420, %v2802
  %v3957 = vmul.f32 %v2421, %v2812
  %v3958 = vmul.f32 %v2422, %v2822
  %v3959 = vmul.f32 %v2423, %v2832
  %v3960 = vmul.f32 %v2424, %v2842
  %v3961 = vmul.f32 %v2425, %v2852
  %v3962 = vmul.f32 %v2426, %v2862
  %v3963 = vmul.f32 %v2427, %v2872
  %v3964 = vmul.f32 %v2428, %v2882
  %v3965 = vmul.f32 %v2429, %v2892
  %v3966 = vmul.f32 %v2430, %v2902
  %v3967 = vmul.f32 %v2431, %v2912
  %v3968 = vmul.f32 %v2432, %v2922
  %v3969 = vmul.f32 %v2433, %v2932
  %v3970 = vmul.f32 %v2434, %v2942
  %v3971 = vmul.f32 %v2435, %v2952
  %v3972 = vmul.f32 %v2436, %v2962
  %v3973 = vmul.f32 %v2437, %v2972
  %v3974 = vmul.f32 %v2438, %v2982
  %v3975 = vmul.f32 %v2439, %v2992
  %v3976 = vmul.f32 %v2440, %v3002
  %v3977 = vmul.f32 %v2441, %v3012
  %v3978 = vmul.f32 %v2442, %v3022
  %v3979 = vmul.f32 %v2443, %v3032
  %v3980 = vmul.f32 %v2444, %v3042
  %v3981 = vmul.f32 %v2445, %v3052
  %v3982 = vmul.f32 %v2446, %v3062
  %v3983 = vmul.f32 %v2447, %v3072
  %v3984 = vmul.f32 %v2448, %v3082
  %v3985 = vmul.f32 %v2449, %v3092
  %v3986 = vmul.f32 %v2450, %v3102
  %v3987 = vmul.f32 %v2451, %v3112
  %v3988 = vmul.f32 %v2452, %v3122
  %v3989 = vmul.f32 %v2453, %v3132
  %v3990 = vmul.f32 %v2454, %v3142
  %v3991 = vmul.f32 %v2455, %v3152
  %v3992 = vmul.f32 %v2456, %v3162
  %v3993 = vmul.f32 %v2457, %v3172
  %v3994 = vmul.f32 %v2458, %v3182
  %v3995 = vmul.f32 %v2459, %v3192
  %v3996 = vmul.f32 %v2460, %v3202
  %v3997 = vmul.f32 %v2461, %v3212
  %v3998 = vmul.f32 %v2462, %v3222
  %v3999 = vmul.f32 %v2463, %v3232
  %v4000 = vmul.f32 %v2464, %v3242
  %v4001 = vmul.f32 %v2465, %v3252
  %v4002 = vmul.f32 %v2466, %v3262
  %v4003 = vmul.f32 %v2467, %v3272
  %v4004 = vmul.f32 %v2468, %v3282
  %v4005 = vmul.f32 %v2469, %v3292
  %v4006 = vmul.f32 %v2470, %v3302
  %v4007 = vmul.f32 %v2471, %v3312
  %v4008 = vmul.f32 %v2472, %v3322
  %v4009 = vmul.f32 %v2473, %v3332
  %v4010 = vmul.f32 %v2474, %v3342
  %v4011 = vmul.f32 %v2475, %v3352
  %v4012 = vmul.f32 %v2476, %v3362
  %v4013 = vmul.f32 %v2477, %v3372
  %v4014 = vmul.f32 %v2478, %v3382
  %v4015 = vmul.f32 %v2479, %v3392
  %v4016 = vmul.f32 %v2480, %v3402
  %v4017 = vmul.f32 %v2481, %v3412
  %v4018 = vmul.f32 %v2482, %v3422
  %v4019 = vmul.f32 %v2483, %v3432
  %v4020 = vmul.f32 %v2484, %v3442
  %v4021 = vmul.f32 %v2485, %v3452
  %v4022 = vmul.f32 %v2486, %v3462
  %v4023 = vmul.f32 %v2487, %v3472
  %v4024 = vmul.f32 %v2488, %v3482
  %v4025 = vmul.f32 %v2489, %v3492
  %v4026 = vmul.f32 %v2490, %v3502
  %v4027 = vmul.f32 %v2491, %v3512
  %v4028 = vmul.f32 %v2492, %v3522
  %v4029 = vmul.f32 %v2493, %v3532
  %v4030 = vmul.f32 %v2494, %v3542
  %v4031 = vmul.f32 %v2495, %v3552
  %v4032 = vmul.f32 %v2496, %v3562
  %v4033 = vmul.f32 %v2497, %v3572
  %v4034 = vmul.f32 %v2498, %v3582
  %v4035 = vmul.f32 %v2499, %v3592
  %v4036 = vmul.f32 %v2500, %v3602
  %v4037 = vmul.f32 %v2501, %v3612
  %v4038 = vmul.f32 %v2502, %v3622
  %v4039 = vmul.f32 %v2503, %v3632
  %v4040 = vmul.f32 %v2504, %v3642
  %v4041 = vmul.f32 %v2505, %v3652
  %v4042 = vmul.f32 %v2506, %v3662
  %v4043 = vmul.f32 %v2507, %v3672
  %v4044 = vmul.f32 %v2508, %v3682
  %v4045 = vmul.f32 %v2509, %v3692
  %v4046 = vmul.f32 %v2510, %v3702
  %v4047 = vmul.f32 %v2511, %v3712
  %v4048 = vmul.f32 %v2512, %v3722
  %v4049 = vmul.f32 %v2513, %v3732
  %v4050 = vmul.f32 %v2514, %v3742
  %v4051 = vmul.f32 %v2515, %v3752
  %v4052 = vmul.f32 %v2516, %v3762
  %v4053 = vmul.f32 %v2517, %v3772
  %v4054 = vmul.f32 %v2518, %v3782
  %v4055 = vmul.f32 %v2519, %v3792
  %v4056 = vmul.f32 %v2520, %v3802
  %v4057 = vmul.f32 %v2521, %v3812
  %v4058 = vmul.f32 %v2522, %v3822
  %v4059 = vmul.f32 %v2523, %v3832
  %v4060 = vmul.f32 %v2524, %v3842
  %v4061 = vmul.f32 %v2525, %v3852
  %v4062 = vmul.f32 %v2526, %v3862
  %v4063 = vmul.f32 %v2527, %v3872
  %v4064 = vmul.f32 %v2528, %v3882
  %v4065 = vmul.f32 %v2529, %v3892
  %v4066 = vmul.f32 %v2530, %v3902
  %v4067 = vmul.f32 %v2531, %v3912
  %v4068 = vmul.f32 %v2532, %v3922
  %v4069 = vmul.f32 %v2533, %v3932
  %v4070 = vmul.f32 %v2534, %v3942
  %v4071 = vxor.u32 %v4007, 2147483648
  %v4072 = vxor.u32 %v4008, 2147483648
  %v4073 = vxor.u32 %v4009, 2147483648
  %v4074 = vxor.u32 %v4010, 2147483648
  %v4075 = vxor.u32 %v4011, 2147483648
  %v4076 = vxor.u32 %v4012, 2147483648
  %v4077 = vxor.u32 %v4013, 2147483648
  %v4078 = vxor.u32 %v4014, 2147483648
  %v4079 = vxor.u32 %v4015, 2147483648
  %v4080 = vxor.u32 %v4016, 2147483648
  %v4081 = vxor.u32 %v4017, 2147483648
  %v4082 = vxor.u32 %v4018, 2147483648
  %v4083 = vxor.u32 %v4019, 2147483648
  %v4084 = vxor.u32 %v4020, 2147483648
  %v4085 = vxor.u32 %v4021, 2147483648
  %v4086 = vxor.u32 %v4022, 2147483648
  %v4087 = vxor.u32 %v4023, 2147483648
  %v4088 = vxor.u32 %v4024, 2147483648
  %v4089 = vxor.u32 %v4025, 2147483648
  %v4090 = vxor.u32 %v4026, 2147483648
  %v4091 = vxor.u32 %v4027, 2147483648
  %v4092 = vxor.u32 %v4028, 2147483648
  %v4093 = vxor.u32 %v4029, 2147483648
  %v4094 = vxor.u32 %v4030, 2147483648
  %v4095 = vxor.u32 %v4031, 2147483648
  %v4096 = vxor.u32 %v4032, 2147483648
  %v4097 = vxor.u32 %v4033, 2147483648
  %v4098 = vxor.u32 %v4034, 2147483648
  %v4099 = vxor.u32 %v4035, 2147483648
  %v4100 = vxor.u32 %v4036, 2147483648
  %v4101 = vxor.u32 %v4037, 2147483648
  %v4102 = vxor.u32 %v4038, 2147483648
  %v4103 = vxor.u32 %v4039, 2147483648
  %v4104 = vxor.u32 %v4040, 2147483648
  %v4105 = vxor.u32 %v4041, 2147483648
  %v4106 = vxor.u32 %v4042, 2147483648
  %v4107 = vxor.u32 %v4043, 2147483648
  %v4108 = vxor.u32 %v4044, 2147483648
  %v4109 = vxor.u32 %v4045, 2147483648
  %v4110 = vxor.u32 %v4046, 2147483648
  %v4111 = vxor.u32 %v4047, 2147483648
  %v4112 = vxor.u32 %v4048, 2147483648
  %v4113 = vxor.u32 %v4049, 2147483648
  %v4114 = vxor.u32 %v4050, 2147483648
  %v4115 = vxor.u32 %v4051, 2147483648
  %v4116 = vxor.u32 %v4052, 2147483648
  %v4117 = vxor.u32 %v4053, 2147483648
  %v4118 = vxor.u32 %v4054, 2147483648
  %v4119 = vxor.u32 %v4055, 2147483648
  %v4120 = vxor.u32 %v4056, 2147483648
  %v4121 = vxor.u32 %v4057, 2147483648
  %v4122 = vxor.u32 %v4058, 2147483648
  %v4123 = vxor.u32 %v4059, 2147483648
  %v4124 = vxor.u32 %v4060, 2147483648
  %v4125 = vxor.u32 %v4061, 2147483648
  %v4126 = vxor.u32 %v4062, 2147483648
  %v4127 = vxor.u32 %v4063, 2147483648
  %v4128 = vxor.u32 %v4064, 2147483648
  %v4129 = vxor.u32 %v4065, 2147483648
  %v4130 = vxor.u32 %v4066, 2147483648
  %v4131 = vxor.u32 %v4067, 2147483648
  %v4132 = vxor.u32 %v4068, 2147483648
  %v4133 = vxor.u32 %v4069, 2147483648
  %v4134 = vxor.u32 %v4070, 2147483648
  %v4135 = vmul.f32 %v4071, 1.442695
  %v4136 = vpow.pop %v4135
  %v4137 = vmul.f32 %v4072, 1.442695
  %v4138 = vpow.pop %v4137
  %v4139 = vmul.f32 %v4073, 1.442695
  %v4140 = vpow.pop %v4139
  %v4141 = vmul.f32 %v4074, 1.442695
  %v4142 = vpow.pop %v4141
  %v4143 = vmul.f32 %v4075, 1.442695
  %v4144 = vpow.pop %v4143
  %v4145 = vmul.f32 %v4076, 1.442695
  %v4146 = vpow.pop %v4145
  %v4147 = vmul.f32 %v4077, 1.442695
  %v4148 = vpow.pop %v4147
  %v4149 = vmul.f32 %v4078, 1.442695
  %v4150 = vpow.pop %v4149
  %v4151 = vmul.f32 %v4079, 1.442695
  %v4152 = vpow.pop %v4151
  %v4153 = vmul.f32 %v4080, 1.442695
  %v4154 = vpow.pop %v4153
  %v4155 = vmul.f32 %v4081, 1.442695
  %v4156 = vpow.pop %v4155
  %v4157 = vmul.f32 %v4082, 1.442695
  %v4158 = vpow.pop %v4157
  %v4159 = vmul.f32 %v4083, 1.442695
  %v4160 = vpow.pop %v4159
  %v4161 = vmul.f32 %v4084, 1.442695
  %v4162 = vpow.pop %v4161
  %v4163 = vmul.f32 %v4085, 1.442695
  %v4164 = vpow.pop %v4163
  %v4165 = vmul.f32 %v4086, 1.442695
  %v4166 = vpow.pop %v4165
  %v4167 = vmul.f32 %v4087, 1.442695
  %v4168 = vpow.pop %v4167
  %v4169 = vmul.f32 %v4088, 1.442695
  %v4170 = vpow.pop %v4169
  %v4171 = vmul.f32 %v4089, 1.442695
  %v4172 = vpow.pop %v4171
  %v4173 = vmul.f32 %v4090, 1.442695
  %v4174 = vpow.pop %v4173
  %v4175 = vmul.f32 %v4091, 1.442695
  %v4176 = vpow.pop %v4175
  %v4177 = vmul.f32 %v4092, 1.442695
  %v4178 = vpow.pop %v4177
  %v4179 = vmul.f32 %v4093, 1.442695
  %v4180 = vpow.pop %v4179
  %v4181 = vmul.f32 %v4094, 1.442695
  %v4182 = vpow.pop %v4181
  %v4183 = vmul.f32 %v4095, 1.442695
  %v4184 = vpow.pop %v4183
  %v4185 = vmul.f32 %v4096, 1.442695
  %v4186 = vpow.pop %v4185
  %v4187 = vmul.f32 %v4097, 1.442695
  %v4188 = vpow.pop %v4187
  %v4189 = vmul.f32 %v4098, 1.442695
  %v4190 = vpow.pop %v4189
  %v4191 = vmul.f32 %v4099, 1.442695
  %v4192 = vpow.pop %v4191
  %v4193 = vmul.f32 %v4100, 1.442695
  %v4194 = vpow.pop %v4193
  %v4195 = vmul.f32 %v4101, 1.442695
  %v4196 = vpow.pop %v4195
  %v4197 = vmul.f32 %v4102, 1.442695
  %v4198 = vpow.pop %v4197
  %v4199 = vmul.f32 %v4103, 1.442695
  %v4200 = vpow.pop %v4199
  %v4201 = vmul.f32 %v4104, 1.442695
  %v4202 = vpow.pop %v4201
  %v4203 = vmul.f32 %v4105, 1.442695
  %v4204 = vpow.pop %v4203
  %v4205 = vmul.f32 %v4106, 1.442695
  %v4206 = vpow.pop %v4205
  %v4207 = vmul.f32 %v4107, 1.442695
  %v4208 = vpow.pop %v4207
  %v4209 = vmul.f32 %v4108, 1.442695
  %v4210 = vpow.pop %v4209
  %v4211 = vmul.f32 %v4109, 1.442695
  %v4212 = vpow.pop %v4211
  %v4213 = vmul.f32 %v4110, 1.442695
  %v4214 = vpow.pop %v4213
  %v4215 = vmul.f32 %v4111, 1.442695
  %v4216 = vpow.pop %v4215
  %v4217 = vmul.f32 %v4112, 1.442695
  %v4218 = vpow.pop %v4217
  %v4219 = vmul.f32 %v4113, 1.442695
  %v4220 = vpow.pop %v4219
  %v4221 = vmul.f32 %v4114, 1.442695
  %v4222 = vpow.pop %v4221
  %v4223 = vmul.f32 %v4115, 1.442695
  %v4224 = vpow.pop %v4223
  %v4225 = vmul.f32 %v4116, 1.442695
  %v4226 = vpow.pop %v4225
  %v4227 = vmul.f32 %v4117, 1.442695
  %v4228 = vpow.pop %v4227
  %v4229 = vmul.f32 %v4118, 1.442695
  %v4230 = vpow.pop %v4229
  %v4231 = vmul.f32 %v4119, 1.442695
  %v4232 = vpow.pop %v4231
  %v4233 = vmul.f32 %v4120, 1.442695
  %v4234 = vpow.pop %v4233
  %v4235 = vmul.f32 %v4121, 1.442695
  %v4236 = vpow.pop %v4235
  %v4237 = vmul.f32 %v4122, 1.442695
  %v4238 = vpow.pop %v4237
  %v4239 = vmul.f32 %v4123, 1.442695
  %v4240 = vpow.pop %v4239
  %v4241 = vmul.f32 %v4124, 1.442695
  %v4242 = vpow.pop %v4241
  %v4243 = vmul.f32 %v4125, 1.442695
  %v4244 = vpow.pop %v4243
  %v4245 = vmul.f32 %v4126, 1.442695
  %v4246 = vpow.pop %v4245
  %v4247 = vmul.f32 %v4127, 1.442695
  %v4248 = vpow.pop %v4247
  %v4249 = vmul.f32 %v4128, 1.442695
  %v4250 = vpow.pop %v4249
  %v4251 = vmul.f32 %v4129, 1.442695
  %v4252 = vpow.pop %v4251
  %v4253 = vmul.f32 %v4130, 1.442695
  %v4254 = vpow.pop %v4253
  %v4255 = vmul.f32 %v4131, 1.442695
  %v4256 = vpow.pop %v4255
  %v4257 = vmul.f32 %v4132, 1.442695
  %v4258 = vpow.pop %v4257
  %v4259 = vmul.f32 %v4133, 1.442695
  %v4260 = vpow.pop %v4259
  %v4261 = vmul.f32 %v4134, 1.442695
  %v4262 = vpow.pop %v4261
  %v4263 = vadd.f32 %v4136, 1.0
  %v4264 = vadd.f32 %v4138, 1.0
  %v4265 = vadd.f32 %v4140, 1.0
  %v4266 = vadd.f32 %v4142, 1.0
  %v4267 = vadd.f32 %v4144, 1.0
  %v4268 = vadd.f32 %v4146, 1.0
  %v4269 = vadd.f32 %v4148, 1.0
  %v4270 = vadd.f32 %v4150, 1.0
  %v4271 = vadd.f32 %v4152, 1.0
  %v4272 = vadd.f32 %v4154, 1.0
  %v4273 = vadd.f32 %v4156, 1.0
  %v4274 = vadd.f32 %v4158, 1.0
  %v4275 = vadd.f32 %v4160, 1.0
  %v4276 = vadd.f32 %v4162, 1.0
  %v4277 = vadd.f32 %v4164, 1.0
  %v4278 = vadd.f32 %v4166, 1.0
  %v4279 = vadd.f32 %v4168, 1.0
  %v4280 = vadd.f32 %v4170, 1.0
  %v4281 = vadd.f32 %v4172, 1.0
  %v4282 = vadd.f32 %v4174, 1.0
  %v4283 = vadd.f32 %v4176, 1.0
  %v4284 = vadd.f32 %v4178, 1.0
  %v4285 = vadd.f32 %v4180, 1.0
  %v4286 = vadd.f32 %v4182, 1.0
  %v4287 = vadd.f32 %v4184, 1.0
  %v4288 = vadd.f32 %v4186, 1.0
  %v4289 = vadd.f32 %v4188, 1.0
  %v4290 = vadd.f32 %v4190, 1.0
  %v4291 = vadd.f32 %v4192, 1.0
  %v4292 = vadd.f32 %v4194, 1.0
  %v4293 = vadd.f32 %v4196, 1.0
  %v4294 = vadd.f32 %v4198, 1.0
  %v4295 = vadd.f32 %v4200, 1.0
  %v4296 = vadd.f32 %v4202, 1.0
  %v4297 = vadd.f32 %v4204, 1.0
  %v4298 = vadd.f32 %v4206, 1.0
  %v4299 = vadd.f32 %v4208, 1.0
  %v4300 = vadd.f32 %v4210, 1.0
  %v4301 = vadd.f32 %v4212, 1.0
  %v4302 = vadd.f32 %v4214, 1.0
  %v4303 = vadd.f32 %v4216, 1.0
  %v4304 = vadd.f32 %v4218, 1.0
  %v4305 = vadd.f32 %v4220, 1.0
  %v4306 = vadd.f32 %v4222, 1.0
  %v4307 = vadd.f32 %v4224, 1.0
  %v4308 = vadd.f32 %v4226, 1.0
  %v4309 = vadd.f32 %v4228, 1.0
  %v4310 = vadd.f32 %v4230, 1.0
  %v4311 = vadd.f32 %v4232, 1.0
  %v4312 = vadd.f32 %v4234, 1.0
  %v4313 = vadd.f32 %v4236, 1.0
  %v4314 = vadd.f32 %v4238, 1.0
  %v4315 = vadd.f32 %v4240, 1.0
  %v4316 = vadd.f32 %v4242, 1.0
  %v4317 = vadd.f32 %v4244, 1.0
  %v4318 = vadd.f32 %v4246, 1.0
  %v4319 = vadd.f32 %v4248, 1.0
  %v4320 = vadd.f32 %v4250, 1.0
  %v4321 = vadd.f32 %v4252, 1.0
  %v4322 = vadd.f32 %v4254, 1.0
  %v4323 = vadd.f32 %v4256, 1.0
  %v4324 = vadd.f32 %v4258, 1.0
  %v4325 = vadd.f32 %v4260, 1.0
  %v4326 = vadd.f32 %v4262, 1.0
  %v4327 = vrcp.pop %v4263
  %v4328 = vmul.f32 %v4263, %v4327
  %v4329 = vsub.f32 1.0, %v4328
  %v4330 = vmul.f32 %v4327, %v4329
  %v4331 = vadd.f32 %v4327, %v4330
  %vm4332 = vweird.f32 %v4263
  %vm4333 = vweird.f32 %v4327
  %vm4334 = vmor %vm4332, %vm4333
  %v4335 = vsel %vm4334, %v4327, %v4331
  %v4336 = vand.u32 2147483647, %v4263
  %vm4337 = vcmp.eq.f32.partialorder %v4336, 8.507059e+37
  %v4338 = vand.u32 %v4263, 2147483648
  %v4339 = vor.u32 1.1754944e-38, %v4338
  %v4340 = vsel %vm4337, %v4339, %v4335
  %v4341 = vmul.f32 1.0, %v4340
  %v4342 = vrcp.pop %v4264
  %v4343 = vmul.f32 %v4264, %v4342
  %v4344 = vsub.f32 1.0, %v4343
  %v4345 = vmul.f32 %v4342, %v4344
  %v4346 = vadd.f32 %v4342, %v4345
  %vm4347 = vweird.f32 %v4264
  %vm4348 = vweird.f32 %v4342
  %vm4349 = vmor %vm4347, %vm4348
  %v4350 = vsel %vm4349, %v4342, %v4346
  %v4351 = vand.u32 2147483647, %v4264
  %vm4352 = vcmp.eq.f32.partialorder %v4351, 8.507059e+37
  %v4353 = vand.u32 %v4264, 2147483648
  %v4354 = vor.u32 1.1754944e-38, %v4353
  %v4355 = vsel %vm4352, %v4354, %v4350
  %v4356 = vmul.f32 1.0, %v4355
  %v4357 = vrcp.pop %v4265
  %v4358 = vmul.f32 %v4265, %v4357
  %v4359 = vsub.f32 1.0, %v4358
  %v4360 = vmul.f32 %v4357, %v4359
  %v4361 = vadd.f32 %v4357, %v4360
  %vm4362 = vweird.f32 %v4265
  %vm4363 = vweird.f32 %v4357
  %vm4364 = vmor %vm4362, %vm4363
  %v4365 = vsel %vm4364, %v4357, %v4361
  %v4366 = vand.u32 2147483647, %v4265
  %vm4367 = vcmp.eq.f32.partialorder %v4366, 8.507059e+37
  %v4368 = vand.u32 %v4265, 2147483648
  %v4369 = vor.u32 1.1754944e-38, %v4368
  %v4370 = vsel %vm4367, %v4369, %v4365
  %v4371 = vmul.f32 1.0, %v4370
  %v4372 = vrcp.pop %v4266
  %v4373 = vmul.f32 %v4266, %v4372
  %v4374 = vsub.f32 1.0, %v4373
  %v4375 = vmul.f32 %v4372, %v4374
  %v4376 = vadd.f32 %v4372, %v4375
  %vm4377 = vweird.f32 %v4266
  %vm4378 = vweird.f32 %v4372
  %vm4379 = vmor %vm4377, %vm4378
  %v4380 = vsel %vm4379, %v4372, %v4376
  %v4381 = vand.u32 2147483647, %v4266
  %vm4382 = vcmp.eq.f32.partialorder %v4381, 8.507059e+37
  %v4383 = vand.u32 %v4266, 2147483648
  %v4384 = vor.u32 1.1754944e-38, %v4383
  %v4385 = vsel %vm4382, %v4384, %v4380
  %v4386 = vmul.f32 1.0, %v4385
  %v4387 = vrcp.pop %v4267
  %v4388 = vmul.f32 %v4267, %v4387
  %v4389 = vsub.f32 1.0, %v4388
  %v4390 = vmul.f32 %v4387, %v4389
  %v4391 = vadd.f32 %v4387, %v4390
  %vm4392 = vweird.f32 %v4267
  %vm4393 = vweird.f32 %v4387
  %vm4394 = vmor %vm4392, %vm4393
  %v4395 = vsel %vm4394, %v4387, %v4391
  %v4396 = vand.u32 2147483647, %v4267
  %vm4397 = vcmp.eq.f32.partialorder %v4396, 8.507059e+37
  %v4398 = vand.u32 %v4267, 2147483648
  %v4399 = vor.u32 1.1754944e-38, %v4398
  %v4400 = vsel %vm4397, %v4399, %v4395
  %v4401 = vmul.f32 1.0, %v4400
  %v4402 = vrcp.pop %v4268
  %v4403 = vmul.f32 %v4268, %v4402
  %v4404 = vsub.f32 1.0, %v4403
  %v4405 = vmul.f32 %v4402, %v4404
  %v4406 = vadd.f32 %v4402, %v4405
  %vm4407 = vweird.f32 %v4268
  %vm4408 = vweird.f32 %v4402
  %vm4409 = vmor %vm4407, %vm4408
  %v4410 = vsel %vm4409, %v4402, %v4406
  %v4411 = vand.u32 2147483647, %v4268
  %vm4412 = vcmp.eq.f32.partialorder %v4411, 8.507059e+37
  %v4413 = vand.u32 %v4268, 2147483648
  %v4414 = vor.u32 1.1754944e-38, %v4413
  %v4415 = vsel %vm4412, %v4414, %v4410
  %v4416 = vmul.f32 1.0, %v4415
  %v4417 = vrcp.pop %v4269
  %v4418 = vmul.f32 %v4269, %v4417
  %v4419 = vsub.f32 1.0, %v4418
  %v4420 = vmul.f32 %v4417, %v4419
  %v4421 = vadd.f32 %v4417, %v4420
  %vm4422 = vweird.f32 %v4269
  %vm4423 = vweird.f32 %v4417
  %vm4424 = vmor %vm4422, %vm4423
  %v4425 = vsel %vm4424, %v4417, %v4421
  %v4426 = vand.u32 2147483647, %v4269
  %vm4427 = vcmp.eq.f32.partialorder %v4426, 8.507059e+37
  %v4428 = vand.u32 %v4269, 2147483648
  %v4429 = vor.u32 1.1754944e-38, %v4428
  %v4430 = vsel %vm4427, %v4429, %v4425
  %v4431 = vmul.f32 1.0, %v4430
  %v4432 = vrcp.pop %v4270
  %v4433 = vmul.f32 %v4270, %v4432
  %v4434 = vsub.f32 1.0, %v4433
  %v4435 = vmul.f32 %v4432, %v4434
  %v4436 = vadd.f32 %v4432, %v4435
  %vm4437 = vweird.f32 %v4270
  %vm4438 = vweird.f32 %v4432
  %vm4439 = vmor %vm4437, %vm4438
  %v4440 = vsel %vm4439, %v4432, %v4436
  %v4441 = vand.u32 2147483647, %v4270
  %vm4442 = vcmp.eq.f32.partialorder %v4441, 8.507059e+37
  %v4443 = vand.u32 %v4270, 2147483648
  %v4444 = vor.u32 1.1754944e-38, %v4443
  %v4445 = vsel %vm4442, %v4444, %v4440
  %v4446 = vmul.f32 1.0, %v4445
  %v4447 = vrcp.pop %v4271
  %v4448 = vmul.f32 %v4271, %v4447
  %v4449 = vsub.f32 1.0, %v4448
  %v4450 = vmul.f32 %v4447, %v4449
  %v4451 = vadd.f32 %v4447, %v4450
  %vm4452 = vweird.f32 %v4271
  %vm4453 = vweird.f32 %v4447
  %vm4454 = vmor %vm4452, %vm4453
  %v4455 = vsel %vm4454, %v4447, %v4451
  %v4456 = vand.u32 2147483647, %v4271
  %vm4457 = vcmp.eq.f32.partialorder %v4456, 8.507059e+37
  %v4458 = vand.u32 %v4271, 2147483648
  %v4459 = vor.u32 1.1754944e-38, %v4458
  %v4460 = vsel %vm4457, %v4459, %v4455
  %v4461 = vmul.f32 1.0, %v4460
  %v4462 = vrcp.pop %v4272
  %v4463 = vmul.f32 %v4272, %v4462
  %v4464 = vsub.f32 1.0, %v4463
  %v4465 = vmul.f32 %v4462, %v4464
  %v4466 = vadd.f32 %v4462, %v4465
  %vm4467 = vweird.f32 %v4272
  %vm4468 = vweird.f32 %v4462
  %vm4469 = vmor %vm4467, %vm4468
  %v4470 = vsel %vm4469, %v4462, %v4466
  %v4471 = vand.u32 2147483647, %v4272
  %vm4472 = vcmp.eq.f32.partialorder %v4471, 8.507059e+37
  %v4473 = vand.u32 %v4272, 2147483648
  %v4474 = vor.u32 1.1754944e-38, %v4473
  %v4475 = vsel %vm4472, %v4474, %v4470
  %v4476 = vmul.f32 1.0, %v4475
  %v4477 = vrcp.pop %v4273
  %v4478 = vmul.f32 %v4273, %v4477
  %v4479 = vsub.f32 1.0, %v4478
  %v4480 = vmul.f32 %v4477, %v4479
  %v4481 = vadd.f32 %v4477, %v4480
  %vm4482 = vweird.f32 %v4273
  %vm4483 = vweird.f32 %v4477
  %vm4484 = vmor %vm4482, %vm4483
  %v4485 = vsel %vm4484, %v4477, %v4481
  %v4486 = vand.u32 2147483647, %v4273
  %vm4487 = vcmp.eq.f32.partialorder %v4486, 8.507059e+37
  %v4488 = vand.u32 %v4273, 2147483648
  %v4489 = vor.u32 1.1754944e-38, %v4488
  %v4490 = vsel %vm4487, %v4489, %v4485
  %v4491 = vmul.f32 1.0, %v4490
  %v4492 = vrcp.pop %v4274
  %v4493 = vmul.f32 %v4274, %v4492
  %v4494 = vsub.f32 1.0, %v4493
  %v4495 = vmul.f32 %v4492, %v4494
  %v4496 = vadd.f32 %v4492, %v4495
  %vm4497 = vweird.f32 %v4274
  %vm4498 = vweird.f32 %v4492
  %vm4499 = vmor %vm4497, %vm4498
  %v4500 = vsel %vm4499, %v4492, %v4496
  %v4501 = vand.u32 2147483647, %v4274
  %vm4502 = vcmp.eq.f32.partialorder %v4501, 8.507059e+37
  %v4503 = vand.u32 %v4274, 2147483648
  %v4504 = vor.u32 1.1754944e-38, %v4503
  %v4505 = vsel %vm4502, %v4504, %v4500
  %v4506 = vmul.f32 1.0, %v4505
  %v4507 = vrcp.pop %v4275
  %v4508 = vmul.f32 %v4275, %v4507
  %v4509 = vsub.f32 1.0, %v4508
  %v4510 = vmul.f32 %v4507, %v4509
  %v4511 = vadd.f32 %v4507, %v4510
  %vm4512 = vweird.f32 %v4275
  %vm4513 = vweird.f32 %v4507
  %vm4514 = vmor %vm4512, %vm4513
  %v4515 = vsel %vm4514, %v4507, %v4511
  %v4516 = vand.u32 2147483647, %v4275
  %vm4517 = vcmp.eq.f32.partialorder %v4516, 8.507059e+37
  %v4518 = vand.u32 %v4275, 2147483648
  %v4519 = vor.u32 1.1754944e-38, %v4518
  %v4520 = vsel %vm4517, %v4519, %v4515
  %v4521 = vmul.f32 1.0, %v4520
  %v4522 = vrcp.pop %v4276
  %v4523 = vmul.f32 %v4276, %v4522
  %v4524 = vsub.f32 1.0, %v4523
  %v4525 = vmul.f32 %v4522, %v4524
  %v4526 = vadd.f32 %v4522, %v4525
  %vm4527 = vweird.f32 %v4276
  %vm4528 = vweird.f32 %v4522
  %vm4529 = vmor %vm4527, %vm4528
  %v4530 = vsel %vm4529, %v4522, %v4526
  %v4531 = vand.u32 2147483647, %v4276
  %vm4532 = vcmp.eq.f32.partialorder %v4531, 8.507059e+37
  %v4533 = vand.u32 %v4276, 2147483648
  %v4534 = vor.u32 1.1754944e-38, %v4533
  %v4535 = vsel %vm4532, %v4534, %v4530
  %v4536 = vmul.f32 1.0, %v4535
  %v4537 = vrcp.pop %v4277
  %v4538 = vmul.f32 %v4277, %v4537
  %v4539 = vsub.f32 1.0, %v4538
  %v4540 = vmul.f32 %v4537, %v4539
  %v4541 = vadd.f32 %v4537, %v4540
  %vm4542 = vweird.f32 %v4277
  %vm4543 = vweird.f32 %v4537
  %vm4544 = vmor %vm4542, %vm4543
  %v4545 = vsel %vm4544, %v4537, %v4541
  %v4546 = vand.u32 2147483647, %v4277
  %vm4547 = vcmp.eq.f32.partialorder %v4546, 8.507059e+37
  %v4548 = vand.u32 %v4277, 2147483648
  %v4549 = vor.u32 1.1754944e-38, %v4548
  %v4550 = vsel %vm4547, %v4549, %v4545
  %v4551 = vmul.f32 1.0, %v4550
  %v4552 = vrcp.pop %v4278
  %v4553 = vmul.f32 %v4278, %v4552
  %v4554 = vsub.f32 1.0, %v4553
  %v4555 = vmul.f32 %v4552, %v4554
  %v4556 = vadd.f32 %v4552, %v4555
  %vm4557 = vweird.f32 %v4278
  %vm4558 = vweird.f32 %v4552
  %vm4559 = vmor %vm4557, %vm4558
  %v4560 = vsel %vm4559, %v4552, %v4556
  %v4561 = vand.u32 2147483647, %v4278
  %vm4562 = vcmp.eq.f32.partialorder %v4561, 8.507059e+37
  %v4563 = vand.u32 %v4278, 2147483648
  %v4564 = vor.u32 1.1754944e-38, %v4563
  %v4565 = vsel %vm4562, %v4564, %v4560
  %v4566 = vmul.f32 1.0, %v4565
  %v4567 = vrcp.pop %v4279
  %v4568 = vmul.f32 %v4279, %v4567
  %v4569 = vsub.f32 1.0, %v4568
  %v4570 = vmul.f32 %v4567, %v4569
  %v4571 = vadd.f32 %v4567, %v4570
  %vm4572 = vweird.f32 %v4279
  %vm4573 = vweird.f32 %v4567
  %vm4574 = vmor %vm4572, %vm4573
  %v4575 = vsel %vm4574, %v4567, %v4571
  %v4576 = vand.u32 2147483647, %v4279
  %vm4577 = vcmp.eq.f32.partialorder %v4576, 8.507059e+37
  %v4578 = vand.u32 %v4279, 2147483648
  %v4579 = vor.u32 1.1754944e-38, %v4578
  %v4580 = vsel %vm4577, %v4579, %v4575
  %v4581 = vmul.f32 1.0, %v4580
  %v4582 = vrcp.pop %v4280
  %v4583 = vmul.f32 %v4280, %v4582
  %v4584 = vsub.f32 1.0, %v4583
  %v4585 = vmul.f32 %v4582, %v4584
  %v4586 = vadd.f32 %v4582, %v4585
  %vm4587 = vweird.f32 %v4280
  %vm4588 = vweird.f32 %v4582
  %vm4589 = vmor %vm4587, %vm4588
  %v4590 = vsel %vm4589, %v4582, %v4586
  %v4591 = vand.u32 2147483647, %v4280
  %vm4592 = vcmp.eq.f32.partialorder %v4591, 8.507059e+37
  %v4593 = vand.u32 %v4280, 2147483648
  %v4594 = vor.u32 1.1754944e-38, %v4593
  %v4595 = vsel %vm4592, %v4594, %v4590
  %v4596 = vmul.f32 1.0, %v4595
  %v4597 = vrcp.pop %v4281
  %v4598 = vmul.f32 %v4281, %v4597
  %v4599 = vsub.f32 1.0, %v4598
  %v4600 = vmul.f32 %v4597, %v4599
  %v4601 = vadd.f32 %v4597, %v4600
  %vm4602 = vweird.f32 %v4281
  %vm4603 = vweird.f32 %v4597
  %vm4604 = vmor %vm4602, %vm4603
  %v4605 = vsel %vm4604, %v4597, %v4601
  %v4606 = vand.u32 2147483647, %v4281
  %vm4607 = vcmp.eq.f32.partialorder %v4606, 8.507059e+37
  %v4608 = vand.u32 %v4281, 2147483648
  %v4609 = vor.u32 1.1754944e-38, %v4608
  %v4610 = vsel %vm4607, %v4609, %v4605
  %v4611 = vmul.f32 1.0, %v4610
  %v4612 = vrcp.pop %v4282
  %v4613 = vmul.f32 %v4282, %v4612
  %v4614 = vsub.f32 1.0, %v4613
  %v4615 = vmul.f32 %v4612, %v4614
  %v4616 = vadd.f32 %v4612, %v4615
  %vm4617 = vweird.f32 %v4282
  %vm4618 = vweird.f32 %v4612
  %vm4619 = vmor %vm4617, %vm4618
  %v4620 = vsel %vm4619, %v4612, %v4616
  %v4621 = vand.u32 2147483647, %v4282
  %vm4622 = vcmp.eq.f32.partialorder %v4621, 8.507059e+37
  %v4623 = vand.u32 %v4282, 2147483648
  %v4624 = vor.u32 1.1754944e-38, %v4623
  %v4625 = vsel %vm4622, %v4624, %v4620
  %v4626 = vmul.f32 1.0, %v4625
  %v4627 = vrcp.pop %v4283
  %v4628 = vmul.f32 %v4283, %v4627
  %v4629 = vsub.f32 1.0, %v4628
  %v4630 = vmul.f32 %v4627, %v4629
  %v4631 = vadd.f32 %v4627, %v4630
  %vm4632 = vweird.f32 %v4283
  %vm4633 = vweird.f32 %v4627
  %vm4634 = vmor %vm4632, %vm4633
  %v4635 = vsel %vm4634, %v4627, %v4631
  %v4636 = vand.u32 2147483647, %v4283
  %vm4637 = vcmp.eq.f32.partialorder %v4636, 8.507059e+37
  %v4638 = vand.u32 %v4283, 2147483648
  %v4639 = vor.u32 1.1754944e-38, %v4638
  %v4640 = vsel %vm4637, %v4639, %v4635
  %v4641 = vmul.f32 1.0, %v4640
  %v4642 = vrcp.pop %v4284
  %v4643 = vmul.f32 %v4284, %v4642
  %v4644 = vsub.f32 1.0, %v4643
  %v4645 = vmul.f32 %v4642, %v4644
  %v4646 = vadd.f32 %v4642, %v4645
  %vm4647 = vweird.f32 %v4284
  %vm4648 = vweird.f32 %v4642
  %vm4649 = vmor %vm4647, %vm4648
  %v4650 = vsel %vm4649, %v4642, %v4646
  %v4651 = vand.u32 2147483647, %v4284
  %vm4652 = vcmp.eq.f32.partialorder %v4651, 8.507059e+37
  %v4653 = vand.u32 %v4284, 2147483648
  %v4654 = vor.u32 1.1754944e-38, %v4653
  %v4655 = vsel %vm4652, %v4654, %v4650
  %v4656 = vmul.f32 1.0, %v4655
  %v4657 = vrcp.pop %v4285
  %v4658 = vmul.f32 %v4285, %v4657
  %v4659 = vsub.f32 1.0, %v4658
  %v4660 = vmul.f32 %v4657, %v4659
  %v4661 = vadd.f32 %v4657, %v4660
  %vm4662 = vweird.f32 %v4285
  %vm4663 = vweird.f32 %v4657
  %vm4664 = vmor %vm4662, %vm4663
  %v4665 = vsel %vm4664, %v4657, %v4661
  %v4666 = vand.u32 2147483647, %v4285
  %vm4667 = vcmp.eq.f32.partialorder %v4666, 8.507059e+37
  %v4668 = vand.u32 %v4285, 2147483648
  %v4669 = vor.u32 1.1754944e-38, %v4668
  %v4670 = vsel %vm4667, %v4669, %v4665
  %v4671 = vmul.f32 1.0, %v4670
  %v4672 = vrcp.pop %v4286
  %v4673 = vmul.f32 %v4286, %v4672
  %v4674 = vsub.f32 1.0, %v4673
  %v4675 = vmul.f32 %v4672, %v4674
  %v4676 = vadd.f32 %v4672, %v4675
  %vm4677 = vweird.f32 %v4286
  %vm4678 = vweird.f32 %v4672
  %vm4679 = vmor %vm4677, %vm4678
  %v4680 = vsel %vm4679, %v4672, %v4676
  %v4681 = vand.u32 2147483647, %v4286
  %vm4682 = vcmp.eq.f32.partialorder %v4681, 8.507059e+37
  %v4683 = vand.u32 %v4286, 2147483648
  %v4684 = vor.u32 1.1754944e-38, %v4683
  %v4685 = vsel %vm4682, %v4684, %v4680
  %v4686 = vmul.f32 1.0, %v4685
  %v4687 = vrcp.pop %v4287
  %v4688 = vmul.f32 %v4287, %v4687
  %v4689 = vsub.f32 1.0, %v4688
  %v4690 = vmul.f32 %v4687, %v4689
  %v4691 = vadd.f32 %v4687, %v4690
  %vm4692 = vweird.f32 %v4287
  %vm4693 = vweird.f32 %v4687
  %vm4694 = vmor %vm4692, %vm4693
  %v4695 = vsel %vm4694, %v4687, %v4691
  %v4696 = vand.u32 2147483647, %v4287
  %vm4697 = vcmp.eq.f32.partialorder %v4696, 8.507059e+37
  %v4698 = vand.u32 %v4287, 2147483648
  %v4699 = vor.u32 1.1754944e-38, %v4698
  %v4700 = vsel %vm4697, %v4699, %v4695
  %v4701 = vmul.f32 1.0, %v4700
  %v4702 = vrcp.pop %v4288
  %v4703 = vmul.f32 %v4288, %v4702
  %v4704 = vsub.f32 1.0, %v4703
  %v4705 = vmul.f32 %v4702, %v4704
  %v4706 = vadd.f32 %v4702, %v4705
  %vm4707 = vweird.f32 %v4288
  %vm4708 = vweird.f32 %v4702
  %vm4709 = vmor %vm4707, %vm4708
  %v4710 = vsel %vm4709, %v4702, %v4706
  %v4711 = vand.u32 2147483647, %v4288
  %vm4712 = vcmp.eq.f32.partialorder %v4711, 8.507059e+37
  %v4713 = vand.u32 %v4288, 2147483648
  %v4714 = vor.u32 1.1754944e-38, %v4713
  %v4715 = vsel %vm4712, %v4714, %v4710
  %v4716 = vmul.f32 1.0, %v4715
  %v4717 = vrcp.pop %v4289
  %v4718 = vmul.f32 %v4289, %v4717
  %v4719 = vsub.f32 1.0, %v4718
  %v4720 = vmul.f32 %v4717, %v4719
  %v4721 = vadd.f32 %v4717, %v4720
  %vm4722 = vweird.f32 %v4289
  %vm4723 = vweird.f32 %v4717
  %vm4724 = vmor %vm4722, %vm4723
  %v4725 = vsel %vm4724, %v4717, %v4721
  %v4726 = vand.u32 2147483647, %v4289
  %vm4727 = vcmp.eq.f32.partialorder %v4726, 8.507059e+37
  %v4728 = vand.u32 %v4289, 2147483648
  %v4729 = vor.u32 1.1754944e-38, %v4728
  %v4730 = vsel %vm4727, %v4729, %v4725
  %v4731 = vmul.f32 1.0, %v4730
  %v4732 = vrcp.pop %v4290
  %v4733 = vmul.f32 %v4290, %v4732
  %v4734 = vsub.f32 1.0, %v4733
  %v4735 = vmul.f32 %v4732, %v4734
  %v4736 = vadd.f32 %v4732, %v4735
  %vm4737 = vweird.f32 %v4290
  %vm4738 = vweird.f32 %v4732
  %vm4739 = vmor %vm4737, %vm4738
  %v4740 = vsel %vm4739, %v4732, %v4736
  %v4741 = vand.u32 2147483647, %v4290
  %vm4742 = vcmp.eq.f32.partialorder %v4741, 8.507059e+37
  %v4743 = vand.u32 %v4290, 2147483648
  %v4744 = vor.u32 1.1754944e-38, %v4743
  %v4745 = vsel %vm4742, %v4744, %v4740
  %v4746 = vmul.f32 1.0, %v4745
  %v4747 = vrcp.pop %v4291
  %v4748 = vmul.f32 %v4291, %v4747
  %v4749 = vsub.f32 1.0, %v4748
  %v4750 = vmul.f32 %v4747, %v4749
  %v4751 = vadd.f32 %v4747, %v4750
  %vm4752 = vweird.f32 %v4291
  %vm4753 = vweird.f32 %v4747
  %vm4754 = vmor %vm4752, %vm4753
  %v4755 = vsel %vm4754, %v4747, %v4751
  %v4756 = vand.u32 2147483647, %v4291
  %vm4757 = vcmp.eq.f32.partialorder %v4756, 8.507059e+37
  %v4758 = vand.u32 %v4291, 2147483648
  %v4759 = vor.u32 1.1754944e-38, %v4758
  %v4760 = vsel %vm4757, %v4759, %v4755
  %v4761 = vmul.f32 1.0, %v4760
  %v4762 = vrcp.pop %v4292
  %v4763 = vmul.f32 %v4292, %v4762
  %v4764 = vsub.f32 1.0, %v4763
  %v4765 = vmul.f32 %v4762, %v4764
  %v4766 = vadd.f32 %v4762, %v4765
  %vm4767 = vweird.f32 %v4292
  %vm4768 = vweird.f32 %v4762
  %vm4769 = vmor %vm4767, %vm4768
  %v4770 = vsel %vm4769, %v4762, %v4766
  %v4771 = vand.u32 2147483647, %v4292
  %vm4772 = vcmp.eq.f32.partialorder %v4771, 8.507059e+37
  %v4773 = vand.u32 %v4292, 2147483648
  %v4774 = vor.u32 1.1754944e-38, %v4773
  %v4775 = vsel %vm4772, %v4774, %v4770
  %v4776 = vmul.f32 1.0, %v4775
  %v4777 = vrcp.pop %v4293
  %v4778 = vmul.f32 %v4293, %v4777
  %v4779 = vsub.f32 1.0, %v4778
  %v4780 = vmul.f32 %v4777, %v4779
  %v4781 = vadd.f32 %v4777, %v4780
  %vm4782 = vweird.f32 %v4293
  %vm4783 = vweird.f32 %v4777
  %vm4784 = vmor %vm4782, %vm4783
  %v4785 = vsel %vm4784, %v4777, %v4781
  %v4786 = vand.u32 2147483647, %v4293
  %vm4787 = vcmp.eq.f32.partialorder %v4786, 8.507059e+37
  %v4788 = vand.u32 %v4293, 2147483648
  %v4789 = vor.u32 1.1754944e-38, %v4788
  %v4790 = vsel %vm4787, %v4789, %v4785
  %v4791 = vmul.f32 1.0, %v4790
  %v4792 = vrcp.pop %v4294
  %v4793 = vmul.f32 %v4294, %v4792
  %v4794 = vsub.f32 1.0, %v4793
  %v4795 = vmul.f32 %v4792, %v4794
  %v4796 = vadd.f32 %v4792, %v4795
  %vm4797 = vweird.f32 %v4294
  %vm4798 = vweird.f32 %v4792
  %vm4799 = vmor %vm4797, %vm4798
  %v4800 = vsel %vm4799, %v4792, %v4796
  %v4801 = vand.u32 2147483647, %v4294
  %vm4802 = vcmp.eq.f32.partialorder %v4801, 8.507059e+37
  %v4803 = vand.u32 %v4294, 2147483648
  %v4804 = vor.u32 1.1754944e-38, %v4803
  %v4805 = vsel %vm4802, %v4804, %v4800
  %v4806 = vmul.f32 1.0, %v4805
  %v4807 = vrcp.pop %v4295
  %v4808 = vmul.f32 %v4295, %v4807
  %v4809 = vsub.f32 1.0, %v4808
  %v4810 = vmul.f32 %v4807, %v4809
  %v4811 = vadd.f32 %v4807, %v4810
  %vm4812 = vweird.f32 %v4295
  %vm4813 = vweird.f32 %v4807
  %vm4814 = vmor %vm4812, %vm4813
  %v4815 = vsel %vm4814, %v4807, %v4811
  %v4816 = vand.u32 2147483647, %v4295
  %vm4817 = vcmp.eq.f32.partialorder %v4816, 8.507059e+37
  %v4818 = vand.u32 %v4295, 2147483648
  %v4819 = vor.u32 1.1754944e-38, %v4818
  %v4820 = vsel %vm4817, %v4819, %v4815
  %v4821 = vmul.f32 1.0, %v4820
  %v4822 = vrcp.pop %v4296
  %v4823 = vmul.f32 %v4296, %v4822
  %v4824 = vsub.f32 1.0, %v4823
  %v4825 = vmul.f32 %v4822, %v4824
  %v4826 = vadd.f32 %v4822, %v4825
  %vm4827 = vweird.f32 %v4296
  %vm4828 = vweird.f32 %v4822
  %vm4829 = vmor %vm4827, %vm4828
  %v4830 = vsel %vm4829, %v4822, %v4826
  %v4831 = vand.u32 2147483647, %v4296
  %vm4832 = vcmp.eq.f32.partialorder %v4831, 8.507059e+37
  %v4833 = vand.u32 %v4296, 2147483648
  %v4834 = vor.u32 1.1754944e-38, %v4833
  %v4835 = vsel %vm4832, %v4834, %v4830
  %v4836 = vmul.f32 1.0, %v4835
  %v4837 = vrcp.pop %v4297
  %v4838 = vmul.f32 %v4297, %v4837
  %v4839 = vsub.f32 1.0, %v4838
  %v4840 = vmul.f32 %v4837, %v4839
  %v4841 = vadd.f32 %v4837, %v4840
  %vm4842 = vweird.f32 %v4297
  %vm4843 = vweird.f32 %v4837
  %vm4844 = vmor %vm4842, %vm4843
  %v4845 = vsel %vm4844, %v4837, %v4841
  %v4846 = vand.u32 2147483647, %v4297
  %vm4847 = vcmp.eq.f32.partialorder %v4846, 8.507059e+37
  %v4848 = vand.u32 %v4297, 2147483648
  %v4849 = vor.u32 1.1754944e-38, %v4848
  %v4850 = vsel %vm4847, %v4849, %v4845
  %v4851 = vmul.f32 1.0, %v4850
  %v4852 = vrcp.pop %v4298
  %v4853 = vmul.f32 %v4298, %v4852
  %v4854 = vsub.f32 1.0, %v4853
  %v4855 = vmul.f32 %v4852, %v4854
  %v4856 = vadd.f32 %v4852, %v4855
  %vm4857 = vweird.f32 %v4298
  %vm4858 = vweird.f32 %v4852
  %vm4859 = vmor %vm4857, %vm4858
  %v4860 = vsel %vm4859, %v4852, %v4856
  %v4861 = vand.u32 2147483647, %v4298
  %vm4862 = vcmp.eq.f32.partialorder %v4861, 8.507059e+37
  %v4863 = vand.u32 %v4298, 2147483648
  %v4864 = vor.u32 1.1754944e-38, %v4863
  %v4865 = vsel %vm4862, %v4864, %v4860
  %v4866 = vmul.f32 1.0, %v4865
  %v4867 = vrcp.pop %v4299
  %v4868 = vmul.f32 %v4299, %v4867
  %v4869 = vsub.f32 1.0, %v4868
  %v4870 = vmul.f32 %v4867, %v4869
  %v4871 = vadd.f32 %v4867, %v4870
  %vm4872 = vweird.f32 %v4299
  %vm4873 = vweird.f32 %v4867
  %vm4874 = vmor %vm4872, %vm4873
  %v4875 = vsel %vm4874, %v4867, %v4871
  %v4876 = vand.u32 2147483647, %v4299
  %vm4877 = vcmp.eq.f32.partialorder %v4876, 8.507059e+37
  %v4878 = vand.u32 %v4299, 2147483648
  %v4879 = vor.u32 1.1754944e-38, %v4878
  %v4880 = vsel %vm4877, %v4879, %v4875
  %v4881 = vmul.f32 1.0, %v4880
  %v4882 = vrcp.pop %v4300
  %v4883 = vmul.f32 %v4300, %v4882
  %v4884 = vsub.f32 1.0, %v4883
  %v4885 = vmul.f32 %v4882, %v4884
  %v4886 = vadd.f32 %v4882, %v4885
  %vm4887 = vweird.f32 %v4300
  %vm4888 = vweird.f32 %v4882
  %vm4889 = vmor %vm4887, %vm4888
  %v4890 = vsel %vm4889, %v4882, %v4886
  %v4891 = vand.u32 2147483647, %v4300
  %vm4892 = vcmp.eq.f32.partialorder %v4891, 8.507059e+37
  %v4893 = vand.u32 %v4300, 2147483648
  %v4894 = vor.u32 1.1754944e-38, %v4893
  %v4895 = vsel %vm4892, %v4894, %v4890
  %v4896 = vmul.f32 1.0, %v4895
  %v4897 = vrcp.pop %v4301
  %v4898 = vmul.f32 %v4301, %v4897
  %v4899 = vsub.f32 1.0, %v4898
  %v4900 = vmul.f32 %v4897, %v4899
  %v4901 = vadd.f32 %v4897, %v4900
  %vm4902 = vweird.f32 %v4301
  %vm4903 = vweird.f32 %v4897
  %vm4904 = vmor %vm4902, %vm4903
  %v4905 = vsel %vm4904, %v4897, %v4901
  %v4906 = vand.u32 2147483647, %v4301
  %vm4907 = vcmp.eq.f32.partialorder %v4906, 8.507059e+37
  %v4908 = vand.u32 %v4301, 2147483648
  %v4909 = vor.u32 1.1754944e-38, %v4908
  %v4910 = vsel %vm4907, %v4909, %v4905
  %v4911 = vmul.f32 1.0, %v4910
  %v4912 = vrcp.pop %v4302
  %v4913 = vmul.f32 %v4302, %v4912
  %v4914 = vsub.f32 1.0, %v4913
  %v4915 = vmul.f32 %v4912, %v4914
  %v4916 = vadd.f32 %v4912, %v4915
  %vm4917 = vweird.f32 %v4302
  %vm4918 = vweird.f32 %v4912
  %vm4919 = vmor %vm4917, %vm4918
  %v4920 = vsel %vm4919, %v4912, %v4916
  %v4921 = vand.u32 2147483647, %v4302
  %vm4922 = vcmp.eq.f32.partialorder %v4921, 8.507059e+37
  %v4923 = vand.u32 %v4302, 2147483648
  %v4924 = vor.u32 1.1754944e-38, %v4923
  %v4925 = vsel %vm4922, %v4924, %v4920
  %v4926 = vmul.f32 1.0, %v4925
  %v4927 = vrcp.pop %v4303
  %v4928 = vmul.f32 %v4303, %v4927
  %v4929 = vsub.f32 1.0, %v4928
  %v4930 = vmul.f32 %v4927, %v4929
  %v4931 = vadd.f32 %v4927, %v4930
  %vm4932 = vweird.f32 %v4303
  %vm4933 = vweird.f32 %v4927
  %vm4934 = vmor %vm4932, %vm4933
  %v4935 = vsel %vm4934, %v4927, %v4931
  %v4936 = vand.u32 2147483647, %v4303
  %vm4937 = vcmp.eq.f32.partialorder %v4936, 8.507059e+37
  %v4938 = vand.u32 %v4303, 2147483648
  %v4939 = vor.u32 1.1754944e-38, %v4938
  %v4940 = vsel %vm4937, %v4939, %v4935
  %v4941 = vmul.f32 1.0, %v4940
  %v4942 = vrcp.pop %v4304
  %v4943 = vmul.f32 %v4304, %v4942
  %v4944 = vsub.f32 1.0, %v4943
  %v4945 = vmul.f32 %v4942, %v4944
  %v4946 = vadd.f32 %v4942, %v4945
  %vm4947 = vweird.f32 %v4304
  %vm4948 = vweird.f32 %v4942
  %vm4949 = vmor %vm4947, %vm4948
  %v4950 = vsel %vm4949, %v4942, %v4946
  %v4951 = vand.u32 2147483647, %v4304
  %vm4952 = vcmp.eq.f32.partialorder %v4951, 8.507059e+37
  %v4953 = vand.u32 %v4304, 2147483648
  %v4954 = vor.u32 1.1754944e-38, %v4953
  %v4955 = vsel %vm4952, %v4954, %v4950
  %v4956 = vmul.f32 1.0, %v4955
  %v4957 = vrcp.pop %v4305
  %v4958 = vmul.f32 %v4305, %v4957
  %v4959 = vsub.f32 1.0, %v4958
  %v4960 = vmul.f32 %v4957, %v4959
  %v4961 = vadd.f32 %v4957, %v4960
  %vm4962 = vweird.f32 %v4305
  %vm4963 = vweird.f32 %v4957
  %vm4964 = vmor %vm4962, %vm4963
  %v4965 = vsel %vm4964, %v4957, %v4961
  %v4966 = vand.u32 2147483647, %v4305
  %vm4967 = vcmp.eq.f32.partialorder %v4966, 8.507059e+37
  %v4968 = vand.u32 %v4305, 2147483648
  %v4969 = vor.u32 1.1754944e-38, %v4968
  %v4970 = vsel %vm4967, %v4969, %v4965
  %v4971 = vmul.f32 1.0, %v4970
  %v4972 = vrcp.pop %v4306
  %v4973 = vmul.f32 %v4306, %v4972
  %v4974 = vsub.f32 1.0, %v4973
  %v4975 = vmul.f32 %v4972, %v4974
  %v4976 = vadd.f32 %v4972, %v4975
  %vm4977 = vweird.f32 %v4306
  %vm4978 = vweird.f32 %v4972
  %vm4979 = vmor %vm4977, %vm4978
  %v4980 = vsel %vm4979, %v4972, %v4976
  %v4981 = vand.u32 2147483647, %v4306
  %vm4982 = vcmp.eq.f32.partialorder %v4981, 8.507059e+37
  %v4983 = vand.u32 %v4306, 2147483648
  %v4984 = vor.u32 1.1754944e-38, %v4983
  %v4985 = vsel %vm4982, %v4984, %v4980
  %v4986 = vmul.f32 1.0, %v4985
  %v4987 = vrcp.pop %v4307
  %v4988 = vmul.f32 %v4307, %v4987
  %v4989 = vsub.f32 1.0, %v4988
  %v4990 = vmul.f32 %v4987, %v4989
  %v4991 = vadd.f32 %v4987, %v4990
  %vm4992 = vweird.f32 %v4307
  %vm4993 = vweird.f32 %v4987
  %vm4994 = vmor %vm4992, %vm4993
  %v4995 = vsel %vm4994, %v4987, %v4991
  %v4996 = vand.u32 2147483647, %v4307
  %vm4997 = vcmp.eq.f32.partialorder %v4996, 8.507059e+37
  %v4998 = vand.u32 %v4307, 2147483648
  %v4999 = vor.u32 1.1754944e-38, %v4998
  %v5000 = vsel %vm4997, %v4999, %v4995
  %v5001 = vmul.f32 1.0, %v5000
  %v5002 = vrcp.pop %v4308
  %v5003 = vmul.f32 %v4308, %v5002
  %v5004 = vsub.f32 1.0, %v5003
  %v5005 = vmul.f32 %v5002, %v5004
  %v5006 = vadd.f32 %v5002, %v5005
  %vm5007 = vweird.f32 %v4308
  %vm5008 = vweird.f32 %v5002
  %vm5009 = vmor %vm5007, %vm5008
  %v5010 = vsel %vm5009, %v5002, %v5006
  %v5011 = vand.u32 2147483647, %v4308
  %vm5012 = vcmp.eq.f32.partialorder %v5011, 8.507059e+37
  %v5013 = vand.u32 %v4308, 2147483648
  %v5014 = vor.u32 1.1754944e-38, %v5013
  %v5015 = vsel %vm5012, %v5014, %v5010
  %v5016 = vmul.f32 1.0, %v5015
  %v5017 = vrcp.pop %v4309
  %v5018 = vmul.f32 %v4309, %v5017
  %v5019 = vsub.f32 1.0, %v5018
  %v5020 = vmul.f32 %v5017, %v5019
  %v5021 = vadd.f32 %v5017, %v5020
  %vm5022 = vweird.f32 %v4309
  %vm5023 = vweird.f32 %v5017
  %vm5024 = vmor %vm5022, %vm5023
  %v5025 = vsel %vm5024, %v5017, %v5021
  %v5026 = vand.u32 2147483647, %v4309
  %vm5027 = vcmp.eq.f32.partialorder %v5026, 8.507059e+37
  %v5028 = vand.u32 %v4309, 2147483648
  %v5029 = vor.u32 1.1754944e-38, %v5028
  %v5030 = vsel %vm5027, %v5029, %v5025
  %v5031 = vmul.f32 1.0, %v5030
  %v5032 = vrcp.pop %v4310
  %v5033 = vmul.f32 %v4310, %v5032
  %v5034 = vsub.f32 1.0, %v5033
  %v5035 = vmul.f32 %v5032, %v5034
  %v5036 = vadd.f32 %v5032, %v5035
  %vm5037 = vweird.f32 %v4310
  %vm5038 = vweird.f32 %v5032
  %vm5039 = vmor %vm5037, %vm5038
  %v5040 = vsel %vm5039, %v5032, %v5036
  %v5041 = vand.u32 2147483647, %v4310
  %vm5042 = vcmp.eq.f32.partialorder %v5041, 8.507059e+37
  %v5043 = vand.u32 %v4310, 2147483648
  %v5044 = vor.u32 1.1754944e-38, %v5043
  %v5045 = vsel %vm5042, %v5044, %v5040
  %v5046 = vmul.f32 1.0, %v5045
  %v5047 = vrcp.pop %v4311
  %v5048 = vmul.f32 %v4311, %v5047
  %v5049 = vsub.f32 1.0, %v5048
  %v5050 = vmul.f32 %v5047, %v5049
  %v5051 = vadd.f32 %v5047, %v5050
  %vm5052 = vweird.f32 %v4311
  %vm5053 = vweird.f32 %v5047
  %vm5054 = vmor %vm5052, %vm5053
  %v5055 = vsel %vm5054, %v5047, %v5051
  %v5056 = vand.u32 2147483647, %v4311
  %vm5057 = vcmp.eq.f32.partialorder %v5056, 8.507059e+37
  %v5058 = vand.u32 %v4311, 2147483648
  %v5059 = vor.u32 1.1754944e-38, %v5058
  %v5060 = vsel %vm5057, %v5059, %v5055
  %v5061 = vmul.f32 1.0, %v5060
  %v5062 = vrcp.pop %v4312
  %v5063 = vmul.f32 %v4312, %v5062
  %v5064 = vsub.f32 1.0, %v5063
  %v5065 = vmul.f32 %v5062, %v5064
  %v5066 = vadd.f32 %v5062, %v5065
  %vm5067 = vweird.f32 %v4312
  %vm5068 = vweird.f32 %v5062
  %vm5069 = vmor %vm5067, %vm5068
  %v5070 = vsel %vm5069, %v5062, %v5066
  %v5071 = vand.u32 2147483647, %v4312
  %vm5072 = vcmp.eq.f32.partialorder %v5071, 8.507059e+37
  %v5073 = vand.u32 %v4312, 2147483648
  %v5074 = vor.u32 1.1754944e-38, %v5073
  %v5075 = vsel %vm5072, %v5074, %v5070
  %v5076 = vmul.f32 1.0, %v5075
  %v5077 = vrcp.pop %v4313
  %v5078 = vmul.f32 %v4313, %v5077
  %v5079 = vsub.f32 1.0, %v5078
  %v5080 = vmul.f32 %v5077, %v5079
  %v5081 = vadd.f32 %v5077, %v5080
  %vm5082 = vweird.f32 %v4313
  %vm5083 = vweird.f32 %v5077
  %vm5084 = vmor %vm5082, %vm5083
  %v5085 = vsel %vm5084, %v5077, %v5081
  %v5086 = vand.u32 2147483647, %v4313
  %vm5087 = vcmp.eq.f32.partialorder %v5086, 8.507059e+37
  %v5088 = vand.u32 %v4313, 2147483648
  %v5089 = vor.u32 1.1754944e-38, %v5088
  %v5090 = vsel %vm5087, %v5089, %v5085
  %v5091 = vmul.f32 1.0, %v5090
  %v5092 = vrcp.pop %v4314
  %v5093 = vmul.f32 %v4314, %v5092
  %v5094 = vsub.f32 1.0, %v5093
  %v5095 = vmul.f32 %v5092, %v5094
  %v5096 = vadd.f32 %v5092, %v5095
  %vm5097 = vweird.f32 %v4314
  %vm5098 = vweird.f32 %v5092
  %vm5099 = vmor %vm5097, %vm5098
  %v5100 = vsel %vm5099, %v5092, %v5096
  %v5101 = vand.u32 2147483647, %v4314
  %vm5102 = vcmp.eq.f32.partialorder %v5101, 8.507059e+37
  %v5103 = vand.u32 %v4314, 2147483648
  %v5104 = vor.u32 1.1754944e-38, %v5103
  %v5105 = vsel %vm5102, %v5104, %v5100
  %v5106 = vmul.f32 1.0, %v5105
  %v5107 = vrcp.pop %v4315
  %v5108 = vmul.f32 %v4315, %v5107
  %v5109 = vsub.f32 1.0, %v5108
  %v5110 = vmul.f32 %v5107, %v5109
  %v5111 = vadd.f32 %v5107, %v5110
  %vm5112 = vweird.f32 %v4315
  %vm5113 = vweird.f32 %v5107
  %vm5114 = vmor %vm5112, %vm5113
  %v5115 = vsel %vm5114, %v5107, %v5111
  %v5116 = vand.u32 2147483647, %v4315
  %vm5117 = vcmp.eq.f32.partialorder %v5116, 8.507059e+37
  %v5118 = vand.u32 %v4315, 2147483648
  %v5119 = vor.u32 1.1754944e-38, %v5118
  %v5120 = vsel %vm5117, %v5119, %v5115
  %v5121 = vmul.f32 1.0, %v5120
  %v5122 = vrcp.pop %v4316
  %v5123 = vmul.f32 %v4316, %v5122
  %v5124 = vsub.f32 1.0, %v5123
  %v5125 = vmul.f32 %v5122, %v5124
  %v5126 = vadd.f32 %v5122, %v5125
  %vm5127 = vweird.f32 %v4316
  %vm5128 = vweird.f32 %v5122
  %vm5129 = vmor %vm5127, %vm5128
  %v5130 = vsel %vm5129, %v5122, %v5126
  %v5131 = vand.u32 2147483647, %v4316
  %vm5132 = vcmp.eq.f32.partialorder %v5131, 8.507059e+37
  %v5133 = vand.u32 %v4316, 2147483648
  %v5134 = vor.u32 1.1754944e-38, %v5133
  %v5135 = vsel %vm5132, %v5134, %v5130
  %v5136 = vmul.f32 1.0, %v5135
  %v5137 = vrcp.pop %v4317
  %v5138 = vmul.f32 %v4317, %v5137
  %v5139 = vsub.f32 1.0, %v5138
  %v5140 = vmul.f32 %v5137, %v5139
  %v5141 = vadd.f32 %v5137, %v5140
  %vm5142 = vweird.f32 %v4317
  %vm5143 = vweird.f32 %v5137
  %vm5144 = vmor %vm5142, %vm5143
  %v5145 = vsel %vm5144, %v5137, %v5141
  %v5146 = vand.u32 2147483647, %v4317
  %vm5147 = vcmp.eq.f32.partialorder %v5146, 8.507059e+37
  %v5148 = vand.u32 %v4317, 2147483648
  %v5149 = vor.u32 1.1754944e-38, %v5148
  %v5150 = vsel %vm5147, %v5149, %v5145
  %v5151 = vmul.f32 1.0, %v5150
  %v5152 = vrcp.pop %v4318
  %v5153 = vmul.f32 %v4318, %v5152
  %v5154 = vsub.f32 1.0, %v5153
  %v5155 = vmul.f32 %v5152, %v5154
  %v5156 = vadd.f32 %v5152, %v5155
  %vm5157 = vweird.f32 %v4318
  %vm5158 = vweird.f32 %v5152
  %vm5159 = vmor %vm5157, %vm5158
  %v5160 = vsel %vm5159, %v5152, %v5156
  %v5161 = vand.u32 2147483647, %v4318
  %vm5162 = vcmp.eq.f32.partialorder %v5161, 8.507059e+37
  %v5163 = vand.u32 %v4318, 2147483648
  %v5164 = vor.u32 1.1754944e-38, %v5163
  %v5165 = vsel %vm5162, %v5164, %v5160
  %v5166 = vmul.f32 1.0, %v5165
  %v5167 = vrcp.pop %v4319
  %v5168 = vmul.f32 %v4319, %v5167
  %v5169 = vsub.f32 1.0, %v5168
  %v5170 = vmul.f32 %v5167, %v5169
  %v5171 = vadd.f32 %v5167, %v5170
  %vm5172 = vweird.f32 %v4319
  %vm5173 = vweird.f32 %v5167
  %vm5174 = vmor %vm5172, %vm5173
  %v5175 = vsel %vm5174, %v5167, %v5171
  %v5176 = vand.u32 2147483647, %v4319
  %vm5177 = vcmp.eq.f32.partialorder %v5176, 8.507059e+37
  %v5178 = vand.u32 %v4319, 2147483648
  %v5179 = vor.u32 1.1754944e-38, %v5178
  %v5180 = vsel %vm5177, %v5179, %v5175
  %v5181 = vmul.f32 1.0, %v5180
  %v5182 = vrcp.pop %v4320
  %v5183 = vmul.f32 %v4320, %v5182
  %v5184 = vsub.f32 1.0, %v5183
  %v5185 = vmul.f32 %v5182, %v5184
  %v5186 = vadd.f32 %v5182, %v5185
  %vm5187 = vweird.f32 %v4320
  %vm5188 = vweird.f32 %v5182
  %vm5189 = vmor %vm5187, %vm5188
  %v5190 = vsel %vm5189, %v5182, %v5186
  %v5191 = vand.u32 2147483647, %v4320
  %vm5192 = vcmp.eq.f32.partialorder %v5191, 8.507059e+37
  %v5193 = vand.u32 %v4320, 2147483648
  %v5194 = vor.u32 1.1754944e-38, %v5193
  %v5195 = vsel %vm5192, %v5194, %v5190
  %v5196 = vmul.f32 1.0, %v5195
  %v5197 = vrcp.pop %v4321
  %v5198 = vmul.f32 %v4321, %v5197
  %v5199 = vsub.f32 1.0, %v5198
  %v5200 = vmul.f32 %v5197, %v5199
  %v5201 = vadd.f32 %v5197, %v5200
  %vm5202 = vweird.f32 %v4321
  %vm5203 = vweird.f32 %v5197
  %vm5204 = vmor %vm5202, %vm5203
  %v5205 = vsel %vm5204, %v5197, %v5201
  %v5206 = vand.u32 2147483647, %v4321
  %vm5207 = vcmp.eq.f32.partialorder %v5206, 8.507059e+37
  %v5208 = vand.u32 %v4321, 2147483648
  %v5209 = vor.u32 1.1754944e-38, %v5208
  %v5210 = vsel %vm5207, %v5209, %v5205
  %v5211 = vmul.f32 1.0, %v5210
  %v5212 = vrcp.pop %v4322
  %v5213 = vmul.f32 %v4322, %v5212
  %v5214 = vsub.f32 1.0, %v5213
  %v5215 = vmul.f32 %v5212, %v5214
  %v5216 = vadd.f32 %v5212, %v5215
  %vm5217 = vweird.f32 %v4322
  %vm5218 = vweird.f32 %v5212
  %vm5219 = vmor %vm5217, %vm5218
  %v5220 = vsel %vm5219, %v5212, %v5216
  %v5221 = vand.u32 2147483647, %v4322
  %vm5222 = vcmp.eq.f32.partialorder %v5221, 8.507059e+37
  %v5223 = vand.u32 %v4322, 2147483648
  %v5224 = vor.u32 1.1754944e-38, %v5223
  %v5225 = vsel %vm5222, %v5224, %v5220
  %v5226 = vmul.f32 1.0, %v5225
  %v5227 = vrcp.pop %v4323
  %v5228 = vmul.f32 %v4323, %v5227
  %v5229 = vsub.f32 1.0, %v5228
  %v5230 = vmul.f32 %v5227, %v5229
  %v5231 = vadd.f32 %v5227, %v5230
  %vm5232 = vweird.f32 %v4323
  %vm5233 = vweird.f32 %v5227
  %vm5234 = vmor %vm5232, %vm5233
  %v5235 = vsel %vm5234, %v5227, %v5231
  %v5236 = vand.u32 2147483647, %v4323
  %vm5237 = vcmp.eq.f32.partialorder %v5236, 8.507059e+37
  %v5238 = vand.u32 %v4323, 2147483648
  %v5239 = vor.u32 1.1754944e-38, %v5238
  %v5240 = vsel %vm5237, %v5239, %v5235
  %v5241 = vmul.f32 1.0, %v5240
  %v5242 = vrcp.pop %v4324
  %v5243 = vmul.f32 %v4324, %v5242
  %v5244 = vsub.f32 1.0, %v5243
  %v5245 = vmul.f32 %v5242, %v5244
  %v5246 = vadd.f32 %v5242, %v5245
  %vm5247 = vweird.f32 %v4324
  %vm5248 = vweird.f32 %v5242
  %vm5249 = vmor %vm5247, %vm5248
  %v5250 = vsel %vm5249, %v5242, %v5246
  %v5251 = vand.u32 2147483647, %v4324
  %vm5252 = vcmp.eq.f32.partialorder %v5251, 8.507059e+37
  %v5253 = vand.u32 %v4324, 2147483648
  %v5254 = vor.u32 1.1754944e-38, %v5253
  %v5255 = vsel %vm5252, %v5254, %v5250
  %v5256 = vmul.f32 1.0, %v5255
  %v5257 = vrcp.pop %v4325
  %v5258 = vmul.f32 %v4325, %v5257
  %v5259 = vsub.f32 1.0, %v5258
  %v5260 = vmul.f32 %v5257, %v5259
  %v5261 = vadd.f32 %v5257, %v5260
  %vm5262 = vweird.f32 %v4325
  %vm5263 = vweird.f32 %v5257
  %vm5264 = vmor %vm5262, %vm5263
  %v5265 = vsel %vm5264, %v5257, %v5261
  %v5266 = vand.u32 2147483647, %v4325
  %vm5267 = vcmp.eq.f32.partialorder %v5266, 8.507059e+37
  %v5268 = vand.u32 %v4325, 2147483648
  %v5269 = vor.u32 1.1754944e-38, %v5268
  %v5270 = vsel %vm5267, %v5269, %v5265
  %v5271 = vmul.f32 1.0, %v5270
  %v5272 = vrcp.pop %v4326
  %v5273 = vmul.f32 %v4326, %v5272
  %v5274 = vsub.f32 1.0, %v5273
  %v5275 = vmul.f32 %v5272, %v5274
  %v5276 = vadd.f32 %v5272, %v5275
  %vm5277 = vweird.f32 %v4326
  %vm5278 = vweird.f32 %v5272
  %vm5279 = vmor %vm5277, %vm5278
  %v5280 = vsel %vm5279, %v5272, %v5276
  %v5281 = vand.u32 2147483647, %v4326
  %vm5282 = vcmp.eq.f32.partialorder %v5281, 8.507059e+37
  %v5283 = vand.u32 %v4326, 2147483648
  %v5284 = vor.u32 1.1754944e-38, %v5283
  %v5285 = vsel %vm5282, %v5284, %v5280
  %v5286 = vmul.f32 1.0, %v5285
  %v5287 = vmul.f32 %v3943, %v4341
  %v5288 = vmul.f32 %v3944, %v4356
  %v5289 = vmul.f32 %v3945, %v4371
  %v5290 = vmul.f32 %v3946, %v4386
  %v5291 = vmul.f32 %v3947, %v4401
  %v5292 = vmul.f32 %v3948, %v4416
  %v5293 = vmul.f32 %v3949, %v4431
  %v5294 = vmul.f32 %v3950, %v4446
  %v5295 = vmul.f32 %v3951, %v4461
  %v5296 = vmul.f32 %v3952, %v4476
  %v5297 = vmul.f32 %v3953, %v4491
  %v5298 = vmul.f32 %v3954, %v4506
  %v5299 = vmul.f32 %v3955, %v4521
  %v5300 = vmul.f32 %v3956, %v4536
  %v5301 = vmul.f32 %v3957, %v4551
  %v5302 = vmul.f32 %v3958, %v4566
  %v5303 = vmul.f32 %v3959, %v4581
  %v5304 = vmul.f32 %v3960, %v4596
  %v5305 = vmul.f32 %v3961, %v4611
  %v5306 = vmul.f32 %v3962, %v4626
  %v5307 = vmul.f32 %v3963, %v4641
  %v5308 = vmul.f32 %v3964, %v4656
  %v5309 = vmul.f32 %v3965, %v4671
  %v5310 = vmul.f32 %v3966, %v4686
  %v5311 = vmul.f32 %v3967, %v4701
  %v5312 = vmul.f32 %v3968, %v4716
  %v5313 = vmul.f32 %v3969, %v4731
  %v5314 = vmul.f32 %v3970, %v4746
  %v5315 = vmul.f32 %v3971, %v4761
  %v5316 = vmul.f32 %v3972, %v4776
  %v5317 = vmul.f32 %v3973, %v4791
  %v5318 = vmul.f32 %v3974, %v4806
  %v5319 = vmul.f32 %v3975, %v4821
  %v5320 = vmul.f32 %v3976, %v4836
  %v5321 = vmul.f32 %v3977, %v4851
  %v5322 = vmul.f32 %v3978, %v4866
  %v5323 = vmul.f32 %v3979, %v4881
  %v5324 = vmul.f32 %v3980, %v4896
  %v5325 = vmul.f32 %v3981, %v4911
  %v5326 = vmul.f32 %v3982, %v4926
  %v5327 = vmul.f32 %v3983, %v4941
  %v5328 = vmul.f32 %v3984, %v4956
  %v5329 = vmul.f32 %v3985, %v4971
  %v5330 = vmul.f32 %v3986, %v4986
  %v5331 = vmul.f32 %v3987, %v5001
  %v5332 = vmul.f32 %v3988, %v5016
  %v5333 = vmul.f32 %v3989, %v5031
  %v5334 = vmul.f32 %v3990, %v5046
  %v5335 = vmul.f32 %v3991, %v5061
  %v5336 = vmul.f32 %v3992, %v5076
  %v5337 = vmul.f32 %v3993, %v5091
  %v5338 = vmul.f32 %v3994, %v5106
  %v5339 = vmul.f32 %v3995, %v5121
  %v5340 = vmul.f32 %v3996, %v5136
  %v5341 = vmul.f32 %v3997, %v5151
  %v5342 = vmul.f32 %v3998, %v5166
  %v5343 = vmul.f32 %v3999, %v5181
  %v5344 = vmul.f32 %v4000, %v5196
  %v5345 = vmul.f32 %v4001, %v5211
  %v5346 = vmul.f32 %v4002, %v5226
  %v5347 = vmul.f32 %v4003, %v5241
  %v5348 = vmul.f32 %v4004, %v5256
  %v5349 = vmul.f32 %v4005, %v5271
  %v5350 = vmul.f32 %v4006, %v5286
  %v5351 = vpack.c.bf16 %v5287, %v5287
  %v5352 = vpack.c.bf16 %v5288, %v5288
  %v5353 = vpack.c.bf16 %v5289, %v5289
  %v5354 = vpack.c.bf16 %v5290, %v5290
  %v5355 = vpack.c.bf16 %v5291, %v5291
  %v5356 = vpack.c.bf16 %v5292, %v5292
  %v5357 = vpack.c.bf16 %v5293, %v5293
  %v5358 = vpack.c.bf16 %v5294, %v5294
  %v5359 = vpack.c.bf16 %v5295, %v5295
  %v5360 = vpack.c.bf16 %v5296, %v5296
  %v5361 = vpack.c.bf16 %v5297, %v5297
  %v5362 = vpack.c.bf16 %v5298, %v5298
  %v5363 = vpack.c.bf16 %v5299, %v5299
  %v5364 = vpack.c.bf16 %v5300, %v5300
  %v5365 = vpack.c.bf16 %v5301, %v5301
  %v5366 = vpack.c.bf16 %v5302, %v5302
  %v5367 = vpack.c.bf16 %v5303, %v5303
  %v5368 = vpack.c.bf16 %v5304, %v5304
  %v5369 = vpack.c.bf16 %v5305, %v5305
  %v5370 = vpack.c.bf16 %v5306, %v5306
  %v5371 = vpack.c.bf16 %v5307, %v5307
  %v5372 = vpack.c.bf16 %v5308, %v5308
  %v5373 = vpack.c.bf16 %v5309, %v5309
  %v5374 = vpack.c.bf16 %v5310, %v5310
  %v5375 = vpack.c.bf16 %v5311, %v5311
  %v5376 = vpack.c.bf16 %v5312, %v5312
  %v5377 = vpack.c.bf16 %v5313, %v5313
  %v5378 = vpack.c.bf16 %v5314, %v5314
  %v5379 = vpack.c.bf16 %v5315, %v5315
  %v5380 = vpack.c.bf16 %v5316, %v5316
  %v5381 = vpack.c.bf16 %v5317, %v5317
  %v5382 = vpack.c.bf16 %v5318, %v5318
  %v5383 = vpack.c.bf16 %v5319, %v5319
  %v5384 = vpack.c.bf16 %v5320, %v5320
  %v5385 = vpack.c.bf16 %v5321, %v5321
  %v5386 = vpack.c.bf16 %v5322, %v5322
  %v5387 = vpack.c.bf16 %v5323, %v5323
  %v5388 = vpack.c.bf16 %v5324, %v5324
  %v5389 = vpack.c.bf16 %v5325, %v5325
  %v5390 = vpack.c.bf16 %v5326, %v5326
  %v5391 = vpack.c.bf16 %v5327, %v5327
  %v5392 = vpack.c.bf16 %v5328, %v5328
  %v5393 = vpack.c.bf16 %v5329, %v5329
  %v5394 = vpack.c.bf16 %v5330, %v5330
  %v5395 = vpack.c.bf16 %v5331, %v5331
  %v5396 = vpack.c.bf16 %v5332, %v5332
  %v5397 = vpack.c.bf16 %v5333, %v5333
  %v5398 = vpack.c.bf16 %v5334, %v5334
  %v5399 = vpack.c.bf16 %v5335, %v5335
  %v5400 = vpack.c.bf16 %v5336, %v5336
  %v5401 = vpack.c.bf16 %v5337, %v5337
  %v5402 = vpack.c.bf16 %v5338, %v5338
  %v5403 = vpack.c.bf16 %v5339, %v5339
  %v5404 = vpack.c.bf16 %v5340, %v5340
  %v5405 = vpack.c.bf16 %v5341, %v5341
  %v5406 = vpack.c.bf16 %v5342, %v5342
  %v5407 = vpack.c.bf16 %v5343, %v5343
  %v5408 = vpack.c.bf16 %v5344, %v5344
  %v5409 = vpack.c.bf16 %v5345, %v5345
  %v5410 = vpack.c.bf16 %v5346, %v5346
  %v5411 = vpack.c.bf16 %v5347, %v5347
  %v5412 = vpack.c.bf16 %v5348, %v5348
  %v5413 = vpack.c.bf16 %v5349, %v5349
  %v5414 = vpack.c.bf16 %v5350, %v5350
  %vm5415 = vcmask 11264
  %5416 = vst.msk [vmem:[%s2] sm:$0xf] %vm5415, %v5351
  %5417 = vst.msk [vmem:[%s2 + $0x4] sm:$0xf] %vm5415, %v5352
  %5418 = vst.msk [vmem:[%s2 + $0x8] sm:$0xf] %vm5415, %v5353
  %5419 = vst.msk [vmem:[%s2 + $0xc] sm:$0xf] %vm5415, %v5354
  %5420 = vst.msk [vmem:[%s2 + $0x10] sm:$0xf] %vm5415, %v5355
  %5421 = vst.msk [vmem:[%s2 + $0x14] sm:$0xf] %vm5415, %v5356
  %5422 = vst.msk [vmem:[%s2 + $0x18] sm:$0xf] %vm5415, %v5357
  %5423 = vst.msk [vmem:[%s2 + $0x1c] sm:$0xf] %vm5415, %v5358
  %5424 = vst.msk [vmem:[%s2 + $0x20] sm:$0xf] %vm5415, %v5359
  %5425 = vst.msk [vmem:[%s2 + $0x24] sm:$0xf] %vm5415, %v5360
  %5426 = vst.msk [vmem:[%s2 + $0x28] sm:$0xf] %vm5415, %v5361
  %5427 = vst.msk [vmem:[%s2 + $0x2c] sm:$0xf] %vm5415, %v5362
  %5428 = vst.msk [vmem:[%s2 + $0x30] sm:$0xf] %vm5415, %v5363
  %5429 = vst.msk [vmem:[%s2 + $0x34] sm:$0xf] %vm5415, %v5364
  %5430 = vst.msk [vmem:[%s2 + $0x38] sm:$0xf] %vm5415, %v5365
  %5431 = vst.msk [vmem:[%s2 + $0x3c] sm:$0xf] %vm5415, %v5366
  %5432 = vst.msk [vmem:[%s2 + $0x40] sm:$0xf] %vm5415, %v5367
  %5433 = vst.msk [vmem:[%s2 + $0x44] sm:$0xf] %vm5415, %v5368
  %5434 = vst.msk [vmem:[%s2 + $0x48] sm:$0xf] %vm5415, %v5369
  %5435 = vst.msk [vmem:[%s2 + $0x4c] sm:$0xf] %vm5415, %v5370
  %5436 = vst.msk [vmem:[%s2 + $0x50] sm:$0xf] %vm5415, %v5371
  %5437 = vst.msk [vmem:[%s2 + $0x54] sm:$0xf] %vm5415, %v5372
  %5438 = vst.msk [vmem:[%s2 + $0x58] sm:$0xf] %vm5415, %v5373
  %5439 = vst.msk [vmem:[%s2 + $0x5c] sm:$0xf] %vm5415, %v5374
  %5440 = vst.msk [vmem:[%s2 + $0x60] sm:$0xf] %vm5415, %v5375
  %5441 = vst.msk [vmem:[%s2 + $0x64] sm:$0xf] %vm5415, %v5376
  %5442 = vst.msk [vmem:[%s2 + $0x68] sm:$0xf] %vm5415, %v5377
  %5443 = vst.msk [vmem:[%s2 + $0x6c] sm:$0xf] %vm5415, %v5378
  %5444 = vst.msk [vmem:[%s2 + $0x70] sm:$0xf] %vm5415, %v5379
  %5445 = vst.msk [vmem:[%s2 + $0x74] sm:$0xf] %vm5415, %v5380
  %5446 = vst.msk [vmem:[%s2 + $0x78] sm:$0xf] %vm5415, %v5381
  %5447 = vst.msk [vmem:[%s2 + $0x7c] sm:$0xf] %vm5415, %v5382
  %5448 = vst.msk [vmem:[%s2 + $0x80] sm:$0xf] %vm5415, %v5383
  %5449 = vst.msk [vmem:[%s2 + $0x84] sm:$0xf] %vm5415, %v5384
  %5450 = vst.msk [vmem:[%s2 + $0x88] sm:$0xf] %vm5415, %v5385
  %5451 = vst.msk [vmem:[%s2 + $0x8c] sm:$0xf] %vm5415, %v5386
  %5452 = vst.msk [vmem:[%s2 + $0x90] sm:$0xf] %vm5415, %v5387
  %5453 = vst.msk [vmem:[%s2 + $0x94] sm:$0xf] %vm5415, %v5388
  %5454 = vst.msk [vmem:[%s2 + $0x98] sm:$0xf] %vm5415, %v5389
  %5455 = vst.msk [vmem:[%s2 + $0x9c] sm:$0xf] %vm5415, %v5390
  %5456 = vst.msk [vmem:[%s2 + $0xa0] sm:$0xf] %vm5415, %v5391
  %5457 = vst.msk [vmem:[%s2 + $0xa4] sm:$0xf] %vm5415, %v5392
  %5458 = vst.msk [vmem:[%s2 + $0xa8] sm:$0xf] %vm5415, %v5393
  %5459 = vst.msk [vmem:[%s2 + $0xac] sm:$0xf] %vm5415, %v5394
  %5460 = vst.msk [vmem:[%s2 + $0xb0] sm:$0xf] %vm5415, %v5395
  %5461 = vst.msk [vmem:[%s2 + $0xb4] sm:$0xf] %vm5415, %v5396
  %5462 = vst.msk [vmem:[%s2 + $0xb8] sm:$0xf] %vm5415, %v5397
  %5463 = vst.msk [vmem:[%s2 + $0xbc] sm:$0xf] %vm5415, %v5398
  %5464 = vst.msk [vmem:[%s2 + $0xc0] sm:$0xf] %vm5415, %v5399
  %5465 = vst.msk [vmem:[%s2 + $0xc4] sm:$0xf] %vm5415, %v5400
  %5466 = vst.msk [vmem:[%s2 + $0xc8] sm:$0xf] %vm5415, %v5401
  %5467 = vst.msk [vmem:[%s2 + $0xcc] sm:$0xf] %vm5415, %v5402
  %5468 = vst.msk [vmem:[%s2 + $0xd0] sm:$0xf] %vm5415, %v5403
  %5469 = vst.msk [vmem:[%s2 + $0xd4] sm:$0xf] %vm5415, %v5404
  %5470 = vst.msk [vmem:[%s2 + $0xd8] sm:$0xf] %vm5415, %v5405
  %5471 = vst.msk [vmem:[%s2 + $0xdc] sm:$0xf] %vm5415, %v5406
  %5472 = vst.msk [vmem:[%s2 + $0xe0] sm:$0xf] %vm5415, %v5407
  %5473 = vst.msk [vmem:[%s2 + $0xe4] sm:$0xf] %vm5415, %v5408
  %5474 = vst.msk [vmem:[%s2 + $0xe8] sm:$0xf] %vm5415, %v5409
  %5475 = vst.msk [vmem:[%s2 + $0xec] sm:$0xf] %vm5415, %v5410
  %5476 = vst.msk [vmem:[%s2 + $0xf0] sm:$0xf] %vm5415, %v5411
  %5477 = vst.msk [vmem:[%s2 + $0xf4] sm:$0xf] %vm5415, %v5412
  %5478 = vst.msk [vmem:[%s2 + $0xf8] sm:$0xf] %vm5415, %v5413
  %5479 = vst.msk [vmem:[%s2 + $0xfc] sm:$0xf] %vm5415, %v5414
  // Predicated region
  $region10: #{init_stage_g_forward.5} parent=0 // pred_check
    _
  $region11: #{init_stage_g_forward.5} parent=0 // pred_check_branch
    %5481 = sbr.rel (0) target = $region13
  $region12: #{init_stage_g_forward.5} parent=0 // pred_region
    _
  $region13: #{init_stage_g_forward.5} parent=0 // pred_fallthru
    _
  // Predicated region
  $region14: #{init_stage_g_forward.5} parent=0 // pred_check
    _
  $region15: #{init_stage_g_forward.5} parent=0 // pred_check_branch
    %5483 = sbr.rel (0) target = $region17
  $region16: #{init_stage_g_forward.5} parent=0 // pred_region
    _
  $region17: #{init_stage_g_forward.5} parent=0 // pred_fallthru
    _

// kernel: init_stage_g_forward.6
$region0: #{init_stage_g_forward.6}
  #allocation0 [shape = 'u32[]', space=smem, size = 0x4, offset = 0x4, fixed_abs, tag = 'smem constant byte address 0x4 - core index']
  #allocation1 [shape = 'u32[72,128]{1,0:T(1,128)}', space=vmem, size = 0x9000, scoped, tag = 'internal scratch']
  %s0 = inlined_call_operand.vmem [shape: bf16[32,288], index: 0, kind: input, shape index: {}]
  %s1 = inlined_call_operand.vmem [shape: bf16[288,128], index: 1, kind: input, shape index: {}]
  %s2 = inlined_call_operand.vmem [shape: bf16[16,128], index: 2, kind: output, shape index: {}]
  %s3 = sld [smem:[#allocation0]]
  $region18: #{init_stage_g_forward.6} parent=0
    _
  %s5 = ssub.s32 1, %s3
  %s6 = scalar_select 0, %s5, %s3
  // Predicated region
  $region2: #{init_stage_g_forward.6} parent=0 // pred_check
    _
  $region3: #{init_stage_g_forward.6} parent=0 // pred_check_branch
    %8 = sbr.rel (0) target = $region5
  $region4: #{init_stage_g_forward.6} parent=0 // pred_region
    _
  $region5: #{init_stage_g_forward.6} parent=0 // pred_fallthru
    _
  // Predicated region
  $region6: #{init_stage_g_forward.6} parent=0 // pred_check
    _
  $region7: #{init_stage_g_forward.6} parent=0 // pred_check_branch
    %10 = sbr.rel (0) target = $region9
  $region8: #{init_stage_g_forward.6} parent=0 // pred_region
    _
  $region9: #{init_stage_g_forward.6} parent=0 // pred_fallthru
    _
  %v12 = vld [vmem:[%s0] sm:$0xff]
  %v13 = vld [vmem:[%s0 + $0x8] sm:$0xf]
  %v14 = vld [vmem:[%s0 + $0xc] sm:$0xff]
  %v15 = vld [vmem:[%s0 + $0x14] sm:$0xf]
  %v16 = vld [vmem:[%s0 + $0x18] sm:$0xff]
  %v17 = vld [vmem:[%s0 + $0x20] sm:$0xf]
  %v18 = vld [vmem:[%s0 + $0x24] sm:$0xff]
  %v19 = vld [vmem:[%s0 + $0x2c] sm:$0xf]
  %v20 = vld [vmem:[%s1] sm:$0xf]
  %v21 = vld [vmem:[%s1 + $0x4] sm:$0xf]
  %v22 = vld [vmem:[%s1 + $0x8] sm:$0xf]
  %v23 = vld [vmem:[%s1 + $0xc] sm:$0xf]
  %v24 = vld [vmem:[%s1 + $0x10] sm:$0xf]
  %v25 = vld [vmem:[%s1 + $0x14] sm:$0xf]
  %v26 = vld [vmem:[%s1 + $0x18] sm:$0xf]
  %v27 = vld [vmem:[%s1 + $0x1c] sm:$0xf]
  %v28 = vld [vmem:[%s1 + $0x20] sm:$0xf]
  %v29 = vld [vmem:[%s1 + $0x24] sm:$0xf]
  %v30 = vld [vmem:[%s1 + $0x28] sm:$0xf]
  %v31 = vld [vmem:[%s1 + $0x2c] sm:$0xf]
  %v32 = vld [vmem:[%s1 + $0x30] sm:$0xf]
  %v33 = vld [vmem:[%s1 + $0x34] sm:$0xf]
  %v34 = vld [vmem:[%s1 + $0x38] sm:$0xf]
  %v35 = vld [vmem:[%s1 + $0x3c] sm:$0xf]
  %v36 = vld [vmem:[%s1 + $0x40] sm:$0xf]
  %v37 = vld [vmem:[%s1 + $0x44] sm:$0xf]
  %v38 = vld [vmem:[%s1 + $0x48] sm:$0xf]
  %v39 = vld [vmem:[%s1 + $0x4c] sm:$0xf]
  %v40 = vld [vmem:[%s1 + $0x50] sm:$0xf]
  %v41 = vld [vmem:[%s1 + $0x54] sm:$0xf]
  %v42 = vld [vmem:[%s1 + $0x58] sm:$0xf]
  %v43 = vld [vmem:[%s1 + $0x5c] sm:$0xf]
  %v44 = vld [vmem:[%s1 + $0x60] sm:$0xf]
  %v45 = vld [vmem:[%s1 + $0x64] sm:$0xf]
  %v46 = vld [vmem:[%s1 + $0x68] sm:$0xf]
  %v47 = vld [vmem:[%s1 + $0x6c] sm:$0xf]
  %v48 = vld [vmem:[%s1 + $0x70] sm:$0xf]
  %v49 = vld [vmem:[%s1 + $0x74] sm:$0xf]
  %v50 = vld [vmem:[%s1 + $0x78] sm:$0xf]
  %v51 = vld [vmem:[%s1 + $0x7c] sm:$0xf]
  %v52 = vld [vmem:[%s1 + $0x80] sm:$0xf]
  %v53 = vld [vmem:[%s1 + $0x84] sm:$0xf]
  %v54 = vld [vmem:[%s1 + $0x88] sm:$0xf]
  %v55 = vld [vmem:[%s1 + $0x8c] sm:$0xf]
  %v64 = vunpack.c.l.b16 %v12
  %v65 = vunpack.c.h.b16 %v12
  %v66 = vunpack.c.l.b16 %v13
  %v67 = vunpack.c.l.b16 %v14
  %v68 = vunpack.c.h.b16 %v14
  %v69 = vunpack.c.l.b16 %v15
  %v70 = vunpack.c.l.b16 %v16
  %v71 = vunpack.c.h.b16 %v16
  %v72 = vunpack.c.l.b16 %v17
  %v73 = vunpack.c.l.b16 %v18
  %v74 = vunpack.c.h.b16 %v18
  %v75 = vunpack.c.l.b16 %v19
  %v76 = vpack.c.b16 %v67, %v64
  %v77 = vpack.c.b16 %v68, %v65
  %v78 = vpack.c.b16 %v69, %v66
  %v79 = vpack.c.b16 %v73, %v70
  %v80 = vpack.c.b16 %v74, %v71
  %v81 = vpack.c.b16 %v75, %v72
  %v122 = vunpack.c.l.b16 %v20
  %v123 = vunpack.c.l.b16 %v21
  %v124 = vunpack.c.l.b16 %v22
  %v125 = vunpack.c.l.b16 %v23
  %v126 = vunpack.c.l.b16 %v24
  %v127 = vunpack.c.l.b16 %v25
  %v128 = vunpack.c.l.b16 %v26
  %v129 = vunpack.c.l.b16 %v27
  %v130 = vunpack.c.l.b16 %v28
  %v131 = vunpack.c.l.b16 %v29
  %v132 = vunpack.c.l.b16 %v30
  %v133 = vunpack.c.l.b16 %v31
  %v134 = vunpack.c.l.b16 %v32
  %v135 = vunpack.c.l.b16 %v33
  %v136 = vunpack.c.l.b16 %v34
  %v137 = vunpack.c.l.b16 %v35
  %v138 = vunpack.c.l.b16 %v36
  %v139 = vunpack.c.l.b16 %v37
  %v140 = vunpack.c.l.b16 %v38
  %v141 = vunpack.c.l.b16 %v39
  %v142 = vunpack.c.l.b16 %v40
  %v143 = vunpack.c.l.b16 %v41
  %v144 = vunpack.c.l.b16 %v42
  %v145 = vunpack.c.l.b16 %v43
  %v146 = vunpack.c.l.b16 %v44
  %v147 = vunpack.c.l.b16 %v45
  %v148 = vunpack.c.l.b16 %v46
  %v149 = vunpack.c.l.b16 %v47
  %v150 = vunpack.c.l.b16 %v48
  %v151 = vunpack.c.l.b16 %v49
  %v152 = vunpack.c.l.b16 %v50
  %v153 = vunpack.c.l.b16 %v51
  %v154 = vunpack.c.l.b16 %v52
  %v155 = vunpack.c.l.b16 %v53
  %v156 = vunpack.c.l.b16 %v54
  %v157 = vunpack.c.l.b16 %v55
  %v158 = vpack.c.b16 %v123, %v122
  %v159 = vpack.c.b16 %v125, %v124
  %v160 = vpack.c.b16 %v127, %v126
  %v161 = vpack.c.b16 %v129, %v128
  %v162 = vpack.c.b16 %v131, %v130
  %v163 = vpack.c.b16 %v133, %v132
  %v164 = vpack.c.b16 %v135, %v134
  %v165 = vpack.c.b16 %v137, %v136
  %v166 = vpack.c.b16 %v139, %v138
  %v167 = vpack.c.b16 %v141, %v140
  %v168 = vpack.c.b16 %v143, %v142
  %v169 = vpack.c.b16 %v145, %v144
  %v170 = vpack.c.b16 %v147, %v146
  %v171 = vpack.c.b16 %v149, %v148
  %v172 = vpack.c.b16 %v151, %v150
  %v173 = vpack.c.b16 %v153, %v152
  %v174 = vpack.c.b16 %v155, %v154
  %v175 = vpack.c.b16 %v157, %v156
  %vm194 = vcmask 261120
  %v196 = vsel %vm194, %v78, 0
  %v199 = vsel %vm194, %v81, 0
  %201 = vmatpush.bf16.msra.mxu0 %v165
  %202 = vmatpush.bf16.msra.mxu0 %v164
  %203 = vmatpush.bf16.msra.mxu0 %v163
  %204 = vmatpush.bf16.msra.mxu0 %v162
  %205 = vmatpush.bf16.msra.mxu0 %v161
  %206 = vmatpush.bf16.msra.mxu0 %v160
  %207 = vmatpush.bf16.msra.mxu0 %v159
  %208 = vmatpush.bf16.msra.mxu0 %v158
  %209 = vmatmul.bf16.gmra.mxu0 %v76
  %v210 = vpop.f32.mrf.mxu0
  %v211 = vadd.f32 0.0, %v210
  %v212 = vpop.f32.mrf.mxu0
  %v213 = vadd.f32 0.0, %v212
  %214 = vmatmul.bf16.gmra.mxu0 %v79
  %v215 = vpop.f32.mrf.mxu0
  %v216 = vadd.f32 0.0, %v215
  %v217 = vpop.f32.mrf.mxu0
  %v218 = vadd.f32 0.0, %v217
  %219 = vdwg.mxu0
  %220 = vmatpush.bf16.msra.mxu0 %v173
  %221 = vmatpush.bf16.msra.mxu0 %v172
  %222 = vmatpush.bf16.msra.mxu0 %v171
  %223 = vmatpush.bf16.msra.mxu0 %v170
  %224 = vmatpush.bf16.msra.mxu0 %v169
  %225 = vmatpush.bf16.msra.mxu0 %v168
  %226 = vmatpush.bf16.msra.mxu0 %v167
  %227 = vmatpush.bf16.msra.mxu0 %v166
  %228 = vmatmul.bf16.gmra.mxu0 %v77
  %v229 = vpop.f32.mrf.mxu0
  %v230 = vadd.f32 %v211, %v229
  %v231 = vpop.f32.mrf.mxu0
  %v232 = vadd.f32 %v213, %v231
  %233 = vmatmul.bf16.gmra.mxu0 %v80
  %v234 = vpop.f32.mrf.mxu0
  %v235 = vadd.f32 %v216, %v234
  %v236 = vpop.f32.mrf.mxu0
  %v237 = vadd.f32 %v218, %v236
  %238 = vdwg.mxu0
  %239 = vmatpush.bf16.msra.mxu0 0
  %240 = vmatpush.bf16.msra.mxu0 0
  %241 = vmatpush.bf16.msra.mxu0 0
  %242 = vmatpush.bf16.msra.mxu0 0
  %243 = vmatpush.bf16.msra.mxu0 0
  %244 = vmatpush.bf16.msra.mxu0 0
  %245 = vmatpush.bf16.msra.mxu0 %v175
  %246 = vmatpush.bf16.msra.mxu0 %v174
  %247 = vmatmul.bf16.gmra.mxu0 %v196
  %v248 = vpop.f32.mrf.mxu0
  %v249 = vadd.f32 %v230, %v248
  %v250 = vpop.f32.mrf.mxu0
  %v251 = vadd.f32 %v232, %v250
  %252 = vmatmul.bf16.gmra.mxu0 %v199
  %v253 = vpop.f32.mrf.mxu0
  %v254 = vadd.f32 %v235, %v253
  %v255 = vpop.f32.mrf.mxu0
  %v256 = vadd.f32 %v237, %v255
  %257 = vdwg.mxu0
  %258 = vadd.xlane.f32.xlu0 %v249
  %v259 = vpop.xlane.xlu0 %258
  %260 = vadd.xlane.f32.xlu0 %v251
  %v261 = vpop.xlane.xlu0 %260
  %262 = vadd.xlane.f32.xlu0 %v254
  %v263 = vpop.xlane.xlu0 %262
  %264 = vadd.xlane.f32.xlu0 %v256
  %v265 = vpop.xlane.xlu0 %264
  %v266 = vmul.f32 %v259, 0.0078125
  %v267 = vmul.f32 %v261, 0.0078125
  %v268 = vmul.f32 %v263, 0.0078125
  %v269 = vmul.f32 %v265, 0.0078125
  %v270 = vmul.f32 %v249, %v249
  %v271 = vmul.f32 %v251, %v251
  %v272 = vmul.f32 %v254, %v254
  %v273 = vmul.f32 %v256, %v256
  %274 = vadd.xlane.f32.xlu0 %v270
  %v275 = vpop.xlane.xlu0 %274
  %276 = vadd.xlane.f32.xlu0 %v271
  %v277 = vpop.xlane.xlu0 %276
  %278 = vadd.xlane.f32.xlu0 %v272
  %v279 = vpop.xlane.xlu0 %278
  %280 = vadd.xlane.f32.xlu0 %v273
  %v281 = vpop.xlane.xlu0 %280
  %v282 = vmul.f32 %v275, 0.0078125
  %v283 = vmul.f32 %v277, 0.0078125
  %v284 = vmul.f32 %v279, 0.0078125
  %v285 = vmul.f32 %v281, 0.0078125
  %v286 = vmul.f32 %v266, %v266
  %v287 = vmul.f32 %v267, %v267
  %v288 = vmul.f32 %v268, %v268
  %v289 = vmul.f32 %v269, %v269
  %v290 = vsub.f32 %v282, %v286
  %v291 = vsub.f32 %v283, %v287
  %v292 = vsub.f32 %v284, %v288
  %v293 = vsub.f32 %v285, %v289
  %v294 = vsub.f32 %v249, %v266
  %v295 = vsub.f32 %v251, %v267
  %v296 = vsub.f32 %v254, %v268
  %v297 = vsub.f32 %v256, %v269
  %v298 = vadd.f32 %v290, 1e-05
  %v299 = vadd.f32 %v291, 1e-05
  %v300 = vadd.f32 %v292, 1e-05
  %v301 = vadd.f32 %v293, 1e-05
  %v302 = vrsqrt.pop %v298
  %v303 = vmul.f32 %v302, %v298
  %v304 = vmul.f32 %v303, %v302
  %v305 = vmul.f32 0.5, %v304
  %v306 = vsub.f32 1.5, %v305
  %v307 = vmul.f32 %v302, %v306
  %vm308 = vweird.f32 %v298
  %vm309 = vweird.f32 %v302
  %vm310 = vmor %vm308, %vm309
  %v311 = vsel %vm310, %v302, %v307
  %v312 = vrsqrt.pop %v299
  %v313 = vmul.f32 %v312, %v299
  %v314 = vmul.f32 %v313, %v312
  %v315 = vmul.f32 0.5, %v314
  %v316 = vsub.f32 1.5, %v315
  %v317 = vmul.f32 %v312, %v316
  %vm318 = vweird.f32 %v299
  %vm319 = vweird.f32 %v312
  %vm320 = vmor %vm318, %vm319
  %v321 = vsel %vm320, %v312, %v317
  %v322 = vrsqrt.pop %v300
  %v323 = vmul.f32 %v322, %v300
  %v324 = vmul.f32 %v323, %v322
  %v325 = vmul.f32 0.5, %v324
  %v326 = vsub.f32 1.5, %v325
  %v327 = vmul.f32 %v322, %v326
  %vm328 = vweird.f32 %v300
  %vm329 = vweird.f32 %v322
  %vm330 = vmor %vm328, %vm329
  %v331 = vsel %vm330, %v322, %v327
  %v332 = vrsqrt.pop %v301
  %v333 = vmul.f32 %v332, %v301
  %v334 = vmul.f32 %v333, %v332
  %v335 = vmul.f32 0.5, %v334
  %v336 = vsub.f32 1.5, %v335
  %v337 = vmul.f32 %v332, %v336
  %vm338 = vweird.f32 %v301
  %vm339 = vweird.f32 %v332
  %vm340 = vmor %vm338, %vm339
  %v341 = vsel %vm340, %v332, %v337
  %v342 = vmul.f32 %v294, %v311
  %v343 = vmul.f32 %v295, %v321
  %v344 = vmul.f32 %v296, %v331
  %v345 = vmul.f32 %v297, %v341
  %v346 = vxor.u32 %v344, 2147483648
  %v347 = vxor.u32 %v345, 2147483648
  %v348 = vmul.f32 %v346, 1.442695
  %v349 = vpow.pop %v348
  %v350 = vmul.f32 %v347, 1.442695
  %v351 = vpow.pop %v350
  %v352 = vadd.f32 %v349, 1.0
  %v353 = vadd.f32 %v351, 1.0
  %v354 = vrcp.pop %v352
  %v355 = vmul.f32 %v352, %v354
  %v356 = vsub.f32 1.0, %v355
  %v357 = vmul.f32 %v354, %v356
  %v358 = vadd.f32 %v354, %v357
  %vm359 = vweird.f32 %v352
  %vm360 = vweird.f32 %v354
  %vm361 = vmor %vm359, %vm360
  %v362 = vsel %vm361, %v354, %v358
  %v363 = vand.u32 2147483647, %v352
  %vm364 = vcmp.eq.f32.partialorder %v363, 8.507059e+37
  %v365 = vand.u32 %v352, 2147483648
  %v366 = vor.u32 1.1754944e-38, %v365
  %v367 = vsel %vm364, %v366, %v362
  %v368 = vmul.f32 1.0, %v367
  %v369 = vrcp.pop %v353
  %v370 = vmul.f32 %v353, %v369
  %v371 = vsub.f32 1.0, %v370
  %v372 = vmul.f32 %v369, %v371
  %v373 = vadd.f32 %v369, %v372
  %vm374 = vweird.f32 %v353
  %vm375 = vweird.f32 %v369
  %vm376 = vmor %vm374, %vm375
  %v377 = vsel %vm376, %v369, %v373
  %v378 = vand.u32 2147483647, %v353
  %vm379 = vcmp.eq.f32.partialorder %v378, 8.507059e+37
  %v380 = vand.u32 %v353, 2147483648
  %v381 = vor.u32 1.1754944e-38, %v380
  %v382 = vsel %vm379, %v381, %v377
  %v383 = vmul.f32 1.0, %v382
  %v384 = vmul.f32 %v342, %v368
  %v385 = vmul.f32 %v343, %v383
  %v386 = vpack.c.bf16 %v384, %v384
  %v387 = vpack.c.bf16 %v385, %v385
  %388 = vst [vmem:[%s2] sm:$0xf] %v386
  %389 = vst [vmem:[%s2 + $0x4] sm:$0xf] %v387
  // Predicated region
  $region10: #{init_stage_g_forward.6} parent=0 // pred_check
    _
  $region11: #{init_stage_g_forward.6} parent=0 // pred_check_branch
    %391 = sbr.rel (0) target = $region13
  $region12: #{init_stage_g_forward.6} parent=0 // pred_region
    _
  $region13: #{init_stage_g_forward.6} parent=0 // pred_fallthru
    _
  // Predicated region
  $region14: #{init_stage_g_forward.6} parent=0 // pred_check
    _
  $region15: #{init_stage_g_forward.6} parent=0 // pred_check_branch
    %393 = sbr.rel (0) target = $region17
  $region16: #{init_stage_g_forward.6} parent=0 // pred_region
    _
  $region17: #{init_stage_g_forward.6} parent=0 // pred_fallthru
    _

// kernel: init_stage_g_forward.7
$region0: #{init_stage_g_forward.7}
  #allocation0 [shape = 'u32[]', space=smem, size = 0x4, offset = 0x4, fixed_abs, tag = 'smem constant byte address 0x4 - core index']
  #allocation1 [shape = 'u32[72,128]{1,0:T(1,128)}', space=vmem, size = 0x9000, scoped, tag = 'internal scratch']
  %s0 = inlined_call_operand.vmem [shape: bf16[16,144], index: 0, kind: input, shape index: {}]
  %s1 = inlined_call_operand.vmem [shape: bf16[144,512], index: 1, kind: input, shape index: {}]
  %s2 = inlined_call_operand.vmem [shape: bf16[8,512], index: 2, kind: output, shape index: {}]
  %s3 = sld [smem:[#allocation0]]
  $region18: #{init_stage_g_forward.7} parent=0
    _
  %s5 = ssub.s32 1, %s3
  %s6 = scalar_select 0, %s5, %s3
  // Predicated region
  $region2: #{init_stage_g_forward.7} parent=0 // pred_check
    _
  $region3: #{init_stage_g_forward.7} parent=0 // pred_check_branch
    %8 = sbr.rel (0) target = $region5
  $region4: #{init_stage_g_forward.7} parent=0 // pred_region
    _
  $region5: #{init_stage_g_forward.7} parent=0 // pred_fallthru
    _
  // Predicated region
  $region6: #{init_stage_g_forward.7} parent=0 // pred_check
    _
  $region7: #{init_stage_g_forward.7} parent=0 // pred_check_branch
    %10 = sbr.rel (0) target = $region9
  $region8: #{init_stage_g_forward.7} parent=0 // pred_region
    _
  $region9: #{init_stage_g_forward.7} parent=0 // pred_fallthru
    _
  %v12 = vld [vmem:[%s0] sm:$0xff]
  %v13 = vld [vmem:[%s0 + $0x8] sm:$0xff]
  %v14 = vld [vmem:[%s1] sm:$0xff]
  %v15 = vld [vmem:[%s1 + $0x8] sm:$0xff]
  %v16 = vld [vmem:[%s1 + $0x10] sm:$0xff]
  %v17 = vld [vmem:[%s1 + $0x18] sm:$0xff]
  %v18 = vld [vmem:[%s1 + $0x20] sm:$0xff]
  %v19 = vld [vmem:[%s1 + $0x28] sm:$0xff]
  %v20 = vld [vmem:[%s1 + $0x30] sm:$0xff]
  %v21 = vld [vmem:[%s1 + $0x38] sm:$0xff]
  %v22 = vld [vmem:[%s1 + $0x40] sm:$0xff]
  %v23 = vld [vmem:[%s1 + $0x48] sm:$0xff]
  %v24 = vld [vmem:[%s1 + $0x50] sm:$0xff]
  %v25 = vld [vmem:[%s1 + $0x58] sm:$0xff]
  %v26 = vld [vmem:[%s1 + $0x60] sm:$0xff]
  %v27 = vld [vmem:[%s1 + $0x68] sm:$0xff]
  %v28 = vld [vmem:[%s1 + $0x70] sm:$0xff]
  %v29 = vld [vmem:[%s1 + $0x78] sm:$0xff]
  %v30 = vld [vmem:[%s1 + $0x80] sm:$0xff]
  %v31 = vld [vmem:[%s1 + $0x88] sm:$0xff]
  %v32 = vld [vmem:[%s1 + $0x90] sm:$0xff]
  %v33 = vld [vmem:[%s1 + $0x98] sm:$0xff]
  %v34 = vld [vmem:[%s1 + $0xa0] sm:$0xff]
  %v35 = vld [vmem:[%s1 + $0xa8] sm:$0xff]
  %v36 = vld [vmem:[%s1 + $0xb0] sm:$0xff]
  %v37 = vld [vmem:[%s1 + $0xb8] sm:$0xff]
  %v38 = vld [vmem:[%s1 + $0xc0] sm:$0xff]
  %v39 = vld [vmem:[%s1 + $0xc8] sm:$0xff]
  %v40 = vld [vmem:[%s1 + $0xd0] sm:$0xff]
  %v41 = vld [vmem:[%s1 + $0xd8] sm:$0xff]
  %v42 = vld [vmem:[%s1 + $0xe0] sm:$0xff]
  %v43 = vld [vmem:[%s1 + $0xe8] sm:$0xff]
  %v44 = vld [vmem:[%s1 + $0xf0] sm:$0xff]
  %v45 = vld [vmem:[%s1 + $0xf8] sm:$0xff]
  %v46 = vld [vmem:[%s1 + $0x100] sm:$0xff]
  %v47 = vld [vmem:[%s1 + $0x108] sm:$0xff]
  %v48 = vld [vmem:[%s1 + $0x110] sm:$0xff]
  %v49 = vld [vmem:[%s1 + $0x118] sm:$0xff]
  %v52 = vunpack.c.l.b16 %v12
  %v53 = vunpack.c.h.b16 %v12
  %v54 = vunpack.c.l.b16 %v13
  %v55 = vunpack.c.h.b16 %v13
  %v56 = vpack.c.b16 %v54, %v52
  %v57 = vpack.c.b16 %v55, %v53
  %v95 = vunpack.c.l.b16 %v14
  %v96 = vunpack.c.h.b16 %v14
  %v97 = vunpack.c.l.b16 %v15
  %v98 = vunpack.c.h.b16 %v15
  %v99 = vunpack.c.l.b16 %v16
  %v100 = vunpack.c.h.b16 %v16
  %v101 = vunpack.c.l.b16 %v17
  %v102 = vunpack.c.h.b16 %v17
  %v103 = vunpack.c.l.b16 %v18
  %v104 = vunpack.c.h.b16 %v18
  %v105 = vunpack.c.l.b16 %v19
  %v106 = vunpack.c.h.b16 %v19
  %v107 = vunpack.c.l.b16 %v20
  %v108 = vunpack.c.h.b16 %v20
  %v109 = vunpack.c.l.b16 %v21
  %v110 = vunpack.c.h.b16 %v21
  %v111 = vunpack.c.l.b16 %v22
  %v112 = vunpack.c.h.b16 %v22
  %v113 = vunpack.c.l.b16 %v23
  %v114 = vunpack.c.h.b16 %v23
  %v115 = vunpack.c.l.b16 %v24
  %v116 = vunpack.c.h.b16 %v24
  %v117 = vunpack.c.l.b16 %v25
  %v118 = vunpack.c.h.b16 %v25
  %v119 = vunpack.c.l.b16 %v26
  %v120 = vunpack.c.h.b16 %v26
  %v121 = vunpack.c.l.b16 %v27
  %v122 = vunpack.c.h.b16 %v27
  %v123 = vunpack.c.l.b16 %v28
  %v124 = vunpack.c.h.b16 %v28
  %v125 = vunpack.c.l.b16 %v29
  %v126 = vunpack.c.h.b16 %v29
  %v127 = vunpack.c.l.b16 %v30
  %v128 = vunpack.c.h.b16 %v30
  %v129 = vunpack.c.l.b16 %v31
  %v130 = vunpack.c.h.b16 %v31
  %v131 = vunpack.c.l.b16 %v32
  %v132 = vunpack.c.h.b16 %v32
  %v133 = vunpack.c.l.b16 %v33
  %v134 = vunpack.c.h.b16 %v33
  %v135 = vunpack.c.l.b16 %v34
  %v136 = vunpack.c.h.b16 %v34
  %v137 = vunpack.c.l.b16 %v35
  %v138 = vunpack.c.h.b16 %v35
  %v139 = vunpack.c.l.b16 %v36
  %v140 = vunpack.c.h.b16 %v36
  %v141 = vunpack.c.l.b16 %v37
  %v142 = vunpack.c.h.b16 %v37
  %v143 = vunpack.c.l.b16 %v38
  %v144 = vunpack.c.h.b16 %v38
  %v145 = vunpack.c.l.b16 %v39
  %v146 = vunpack.c.h.b16 %v39
  %v147 = vunpack.c.l.b16 %v40
  %v148 = vunpack.c.h.b16 %v40
  %v149 = vunpack.c.l.b16 %v41
  %v150 = vunpack.c.h.b16 %v41
  %v151 = vunpack.c.l.b16 %v42
  %v152 = vunpack.c.h.b16 %v42
  %v153 = vunpack.c.l.b16 %v43
  %v154 = vunpack.c.h.b16 %v43
  %v155 = vunpack.c.l.b16 %v44
  %v156 = vunpack.c.h.b16 %v44
  %v157 = vunpack.c.l.b16 %v45
  %v158 = vunpack.c.h.b16 %v45
  %v159 = vunpack.c.l.b16 %v46
  %v160 = vunpack.c.h.b16 %v46
  %v161 = vunpack.c.l.b16 %v47
  %v162 = vunpack.c.h.b16 %v47
  %v163 = vunpack.c.l.b16 %v48
  %v164 = vunpack.c.h.b16 %v48
  %v165 = vunpack.c.l.b16 %v49
  %v166 = vunpack.c.h.b16 %v49
  %v167 = vpack.c.b16 %v99, %v95
  %v168 = vpack.c.b16 %v100, %v96
  %v169 = vpack.c.b16 %v101, %v97
  %v170 = vpack.c.b16 %v102, %v98
  %v171 = vpack.c.b16 %v107, %v103
  %v172 = vpack.c.b16 %v108, %v104
  %v173 = vpack.c.b16 %v109, %v105
  %v174 = vpack.c.b16 %v110, %v106
  %v175 = vpack.c.b16 %v115, %v111
  %v176 = vpack.c.b16 %v116, %v112
  %v177 = vpack.c.b16 %v117, %v113
  %v178 = vpack.c.b16 %v118, %v114
  %v179 = vpack.c.b16 %v123, %v119
  %v180 = vpack.c.b16 %v124, %v120
  %v181 = vpack.c.b16 %v125, %v121
  %v182 = vpack.c.b16 %v126, %v122
  %v183 = vpack.c.b16 %v131, %v127
  %v184 = vpack.c.b16 %v132, %v128
  %v185 = vpack.c.b16 %v133, %v129
  %v186 = vpack.c.b16 %v134, %v130
  %v187 = vpack.c.b16 %v139, %v135
  %v188 = vpack.c.b16 %v140, %v136
  %v189 = vpack.c.b16 %v141, %v137
  %v190 = vpack.c.b16 %v142, %v138
  %v191 = vpack.c.b16 %v147, %v143
  %v192 = vpack.c.b16 %v148, %v144
  %v193 = vpack.c.b16 %v149, %v145
  %v194 = vpack.c.b16 %v150, %v146
  %v195 = vpack.c.b16 %v155, %v151
  %v196 = vpack.c.b16 %v156, %v152
  %v197 = vpack.c.b16 %v157, %v153
  %v198 = vpack.c.b16 %v158, %v154
  %v199 = vpack.c.b16 %v163, %v159
  %v200 = vpack.c.b16 %v164, %v160
  %v201 = vpack.c.b16 %v165, %v161
  %v202 = vpack.c.b16 %v166, %v162
  %vm239 = vcmask 130048
  %v241 = vsel %vm239, %v57, 0
  %243 = vmatpush.bf16.msra.mxu0 %v195
  %244 = vmatpush.bf16.msra.mxu0 %v191
  %245 = vmatpush.bf16.msra.mxu0 %v187
  %246 = vmatpush.bf16.msra.mxu0 %v183
  %247 = vmatpush.bf16.msra.mxu0 %v179
  %248 = vmatpush.bf16.msra.mxu0 %v175
  %249 = vmatpush.bf16.msra.mxu0 %v171
  %250 = vmatpush.bf16.msra.mxu0 %v167
  %251 = vmatmul.bf16.gmra.mxu0 %v56
  %v252 = vpop.f32.mrf.mxu0
  %v253 = vadd.f32 0.0, %v252
  %v254 = vpop.f32.mrf.mxu0
  %v255 = vadd.f32 0.0, %v254
  %256 = vdwg.mxu0
  %257 = vmatpush.bf16.msra.mxu0 0
  %258 = vmatpush.bf16.msra.mxu0 0
  %259 = vmatpush.bf16.msra.mxu0 0
  %260 = vmatpush.bf16.msra.mxu0 0
  %261 = vmatpush.bf16.msra.mxu0 0
  %262 = vmatpush.bf16.msra.mxu0 0
  %263 = vmatpush.bf16.msra.mxu0 0
  %264 = vmatpush.bf16.msra.mxu0 %v199
  %265 = vmatmul.bf16.gmra.mxu0 %v241
  %v266 = vpop.f32.mrf.mxu0
  %v267 = vadd.f32 %v253, %v266
  %v268 = vpop.f32.mrf.mxu0
  %v269 = vadd.f32 %v255, %v268
  %270 = vdwg.mxu0
  %271 = vmatpush.bf16.msra.mxu0 %v196
  %272 = vmatpush.bf16.msra.mxu0 %v192
  %273 = vmatpush.bf16.msra.mxu0 %v188
  %274 = vmatpush.bf16.msra.mxu0 %v184
  %275 = vmatpush.bf16.msra.mxu0 %v180
  %276 = vmatpush.bf16.msra.mxu0 %v176
  %277 = vmatpush.bf16.msra.mxu0 %v172
  %278 = vmatpush.bf16.msra.mxu0 %v168
  %279 = vmatmul.bf16.gmra.mxu0 %v56
  %v280 = vpop.f32.mrf.mxu0
  %v281 = vadd.f32 0.0, %v280
  %v282 = vpop.f32.mrf.mxu0
  %v283 = vadd.f32 0.0, %v282
  %284 = vdwg.mxu0
  %285 = vmatpush.bf16.msra.mxu0 0
  %286 = vmatpush.bf16.msra.mxu0 0
  %287 = vmatpush.bf16.msra.mxu0 0
  %288 = vmatpush.bf16.msra.mxu0 0
  %289 = vmatpush.bf16.msra.mxu0 0
  %290 = vmatpush.bf16.msra.mxu0 0
  %291 = vmatpush.bf16.msra.mxu0 0
  %292 = vmatpush.bf16.msra.mxu0 %v200
  %293 = vmatmul.bf16.gmra.mxu0 %v241
  %v294 = vpop.f32.mrf.mxu0
  %v295 = vadd.f32 %v281, %v294
  %v296 = vpop.f32.mrf.mxu0
  %v297 = vadd.f32 %v283, %v296
  %298 = vdwg.mxu0
  %299 = vmatpush.bf16.msra.mxu0 %v197
  %300 = vmatpush.bf16.msra.mxu0 %v193
  %301 = vmatpush.bf16.msra.mxu0 %v189
  %302 = vmatpush.bf16.msra.mxu0 %v185
  %303 = vmatpush.bf16.msra.mxu0 %v181
  %304 = vmatpush.bf16.msra.mxu0 %v177
  %305 = vmatpush.bf16.msra.mxu0 %v173
  %306 = vmatpush.bf16.msra.mxu0 %v169
  %307 = vmatmul.bf16.gmra.mxu0 %v56
  %v308 = vpop.f32.mrf.mxu0
  %v309 = vadd.f32 0.0, %v308
  %v310 = vpop.f32.mrf.mxu0
  %v311 = vadd.f32 0.0, %v310
  %312 = vdwg.mxu0
  %313 = vmatpush.bf16.msra.mxu0 0
  %314 = vmatpush.bf16.msra.mxu0 0
  %315 = vmatpush.bf16.msra.mxu0 0
  %316 = vmatpush.bf16.msra.mxu0 0
  %317 = vmatpush.bf16.msra.mxu0 0
  %318 = vmatpush.bf16.msra.mxu0 0
  %319 = vmatpush.bf16.msra.mxu0 0
  %320 = vmatpush.bf16.msra.mxu0 %v201
  %321 = vmatmul.bf16.gmra.mxu0 %v241
  %v322 = vpop.f32.mrf.mxu0
  %v323 = vadd.f32 %v309, %v322
  %v324 = vpop.f32.mrf.mxu0
  %v325 = vadd.f32 %v311, %v324
  %326 = vdwg.mxu0
  %327 = vmatpush.bf16.msra.mxu0 %v198
  %328 = vmatpush.bf16.msra.mxu0 %v194
  %329 = vmatpush.bf16.msra.mxu0 %v190
  %330 = vmatpush.bf16.msra.mxu0 %v186
  %331 = vmatpush.bf16.msra.mxu0 %v182
  %332 = vmatpush.bf16.msra.mxu0 %v178
  %333 = vmatpush.bf16.msra.mxu0 %v174
  %334 = vmatpush.bf16.msra.mxu0 %v170
  %335 = vmatmul.bf16.gmra.mxu0 %v56
  %v336 = vpop.f32.mrf.mxu0
  %v337 = vadd.f32 0.0, %v336
  %v338 = vpop.f32.mrf.mxu0
  %v339 = vadd.f32 0.0, %v338
  %340 = vdwg.mxu0
  %341 = vmatpush.bf16.msra.mxu0 0
  %342 = vmatpush.bf16.msra.mxu0 0
  %343 = vmatpush.bf16.msra.mxu0 0
  %344 = vmatpush.bf16.msra.mxu0 0
  %345 = vmatpush.bf16.msra.mxu0 0
  %346 = vmatpush.bf16.msra.mxu0 0
  %347 = vmatpush.bf16.msra.mxu0 0
  %348 = vmatpush.bf16.msra.mxu0 %v202
  %349 = vmatmul.bf16.gmra.mxu0 %v241
  %v350 = vpop.f32.mrf.mxu0
  %v351 = vadd.f32 %v337, %v350
  %v352 = vpop.f32.mrf.mxu0
  %v353 = vadd.f32 %v339, %v352
  %354 = vdwg.mxu0
  %v355 = vadd.f32 %v267, %v295
  %v356 = vadd.f32 %v355, %v323
  %v357 = vadd.f32 %v356, %v351
  %358 = vadd.xlane.f32.xlu0 %v357
  %v359 = vpop.xlane.xlu0 %358
  %v360 = vadd.f32 %v269, %v297
  %v361 = vadd.f32 %v360, %v325
  %v362 = vadd.f32 %v361, %v353
  %363 = vadd.xlane.f32.xlu0 %v362
  %v364 = vpop.xlane.xlu0 %363
  %v365 = vmul.f32 %v359, 0.001953125
  %v366 = vmul.f32 %v364, 0.001953125
  %v367 = vmul.f32 %v267, %v267
  %v368 = vmul.f32 %v295, %v295
  %v369 = vmul.f32 %v323, %v323
  %v370 = vmul.f32 %v351, %v351
  %v371 = vmul.f32 %v269, %v269
  %v372 = vmul.f32 %v297, %v297
  %v373 = vmul.f32 %v325, %v325
  %v374 = vmul.f32 %v353, %v353
  %v375 = vadd.f32 %v367, %v368
  %v376 = vadd.f32 %v375, %v369
  %v377 = vadd.f32 %v376, %v370
  %378 = vadd.xlane.f32.xlu0 %v377
  %v379 = vpop.xlane.xlu0 %378
  %v380 = vadd.f32 %v371, %v372
  %v381 = vadd.f32 %v380, %v373
  %v382 = vadd.f32 %v381, %v374
  %383 = vadd.xlane.f32.xlu0 %v382
  %v384 = vpop.xlane.xlu0 %383
  %v385 = vmul.f32 %v379, 0.001953125
  %v386 = vmul.f32 %v384, 0.001953125
  %v387 = vmul.f32 %v365, %v365
  %v388 = vmul.f32 %v366, %v366
  %v389 = vsub.f32 %v385, %v387
  %v390 = vsub.f32 %v386, %v388
  %v391 = vsub.f32 %v267, %v365
  %v392 = vsub.f32 %v295, %v365
  %v393 = vsub.f32 %v323, %v365
  %v394 = vsub.f32 %v351, %v365
  %v395 = vsub.f32 %v269, %v366
  %v396 = vsub.f32 %v297, %v366
  %v397 = vsub.f32 %v325, %v366
  %v398 = vsub.f32 %v353, %v366
  %v399 = vadd.f32 %v389, 1e-05
  %v400 = vadd.f32 %v390, 1e-05
  %v401 = vrsqrt.pop %v399
  %v402 = vmul.f32 %v401, %v399
  %v403 = vmul.f32 %v402, %v401
  %v404 = vmul.f32 0.5, %v403
  %v405 = vsub.f32 1.5, %v404
  %v406 = vmul.f32 %v401, %v405
  %vm407 = vweird.f32 %v399
  %vm408 = vweird.f32 %v401
  %vm409 = vmor %vm407, %vm408
  %v410 = vsel %vm409, %v401, %v406
  %v411 = vrsqrt.pop %v400
  %v412 = vmul.f32 %v411, %v400
  %v413 = vmul.f32 %v412, %v411
  %v414 = vmul.f32 0.5, %v413
  %v415 = vsub.f32 1.5, %v414
  %v416 = vmul.f32 %v411, %v415
  %vm417 = vweird.f32 %v400
  %vm418 = vweird.f32 %v411
  %vm419 = vmor %vm417, %vm418
  %v420 = vsel %vm419, %v411, %v416
  %v421 = vmul.f32 %v391, %v410
  %v422 = vmul.f32 %v392, %v410
  %v423 = vmul.f32 %v393, %v410
  %v424 = vmul.f32 %v394, %v410
  %v425 = vmul.f32 %v395, %v420
  %v426 = vmul.f32 %v396, %v420
  %v427 = vmul.f32 %v397, %v420
  %v428 = vmul.f32 %v398, %v420
  %v429 = vxor.u32 %v425, 2147483648
  %v430 = vxor.u32 %v426, 2147483648
  %v431 = vxor.u32 %v427, 2147483648
  %v432 = vxor.u32 %v428, 2147483648
  %v433 = vmul.f32 %v429, 1.442695
  %v434 = vpow.pop %v433
  %v435 = vmul.f32 %v430, 1.442695
  %v436 = vpow.pop %v435
  %v437 = vmul.f32 %v431, 1.442695
  %v438 = vpow.pop %v437
  %v439 = vmul.f32 %v432, 1.442695
  %v440 = vpow.pop %v439
  %v441 = vadd.f32 %v434, 1.0
  %v442 = vadd.f32 %v436, 1.0
  %v443 = vadd.f32 %v438, 1.0
  %v444 = vadd.f32 %v440, 1.0
  %v445 = vrcp.pop %v441
  %v446 = vmul.f32 %v441, %v445
  %v447 = vsub.f32 1.0, %v446
  %v448 = vmul.f32 %v445, %v447
  %v449 = vadd.f32 %v445, %v448
  %vm450 = vweird.f32 %v441
  %vm451 = vweird.f32 %v445
  %vm452 = vmor %vm450, %vm451
  %v453 = vsel %vm452, %v445, %v449
  %v454 = vand.u32 2147483647, %v441
  %vm455 = vcmp.eq.f32.partialorder %v454, 8.507059e+37
  %v456 = vand.u32 %v441, 2147483648
  %v457 = vor.u32 1.1754944e-38, %v456
  %v458 = vsel %vm455, %v457, %v453
  %v459 = vmul.f32 1.0, %v458
  %v460 = vrcp.pop %v442
  %v461 = vmul.f32 %v442, %v460
  %v462 = vsub.f32 1.0, %v461
  %v463 = vmul.f32 %v460, %v462
  %v464 = vadd.f32 %v460, %v463
  %vm465 = vweird.f32 %v442
  %vm466 = vweird.f32 %v460
  %vm467 = vmor %vm465, %vm466
  %v468 = vsel %vm467, %v460, %v464
  %v469 = vand.u32 2147483647, %v442
  %vm470 = vcmp.eq.f32.partialorder %v469, 8.507059e+37
  %v471 = vand.u32 %v442, 2147483648
  %v472 = vor.u32 1.1754944e-38, %v471
  %v473 = vsel %vm470, %v472, %v468
  %v474 = vmul.f32 1.0, %v473
  %v475 = vrcp.pop %v443
  %v476 = vmul.f32 %v443, %v475
  %v477 = vsub.f32 1.0, %v476
  %v478 = vmul.f32 %v475, %v477
  %v479 = vadd.f32 %v475, %v478
  %vm480 = vweird.f32 %v443
  %vm481 = vweird.f32 %v475
  %vm482 = vmor %vm480, %vm481
  %v483 = vsel %vm482, %v475, %v479
  %v484 = vand.u32 2147483647, %v443
  %vm485 = vcmp.eq.f32.partialorder %v484, 8.507059e+37
  %v486 = vand.u32 %v443, 2147483648
  %v487 = vor.u32 1.1754944e-38, %v486
  %v488 = vsel %vm485, %v487, %v483
  %v489 = vmul.f32 1.0, %v488
  %v490 = vrcp.pop %v444
  %v491 = vmul.f32 %v444, %v490
  %v492 = vsub.f32 1.0, %v491
  %v493 = vmul.f32 %v490, %v492
  %v494 = vadd.f32 %v490, %v493
  %vm495 = vweird.f32 %v444
  %vm496 = vweird.f32 %v490
  %vm497 = vmor %vm495, %vm496
  %v498 = vsel %vm497, %v490, %v494
  %v499 = vand.u32 2147483647, %v444
  %vm500 = vcmp.eq.f32.partialorder %v499, 8.507059e+37
  %v501 = vand.u32 %v444, 2147483648
  %v502 = vor.u32 1.1754944e-38, %v501
  %v503 = vsel %vm500, %v502, %v498
  %v504 = vmul.f32 1.0, %v503
  %v505 = vmul.f32 %v421, %v459
  %v506 = vmul.f32 %v422, %v474
  %v507 = vmul.f32 %v423, %v489
  %v508 = vmul.f32 %v424, %v504
  %v509 = vpack.c.bf16 %v506, %v505
  %v510 = vpack.c.bf16 %v508, %v507
  %511 = vst [vmem:[%s2] sm:$0xff] %v509
  %512 = vst [vmem:[%s2 + $0x8] sm:$0xff] %v510
  // Predicated region
  $region10: #{init_stage_g_forward.7} parent=0 // pred_check
    _
  $region11: #{init_stage_g_forward.7} parent=0 // pred_check_branch
    %514 = sbr.rel (0) target = $region13
  $region12: #{init_stage_g_forward.7} parent=0 // pred_region
    _
  $region13: #{init_stage_g_forward.7} parent=0 // pred_fallthru
    _
  // Predicated region
  $region14: #{init_stage_g_forward.7} parent=0 // pred_check
    _
  $region15: #{init_stage_g_forward.7} parent=0 // pred_check_branch
    %516 = sbr.rel (0) target = $region17
  $region16: #{init_stage_g_forward.7} parent=0 // pred_region
    _
  $region17: #{init_stage_g_forward.7} parent=0 // pred_fallthru
    _

// kernel: init_stage_g_forward.8
$region0: #{init_stage_g_forward.8}
  #allocation0 [shape = 'u32[]', space=smem, size = 0x4, offset = 0x4, fixed_abs, tag = 'smem constant byte address 0x4 - core index']
  #allocation1 [shape = 'u32[72,128]{1,0:T(1,128)}', space=vmem, size = 0x9000, scoped, tag = 'internal scratch']
  %s0 = inlined_call_operand.vmem [shape: bf16[8,72], index: 0, kind: input, shape index: {}]
  %s1 = inlined_call_operand.vmem [shape: bf16[72,2048], index: 1, kind: input, shape index: {}]
  %s2 = inlined_call_operand.vmem [shape: bf16[4,2048], index: 2, kind: output, shape index: {}]
  %s3 = sld [smem:[#allocation0]]
  $region18: #{init_stage_g_forward.8} parent=0
    _
  %s5 = ssub.s32 1, %s3
  %s6 = scalar_select 0, %s5, %s3
  // Predicated region
  $region2: #{init_stage_g_forward.8} parent=0 // pred_check
    _
  $region3: #{init_stage_g_forward.8} parent=0 // pred_check_branch
    %8 = sbr.rel (0) target = $region5
  $region4: #{init_stage_g_forward.8} parent=0 // pred_region
    _
  $region5: #{init_stage_g_forward.8} parent=0 // pred_fallthru
    _
  // Predicated region
  $region6: #{init_stage_g_forward.8} parent=0 // pred_check
    _
  $region7: #{init_stage_g_forward.8} parent=0 // pred_check_branch
    %10 = sbr.rel (0) target = $region9
  $region8: #{init_stage_g_forward.8} parent=0 // pred_region
    _
  $region9: #{init_stage_g_forward.8} parent=0 // pred_fallthru
    _
  %v12 = vld [vmem:[%s0] sm:$0xf]
  %v13 = vld [vmem:[%s1] sm:$0xff]
  %v14 = vld [vmem:[%s1 + $0x8] sm:$0xff]
  %v15 = vld [vmem:[%s1 + $0x10] sm:$0xff]
  %v16 = vld [vmem:[%s1 + $0x18] sm:$0xff]
  %v17 = vld [vmem:[%s1 + $0x20] sm:$0xff]
  %v18 = vld [vmem:[%s1 + $0x28] sm:$0xff]
  %v19 = vld [vmem:[%s1 + $0x30] sm:$0xff]
  %v20 = vld [vmem:[%s1 + $0x38] sm:$0xff]
  %v21 = vld [vmem:[%s1 + $0x40] sm:$0xff]
  %v22 = vld [vmem:[%s1 + $0x48] sm:$0xff]
  %v23 = vld [vmem:[%s1 + $0x50] sm:$0xff]
  %v24 = vld [vmem:[%s1 + $0x58] sm:$0xff]
  %v25 = vld [vmem:[%s1 + $0x60] sm:$0xff]
  %v26 = vld [vmem:[%s1 + $0x68] sm:$0xff]
  %v27 = vld [vmem:[%s1 + $0x70] sm:$0xff]
  %v28 = vld [vmem:[%s1 + $0x78] sm:$0xff]
  %v29 = vld [vmem:[%s1 + $0x80] sm:$0xff]
  %v30 = vld [vmem:[%s1 + $0x88] sm:$0xff]
  %v31 = vld [vmem:[%s1 + $0x90] sm:$0xff]
  %v32 = vld [vmem:[%s1 + $0x98] sm:$0xff]
  %v33 = vld [vmem:[%s1 + $0xa0] sm:$0xff]
  %v34 = vld [vmem:[%s1 + $0xa8] sm:$0xff]
  %v35 = vld [vmem:[%s1 + $0xb0] sm:$0xff]
  %v36 = vld [vmem:[%s1 + $0xb8] sm:$0xff]
  %v37 = vld [vmem:[%s1 + $0xc0] sm:$0xff]
  %v38 = vld [vmem:[%s1 + $0xc8] sm:$0xff]
  %v39 = vld [vmem:[%s1 + $0xd0] sm:$0xff]
  %v40 = vld [vmem:[%s1 + $0xd8] sm:$0xff]
  %v41 = vld [vmem:[%s1 + $0xe0] sm:$0xff]
  %v42 = vld [vmem:[%s1 + $0xe8] sm:$0xff]
  %v43 = vld [vmem:[%s1 + $0xf0] sm:$0xff]
  %v44 = vld [vmem:[%s1 + $0xf8] sm:$0xff]
  %v45 = vld [vmem:[%s1 + $0x100] sm:$0xff]
  %v46 = vld [vmem:[%s1 + $0x108] sm:$0xff]
  %v47 = vld [vmem:[%s1 + $0x110] sm:$0xff]
  %v48 = vld [vmem:[%s1 + $0x118] sm:$0xff]
  %v49 = vld [vmem:[%s1 + $0x120] sm:$0xff]
  %v50 = vld [vmem:[%s1 + $0x128] sm:$0xff]
  %v51 = vld [vmem:[%s1 + $0x130] sm:$0xff]
  %v52 = vld [vmem:[%s1 + $0x138] sm:$0xff]
  %v53 = vld [vmem:[%s1 + $0x140] sm:$0xff]
  %v54 = vld [vmem:[%s1 + $0x148] sm:$0xff]
  %v55 = vld [vmem:[%s1 + $0x150] sm:$0xff]
  %v56 = vld [vmem:[%s1 + $0x158] sm:$0xff]
  %v57 = vld [vmem:[%s1 + $0x160] sm:$0xff]
  %v58 = vld [vmem:[%s1 + $0x168] sm:$0xff]
  %v59 = vld [vmem:[%s1 + $0x170] sm:$0xff]
  %v60 = vld [vmem:[%s1 + $0x178] sm:$0xff]
  %v61 = vld [vmem:[%s1 + $0x180] sm:$0xff]
  %v62 = vld [vmem:[%s1 + $0x188] sm:$0xff]
  %v63 = vld [vmem:[%s1 + $0x190] sm:$0xff]
  %v64 = vld [vmem:[%s1 + $0x198] sm:$0xff]
  %v65 = vld [vmem:[%s1 + $0x1a0] sm:$0xff]
  %v66 = vld [vmem:[%s1 + $0x1a8] sm:$0xff]
  %v67 = vld [vmem:[%s1 + $0x1b0] sm:$0xff]
  %v68 = vld [vmem:[%s1 + $0x1b8] sm:$0xff]
  %v69 = vld [vmem:[%s1 + $0x1c0] sm:$0xff]
  %v70 = vld [vmem:[%s1 + $0x1c8] sm:$0xff]
  %v71 = vld [vmem:[%s1 + $0x1d0] sm:$0xff]
  %v72 = vld [vmem:[%s1 + $0x1d8] sm:$0xff]
  %v73 = vld [vmem:[%s1 + $0x1e0] sm:$0xff]
  %v74 = vld [vmem:[%s1 + $0x1e8] sm:$0xff]
  %v75 = vld [vmem:[%s1 + $0x1f0] sm:$0xff]
  %v76 = vld [vmem:[%s1 + $0x1f8] sm:$0xff]
  %v77 = vld [vmem:[%s1 + $0x200] sm:$0xff]
  %v78 = vld [vmem:[%s1 + $0x208] sm:$0xff]
  %v79 = vld [vmem:[%s1 + $0x210] sm:$0xff]
  %v80 = vld [vmem:[%s1 + $0x218] sm:$0xff]
  %v81 = vld [vmem:[%s1 + $0x220] sm:$0xff]
  %v82 = vld [vmem:[%s1 + $0x228] sm:$0xff]
  %v83 = vld [vmem:[%s1 + $0x230] sm:$0xff]
  %v84 = vld [vmem:[%s1 + $0x238] sm:$0xff]
  %v157 = vunpack.c.l.b16 %v13
  %v158 = vunpack.c.h.b16 %v13
  %v159 = vunpack.c.l.b16 %v14
  %v160 = vunpack.c.h.b16 %v14
  %v161 = vunpack.c.l.b16 %v15
  %v162 = vunpack.c.h.b16 %v15
  %v163 = vunpack.c.l.b16 %v16
  %v164 = vunpack.c.h.b16 %v16
  %v165 = vunpack.c.l.b16 %v17
  %v166 = vunpack.c.h.b16 %v17
  %v167 = vunpack.c.l.b16 %v18
  %v168 = vunpack.c.h.b16 %v18
  %v169 = vunpack.c.l.b16 %v19
  %v170 = vunpack.c.h.b16 %v19
  %v171 = vunpack.c.l.b16 %v20
  %v172 = vunpack.c.h.b16 %v20
  %v173 = vunpack.c.l.b16 %v21
  %v174 = vunpack.c.h.b16 %v21
  %v175 = vunpack.c.l.b16 %v22
  %v176 = vunpack.c.h.b16 %v22
  %v177 = vunpack.c.l.b16 %v23
  %v178 = vunpack.c.h.b16 %v23
  %v179 = vunpack.c.l.b16 %v24
  %v180 = vunpack.c.h.b16 %v24
  %v181 = vunpack.c.l.b16 %v25
  %v182 = vunpack.c.h.b16 %v25
  %v183 = vunpack.c.l.b16 %v26
  %v184 = vunpack.c.h.b16 %v26
  %v185 = vunpack.c.l.b16 %v27
  %v186 = vunpack.c.h.b16 %v27
  %v187 = vunpack.c.l.b16 %v28
  %v188 = vunpack.c.h.b16 %v28
  %v189 = vunpack.c.l.b16 %v29
  %v190 = vunpack.c.h.b16 %v29
  %v191 = vunpack.c.l.b16 %v30
  %v192 = vunpack.c.h.b16 %v30
  %v193 = vunpack.c.l.b16 %v31
  %v194 = vunpack.c.h.b16 %v31
  %v195 = vunpack.c.l.b16 %v32
  %v196 = vunpack.c.h.b16 %v32
  %v197 = vunpack.c.l.b16 %v33
  %v198 = vunpack.c.h.b16 %v33
  %v199 = vunpack.c.l.b16 %v34
  %v200 = vunpack.c.h.b16 %v34
  %v201 = vunpack.c.l.b16 %v35
  %v202 = vunpack.c.h.b16 %v35
  %v203 = vunpack.c.l.b16 %v36
  %v204 = vunpack.c.h.b16 %v36
  %v205 = vunpack.c.l.b16 %v37
  %v206 = vunpack.c.h.b16 %v37
  %v207 = vunpack.c.l.b16 %v38
  %v208 = vunpack.c.h.b16 %v38
  %v209 = vunpack.c.l.b16 %v39
  %v210 = vunpack.c.h.b16 %v39
  %v211 = vunpack.c.l.b16 %v40
  %v212 = vunpack.c.h.b16 %v40
  %v213 = vunpack.c.l.b16 %v41
  %v214 = vunpack.c.h.b16 %v41
  %v215 = vunpack.c.l.b16 %v42
  %v216 = vunpack.c.h.b16 %v42
  %v217 = vunpack.c.l.b16 %v43
  %v218 = vunpack.c.h.b16 %v43
  %v219 = vunpack.c.l.b16 %v44
  %v220 = vunpack.c.h.b16 %v44
  %v221 = vunpack.c.l.b16 %v45
  %v222 = vunpack.c.h.b16 %v45
  %v223 = vunpack.c.l.b16 %v46
  %v224 = vunpack.c.h.b16 %v46
  %v225 = vunpack.c.l.b16 %v47
  %v226 = vunpack.c.h.b16 %v47
  %v227 = vunpack.c.l.b16 %v48
  %v228 = vunpack.c.h.b16 %v48
  %v229 = vunpack.c.l.b16 %v49
  %v230 = vunpack.c.h.b16 %v49
  %v231 = vunpack.c.l.b16 %v50
  %v232 = vunpack.c.h.b16 %v50
  %v233 = vunpack.c.l.b16 %v51
  %v234 = vunpack.c.h.b16 %v51
  %v235 = vunpack.c.l.b16 %v52
  %v236 = vunpack.c.h.b16 %v52
  %v237 = vunpack.c.l.b16 %v53
  %v238 = vunpack.c.h.b16 %v53
  %v239 = vunpack.c.l.b16 %v54
  %v240 = vunpack.c.h.b16 %v54
  %v241 = vunpack.c.l.b16 %v55
  %v242 = vunpack.c.h.b16 %v55
  %v243 = vunpack.c.l.b16 %v56
  %v244 = vunpack.c.h.b16 %v56
  %v245 = vunpack.c.l.b16 %v57
  %v246 = vunpack.c.h.b16 %v57
  %v247 = vunpack.c.l.b16 %v58
  %v248 = vunpack.c.h.b16 %v58
  %v249 = vunpack.c.l.b16 %v59
  %v250 = vunpack.c.h.b16 %v59
  %v251 = vunpack.c.l.b16 %v60
  %v252 = vunpack.c.h.b16 %v60
  %v253 = vunpack.c.l.b16 %v61
  %v254 = vunpack.c.h.b16 %v61
  %v255 = vunpack.c.l.b16 %v62
  %v256 = vunpack.c.h.b16 %v62
  %v257 = vunpack.c.l.b16 %v63
  %v258 = vunpack.c.h.b16 %v63
  %v259 = vunpack.c.l.b16 %v64
  %v260 = vunpack.c.h.b16 %v64
  %v261 = vunpack.c.l.b16 %v65
  %v262 = vunpack.c.h.b16 %v65
  %v263 = vunpack.c.l.b16 %v66
  %v264 = vunpack.c.h.b16 %v66
  %v265 = vunpack.c.l.b16 %v67
  %v266 = vunpack.c.h.b16 %v67
  %v267 = vunpack.c.l.b16 %v68
  %v268 = vunpack.c.h.b16 %v68
  %v269 = vunpack.c.l.b16 %v69
  %v270 = vunpack.c.h.b16 %v69
  %v271 = vunpack.c.l.b16 %v70
  %v272 = vunpack.c.h.b16 %v70
  %v273 = vunpack.c.l.b16 %v71
  %v274 = vunpack.c.h.b16 %v71
  %v275 = vunpack.c.l.b16 %v72
  %v276 = vunpack.c.h.b16 %v72
  %v277 = vunpack.c.l.b16 %v73
  %v278 = vunpack.c.h.b16 %v73
  %v279 = vunpack.c.l.b16 %v74
  %v280 = vunpack.c.h.b16 %v74
  %v281 = vunpack.c.l.b16 %v75
  %v282 = vunpack.c.h.b16 %v75
  %v283 = vunpack.c.l.b16 %v76
  %v284 = vunpack.c.h.b16 %v76
  %v285 = vunpack.c.l.b16 %v77
  %v286 = vunpack.c.h.b16 %v77
  %v287 = vunpack.c.l.b16 %v78
  %v288 = vunpack.c.h.b16 %v78
  %v289 = vunpack.c.l.b16 %v79
  %v290 = vunpack.c.h.b16 %v79
  %v291 = vunpack.c.l.b16 %v80
  %v292 = vunpack.c.h.b16 %v80
  %v293 = vunpack.c.l.b16 %v81
  %v294 = vunpack.c.h.b16 %v81
  %v295 = vunpack.c.l.b16 %v82
  %v296 = vunpack.c.h.b16 %v82
  %v297 = vunpack.c.l.b16 %v83
  %v298 = vunpack.c.h.b16 %v83
  %v299 = vunpack.c.l.b16 %v84
  %v300 = vunpack.c.h.b16 %v84
  %v301 = vpack.c.b16 %v173, %v157
  %v302 = vpack.c.b16 %v174, %v158
  %v303 = vpack.c.b16 %v175, %v159
  %v304 = vpack.c.b16 %v176, %v160
  %v305 = vpack.c.b16 %v177, %v161
  %v306 = vpack.c.b16 %v178, %v162
  %v307 = vpack.c.b16 %v179, %v163
  %v308 = vpack.c.b16 %v180, %v164
  %v309 = vpack.c.b16 %v181, %v165
  %v310 = vpack.c.b16 %v182, %v166
  %v311 = vpack.c.b16 %v183, %v167
  %v312 = vpack.c.b16 %v184, %v168
  %v313 = vpack.c.b16 %v185, %v169
  %v314 = vpack.c.b16 %v186, %v170
  %v315 = vpack.c.b16 %v187, %v171
  %v316 = vpack.c.b16 %v188, %v172
  %v317 = vpack.c.b16 %v205, %v189
  %v318 = vpack.c.b16 %v206, %v190
  %v319 = vpack.c.b16 %v207, %v191
  %v320 = vpack.c.b16 %v208, %v192
  %v321 = vpack.c.b16 %v209, %v193
  %v322 = vpack.c.b16 %v210, %v194
  %v323 = vpack.c.b16 %v211, %v195
  %v324 = vpack.c.b16 %v212, %v196
  %v325 = vpack.c.b16 %v213, %v197
  %v326 = vpack.c.b16 %v214, %v198
  %v327 = vpack.c.b16 %v215, %v199
  %v328 = vpack.c.b16 %v216, %v200
  %v329 = vpack.c.b16 %v217, %v201
  %v330 = vpack.c.b16 %v218, %v202
  %v331 = vpack.c.b16 %v219, %v203
  %v332 = vpack.c.b16 %v220, %v204
  %v333 = vpack.c.b16 %v237, %v221
  %v334 = vpack.c.b16 %v238, %v222
  %v335 = vpack.c.b16 %v239, %v223
  %v336 = vpack.c.b16 %v240, %v224
  %v337 = vpack.c.b16 %v241, %v225
  %v338 = vpack.c.b16 %v242, %v226
  %v339 = vpack.c.b16 %v243, %v227
  %v340 = vpack.c.b16 %v244, %v228
  %v341 = vpack.c.b16 %v245, %v229
  %v342 = vpack.c.b16 %v246, %v230
  %v343 = vpack.c.b16 %v247, %v231
  %v344 = vpack.c.b16 %v248, %v232
  %v345 = vpack.c.b16 %v249, %v233
  %v346 = vpack.c.b16 %v250, %v234
  %v347 = vpack.c.b16 %v251, %v235
  %v348 = vpack.c.b16 %v252, %v236
  %v349 = vpack.c.b16 %v269, %v253
  %v350 = vpack.c.b16 %v270, %v254
  %v351 = vpack.c.b16 %v271, %v255
  %v352 = vpack.c.b16 %v272, %v256
  %v353 = vpack.c.b16 %v273, %v257
  %v354 = vpack.c.b16 %v274, %v258
  %v355 = vpack.c.b16 %v275, %v259
  %v356 = vpack.c.b16 %v276, %v260
  %v357 = vpack.c.b16 %v277, %v261
  %v358 = vpack.c.b16 %v278, %v262
  %v359 = vpack.c.b16 %v279, %v263
  %v360 = vpack.c.b16 %v280, %v264
  %v361 = vpack.c.b16 %v281, %v265
  %v362 = vpack.c.b16 %v282, %v266
  %v363 = vpack.c.b16 %v283, %v267
  %v364 = vpack.c.b16 %v284, %v268
  %v365 = vpack.c.b16 %v285, %v285
  %v366 = vpack.c.b16 %v286, %v286
  %v367 = vpack.c.b16 %v287, %v287
  %v368 = vpack.c.b16 %v288, %v288
  %v369 = vpack.c.b16 %v289, %v289
  %v370 = vpack.c.b16 %v290, %v290
  %v371 = vpack.c.b16 %v291, %v291
  %v372 = vpack.c.b16 %v292, %v292
  %v373 = vpack.c.b16 %v293, %v293
  %v374 = vpack.c.b16 %v294, %v294
  %v375 = vpack.c.b16 %v295, %v295
  %v376 = vpack.c.b16 %v296, %v296
  %v377 = vpack.c.b16 %v297, %v297
  %v378 = vpack.c.b16 %v298, %v298
  %v379 = vpack.c.b16 %v299, %v299
  %v380 = vpack.c.b16 %v300, %v300
  %vm445 = vcmask 588800
  %v447 = vsel %vm445, %v12, 0
  %vm449 = vcmask 1043456
  %v451 = vsel %vm449, %v365, 0
  %v454 = vsel %vm449, %v366, 0
  %v457 = vsel %vm449, %v367, 0
  %v460 = vsel %vm449, %v368, 0
  %v463 = vsel %vm449, %v369, 0
  %v466 = vsel %vm449, %v370, 0
  %v469 = vsel %vm449, %v371, 0
  %v472 = vsel %vm449, %v372, 0
  %v475 = vsel %vm449, %v373, 0
  %v478 = vsel %vm449, %v374, 0
  %v481 = vsel %vm449, %v375, 0
  %v484 = vsel %vm449, %v376, 0
  %v487 = vsel %vm449, %v377, 0
  %v490 = vsel %vm449, %v378, 0
  %v493 = vsel %vm449, %v379, 0
  %v496 = vsel %vm449, %v380, 0
  %498 = vmatpush.bf16.msra.mxu0 0
  %499 = vmatpush.bf16.msra.mxu0 0
  %500 = vmatpush.bf16.msra.mxu0 0
  %501 = vmatpush.bf16.msra.mxu0 %v451
  %502 = vmatpush.bf16.msra.mxu0 %v349
  %503 = vmatpush.bf16.msra.mxu0 %v333
  %504 = vmatpush.bf16.msra.mxu0 %v317
  %505 = vmatpush.bf16.msra.mxu0 %v301
  %506 = vmatmul.bf16.gmra.mxu0 %v447
  %v507 = vpop.f32.mrf.mxu0
  %v508 = vadd.f32 0.0, %v507
  %v509 = vpop.f32.mrf.mxu0
  %510 = vdwg.mxu0
  %511 = vmatpush.bf16.msra.mxu0 0
  %512 = vmatpush.bf16.msra.mxu0 0
  %513 = vmatpush.bf16.msra.mxu0 0
  %514 = vmatpush.bf16.msra.mxu0 %v454
  %515 = vmatpush.bf16.msra.mxu0 %v350
  %516 = vmatpush.bf16.msra.mxu0 %v334
  %517 = vmatpush.bf16.msra.mxu0 %v318
  %518 = vmatpush.bf16.msra.mxu0 %v302
  %519 = vmatmul.bf16.gmra.mxu0 %v447
  %v520 = vpop.f32.mrf.mxu0
  %v521 = vadd.f32 0.0, %v520
  %v522 = vpop.f32.mrf.mxu0
  %523 = vdwg.mxu0
  %524 = vmatpush.bf16.msra.mxu0 0
  %525 = vmatpush.bf16.msra.mxu0 0
  %526 = vmatpush.bf16.msra.mxu0 0
  %527 = vmatpush.bf16.msra.mxu0 %v457
  %528 = vmatpush.bf16.msra.mxu0 %v351
  %529 = vmatpush.bf16.msra.mxu0 %v335
  %530 = vmatpush.bf16.msra.mxu0 %v319
  %531 = vmatpush.bf16.msra.mxu0 %v303
  %532 = vmatmul.bf16.gmra.mxu0 %v447
  %v533 = vpop.f32.mrf.mxu0
  %v534 = vadd.f32 0.0, %v533
  %v535 = vpop.f32.mrf.mxu0
  %536 = vdwg.mxu0
  %537 = vmatpush.bf16.msra.mxu0 0
  %538 = vmatpush.bf16.msra.mxu0 0
  %539 = vmatpush.bf16.msra.mxu0 0
  %540 = vmatpush.bf16.msra.mxu0 %v460
  %541 = vmatpush.bf16.msra.mxu0 %v352
  %542 = vmatpush.bf16.msra.mxu0 %v336
  %543 = vmatpush.bf16.msra.mxu0 %v320
  %544 = vmatpush.bf16.msra.mxu0 %v304
  %545 = vmatmul.bf16.gmra.mxu0 %v447
  %v546 = vpop.f32.mrf.mxu0
  %v547 = vadd.f32 0.0, %v546
  %v548 = vpop.f32.mrf.mxu0
  %549 = vdwg.mxu0
  %550 = vmatpush.bf16.msra.mxu0 0
  %551 = vmatpush.bf16.msra.mxu0 0
  %552 = vmatpush.bf16.msra.mxu0 0
  %553 = vmatpush.bf16.msra.mxu0 %v463
  %554 = vmatpush.bf16.msra.mxu0 %v353
  %555 = vmatpush.bf16.msra.mxu0 %v337
  %556 = vmatpush.bf16.msra.mxu0 %v321
  %557 = vmatpush.bf16.msra.mxu0 %v305
  %558 = vmatmul.bf16.gmra.mxu0 %v447
  %v559 = vpop.f32.mrf.mxu0
  %v560 = vadd.f32 0.0, %v559
  %v561 = vpop.f32.mrf.mxu0
  %562 = vdwg.mxu0
  %563 = vmatpush.bf16.msra.mxu0 0
  %564 = vmatpush.bf16.msra.mxu0 0
  %565 = vmatpush.bf16.msra.mxu0 0
  %566 = vmatpush.bf16.msra.mxu0 %v466
  %567 = vmatpush.bf16.msra.mxu0 %v354
  %568 = vmatpush.bf16.msra.mxu0 %v338
  %569 = vmatpush.bf16.msra.mxu0 %v322
  %570 = vmatpush.bf16.msra.mxu0 %v306
  %571 = vmatmul.bf16.gmra.mxu0 %v447
  %v572 = vpop.f32.mrf.mxu0
  %v573 = vadd.f32 0.0, %v572
  %v574 = vpop.f32.mrf.mxu0
  %575 = vdwg.mxu0
  %576 = vmatpush.bf16.msra.mxu0 0
  %577 = vmatpush.bf16.msra.mxu0 0
  %578 = vmatpush.bf16.msra.mxu0 0
  %579 = vmatpush.bf16.msra.mxu0 %v469
  %580 = vmatpush.bf16.msra.mxu0 %v355
  %581 = vmatpush.bf16.msra.mxu0 %v339
  %582 = vmatpush.bf16.msra.mxu0 %v323
  %583 = vmatpush.bf16.msra.mxu0 %v307
  %584 = vmatmul.bf16.gmra.mxu0 %v447
  %v585 = vpop.f32.mrf.mxu0
  %v586 = vadd.f32 0.0, %v585
  %v587 = vpop.f32.mrf.mxu0
  %588 = vdwg.mxu0
  %589 = vmatpush.bf16.msra.mxu0 0
  %590 = vmatpush.bf16.msra.mxu0 0
  %591 = vmatpush.bf16.msra.mxu0 0
  %592 = vmatpush.bf16.msra.mxu0 %v472
  %593 = vmatpush.bf16.msra.mxu0 %v356
  %594 = vmatpush.bf16.msra.mxu0 %v340
  %595 = vmatpush.bf16.msra.mxu0 %v324
  %596 = vmatpush.bf16.msra.mxu0 %v308
  %597 = vmatmul.bf16.gmra.mxu0 %v447
  %v598 = vpop.f32.mrf.mxu0
  %v599 = vadd.f32 0.0, %v598
  %v600 = vpop.f32.mrf.mxu0
  %601 = vdwg.mxu0
  %602 = vmatpush.bf16.msra.mxu0 0
  %603 = vmatpush.bf16.msra.mxu0 0
  %604 = vmatpush.bf16.msra.mxu0 0
  %605 = vmatpush.bf16.msra.mxu0 %v475
  %606 = vmatpush.bf16.msra.mxu0 %v357
  %607 = vmatpush.bf16.msra.mxu0 %v341
  %608 = vmatpush.bf16.msra.mxu0 %v325
  %609 = vmatpush.bf16.msra.mxu0 %v309
  %610 = vmatmul.bf16.gmra.mxu0 %v447
  %v611 = vpop.f32.mrf.mxu0
  %v612 = vadd.f32 0.0, %v611
  %v613 = vpop.f32.mrf.mxu0
  %614 = vdwg.mxu0
  %615 = vmatpush.bf16.msra.mxu0 0
  %616 = vmatpush.bf16.msra.mxu0 0
  %617 = vmatpush.bf16.msra.mxu0 0
  %618 = vmatpush.bf16.msra.mxu0 %v478
  %619 = vmatpush.bf16.msra.mxu0 %v358
  %620 = vmatpush.bf16.msra.mxu0 %v342
  %621 = vmatpush.bf16.msra.mxu0 %v326
  %622 = vmatpush.bf16.msra.mxu0 %v310
  %623 = vmatmul.bf16.gmra.mxu0 %v447
  %v624 = vpop.f32.mrf.mxu0
  %v625 = vadd.f32 0.0, %v624
  %v626 = vpop.f32.mrf.mxu0
  %627 = vdwg.mxu0
  %628 = vmatpush.bf16.msra.mxu0 0
  %629 = vmatpush.bf16.msra.mxu0 0
  %630 = vmatpush.bf16.msra.mxu0 0
  %631 = vmatpush.bf16.msra.mxu0 %v481
  %632 = vmatpush.bf16.msra.mxu0 %v359
  %633 = vmatpush.bf16.msra.mxu0 %v343
  %634 = vmatpush.bf16.msra.mxu0 %v327
  %635 = vmatpush.bf16.msra.mxu0 %v311
  %636 = vmatmul.bf16.gmra.mxu0 %v447
  %v637 = vpop.f32.mrf.mxu0
  %v638 = vadd.f32 0.0, %v637
  %v639 = vpop.f32.mrf.mxu0
  %640 = vdwg.mxu0
  %641 = vmatpush.bf16.msra.mxu0 0
  %642 = vmatpush.bf16.msra.mxu0 0
  %643 = vmatpush.bf16.msra.mxu0 0
  %644 = vmatpush.bf16.msra.mxu0 %v484
  %645 = vmatpush.bf16.msra.mxu0 %v360
  %646 = vmatpush.bf16.msra.mxu0 %v344
  %647 = vmatpush.bf16.msra.mxu0 %v328
  %648 = vmatpush.bf16.msra.mxu0 %v312
  %649 = vmatmul.bf16.gmra.mxu0 %v447
  %v650 = vpop.f32.mrf.mxu0
  %v651 = vadd.f32 0.0, %v650
  %v652 = vpop.f32.mrf.mxu0
  %653 = vdwg.mxu0
  %654 = vmatpush.bf16.msra.mxu0 0
  %655 = vmatpush.bf16.msra.mxu0 0
  %656 = vmatpush.bf16.msra.mxu0 0
  %657 = vmatpush.bf16.msra.mxu0 %v487
  %658 = vmatpush.bf16.msra.mxu0 %v361
  %659 = vmatpush.bf16.msra.mxu0 %v345
  %660 = vmatpush.bf16.msra.mxu0 %v329
  %661 = vmatpush.bf16.msra.mxu0 %v313
  %662 = vmatmul.bf16.gmra.mxu0 %v447
  %v663 = vpop.f32.mrf.mxu0
  %v664 = vadd.f32 0.0, %v663
  %v665 = vpop.f32.mrf.mxu0
  %666 = vdwg.mxu0
  %667 = vmatpush.bf16.msra.mxu0 0
  %668 = vmatpush.bf16.msra.mxu0 0
  %669 = vmatpush.bf16.msra.mxu0 0
  %670 = vmatpush.bf16.msra.mxu0 %v490
  %671 = vmatpush.bf16.msra.mxu0 %v362
  %672 = vmatpush.bf16.msra.mxu0 %v346
  %673 = vmatpush.bf16.msra.mxu0 %v330
  %674 = vmatpush.bf16.msra.mxu0 %v314
  %675 = vmatmul.bf16.gmra.mxu0 %v447
  %v676 = vpop.f32.mrf.mxu0
  %v677 = vadd.f32 0.0, %v676
  %v678 = vpop.f32.mrf.mxu0
  %679 = vdwg.mxu0
  %680 = vmatpush.bf16.msra.mxu0 0
  %681 = vmatpush.bf16.msra.mxu0 0
  %682 = vmatpush.bf16.msra.mxu0 0
  %683 = vmatpush.bf16.msra.mxu0 %v493
  %684 = vmatpush.bf16.msra.mxu0 %v363
  %685 = vmatpush.bf16.msra.mxu0 %v347
  %686 = vmatpush.bf16.msra.mxu0 %v331
  %687 = vmatpush.bf16.msra.mxu0 %v315
  %688 = vmatmul.bf16.gmra.mxu0 %v447
  %v689 = vpop.f32.mrf.mxu0
  %v690 = vadd.f32 0.0, %v689
  %v691 = vpop.f32.mrf.mxu0
  %692 = vdwg.mxu0
  %693 = vmatpush.bf16.msra.mxu0 0
  %694 = vmatpush.bf16.msra.mxu0 0
  %695 = vmatpush.bf16.msra.mxu0 0
  %696 = vmatpush.bf16.msra.mxu0 %v496
  %697 = vmatpush.bf16.msra.mxu0 %v364
  %698 = vmatpush.bf16.msra.mxu0 %v348
  %699 = vmatpush.bf16.msra.mxu0 %v332
  %700 = vmatpush.bf16.msra.mxu0 %v316
  %701 = vmatmul.bf16.gmra.mxu0 %v447
  %v702 = vpop.f32.mrf.mxu0
  %v703 = vadd.f32 0.0, %v702
  %v704 = vpop.f32.mrf.mxu0
  %705 = vdwg.mxu0
  %v706 = vadd.f32 %v508, %v521
  %v707 = vadd.f32 %v706, %v534
  %v708 = vadd.f32 %v707, %v547
  %v709 = vadd.f32 %v708, %v560
  %v710 = vadd.f32 %v709, %v573
  %v711 = vadd.f32 %v710, %v586
  %v712 = vadd.f32 %v711, %v599
  %v713 = vadd.f32 %v712, %v612
  %v714 = vadd.f32 %v713, %v625
  %v715 = vadd.f32 %v714, %v638
  %v716 = vadd.f32 %v715, %v651
  %v717 = vadd.f32 %v716, %v664
  %v718 = vadd.f32 %v717, %v677
  %v719 = vadd.f32 %v718, %v690
  %v720 = vadd.f32 %v719, %v703
  %721 = vadd.xlane.f32.xlu0 %v720
  %v722 = vpop.xlane.xlu0 %721
  %v723 = vmul.f32 %v722, 0.00048828125
  %v724 = vmul.f32 %v508, %v508
  %v725 = vmul.f32 %v521, %v521
  %v726 = vmul.f32 %v534, %v534
  %v727 = vmul.f32 %v547, %v547
  %v728 = vmul.f32 %v560, %v560
  %v729 = vmul.f32 %v573, %v573
  %v730 = vmul.f32 %v586, %v586
  %v731 = vmul.f32 %v599, %v599
  %v732 = vmul.f32 %v612, %v612
  %v733 = vmul.f32 %v625, %v625
  %v734 = vmul.f32 %v638, %v638
  %v735 = vmul.f32 %v651, %v651
  %v736 = vmul.f32 %v664, %v664
  %v737 = vmul.f32 %v677, %v677
  %v738 = vmul.f32 %v690, %v690
  %v739 = vmul.f32 %v703, %v703
  %v740 = vadd.f32 %v724, %v725
  %v741 = vadd.f32 %v740, %v726
  %v742 = vadd.f32 %v741, %v727
  %v743 = vadd.f32 %v742, %v728
  %v744 = vadd.f32 %v743, %v729
  %v745 = vadd.f32 %v744, %v730
  %v746 = vadd.f32 %v745, %v731
  %v747 = vadd.f32 %v746, %v732
  %v748 = vadd.f32 %v747, %v733
  %v749 = vadd.f32 %v748, %v734
  %v750 = vadd.f32 %v749, %v735
  %v751 = vadd.f32 %v750, %v736
  %v752 = vadd.f32 %v751, %v737
  %v753 = vadd.f32 %v752, %v738
  %v754 = vadd.f32 %v753, %v739
  %755 = vadd.xlane.f32.xlu0 %v754
  %v756 = vpop.xlane.xlu0 %755
  %v757 = vmul.f32 %v756, 0.00048828125
  %v758 = vmul.f32 %v723, %v723
  %v759 = vsub.f32 %v757, %v758
  %v760 = vsub.f32 %v508, %v723
  %v761 = vsub.f32 %v521, %v723
  %v762 = vsub.f32 %v534, %v723
  %v763 = vsub.f32 %v547, %v723
  %v764 = vsub.f32 %v560, %v723
  %v765 = vsub.f32 %v573, %v723
  %v766 = vsub.f32 %v586, %v723
  %v767 = vsub.f32 %v599, %v723
  %v768 = vsub.f32 %v612, %v723
  %v769 = vsub.f32 %v625, %v723
  %v770 = vsub.f32 %v638, %v723
  %v771 = vsub.f32 %v651, %v723
  %v772 = vsub.f32 %v664, %v723
  %v773 = vsub.f32 %v677, %v723
  %v774 = vsub.f32 %v690, %v723
  %v775 = vsub.f32 %v703, %v723
  %v776 = vadd.f32 %v759, 1e-05
  %v777 = vrsqrt.pop %v776
  %v778 = vmul.f32 %v777, %v776
  %v779 = vmul.f32 %v778, %v777
  %v780 = vmul.f32 0.5, %v779
  %v781 = vsub.f32 1.5, %v780
  %v782 = vmul.f32 %v777, %v781
  %vm783 = vweird.f32 %v776
  %vm784 = vweird.f32 %v777
  %vm785 = vmor %vm783, %vm784
  %v786 = vsel %vm785, %v777, %v782
  %v787 = vmul.f32 %v760, %v786
  %v788 = vmul.f32 %v761, %v786
  %v789 = vmul.f32 %v762, %v786
  %v790 = vmul.f32 %v763, %v786
  %v791 = vmul.f32 %v764, %v786
  %v792 = vmul.f32 %v765, %v786
  %v793 = vmul.f32 %v766, %v786
  %v794 = vmul.f32 %v767, %v786
  %v795 = vmul.f32 %v768, %v786
  %v796 = vmul.f32 %v769, %v786
  %v797 = vmul.f32 %v770, %v786
  %v798 = vmul.f32 %v771, %v786
  %v799 = vmul.f32 %v772, %v786
  %v800 = vmul.f32 %v773, %v786
  %v801 = vmul.f32 %v774, %v786
  %v802 = vmul.f32 %v775, %v786
  %v803 = vxor.u32 %v787, 2147483648
  %v804 = vxor.u32 %v788, 2147483648
  %v805 = vxor.u32 %v789, 2147483648
  %v806 = vxor.u32 %v790, 2147483648
  %v807 = vxor.u32 %v791, 2147483648
  %v808 = vxor.u32 %v792, 2147483648
  %v809 = vxor.u32 %v793, 2147483648
  %v810 = vxor.u32 %v794, 2147483648
  %v811 = vxor.u32 %v795, 2147483648
  %v812 = vxor.u32 %v796, 2147483648
  %v813 = vxor.u32 %v797, 2147483648
  %v814 = vxor.u32 %v798, 2147483648
  %v815 = vxor.u32 %v799, 2147483648
  %v816 = vxor.u32 %v800, 2147483648
  %v817 = vxor.u32 %v801, 2147483648
  %v818 = vxor.u32 %v802, 2147483648
  %v819 = vmul.f32 %v803, 1.442695
  %v820 = vpow.pop %v819
  %v821 = vmul.f32 %v804, 1.442695
  %v822 = vpow.pop %v821
  %v823 = vmul.f32 %v805, 1.442695
  %v824 = vpow.pop %v823
  %v825 = vmul.f32 %v806, 1.442695
  %v826 = vpow.pop %v825
  %v827 = vmul.f32 %v807, 1.442695
  %v828 = vpow.pop %v827
  %v829 = vmul.f32 %v808, 1.442695
  %v830 = vpow.pop %v829
  %v831 = vmul.f32 %v809, 1.442695
  %v832 = vpow.pop %v831
  %v833 = vmul.f32 %v810, 1.442695
  %v834 = vpow.pop %v833
  %v835 = vmul.f32 %v811, 1.442695
  %v836 = vpow.pop %v835
  %v837 = vmul.f32 %v812, 1.442695
  %v838 = vpow.pop %v837
  %v839 = vmul.f32 %v813, 1.442695
  %v840 = vpow.pop %v839
  %v841 = vmul.f32 %v814, 1.442695
  %v842 = vpow.pop %v841
  %v843 = vmul.f32 %v815, 1.442695
  %v844 = vpow.pop %v843
  %v845 = vmul.f32 %v816, 1.442695
  %v846 = vpow.pop %v845
  %v847 = vmul.f32 %v817, 1.442695
  %v848 = vpow.pop %v847
  %v849 = vmul.f32 %v818, 1.442695
  %v850 = vpow.pop %v849
  %v851 = vadd.f32 %v820, 1.0
  %v852 = vadd.f32 %v822, 1.0
  %v853 = vadd.f32 %v824, 1.0
  %v854 = vadd.f32 %v826, 1.0
  %v855 = vadd.f32 %v828, 1.0
  %v856 = vadd.f32 %v830, 1.0
  %v857 = vadd.f32 %v832, 1.0
  %v858 = vadd.f32 %v834, 1.0
  %v859 = vadd.f32 %v836, 1.0
  %v860 = vadd.f32 %v838, 1.0
  %v861 = vadd.f32 %v840, 1.0
  %v862 = vadd.f32 %v842, 1.0
  %v863 = vadd.f32 %v844, 1.0
  %v864 = vadd.f32 %v846, 1.0
  %v865 = vadd.f32 %v848, 1.0
  %v866 = vadd.f32 %v850, 1.0
  %v867 = vrcp.pop %v851
  %v868 = vmul.f32 %v851, %v867
  %v869 = vsub.f32 1.0, %v868
  %v870 = vmul.f32 %v867, %v869
  %v871 = vadd.f32 %v867, %v870
  %vm872 = vweird.f32 %v851
  %vm873 = vweird.f32 %v867
  %vm874 = vmor %vm872, %vm873
  %v875 = vsel %vm874, %v867, %v871
  %v876 = vand.u32 2147483647, %v851
  %vm877 = vcmp.eq.f32.partialorder %v876, 8.507059e+37
  %v878 = vand.u32 %v851, 2147483648
  %v879 = vor.u32 1.1754944e-38, %v878
  %v880 = vsel %vm877, %v879, %v875
  %v881 = vmul.f32 1.0, %v880
  %v882 = vrcp.pop %v852
  %v883 = vmul.f32 %v852, %v882
  %v884 = vsub.f32 1.0, %v883
  %v885 = vmul.f32 %v882, %v884
  %v886 = vadd.f32 %v882, %v885
  %vm887 = vweird.f32 %v852
  %vm888 = vweird.f32 %v882
  %vm889 = vmor %vm887, %vm888
  %v890 = vsel %vm889, %v882, %v886
  %v891 = vand.u32 2147483647, %v852
  %vm892 = vcmp.eq.f32.partialorder %v891, 8.507059e+37
  %v893 = vand.u32 %v852, 2147483648
  %v894 = vor.u32 1.1754944e-38, %v893
  %v895 = vsel %vm892, %v894, %v890
  %v896 = vmul.f32 1.0, %v895
  %v897 = vrcp.pop %v853
  %v898 = vmul.f32 %v853, %v897
  %v899 = vsub.f32 1.0, %v898
  %v900 = vmul.f32 %v897, %v899
  %v901 = vadd.f32 %v897, %v900
  %vm902 = vweird.f32 %v853
  %vm903 = vweird.f32 %v897
  %vm904 = vmor %vm902, %vm903
  %v905 = vsel %vm904, %v897, %v901
  %v906 = vand.u32 2147483647, %v853
  %vm907 = vcmp.eq.f32.partialorder %v906, 8.507059e+37
  %v908 = vand.u32 %v853, 2147483648
  %v909 = vor.u32 1.1754944e-38, %v908
  %v910 = vsel %vm907, %v909, %v905
  %v911 = vmul.f32 1.0, %v910
  %v912 = vrcp.pop %v854
  %v913 = vmul.f32 %v854, %v912
  %v914 = vsub.f32 1.0, %v913
  %v915 = vmul.f32 %v912, %v914
  %v916 = vadd.f32 %v912, %v915
  %vm917 = vweird.f32 %v854
  %vm918 = vweird.f32 %v912
  %vm919 = vmor %vm917, %vm918
  %v920 = vsel %vm919, %v912, %v916
  %v921 = vand.u32 2147483647, %v854
  %vm922 = vcmp.eq.f32.partialorder %v921, 8.507059e+37
  %v923 = vand.u32 %v854, 2147483648
  %v924 = vor.u32 1.1754944e-38, %v923
  %v925 = vsel %vm922, %v924, %v920
  %v926 = vmul.f32 1.0, %v925
  %v927 = vrcp.pop %v855
  %v928 = vmul.f32 %v855, %v927
  %v929 = vsub.f32 1.0, %v928
  %v930 = vmul.f32 %v927, %v929
  %v931 = vadd.f32 %v927, %v930
  %vm932 = vweird.f32 %v855
  %vm933 = vweird.f32 %v927
  %vm934 = vmor %vm932, %vm933
  %v935 = vsel %vm934, %v927, %v931
  %v936 = vand.u32 2147483647, %v855
  %vm937 = vcmp.eq.f32.partialorder %v936, 8.507059e+37
  %v938 = vand.u32 %v855, 2147483648
  %v939 = vor.u32 1.1754944e-38, %v938
  %v940 = vsel %vm937, %v939, %v935
  %v941 = vmul.f32 1.0, %v940
  %v942 = vrcp.pop %v856
  %v943 = vmul.f32 %v856, %v942
  %v944 = vsub.f32 1.0, %v943
  %v945 = vmul.f32 %v942, %v944
  %v946 = vadd.f32 %v942, %v945
  %vm947 = vweird.f32 %v856
  %vm948 = vweird.f32 %v942
  %vm949 = vmor %vm947, %vm948
  %v950 = vsel %vm949, %v942, %v946
  %v951 = vand.u32 2147483647, %v856
  %vm952 = vcmp.eq.f32.partialorder %v951, 8.507059e+37
  %v953 = vand.u32 %v856, 2147483648
  %v954 = vor.u32 1.1754944e-38, %v953
  %v955 = vsel %vm952, %v954, %v950
  %v956 = vmul.f32 1.0, %v955
  %v957 = vrcp.pop %v857
  %v958 = vmul.f32 %v857, %v957
  %v959 = vsub.f32 1.0, %v958
  %v960 = vmul.f32 %v957, %v959
  %v961 = vadd.f32 %v957, %v960
  %vm962 = vweird.f32 %v857
  %vm963 = vweird.f32 %v957
  %vm964 = vmor %vm962, %vm963
  %v965 = vsel %vm964, %v957, %v961
  %v966 = vand.u32 2147483647, %v857
  %vm967 = vcmp.eq.f32.partialorder %v966, 8.507059e+37
  %v968 = vand.u32 %v857, 2147483648
  %v969 = vor.u32 1.1754944e-38, %v968
  %v970 = vsel %vm967, %v969, %v965
  %v971 = vmul.f32 1.0, %v970
  %v972 = vrcp.pop %v858
  %v973 = vmul.f32 %v858, %v972
  %v974 = vsub.f32 1.0, %v973
  %v975 = vmul.f32 %v972, %v974
  %v976 = vadd.f32 %v972, %v975
  %vm977 = vweird.f32 %v858
  %vm978 = vweird.f32 %v972
  %vm979 = vmor %vm977, %vm978
  %v980 = vsel %vm979, %v972, %v976
  %v981 = vand.u32 2147483647, %v858
  %vm982 = vcmp.eq.f32.partialorder %v981, 8.507059e+37
  %v983 = vand.u32 %v858, 2147483648
  %v984 = vor.u32 1.1754944e-38, %v983
  %v985 = vsel %vm982, %v984, %v980
  %v986 = vmul.f32 1.0, %v985
  %v987 = vrcp.pop %v859
  %v988 = vmul.f32 %v859, %v987
  %v989 = vsub.f32 1.0, %v988
  %v990 = vmul.f32 %v987, %v989
  %v991 = vadd.f32 %v987, %v990
  %vm992 = vweird.f32 %v859
  %vm993 = vweird.f32 %v987
  %vm994 = vmor %vm992, %vm993
  %v995 = vsel %vm994, %v987, %v991
  %v996 = vand.u32 2147483647, %v859
  %vm997 = vcmp.eq.f32.partialorder %v996, 8.507059e+37
  %v998 = vand.u32 %v859, 2147483648
  %v999 = vor.u32 1.1754944e-38, %v998
  %v1000 = vsel %vm997, %v999, %v995
  %v1001 = vmul.f32 1.0, %v1000
  %v1002 = vrcp.pop %v860
  %v1003 = vmul.f32 %v860, %v1002
  %v1004 = vsub.f32 1.0, %v1003
  %v1005 = vmul.f32 %v1002, %v1004
  %v1006 = vadd.f32 %v1002, %v1005
  %vm1007 = vweird.f32 %v860
  %vm1008 = vweird.f32 %v1002
  %vm1009 = vmor %vm1007, %vm1008
  %v1010 = vsel %vm1009, %v1002, %v1006
  %v1011 = vand.u32 2147483647, %v860
  %vm1012 = vcmp.eq.f32.partialorder %v1011, 8.507059e+37
  %v1013 = vand.u32 %v860, 2147483648
  %v1014 = vor.u32 1.1754944e-38, %v1013
  %v1015 = vsel %vm1012, %v1014, %v1010
  %v1016 = vmul.f32 1.0, %v1015
  %v1017 = vrcp.pop %v861
  %v1018 = vmul.f32 %v861, %v1017
  %v1019 = vsub.f32 1.0, %v1018
  %v1020 = vmul.f32 %v1017, %v1019
  %v1021 = vadd.f32 %v1017, %v1020
  %vm1022 = vweird.f32 %v861
  %vm1023 = vweird.f32 %v1017
  %vm1024 = vmor %vm1022, %vm1023
  %v1025 = vsel %vm1024, %v1017, %v1021
  %v1026 = vand.u32 2147483647, %v861
  %vm1027 = vcmp.eq.f32.partialorder %v1026, 8.507059e+37
  %v1028 = vand.u32 %v861, 2147483648
  %v1029 = vor.u32 1.1754944e-38, %v1028
  %v1030 = vsel %vm1027, %v1029, %v1025
  %v1031 = vmul.f32 1.0, %v1030
  %v1032 = vrcp.pop %v862
  %v1033 = vmul.f32 %v862, %v1032
  %v1034 = vsub.f32 1.0, %v1033
  %v1035 = vmul.f32 %v1032, %v1034
  %v1036 = vadd.f32 %v1032, %v1035
  %vm1037 = vweird.f32 %v862
  %vm1038 = vweird.f32 %v1032
  %vm1039 = vmor %vm1037, %vm1038
  %v1040 = vsel %vm1039, %v1032, %v1036
  %v1041 = vand.u32 2147483647, %v862
  %vm1042 = vcmp.eq.f32.partialorder %v1041, 8.507059e+37
  %v1043 = vand.u32 %v862, 2147483648
  %v1044 = vor.u32 1.1754944e-38, %v1043
  %v1045 = vsel %vm1042, %v1044, %v1040
  %v1046 = vmul.f32 1.0, %v1045
  %v1047 = vrcp.pop %v863
  %v1048 = vmul.f32 %v863, %v1047
  %v1049 = vsub.f32 1.0, %v1048
  %v1050 = vmul.f32 %v1047, %v1049
  %v1051 = vadd.f32 %v1047, %v1050
  %vm1052 = vweird.f32 %v863
  %vm1053 = vweird.f32 %v1047
  %vm1054 = vmor %vm1052, %vm1053
  %v1055 = vsel %vm1054, %v1047, %v1051
  %v1056 = vand.u32 2147483647, %v863
  %vm1057 = vcmp.eq.f32.partialorder %v1056, 8.507059e+37
  %v1058 = vand.u32 %v863, 2147483648
  %v1059 = vor.u32 1.1754944e-38, %v1058
  %v1060 = vsel %vm1057, %v1059, %v1055
  %v1061 = vmul.f32 1.0, %v1060
  %v1062 = vrcp.pop %v864
  %v1063 = vmul.f32 %v864, %v1062
  %v1064 = vsub.f32 1.0, %v1063
  %v1065 = vmul.f32 %v1062, %v1064
  %v1066 = vadd.f32 %v1062, %v1065
  %vm1067 = vweird.f32 %v864
  %vm1068 = vweird.f32 %v1062
  %vm1069 = vmor %vm1067, %vm1068
  %v1070 = vsel %vm1069, %v1062, %v1066
  %v1071 = vand.u32 2147483647, %v864
  %vm1072 = vcmp.eq.f32.partialorder %v1071, 8.507059e+37
  %v1073 = vand.u32 %v864, 2147483648
  %v1074 = vor.u32 1.1754944e-38, %v1073
  %v1075 = vsel %vm1072, %v1074, %v1070
  %v1076 = vmul.f32 1.0, %v1075
  %v1077 = vrcp.pop %v865
  %v1078 = vmul.f32 %v865, %v1077
  %v1079 = vsub.f32 1.0, %v1078
  %v1080 = vmul.f32 %v1077, %v1079
  %v1081 = vadd.f32 %v1077, %v1080
  %vm1082 = vweird.f32 %v865
  %vm1083 = vweird.f32 %v1077
  %vm1084 = vmor %vm1082, %vm1083
  %v1085 = vsel %vm1084, %v1077, %v1081
  %v1086 = vand.u32 2147483647, %v865
  %vm1087 = vcmp.eq.f32.partialorder %v1086, 8.507059e+37
  %v1088 = vand.u32 %v865, 2147483648
  %v1089 = vor.u32 1.1754944e-38, %v1088
  %v1090 = vsel %vm1087, %v1089, %v1085
  %v1091 = vmul.f32 1.0, %v1090
  %v1092 = vrcp.pop %v866
  %v1093 = vmul.f32 %v866, %v1092
  %v1094 = vsub.f32 1.0, %v1093
  %v1095 = vmul.f32 %v1092, %v1094
  %v1096 = vadd.f32 %v1092, %v1095
  %vm1097 = vweird.f32 %v866
  %vm1098 = vweird.f32 %v1092
  %vm1099 = vmor %vm1097, %vm1098
  %v1100 = vsel %vm1099, %v1092, %v1096
  %v1101 = vand.u32 2147483647, %v866
  %vm1102 = vcmp.eq.f32.partialorder %v1101, 8.507059e+37
  %v1103 = vand.u32 %v866, 2147483648
  %v1104 = vor.u32 1.1754944e-38, %v1103
  %v1105 = vsel %vm1102, %v1104, %v1100
  %v1106 = vmul.f32 1.0, %v1105
  %v1123 = vrot.slane %v881, 4
  %v1124 = vrot.slane %v896, 4
  %v1125 = vrot.slane %v911, 4
  %v1126 = vrot.slane %v926, 4
  %v1127 = vrot.slane %v941, 4
  %v1128 = vrot.slane %v956, 4
  %v1129 = vrot.slane %v971, 4
  %v1130 = vrot.slane %v986, 4
  %v1131 = vrot.slane %v1001, 4
  %v1132 = vrot.slane %v1016, 4
  %v1133 = vrot.slane %v1031, 4
  %v1134 = vrot.slane %v1046, 4
  %v1135 = vrot.slane %v1061, 4
  %v1136 = vrot.slane %v1076, 4
  %v1137 = vrot.slane %v1091, 4
  %v1138 = vrot.slane %v1106, 4
  %v1155 = vmul.f32 %v787, %v1123
  %v1156 = vmul.f32 %v788, %v1124
  %v1157 = vmul.f32 %v789, %v1125
  %v1158 = vmul.f32 %v790, %v1126
  %v1159 = vmul.f32 %v791, %v1127
  %v1160 = vmul.f32 %v792, %v1128
  %v1161 = vmul.f32 %v793, %v1129
  %v1162 = vmul.f32 %v794, %v1130
  %v1163 = vmul.f32 %v795, %v1131
  %v1164 = vmul.f32 %v796, %v1132
  %v1165 = vmul.f32 %v797, %v1133
  %v1166 = vmul.f32 %v798, %v1134
  %v1167 = vmul.f32 %v799, %v1135
  %v1168 = vmul.f32 %v800, %v1136
  %v1169 = vmul.f32 %v801, %v1137
  %v1170 = vmul.f32 %v802, %v1138
  %v1171 = vpack.c.bf16 %v1156, %v1155
  %v1172 = vpack.c.bf16 %v1158, %v1157
  %v1173 = vpack.c.bf16 %v1160, %v1159
  %v1174 = vpack.c.bf16 %v1162, %v1161
  %v1175 = vpack.c.bf16 %v1164, %v1163
  %v1176 = vpack.c.bf16 %v1166, %v1165
  %v1177 = vpack.c.bf16 %v1168, %v1167
  %v1178 = vpack.c.bf16 %v1170, %v1169
  %v1187 = vrot.slane %v1171, 2
  %v1188 = vrot.slane %v1172, 4
  %v1189 = vrot.slane %v1172, 6
  %v1190 = vrot.slane %v1173, 2
  %v1191 = vrot.slane %v1174, 4
  %v1192 = vrot.slane %v1174, 6
  %v1193 = vrot.slane %v1175, 2
  %v1194 = vrot.slane %v1176, 4
  %v1195 = vrot.slane %v1176, 6
  %v1196 = vrot.slane %v1177, 2
  %v1197 = vrot.slane %v1178, 4
  %v1198 = vrot.slane %v1178, 6
  %vm1199 = vcmask 1041408
  %v1202 = vsel %vm1199, %v1171, %v1187
  %vm1203 = vcmask 1045508
  %v1206 = vsel %vm1203, %v1188, %v1189
  %v1207 = vsel %vm449, %v1202, %v1206
  %v1210 = vsel %vm1199, %v1173, %v1190
  %v1213 = vsel %vm1203, %v1191, %v1192
  %v1214 = vsel %vm449, %v1210, %v1213
  %v1217 = vsel %vm1199, %v1175, %v1193
  %v1220 = vsel %vm1203, %v1194, %v1195
  %v1221 = vsel %vm449, %v1217, %v1220
  %v1224 = vsel %vm1199, %v1177, %v1196
  %v1227 = vsel %vm1203, %v1197, %v1198
  %v1228 = vsel %vm449, %v1224, %v1227
  %1233 = vst [vmem:[%s2] sm:$0xff] %v1207
  %1234 = vst [vmem:[%s2 + $0x8] sm:$0xff] %v1214
  %1235 = vst [vmem:[%s2 + $0x10] sm:$0xff] %v1221
  %1236 = vst [vmem:[%s2 + $0x18] sm:$0xff] %v1228
  // Predicated region
  $region10: #{init_stage_g_forward.8} parent=0 // pred_check
    _
  $region11: #{init_stage_g_forward.8} parent=0 // pred_check_branch
    %1238 = sbr.rel (0) target = $region13
  $region12: #{init_stage_g_forward.8} parent=0 // pred_region
    _
  $region13: #{init_stage_g_forward.8} parent=0 // pred_fallthru
    _
  // Predicated region
  $region14: #{init_stage_g_forward.8} parent=0 // pred_check
    _
  $region15: #{init_stage_g_forward.8} parent=0 // pred_check_branch
    %1240 = sbr.rel (0) target = $region17
  $region16: #{init_stage_g_forward.8} parent=0 // pred_region
    _
  $region17: #{init_stage_g_forward.8} parent=0 // pred_fallthru
    _

// kernel: init_stage_g_forward.9
$region0: #{init_stage_g_forward.9}
  #allocation0 [shape = 'u32[]', space=smem, size = 0x4, offset = 0x4, fixed_abs, tag = 'smem constant byte address 0x4 - core index']
  #allocation1 [shape = 'u32[72,128]{1,0:T(1,128)}', space=vmem, size = 0x9000, scoped, tag = 'internal scratch']
  %s0 = inlined_call_operand.vmem [shape: bf16[4,36], index: 0, kind: input, shape index: {}]
  %s1 = inlined_call_operand.vmem [shape: bf16[36,8192], index: 1, kind: input, shape index: {}]
  %s2 = inlined_call_operand.vmem [shape: bf16[2,8192], index: 2, kind: output, shape index: {}]
  %s3 = sld [smem:[#allocation0]]
  $region18: #{init_stage_g_forward.9} parent=0
    _
  %s5 = ssub.s32 1, %s3
  %s6 = scalar_select 0, %s5, %s3
  // Predicated region
  $region2: #{init_stage_g_forward.9} parent=0 // pred_check
    _
  $region3: #{init_stage_g_forward.9} parent=0 // pred_check_branch
    %8 = sbr.rel (0) target = $region5
  $region4: #{init_stage_g_forward.9} parent=0 // pred_region
    _
  $region5: #{init_stage_g_forward.9} parent=0 // pred_fallthru
    _
  // Predicated region
  $region6: #{init_stage_g_forward.9} parent=0 // pred_check
    _
  $region7: #{init_stage_g_forward.9} parent=0 // pred_check_branch
    %10 = sbr.rel (0) target = $region9
  $region8: #{init_stage_g_forward.9} parent=0 // pred_region
    _
  $region9: #{init_stage_g_forward.9} parent=0 // pred_fallthru
    _
  %v12 = vld [vmem:[%s0] sm:$0x3]
  %v13 = vld [vmem:[%s1] sm:$0xff]
  %v14 = vld [vmem:[%s1 + $0x8] sm:$0xff]
  %v15 = vld [vmem:[%s1 + $0x10] sm:$0xff]
  %v16 = vld [vmem:[%s1 + $0x18] sm:$0xff]
  %v17 = vld [vmem:[%s1 + $0x20] sm:$0xff]
  %v18 = vld [vmem:[%s1 + $0x28] sm:$0xff]
  %v19 = vld [vmem:[%s1 + $0x30] sm:$0xff]
  %v20 = vld [vmem:[%s1 + $0x38] sm:$0xff]
  %v21 = vld [vmem:[%s1 + $0x40] sm:$0xff]
  %v22 = vld [vmem:[%s1 + $0x48] sm:$0xff]
  %v23 = vld [vmem:[%s1 + $0x50] sm:$0xff]
  %v24 = vld [vmem:[%s1 + $0x58] sm:$0xff]
  %v25 = vld [vmem:[%s1 + $0x60] sm:$0xff]
  %v26 = vld [vmem:[%s1 + $0x68] sm:$0xff]
  %v27 = vld [vmem:[%s1 + $0x70] sm:$0xff]
  %v28 = vld [vmem:[%s1 + $0x78] sm:$0xff]
  %v29 = vld [vmem:[%s1 + $0x80] sm:$0xff]
  %v30 = vld [vmem:[%s1 + $0x88] sm:$0xff]
  %v31 = vld [vmem:[%s1 + $0x90] sm:$0xff]
  %v32 = vld [vmem:[%s1 + $0x98] sm:$0xff]
  %v33 = vld [vmem:[%s1 + $0xa0] sm:$0xff]
  %v34 = vld [vmem:[%s1 + $0xa8] sm:$0xff]
  %v35 = vld [vmem:[%s1 + $0xb0] sm:$0xff]
  %v36 = vld [vmem:[%s1 + $0xb8] sm:$0xff]
  %v37 = vld [vmem:[%s1 + $0xc0] sm:$0xff]
  %v38 = vld [vmem:[%s1 + $0xc8] sm:$0xff]
  %v39 = vld [vmem:[%s1 + $0xd0] sm:$0xff]
  %v40 = vld [vmem:[%s1 + $0xd8] sm:$0xff]
  %v41 = vld [vmem:[%s1 + $0xe0] sm:$0xff]
  %v42 = vld [vmem:[%s1 + $0xe8] sm:$0xff]
  %v43 = vld [vmem:[%s1 + $0xf0] sm:$0xff]
  %v44 = vld [vmem:[%s1 + $0xf8] sm:$0xff]
  %v45 = vld [vmem:[%s1 + $0x100] sm:$0xff]
  %v46 = vld [vmem:[%s1 + $0x108] sm:$0xff]
  %v47 = vld [vmem:[%s1 + $0x110] sm:$0xff]
  %v48 = vld [vmem:[%s1 + $0x118] sm:$0xff]
  %v49 = vld [vmem:[%s1 + $0x120] sm:$0xff]
  %v50 = vld [vmem:[%s1 + $0x128] sm:$0xff]
  %v51 = vld [vmem:[%s1 + $0x130] sm:$0xff]
  %v52 = vld [vmem:[%s1 + $0x138] sm:$0xff]
  %v53 = vld [vmem:[%s1 + $0x140] sm:$0xff]
  %v54 = vld [vmem:[%s1 + $0x148] sm:$0xff]
  %v55 = vld [vmem:[%s1 + $0x150] sm:$0xff]
  %v56 = vld [vmem:[%s1 + $0x158] sm:$0xff]
  %v57 = vld [vmem:[%s1 + $0x160] sm:$0xff]
  %v58 = vld [vmem:[%s1 + $0x168] sm:$0xff]
  %v59 = vld [vmem:[%s1 + $0x170] sm:$0xff]
  %v60 = vld [vmem:[%s1 + $0x178] sm:$0xff]
  %v61 = vld [vmem:[%s1 + $0x180] sm:$0xff]
  %v62 = vld [vmem:[%s1 + $0x188] sm:$0xff]
  %v63 = vld [vmem:[%s1 + $0x190] sm:$0xff]
  %v64 = vld [vmem:[%s1 + $0x198] sm:$0xff]
  %v65 = vld [vmem:[%s1 + $0x1a0] sm:$0xff]
  %v66 = vld [vmem:[%s1 + $0x1a8] sm:$0xff]
  %v67 = vld [vmem:[%s1 + $0x1b0] sm:$0xff]
  %v68 = vld [vmem:[%s1 + $0x1b8] sm:$0xff]
  %v69 = vld [vmem:[%s1 + $0x1c0] sm:$0xff]
  %v70 = vld [vmem:[%s1 + $0x1c8] sm:$0xff]
  %v71 = vld [vmem:[%s1 + $0x1d0] sm:$0xff]
  %v72 = vld [vmem:[%s1 + $0x1d8] sm:$0xff]
  %v73 = vld [vmem:[%s1 + $0x1e0] sm:$0xff]
  %v74 = vld [vmem:[%s1 + $0x1e8] sm:$0xff]
  %v75 = vld [vmem:[%s1 + $0x1f0] sm:$0xff]
  %v76 = vld [vmem:[%s1 + $0x1f8] sm:$0xff]
  %v77 = vld [vmem:[%s1 + $0x200] sm:$0xff]
  %v78 = vld [vmem:[%s1 + $0x208] sm:$0xff]
  %v79 = vld [vmem:[%s1 + $0x210] sm:$0xff]
  %v80 = vld [vmem:[%s1 + $0x218] sm:$0xff]
  %v81 = vld [vmem:[%s1 + $0x220] sm:$0xff]
  %v82 = vld [vmem:[%s1 + $0x228] sm:$0xff]
  %v83 = vld [vmem:[%s1 + $0x230] sm:$0xff]
  %v84 = vld [vmem:[%s1 + $0x238] sm:$0xff]
  %v85 = vld [vmem:[%s1 + $0x240] sm:$0xff]
  %v86 = vld [vmem:[%s1 + $0x248] sm:$0xff]
  %v87 = vld [vmem:[%s1 + $0x250] sm:$0xff]
  %v88 = vld [vmem:[%s1 + $0x258] sm:$0xff]
  %v89 = vld [vmem:[%s1 + $0x260] sm:$0xff]
  %v90 = vld [vmem:[%s1 + $0x268] sm:$0xff]
  %v91 = vld [vmem:[%s1 + $0x270] sm:$0xff]
  %v92 = vld [vmem:[%s1 + $0x278] sm:$0xff]
  %v93 = vld [vmem:[%s1 + $0x280] sm:$0xff]
  %v94 = vld [vmem:[%s1 + $0x288] sm:$0xff]
  %v95 = vld [vmem:[%s1 + $0x290] sm:$0xff]
  %v96 = vld [vmem:[%s1 + $0x298] sm:$0xff]
  %v97 = vld [vmem:[%s1 + $0x2a0] sm:$0xff]
  %v98 = vld [vmem:[%s1 + $0x2a8] sm:$0xff]
  %v99 = vld [vmem:[%s1 + $0x2b0] sm:$0xff]
  %v100 = vld [vmem:[%s1 + $0x2b8] sm:$0xff]
  %v101 = vld [vmem:[%s1 + $0x2c0] sm:$0xff]
  %v102 = vld [vmem:[%s1 + $0x2c8] sm:$0xff]
  %v103 = vld [vmem:[%s1 + $0x2d0] sm:$0xff]
  %v104 = vld [vmem:[%s1 + $0x2d8] sm:$0xff]
  %v105 = vld [vmem:[%s1 + $0x2e0] sm:$0xff]
  %v106 = vld [vmem:[%s1 + $0x2e8] sm:$0xff]
  %v107 = vld [vmem:[%s1 + $0x2f0] sm:$0xff]
  %v108 = vld [vmem:[%s1 + $0x2f8] sm:$0xff]
  %v109 = vld [vmem:[%s1 + $0x300] sm:$0xff]
  %v110 = vld [vmem:[%s1 + $0x308] sm:$0xff]
  %v111 = vld [vmem:[%s1 + $0x310] sm:$0xff]
  %v112 = vld [vmem:[%s1 + $0x318] sm:$0xff]
  %v113 = vld [vmem:[%s1 + $0x320] sm:$0xff]
  %v114 = vld [vmem:[%s1 + $0x328] sm:$0xff]
  %v115 = vld [vmem:[%s1 + $0x330] sm:$0xff]
  %v116 = vld [vmem:[%s1 + $0x338] sm:$0xff]
  %v117 = vld [vmem:[%s1 + $0x340] sm:$0xff]
  %v118 = vld [vmem:[%s1 + $0x348] sm:$0xff]
  %v119 = vld [vmem:[%s1 + $0x350] sm:$0xff]
  %v120 = vld [vmem:[%s1 + $0x358] sm:$0xff]
  %v121 = vld [vmem:[%s1 + $0x360] sm:$0xff]
  %v122 = vld [vmem:[%s1 + $0x368] sm:$0xff]
  %v123 = vld [vmem:[%s1 + $0x370] sm:$0xff]
  %v124 = vld [vmem:[%s1 + $0x378] sm:$0xff]
  %v125 = vld [vmem:[%s1 + $0x380] sm:$0xff]
  %v126 = vld [vmem:[%s1 + $0x388] sm:$0xff]
  %v127 = vld [vmem:[%s1 + $0x390] sm:$0xff]
  %v128 = vld [vmem:[%s1 + $0x398] sm:$0xff]
  %v129 = vld [vmem:[%s1 + $0x3a0] sm:$0xff]
  %v130 = vld [vmem:[%s1 + $0x3a8] sm:$0xff]
  %v131 = vld [vmem:[%s1 + $0x3b0] sm:$0xff]
  %v132 = vld [vmem:[%s1 + $0x3b8] sm:$0xff]
  %v133 = vld [vmem:[%s1 + $0x3c0] sm:$0xff]
  %v134 = vld [vmem:[%s1 + $0x3c8] sm:$0xff]
  %v135 = vld [vmem:[%s1 + $0x3d0] sm:$0xff]
  %v136 = vld [vmem:[%s1 + $0x3d8] sm:$0xff]
  %v137 = vld [vmem:[%s1 + $0x3e0] sm:$0xff]
  %v138 = vld [vmem:[%s1 + $0x3e8] sm:$0xff]
  %v139 = vld [vmem:[%s1 + $0x3f0] sm:$0xff]
  %v140 = vld [vmem:[%s1 + $0x3f8] sm:$0xff]
  %v141 = vld [vmem:[%s1 + $0x400] sm:$0x33]
  %v142 = vld [vmem:[%s1 + $0x408] sm:$0x33]
  %v143 = vld [vmem:[%s1 + $0x410] sm:$0x33]
  %v144 = vld [vmem:[%s1 + $0x418] sm:$0x33]
  %v145 = vld [vmem:[%s1 + $0x420] sm:$0x33]
  %v146 = vld [vmem:[%s1 + $0x428] sm:$0x33]
  %v147 = vld [vmem:[%s1 + $0x430] sm:$0x33]
  %v148 = vld [vmem:[%s1 + $0x438] sm:$0x33]
  %v149 = vld [vmem:[%s1 + $0x440] sm:$0x33]
  %v150 = vld [vmem:[%s1 + $0x448] sm:$0x33]
  %v151 = vld [vmem:[%s1 + $0x450] sm:$0x33]
  %v152 = vld [vmem:[%s1 + $0x458] sm:$0x33]
  %v153 = vld [vmem:[%s1 + $0x460] sm:$0x33]
  %v154 = vld [vmem:[%s1 + $0x468] sm:$0x33]
  %v155 = vld [vmem:[%s1 + $0x470] sm:$0x33]
  %v156 = vld [vmem:[%s1 + $0x478] sm:$0x33]
  %v157 = vld [vmem:[%s1 + $0x480] sm:$0x33]
  %v158 = vld [vmem:[%s1 + $0x488] sm:$0x33]
  %v159 = vld [vmem:[%s1 + $0x490] sm:$0x33]
  %v160 = vld [vmem:[%s1 + $0x498] sm:$0x33]
  %v161 = vld [vmem:[%s1 + $0x4a0] sm:$0x33]
  %v162 = vld [vmem:[%s1 + $0x4a8] sm:$0x33]
  %v163 = vld [vmem:[%s1 + $0x4b0] sm:$0x33]
  %v164 = vld [vmem:[%s1 + $0x4b8] sm:$0x33]
  %v165 = vld [vmem:[%s1 + $0x4c0] sm:$0x33]
  %v166 = vld [vmem:[%s1 + $0x4c8] sm:$0x33]
  %v167 = vld [vmem:[%s1 + $0x4d0] sm:$0x33]
  %v168 = vld [vmem:[%s1 + $0x4d8] sm:$0x33]
  %v169 = vld [vmem:[%s1 + $0x4e0] sm:$0x33]
  %v170 = vld [vmem:[%s1 + $0x4e8] sm:$0x33]
  %v171 = vld [vmem:[%s1 + $0x4f0] sm:$0x33]
  %v172 = vld [vmem:[%s1 + $0x4f8] sm:$0x33]
  %v333 = vunpack.c.l.b16 %v13
  %v334 = vunpack.c.h.b16 %v13
  %v335 = vunpack.c.l.b16 %v14
  %v336 = vunpack.c.h.b16 %v14
  %v337 = vunpack.c.l.b16 %v15
  %v338 = vunpack.c.h.b16 %v15
  %v339 = vunpack.c.l.b16 %v16
  %v340 = vunpack.c.h.b16 %v16
  %v341 = vunpack.c.l.b16 %v17
  %v342 = vunpack.c.h.b16 %v17
  %v343 = vunpack.c.l.b16 %v18
  %v344 = vunpack.c.h.b16 %v18
  %v345 = vunpack.c.l.b16 %v19
  %v346 = vunpack.c.h.b16 %v19
  %v347 = vunpack.c.l.b16 %v20
  %v348 = vunpack.c.h.b16 %v20
  %v349 = vunpack.c.l.b16 %v21
  %v350 = vunpack.c.h.b16 %v21
  %v351 = vunpack.c.l.b16 %v22
  %v352 = vunpack.c.h.b16 %v22
  %v353 = vunpack.c.l.b16 %v23
  %v354 = vunpack.c.h.b16 %v23
  %v355 = vunpack.c.l.b16 %v24
  %v356 = vunpack.c.h.b16 %v24
  %v357 = vunpack.c.l.b16 %v25
  %v358 = vunpack.c.h.b16 %v25
  %v359 = vunpack.c.l.b16 %v26
  %v360 = vunpack.c.h.b16 %v26
  %v361 = vunpack.c.l.b16 %v27
  %v362 = vunpack.c.h.b16 %v27
  %v363 = vunpack.c.l.b16 %v28
  %v364 = vunpack.c.h.b16 %v28
  %v365 = vunpack.c.l.b16 %v29
  %v366 = vunpack.c.h.b16 %v29
  %v367 = vunpack.c.l.b16 %v30
  %v368 = vunpack.c.h.b16 %v30
  %v369 = vunpack.c.l.b16 %v31
  %v370 = vunpack.c.h.b16 %v31
  %v371 = vunpack.c.l.b16 %v32
  %v372 = vunpack.c.h.b16 %v32
  %v373 = vunpack.c.l.b16 %v33
  %v374 = vunpack.c.h.b16 %v33
  %v375 = vunpack.c.l.b16 %v34
  %v376 = vunpack.c.h.b16 %v34
  %v377 = vunpack.c.l.b16 %v35
  %v378 = vunpack.c.h.b16 %v35
  %v379 = vunpack.c.l.b16 %v36
  %v380 = vunpack.c.h.b16 %v36
  %v381 = vunpack.c.l.b16 %v37
  %v382 = vunpack.c.h.b16 %v37
  %v383 = vunpack.c.l.b16 %v38
  %v384 = vunpack.c.h.b16 %v38
  %v385 = vunpack.c.l.b16 %v39
  %v386 = vunpack.c.h.b16 %v39
  %v387 = vunpack.c.l.b16 %v40
  %v388 = vunpack.c.h.b16 %v40
  %v389 = vunpack.c.l.b16 %v41
  %v390 = vunpack.c.h.b16 %v41
  %v391 = vunpack.c.l.b16 %v42
  %v392 = vunpack.c.h.b16 %v42
  %v393 = vunpack.c.l.b16 %v43
  %v394 = vunpack.c.h.b16 %v43
  %v395 = vunpack.c.l.b16 %v44
  %v396 = vunpack.c.h.b16 %v44
  %v397 = vunpack.c.l.b16 %v45
  %v398 = vunpack.c.h.b16 %v45
  %v399 = vunpack.c.l.b16 %v46
  %v400 = vunpack.c.h.b16 %v46
  %v401 = vunpack.c.l.b16 %v47
  %v402 = vunpack.c.h.b16 %v47
  %v403 = vunpack.c.l.b16 %v48
  %v404 = vunpack.c.h.b16 %v48
  %v405 = vunpack.c.l.b16 %v49
  %v406 = vunpack.c.h.b16 %v49
  %v407 = vunpack.c.l.b16 %v50
  %v408 = vunpack.c.h.b16 %v50
  %v409 = vunpack.c.l.b16 %v51
  %v410 = vunpack.c.h.b16 %v51
  %v411 = vunpack.c.l.b16 %v52
  %v412 = vunpack.c.h.b16 %v52
  %v413 = vunpack.c.l.b16 %v53
  %v414 = vunpack.c.h.b16 %v53
  %v415 = vunpack.c.l.b16 %v54
  %v416 = vunpack.c.h.b16 %v54
  %v417 = vunpack.c.l.b16 %v55
  %v418 = vunpack.c.h.b16 %v55
  %v419 = vunpack.c.l.b16 %v56
  %v420 = vunpack.c.h.b16 %v56
  %v421 = vunpack.c.l.b16 %v57
  %v422 = vunpack.c.h.b16 %v57
  %v423 = vunpack.c.l.b16 %v58
  %v424 = vunpack.c.h.b16 %v58
  %v425 = vunpack.c.l.b16 %v59
  %v426 = vunpack.c.h.b16 %v59
  %v427 = vunpack.c.l.b16 %v60
  %v428 = vunpack.c.h.b16 %v60
  %v429 = vunpack.c.l.b16 %v61
  %v430 = vunpack.c.h.b16 %v61
  %v431 = vunpack.c.l.b16 %v62
  %v432 = vunpack.c.h.b16 %v62
  %v433 = vunpack.c.l.b16 %v63
  %v434 = vunpack.c.h.b16 %v63
  %v435 = vunpack.c.l.b16 %v64
  %v436 = vunpack.c.h.b16 %v64
  %v437 = vunpack.c.l.b16 %v65
  %v438 = vunpack.c.h.b16 %v65
  %v439 = vunpack.c.l.b16 %v66
  %v440 = vunpack.c.h.b16 %v66
  %v441 = vunpack.c.l.b16 %v67
  %v442 = vunpack.c.h.b16 %v67
  %v443 = vunpack.c.l.b16 %v68
  %v444 = vunpack.c.h.b16 %v68
  %v445 = vunpack.c.l.b16 %v69
  %v446 = vunpack.c.h.b16 %v69
  %v447 = vunpack.c.l.b16 %v70
  %v448 = vunpack.c.h.b16 %v70
  %v449 = vunpack.c.l.b16 %v71
  %v450 = vunpack.c.h.b16 %v71
  %v451 = vunpack.c.l.b16 %v72
  %v452 = vunpack.c.h.b16 %v72
  %v453 = vunpack.c.l.b16 %v73
  %v454 = vunpack.c.h.b16 %v73
  %v455 = vunpack.c.l.b16 %v74
  %v456 = vunpack.c.h.b16 %v74
  %v457 = vunpack.c.l.b16 %v75
  %v458 = vunpack.c.h.b16 %v75
  %v459 = vunpack.c.l.b16 %v76
  %v460 = vunpack.c.h.b16 %v76
  %v461 = vunpack.c.l.b16 %v77
  %v462 = vunpack.c.h.b16 %v77
  %v463 = vunpack.c.l.b16 %v78
  %v464 = vunpack.c.h.b16 %v78
  %v465 = vunpack.c.l.b16 %v79
  %v466 = vunpack.c.h.b16 %v79
  %v467 = vunpack.c.l.b16 %v80
  %v468 = vunpack.c.h.b16 %v80
  %v469 = vunpack.c.l.b16 %v81
  %v470 = vunpack.c.h.b16 %v81
  %v471 = vunpack.c.l.b16 %v82
  %v472 = vunpack.c.h.b16 %v82
  %v473 = vunpack.c.l.b16 %v83
  %v474 = vunpack.c.h.b16 %v83
  %v475 = vunpack.c.l.b16 %v84
  %v476 = vunpack.c.h.b16 %v84
  %v477 = vunpack.c.l.b16 %v85
  %v478 = vunpack.c.h.b16 %v85
  %v479 = vunpack.c.l.b16 %v86
  %v480 = vunpack.c.h.b16 %v86
  %v481 = vunpack.c.l.b16 %v87
  %v482 = vunpack.c.h.b16 %v87
  %v483 = vunpack.c.l.b16 %v88
  %v484 = vunpack.c.h.b16 %v88
  %v485 = vunpack.c.l.b16 %v89
  %v486 = vunpack.c.h.b16 %v89
  %v487 = vunpack.c.l.b16 %v90
  %v488 = vunpack.c.h.b16 %v90
  %v489 = vunpack.c.l.b16 %v91
  %v490 = vunpack.c.h.b16 %v91
  %v491 = vunpack.c.l.b16 %v92
  %v492 = vunpack.c.h.b16 %v92
  %v493 = vunpack.c.l.b16 %v93
  %v494 = vunpack.c.h.b16 %v93
  %v495 = vunpack.c.l.b16 %v94
  %v496 = vunpack.c.h.b16 %v94
  %v497 = vunpack.c.l.b16 %v95
  %v498 = vunpack.c.h.b16 %v95
  %v499 = vunpack.c.l.b16 %v96
  %v500 = vunpack.c.h.b16 %v96
  %v501 = vunpack.c.l.b16 %v97
  %v502 = vunpack.c.h.b16 %v97
  %v503 = vunpack.c.l.b16 %v98
  %v504 = vunpack.c.h.b16 %v98
  %v505 = vunpack.c.l.b16 %v99
  %v506 = vunpack.c.h.b16 %v99
  %v507 = vunpack.c.l.b16 %v100
  %v508 = vunpack.c.h.b16 %v100
  %v509 = vunpack.c.l.b16 %v101
  %v510 = vunpack.c.h.b16 %v101
  %v511 = vunpack.c.l.b16 %v102
  %v512 = vunpack.c.h.b16 %v102
  %v513 = vunpack.c.l.b16 %v103
  %v514 = vunpack.c.h.b16 %v103
  %v515 = vunpack.c.l.b16 %v104
  %v516 = vunpack.c.h.b16 %v104
  %v517 = vunpack.c.l.b16 %v105
  %v518 = vunpack.c.h.b16 %v105
  %v519 = vunpack.c.l.b16 %v106
  %v520 = vunpack.c.h.b16 %v106
  %v521 = vunpack.c.l.b16 %v107
  %v522 = vunpack.c.h.b16 %v107
  %v523 = vunpack.c.l.b16 %v108
  %v524 = vunpack.c.h.b16 %v108
  %v525 = vunpack.c.l.b16 %v109
  %v526 = vunpack.c.h.b16 %v109
  %v527 = vunpack.c.l.b16 %v110
  %v528 = vunpack.c.h.b16 %v110
  %v529 = vunpack.c.l.b16 %v111
  %v530 = vunpack.c.h.b16 %v111
  %v531 = vunpack.c.l.b16 %v112
  %v532 = vunpack.c.h.b16 %v112
  %v533 = vunpack.c.l.b16 %v113
  %v534 = vunpack.c.h.b16 %v113
  %v535 = vunpack.c.l.b16 %v114
  %v536 = vunpack.c.h.b16 %v114
  %v537 = vunpack.c.l.b16 %v115
  %v538 = vunpack.c.h.b16 %v115
  %v539 = vunpack.c.l.b16 %v116
  %v540 = vunpack.c.h.b16 %v116
  %v541 = vunpack.c.l.b16 %v117
  %v542 = vunpack.c.h.b16 %v117
  %v543 = vunpack.c.l.b16 %v118
  %v544 = vunpack.c.h.b16 %v118
  %v545 = vunpack.c.l.b16 %v119
  %v546 = vunpack.c.h.b16 %v119
  %v547 = vunpack.c.l.b16 %v120
  %v548 = vunpack.c.h.b16 %v120
  %v549 = vunpack.c.l.b16 %v121
  %v550 = vunpack.c.h.b16 %v121
  %v551 = vunpack.c.l.b16 %v122
  %v552 = vunpack.c.h.b16 %v122
  %v553 = vunpack.c.l.b16 %v123
  %v554 = vunpack.c.h.b16 %v123
  %v555 = vunpack.c.l.b16 %v124
  %v556 = vunpack.c.h.b16 %v124
  %v557 = vunpack.c.l.b16 %v125
  %v558 = vunpack.c.h.b16 %v125
  %v559 = vunpack.c.l.b16 %v126
  %v560 = vunpack.c.h.b16 %v126
  %v561 = vunpack.c.l.b16 %v127
  %v562 = vunpack.c.h.b16 %v127
  %v563 = vunpack.c.l.b16 %v128
  %v564 = vunpack.c.h.b16 %v128
  %v565 = vunpack.c.l.b16 %v129
  %v566 = vunpack.c.h.b16 %v129
  %v567 = vunpack.c.l.b16 %v130
  %v568 = vunpack.c.h.b16 %v130
  %v569 = vunpack.c.l.b16 %v131
  %v570 = vunpack.c.h.b16 %v131
  %v571 = vunpack.c.l.b16 %v132
  %v572 = vunpack.c.h.b16 %v132
  %v573 = vunpack.c.l.b16 %v133
  %v574 = vunpack.c.h.b16 %v133
  %v575 = vunpack.c.l.b16 %v134
  %v576 = vunpack.c.h.b16 %v134
  %v577 = vunpack.c.l.b16 %v135
  %v578 = vunpack.c.h.b16 %v135
  %v579 = vunpack.c.l.b16 %v136
  %v580 = vunpack.c.h.b16 %v136
  %v581 = vunpack.c.l.b16 %v137
  %v582 = vunpack.c.h.b16 %v137
  %v583 = vunpack.c.l.b16 %v138
  %v584 = vunpack.c.h.b16 %v138
  %v585 = vunpack.c.l.b16 %v139
  %v586 = vunpack.c.h.b16 %v139
  %v587 = vunpack.c.l.b16 %v140
  %v588 = vunpack.c.h.b16 %v140
  %v589 = vunpack.c.l.b16 %v141
  %v590 = vunpack.c.h.b16 %v141
  %v591 = vunpack.c.l.b16 %v142
  %v592 = vunpack.c.h.b16 %v142
  %v593 = vunpack.c.l.b16 %v143
  %v594 = vunpack.c.h.b16 %v143
  %v595 = vunpack.c.l.b16 %v144
  %v596 = vunpack.c.h.b16 %v144
  %v597 = vunpack.c.l.b16 %v145
  %v598 = vunpack.c.h.b16 %v145
  %v599 = vunpack.c.l.b16 %v146
  %v600 = vunpack.c.h.b16 %v146
  %v601 = vunpack.c.l.b16 %v147
  %v602 = vunpack.c.h.b16 %v147
  %v603 = vunpack.c.l.b16 %v148
  %v604 = vunpack.c.h.b16 %v148
  %v605 = vunpack.c.l.b16 %v149
  %v606 = vunpack.c.h.b16 %v149
  %v607 = vunpack.c.l.b16 %v150
  %v608 = vunpack.c.h.b16 %v150
  %v609 = vunpack.c.l.b16 %v151
  %v610 = vunpack.c.h.b16 %v151
  %v611 = vunpack.c.l.b16 %v152
  %v612 = vunpack.c.h.b16 %v152
  %v613 = vunpack.c.l.b16 %v153
  %v614 = vunpack.c.h.b16 %v153
  %v615 = vunpack.c.l.b16 %v154
  %v616 = vunpack.c.h.b16 %v154
  %v617 = vunpack.c.l.b16 %v155
  %v618 = vunpack.c.h.b16 %v155
  %v619 = vunpack.c.l.b16 %v156
  %v620 = vunpack.c.h.b16 %v156
  %v621 = vunpack.c.l.b16 %v157
  %v622 = vunpack.c.h.b16 %v157
  %v623 = vunpack.c.l.b16 %v158
  %v624 = vunpack.c.h.b16 %v158
  %v625 = vunpack.c.l.b16 %v159
  %v626 = vunpack.c.h.b16 %v159
  %v627 = vunpack.c.l.b16 %v160
  %v628 = vunpack.c.h.b16 %v160
  %v629 = vunpack.c.l.b16 %v161
  %v630 = vunpack.c.h.b16 %v161
  %v631 = vunpack.c.l.b16 %v162
  %v632 = vunpack.c.h.b16 %v162
  %v633 = vunpack.c.l.b16 %v163
  %v634 = vunpack.c.h.b16 %v163
  %v635 = vunpack.c.l.b16 %v164
  %v636 = vunpack.c.h.b16 %v164
  %v637 = vunpack.c.l.b16 %v165
  %v638 = vunpack.c.h.b16 %v165
  %v639 = vunpack.c.l.b16 %v166
  %v640 = vunpack.c.h.b16 %v166
  %v641 = vunpack.c.l.b16 %v167
  %v642 = vunpack.c.h.b16 %v167
  %v643 = vunpack.c.l.b16 %v168
  %v644 = vunpack.c.h.b16 %v168
  %v645 = vunpack.c.l.b16 %v169
  %v646 = vunpack.c.h.b16 %v169
  %v647 = vunpack.c.l.b16 %v170
  %v648 = vunpack.c.h.b16 %v170
  %v649 = vunpack.c.l.b16 %v171
  %v650 = vunpack.c.h.b16 %v171
  %v651 = vunpack.c.l.b16 %v172
  %v652 = vunpack.c.h.b16 %v172
  %v653 = vpack.c.b16 %v397, %v333
  %v654 = vpack.c.b16 %v398, %v334
  %v655 = vpack.c.b16 %v399, %v335
  %v656 = vpack.c.b16 %v400, %v336
  %v657 = vpack.c.b16 %v401, %v337
  %v658 = vpack.c.b16 %v402, %v338
  %v659 = vpack.c.b16 %v403, %v339
  %v660 = vpack.c.b16 %v404, %v340
  %v661 = vpack.c.b16 %v405, %v341
  %v662 = vpack.c.b16 %v406, %v342
  %v663 = vpack.c.b16 %v407, %v343
  %v664 = vpack.c.b16 %v408, %v344
  %v665 = vpack.c.b16 %v409, %v345
  %v666 = vpack.c.b16 %v410, %v346
  %v667 = vpack.c.b16 %v411, %v347
  %v668 = vpack.c.b16 %v412, %v348
  %v669 = vpack.c.b16 %v413, %v349
  %v670 = vpack.c.b16 %v414, %v350
  %v671 = vpack.c.b16 %v415, %v351
  %v672 = vpack.c.b16 %v416, %v352
  %v673 = vpack.c.b16 %v417, %v353
  %v674 = vpack.c.b16 %v418, %v354
  %v675 = vpack.c.b16 %v419, %v355
  %v676 = vpack.c.b16 %v420, %v356
  %v677 = vpack.c.b16 %v421, %v357
  %v678 = vpack.c.b16 %v422, %v358
  %v679 = vpack.c.b16 %v423, %v359
  %v680 = vpack.c.b16 %v424, %v360
  %v681 = vpack.c.b16 %v425, %v361
  %v682 = vpack.c.b16 %v426, %v362
  %v683 = vpack.c.b16 %v427, %v363
  %v684 = vpack.c.b16 %v428, %v364
  %v685 = vpack.c.b16 %v429, %v365
  %v686 = vpack.c.b16 %v430, %v366
  %v687 = vpack.c.b16 %v431, %v367
  %v688 = vpack.c.b16 %v432, %v368
  %v689 = vpack.c.b16 %v433, %v369
  %v690 = vpack.c.b16 %v434, %v370
  %v691 = vpack.c.b16 %v435, %v371
  %v692 = vpack.c.b16 %v436, %v372
  %v693 = vpack.c.b16 %v437, %v373
  %v694 = vpack.c.b16 %v438, %v374
  %v695 = vpack.c.b16 %v439, %v375
  %v696 = vpack.c.b16 %v440, %v376
  %v697 = vpack.c.b16 %v441, %v377
  %v698 = vpack.c.b16 %v442, %v378
  %v699 = vpack.c.b16 %v443, %v379
  %v700 = vpack.c.b16 %v444, %v380
  %v701 = vpack.c.b16 %v445, %v381
  %v702 = vpack.c.b16 %v446, %v382
  %v703 = vpack.c.b16 %v447, %v383
  %v704 = vpack.c.b16 %v448, %v384
  %v705 = vpack.c.b16 %v449, %v385
  %v706 = vpack.c.b16 %v450, %v386
  %v707 = vpack.c.b16 %v451, %v387
  %v708 = vpack.c.b16 %v452, %v388
  %v709 = vpack.c.b16 %v453, %v389
  %v710 = vpack.c.b16 %v454, %v390
  %v711 = vpack.c.b16 %v455, %v391
  %v712 = vpack.c.b16 %v456, %v392
  %v713 = vpack.c.b16 %v457, %v393
  %v714 = vpack.c.b16 %v458, %v394
  %v715 = vpack.c.b16 %v459, %v395
  %v716 = vpack.c.b16 %v460, %v396
  %v717 = vpack.c.b16 %v525, %v461
  %v718 = vpack.c.b16 %v526, %v462
  %v719 = vpack.c.b16 %v527, %v463
  %v720 = vpack.c.b16 %v528, %v464
  %v721 = vpack.c.b16 %v529, %v465
  %v722 = vpack.c.b16 %v530, %v466
  %v723 = vpack.c.b16 %v531, %v467
  %v724 = vpack.c.b16 %v532, %v468
  %v725 = vpack.c.b16 %v533, %v469
  %v726 = vpack.c.b16 %v534, %v470
  %v727 = vpack.c.b16 %v535, %v471
  %v728 = vpack.c.b16 %v536, %v472
  %v729 = vpack.c.b16 %v537, %v473
  %v730 = vpack.c.b16 %v538, %v474
  %v731 = vpack.c.b16 %v539, %v475
  %v732 = vpack.c.b16 %v540, %v476
  %v733 = vpack.c.b16 %v541, %v477
  %v734 = vpack.c.b16 %v542, %v478
  %v735 = vpack.c.b16 %v543, %v479
  %v736 = vpack.c.b16 %v544, %v480
  %v737 = vpack.c.b16 %v545, %v481
  %v738 = vpack.c.b16 %v546, %v482
  %v739 = vpack.c.b16 %v547, %v483
  %v740 = vpack.c.b16 %v548, %v484
  %v741 = vpack.c.b16 %v549, %v485
  %v742 = vpack.c.b16 %v550, %v486
  %v743 = vpack.c.b16 %v551, %v487
  %v744 = vpack.c.b16 %v552, %v488
  %v745 = vpack.c.b16 %v553, %v489
  %v746 = vpack.c.b16 %v554, %v490
  %v747 = vpack.c.b16 %v555, %v491
  %v748 = vpack.c.b16 %v556, %v492
  %v749 = vpack.c.b16 %v557, %v493
  %v750 = vpack.c.b16 %v558, %v494
  %v751 = vpack.c.b16 %v559, %v495
  %v752 = vpack.c.b16 %v560, %v496
  %v753 = vpack.c.b16 %v561, %v497
  %v754 = vpack.c.b16 %v562, %v498
  %v755 = vpack.c.b16 %v563, %v499
  %v756 = vpack.c.b16 %v564, %v500
  %v757 = vpack.c.b16 %v565, %v501
  %v758 = vpack.c.b16 %v566, %v502
  %v759 = vpack.c.b16 %v567, %v503
  %v760 = vpack.c.b16 %v568, %v504
  %v761 = vpack.c.b16 %v569, %v505
  %v762 = vpack.c.b16 %v570, %v506
  %v763 = vpack.c.b16 %v571, %v507
  %v764 = vpack.c.b16 %v572, %v508
  %v765 = vpack.c.b16 %v573, %v509
  %v766 = vpack.c.b16 %v574, %v510
  %v767 = vpack.c.b16 %v575, %v511
  %v768 = vpack.c.b16 %v576, %v512
  %v769 = vpack.c.b16 %v577, %v513
  %v770 = vpack.c.b16 %v578, %v514
  %v771 = vpack.c.b16 %v579, %v515
  %v772 = vpack.c.b16 %v580, %v516
  %v773 = vpack.c.b16 %v581, %v517
  %v774 = vpack.c.b16 %v582, %v518
  %v775 = vpack.c.b16 %v583, %v519
  %v776 = vpack.c.b16 %v584, %v520
  %v777 = vpack.c.b16 %v585, %v521
  %v778 = vpack.c.b16 %v586, %v522
  %v779 = vpack.c.b16 %v587, %v523
  %v780 = vpack.c.b16 %v588, %v524
  %v781 = vpack.c.b16 %v589, %v589
  %v782 = vpack.c.b16 %v590, %v590
  %v783 = vpack.c.b16 %v591, %v591
  %v784 = vpack.c.b16 %v592, %v592
  %v785 = vpack.c.b16 %v593, %v593
  %v786 = vpack.c.b16 %v594, %v594
  %v787 = vpack.c.b16 %v595, %v595
  %v788 = vpack.c.b16 %v596, %v596
  %v789 = vpack.c.b16 %v597, %v597
  %v790 = vpack.c.b16 %v598, %v598
  %v791 = vpack.c.b16 %v599, %v599
  %v792 = vpack.c.b16 %v600, %v600
  %v793 = vpack.c.b16 %v601, %v601
  %v794 = vpack.c.b16 %v602, %v602
  %v795 = vpack.c.b16 %v603, %v603
  %v796 = vpack.c.b16 %v604, %v604
  %v797 = vpack.c.b16 %v605, %v605
  %v798 = vpack.c.b16 %v606, %v606
  %v799 = vpack.c.b16 %v607, %v607
  %v800 = vpack.c.b16 %v608, %v608
  %v801 = vpack.c.b16 %v609, %v609
  %v802 = vpack.c.b16 %v610, %v610
  %v803 = vpack.c.b16 %v611, %v611
  %v804 = vpack.c.b16 %v612, %v612
  %v805 = vpack.c.b16 %v613, %v613
  %v806 = vpack.c.b16 %v614, %v614
  %v807 = vpack.c.b16 %v615, %v615
  %v808 = vpack.c.b16 %v616, %v616
  %v809 = vpack.c.b16 %v617, %v617
  %v810 = vpack.c.b16 %v618, %v618
  %v811 = vpack.c.b16 %v619, %v619
  %v812 = vpack.c.b16 %v620, %v620
  %v813 = vpack.c.b16 %v621, %v621
  %v814 = vpack.c.b16 %v622, %v622
  %v815 = vpack.c.b16 %v623, %v623
  %v816 = vpack.c.b16 %v624, %v624
  %v817 = vpack.c.b16 %v625, %v625
  %v818 = vpack.c.b16 %v626, %v626
  %v819 = vpack.c.b16 %v627, %v627
  %v820 = vpack.c.b16 %v628, %v628
  %v821 = vpack.c.b16 %v629, %v629
  %v822 = vpack.c.b16 %v630, %v630
  %v823 = vpack.c.b16 %v631, %v631
  %v824 = vpack.c.b16 %v632, %v632
  %v825 = vpack.c.b16 %v633, %v633
  %v826 = vpack.c.b16 %v634, %v634
  %v827 = vpack.c.b16 %v635, %v635
  %v828 = vpack.c.b16 %v636, %v636
  %v829 = vpack.c.b16 %v637, %v637
  %v830 = vpack.c.b16 %v638, %v638
  %v831 = vpack.c.b16 %v639, %v639
  %v832 = vpack.c.b16 %v640, %v640
  %v833 = vpack.c.b16 %v641, %v641
  %v834 = vpack.c.b16 %v642, %v642
  %v835 = vpack.c.b16 %v643, %v643
  %v836 = vpack.c.b16 %v644, %v644
  %v837 = vpack.c.b16 %v645, %v645
  %v838 = vpack.c.b16 %v646, %v646
  %v839 = vpack.c.b16 %v647, %v647
  %v840 = vpack.c.b16 %v648, %v648
  %v841 = vpack.c.b16 %v649, %v649
  %v842 = vpack.c.b16 %v650, %v650
  %v843 = vpack.c.b16 %v651, %v651
  %v844 = vpack.c.b16 %v652, %v652
  %vm973 = vcmask 293888
  %v975 = vsel %vm973, %v12, 0
  %vm977 = vcmask 1041408
  %v979 = vsel %vm977, %v781, 0
  %v982 = vsel %vm977, %v782, 0
  %v985 = vsel %vm977, %v783, 0
  %v988 = vsel %vm977, %v784, 0
  %v991 = vsel %vm977, %v785, 0
  %v994 = vsel %vm977, %v786, 0
  %v997 = vsel %vm977, %v787, 0
  %v1000 = vsel %vm977, %v788, 0
  %v1003 = vsel %vm977, %v789, 0
  %v1006 = vsel %vm977, %v790, 0
  %v1009 = vsel %vm977, %v791, 0
  %v1012 = vsel %vm977, %v792, 0
  %v1015 = vsel %vm977, %v793, 0
  %v1018 = vsel %vm977, %v794, 0
  %v1021 = vsel %vm977, %v795, 0
  %v1024 = vsel %vm977, %v796, 0
  %v1027 = vsel %vm977, %v797, 0
  %v1030 = vsel %vm977, %v798, 0
  %v1033 = vsel %vm977, %v799, 0
  %v1036 = vsel %vm977, %v800, 0
  %v1039 = vsel %vm977, %v801, 0
  %v1042 = vsel %vm977, %v802, 0
  %v1045 = vsel %vm977, %v803, 0
  %v1048 = vsel %vm977, %v804, 0
  %v1051 = vsel %vm977, %v805, 0
  %v1054 = vsel %vm977, %v806, 0
  %v1057 = vsel %vm977, %v807, 0
  %v1060 = vsel %vm977, %v808, 0
  %v1063 = vsel %vm977, %v809, 0
  %v1066 = vsel %vm977, %v810, 0
  %v1069 = vsel %vm977, %v811, 0
  %v1072 = vsel %vm977, %v812, 0
  %v1075 = vsel %vm977, %v813, 0
  %v1078 = vsel %vm977, %v814, 0
  %v1081 = vsel %vm977, %v815, 0
  %v1084 = vsel %vm977, %v816, 0
  %v1087 = vsel %vm977, %v817, 0
  %v1090 = vsel %vm977, %v818, 0
  %v1093 = vsel %vm977, %v819, 0
  %v1096 = vsel %vm977, %v820, 0
  %v1099 = vsel %vm977, %v821, 0
  %v1102 = vsel %vm977, %v822, 0
  %v1105 = vsel %vm977, %v823, 0
  %v1108 = vsel %vm977, %v824, 0
  %v1111 = vsel %vm977, %v825, 0
  %v1114 = vsel %vm977, %v826, 0
  %v1117 = vsel %vm977, %v827, 0
  %v1120 = vsel %vm977, %v828, 0
  %v1123 = vsel %vm977, %v829, 0
  %v1126 = vsel %vm977, %v830, 0
  %v1129 = vsel %vm977, %v831, 0
  %v1132 = vsel %vm977, %v832, 0
  %v1135 = vsel %vm977, %v833, 0
  %v1138 = vsel %vm977, %v834, 0
  %v1141 = vsel %vm977, %v835, 0
  %v1144 = vsel %vm977, %v836, 0
  %v1147 = vsel %vm977, %v837, 0
  %v1150 = vsel %vm977, %v838, 0
  %v1153 = vsel %vm977, %v839, 0
  %v1156 = vsel %vm977, %v840, 0
  %v1159 = vsel %vm977, %v841, 0
  %v1162 = vsel %vm977, %v842, 0
  %v1165 = vsel %vm977, %v843, 0
  %v1168 = vsel %vm977, %v844, 0
  %1170 = vmatpush.bf16.msra.mxu0 0
  %1171 = vmatpush.bf16.msra.mxu0 0
  %1172 = vmatpush.bf16.msra.mxu0 0
  %1173 = vmatpush.bf16.msra.mxu0 0
  %1174 = vmatpush.bf16.msra.mxu0 0
  %1175 = vmatpush.bf16.msra.mxu0 %v979
  %1176 = vmatpush.bf16.msra.mxu0 %v717
  %1177 = vmatpush.bf16.msra.mxu0 %v653
  %1178 = vmatmul.bf16.gmra.mxu0 %v975
  %v1179 = vpop.f32.mrf.mxu0
  %v1180 = vadd.f32 0.0, %v1179
  %v1181 = vpop.f32.mrf.mxu0
  %1182 = vdwg.mxu0
  %1183 = vmatpush.bf16.msra.mxu0 0
  %1184 = vmatpush.bf16.msra.mxu0 0
  %1185 = vmatpush.bf16.msra.mxu0 0
  %1186 = vmatpush.bf16.msra.mxu0 0
  %1187 = vmatpush.bf16.msra.mxu0 0
  %1188 = vmatpush.bf16.msra.mxu0 %v982
  %1189 = vmatpush.bf16.msra.mxu0 %v718
  %1190 = vmatpush.bf16.msra.mxu0 %v654
  %1191 = vmatmul.bf16.gmra.mxu0 %v975
  %v1192 = vpop.f32.mrf.mxu0
  %v1193 = vadd.f32 0.0, %v1192
  %v1194 = vpop.f32.mrf.mxu0
  %1195 = vdwg.mxu0
  %1196 = vmatpush.bf16.msra.mxu0 0
  %1197 = vmatpush.bf16.msra.mxu0 0
  %1198 = vmatpush.bf16.msra.mxu0 0
  %1199 = vmatpush.bf16.msra.mxu0 0
  %1200 = vmatpush.bf16.msra.mxu0 0
  %1201 = vmatpush.bf16.msra.mxu0 %v985
  %1202 = vmatpush.bf16.msra.mxu0 %v719
  %1203 = vmatpush.bf16.msra.mxu0 %v655
  %1204 = vmatmul.bf16.gmra.mxu0 %v975
  %v1205 = vpop.f32.mrf.mxu0
  %v1206 = vadd.f32 0.0, %v1205
  %v1207 = vpop.f32.mrf.mxu0
  %1208 = vdwg.mxu0
  %1209 = vmatpush.bf16.msra.mxu0 0
  %1210 = vmatpush.bf16.msra.mxu0 0
  %1211 = vmatpush.bf16.msra.mxu0 0
  %1212 = vmatpush.bf16.msra.mxu0 0
  %1213 = vmatpush.bf16.msra.mxu0 0
  %1214 = vmatpush.bf16.msra.mxu0 %v988
  %1215 = vmatpush.bf16.msra.mxu0 %v720
  %1216 = vmatpush.bf16.msra.mxu0 %v656
  %1217 = vmatmul.bf16.gmra.mxu0 %v975
  %v1218 = vpop.f32.mrf.mxu0
  %v1219 = vadd.f32 0.0, %v1218
  %v1220 = vpop.f32.mrf.mxu0
  %1221 = vdwg.mxu0
  %1222 = vmatpush.bf16.msra.mxu0 0
  %1223 = vmatpush.bf16.msra.mxu0 0
  %1224 = vmatpush.bf16.msra.mxu0 0
  %1225 = vmatpush.bf16.msra.mxu0 0
  %1226 = vmatpush.bf16.msra.mxu0 0
  %1227 = vmatpush.bf16.msra.mxu0 %v991
  %1228 = vmatpush.bf16.msra.mxu0 %v721
  %1229 = vmatpush.bf16.msra.mxu0 %v657
  %1230 = vmatmul.bf16.gmra.mxu0 %v975
  %v1231 = vpop.f32.mrf.mxu0
  %v1232 = vadd.f32 0.0, %v1231
  %v1233 = vpop.f32.mrf.mxu0
  %1234 = vdwg.mxu0
  %1235 = vmatpush.bf16.msra.mxu0 0
  %1236 = vmatpush.bf16.msra.mxu0 0
  %1237 = vmatpush.bf16.msra.mxu0 0
  %1238 = vmatpush.bf16.msra.mxu0 0
  %1239 = vmatpush.bf16.msra.mxu0 0
  %1240 = vmatpush.bf16.msra.mxu0 %v994
  %1241 = vmatpush.bf16.msra.mxu0 %v722
  %1242 = vmatpush.bf16.msra.mxu0 %v658
  %1243 = vmatmul.bf16.gmra.mxu0 %v975
  %v1244 = vpop.f32.mrf.mxu0
  %v1245 = vadd.f32 0.0, %v1244
  %v1246 = vpop.f32.mrf.mxu0
  %1247 = vdwg.mxu0
  %1248 = vmatpush.bf16.msra.mxu0 0
  %1249 = vmatpush.bf16.msra.mxu0 0
  %1250 = vmatpush.bf16.msra.mxu0 0
  %1251 = vmatpush.bf16.msra.mxu0 0
  %1252 = vmatpush.bf16.msra.mxu0 0
  %1253 = vmatpush.bf16.msra.mxu0 %v997
  %1254 = vmatpush.bf16.msra.mxu0 %v723
  %1255 = vmatpush.bf16.msra.mxu0 %v659
  %1256 = vmatmul.bf16.gmra.mxu0 %v975
  %v1257 = vpop.f32.mrf.mxu0
  %v1258 = vadd.f32 0.0, %v1257
  %v1259 = vpop.f32.mrf.mxu0
  %1260 = vdwg.mxu0
  %1261 = vmatpush.bf16.msra.mxu0 0
  %1262 = vmatpush.bf16.msra.mxu0 0
  %1263 = vmatpush.bf16.msra.mxu0 0
  %1264 = vmatpush.bf16.msra.mxu0 0
  %1265 = vmatpush.bf16.msra.mxu0 0
  %1266 = vmatpush.bf16.msra.mxu0 %v1000
  %1267 = vmatpush.bf16.msra.mxu0 %v724
  %1268 = vmatpush.bf16.msra.mxu0 %v660
  %1269 = vmatmul.bf16.gmra.mxu0 %v975
  %v1270 = vpop.f32.mrf.mxu0
  %v1271 = vadd.f32 0.0, %v1270
  %v1272 = vpop.f32.mrf.mxu0
  %1273 = vdwg.mxu0
  %1274 = vmatpush.bf16.msra.mxu0 0
  %1275 = vmatpush.bf16.msra.mxu0 0
  %1276 = vmatpush.bf16.msra.mxu0 0
  %1277 = vmatpush.bf16.msra.mxu0 0
  %1278 = vmatpush.bf16.msra.mxu0 0
  %1279 = vmatpush.bf16.msra.mxu0 %v1003
  %1280 = vmatpush.bf16.msra.mxu0 %v725
  %1281 = vmatpush.bf16.msra.mxu0 %v661
  %1282 = vmatmul.bf16.gmra.mxu0 %v975
  %v1283 = vpop.f32.mrf.mxu0
  %v1284 = vadd.f32 0.0, %v1283
  %v1285 = vpop.f32.mrf.mxu0
  %1286 = vdwg.mxu0
  %1287 = vmatpush.bf16.msra.mxu0 0
  %1288 = vmatpush.bf16.msra.mxu0 0
  %1289 = vmatpush.bf16.msra.mxu0 0
  %1290 = vmatpush.bf16.msra.mxu0 0
  %1291 = vmatpush.bf16.msra.mxu0 0
  %1292 = vmatpush.bf16.msra.mxu0 %v1006
  %1293 = vmatpush.bf16.msra.mxu0 %v726
  %1294 = vmatpush.bf16.msra.mxu0 %v662
  %1295 = vmatmul.bf16.gmra.mxu0 %v975
  %v1296 = vpop.f32.mrf.mxu0
  %v1297 = vadd.f32 0.0, %v1296
  %v1298 = vpop.f32.mrf.mxu0
  %1299 = vdwg.mxu0
  %1300 = vmatpush.bf16.msra.mxu0 0
  %1301 = vmatpush.bf16.msra.mxu0 0
  %1302 = vmatpush.bf16.msra.mxu0 0
  %1303 = vmatpush.bf16.msra.mxu0 0
  %1304 = vmatpush.bf16.msra.mxu0 0
  %1305 = vmatpush.bf16.msra.mxu0 %v1009
  %1306 = vmatpush.bf16.msra.mxu0 %v727
  %1307 = vmatpush.bf16.msra.mxu0 %v663
  %1308 = vmatmul.bf16.gmra.mxu0 %v975
  %v1309 = vpop.f32.mrf.mxu0
  %v1310 = vadd.f32 0.0, %v1309
  %v1311 = vpop.f32.mrf.mxu0
  %1312 = vdwg.mxu0
  %1313 = vmatpush.bf16.msra.mxu0 0
  %1314 = vmatpush.bf16.msra.mxu0 0
  %1315 = vmatpush.bf16.msra.mxu0 0
  %1316 = vmatpush.bf16.msra.mxu0 0
  %1317 = vmatpush.bf16.msra.mxu0 0
  %1318 = vmatpush.bf16.msra.mxu0 %v1012
  %1319 = vmatpush.bf16.msra.mxu0 %v728
  %1320 = vmatpush.bf16.msra.mxu0 %v664
  %1321 = vmatmul.bf16.gmra.mxu0 %v975
  %v1322 = vpop.f32.mrf.mxu0
  %v1323 = vadd.f32 0.0, %v1322
  %v1324 = vpop.f32.mrf.mxu0
  %1325 = vdwg.mxu0
  %1326 = vmatpush.bf16.msra.mxu0 0
  %1327 = vmatpush.bf16.msra.mxu0 0
  %1328 = vmatpush.bf16.msra.mxu0 0
  %1329 = vmatpush.bf16.msra.mxu0 0
  %1330 = vmatpush.bf16.msra.mxu0 0
  %1331 = vmatpush.bf16.msra.mxu0 %v1015
  %1332 = vmatpush.bf16.msra.mxu0 %v729
  %1333 = vmatpush.bf16.msra.mxu0 %v665
  %1334 = vmatmul.bf16.gmra.mxu0 %v975
  %v1335 = vpop.f32.mrf.mxu0
  %v1336 = vadd.f32 0.0, %v1335
  %v1337 = vpop.f32.mrf.mxu0
  %1338 = vdwg.mxu0
  %1339 = vmatpush.bf16.msra.mxu0 0
  %1340 = vmatpush.bf16.msra.mxu0 0
  %1341 = vmatpush.bf16.msra.mxu0 0
  %1342 = vmatpush.bf16.msra.mxu0 0
  %1343 = vmatpush.bf16.msra.mxu0 0
  %1344 = vmatpush.bf16.msra.mxu0 %v1018
  %1345 = vmatpush.bf16.msra.mxu0 %v730
  %1346 = vmatpush.bf16.msra.mxu0 %v666
  %1347 = vmatmul.bf16.gmra.mxu0 %v975
  %v1348 = vpop.f32.mrf.mxu0
  %v1349 = vadd.f32 0.0, %v1348
  %v1350 = vpop.f32.mrf.mxu0
  %1351 = vdwg.mxu0
  %1352 = vmatpush.bf16.msra.mxu0 0
  %1353 = vmatpush.bf16.msra.mxu0 0
  %1354 = vmatpush.bf16.msra.mxu0 0
  %1355 = vmatpush.bf16.msra.mxu0 0
  %1356 = vmatpush.bf16.msra.mxu0 0
  %1357 = vmatpush.bf16.msra.mxu0 %v1021
  %1358 = vmatpush.bf16.msra.mxu0 %v731
  %1359 = vmatpush.bf16.msra.mxu0 %v667
  %1360 = vmatmul.bf16.gmra.mxu0 %v975
  %v1361 = vpop.f32.mrf.mxu0
  %v1362 = vadd.f32 0.0, %v1361
  %v1363 = vpop.f32.mrf.mxu0
  %1364 = vdwg.mxu0
  %1365 = vmatpush.bf16.msra.mxu0 0
  %1366 = vmatpush.bf16.msra.mxu0 0
  %1367 = vmatpush.bf16.msra.mxu0 0
  %1368 = vmatpush.bf16.msra.mxu0 0
  %1369 = vmatpush.bf16.msra.mxu0 0
  %1370 = vmatpush.bf16.msra.mxu0 %v1024
  %1371 = vmatpush.bf16.msra.mxu0 %v732
  %1372 = vmatpush.bf16.msra.mxu0 %v668
  %1373 = vmatmul.bf16.gmra.mxu0 %v975
  %v1374 = vpop.f32.mrf.mxu0
  %v1375 = vadd.f32 0.0, %v1374
  %v1376 = vpop.f32.mrf.mxu0
  %1377 = vdwg.mxu0
  %1378 = vmatpush.bf16.msra.mxu0 0
  %1379 = vmatpush.bf16.msra.mxu0 0
  %1380 = vmatpush.bf16.msra.mxu0 0
  %1381 = vmatpush.bf16.msra.mxu0 0
  %1382 = vmatpush.bf16.msra.mxu0 0
  %1383 = vmatpush.bf16.msra.mxu0 %v1027
  %1384 = vmatpush.bf16.msra.mxu0 %v733
  %1385 = vmatpush.bf16.msra.mxu0 %v669
  %1386 = vmatmul.bf16.gmra.mxu0 %v975
  %v1387 = vpop.f32.mrf.mxu0
  %v1388 = vadd.f32 0.0, %v1387
  %v1389 = vpop.f32.mrf.mxu0
  %1390 = vdwg.mxu0
  %1391 = vmatpush.bf16.msra.mxu0 0
  %1392 = vmatpush.bf16.msra.mxu0 0
  %1393 = vmatpush.bf16.msra.mxu0 0
  %1394 = vmatpush.bf16.msra.mxu0 0
  %1395 = vmatpush.bf16.msra.mxu0 0
  %1396 = vmatpush.bf16.msra.mxu0 %v1030
  %1397 = vmatpush.bf16.msra.mxu0 %v734
  %1398 = vmatpush.bf16.msra.mxu0 %v670
  %1399 = vmatmul.bf16.gmra.mxu0 %v975
  %v1400 = vpop.f32.mrf.mxu0
  %v1401 = vadd.f32 0.0, %v1400
  %v1402 = vpop.f32.mrf.mxu0
  %1403 = vdwg.mxu0
  %1404 = vmatpush.bf16.msra.mxu0 0
  %1405 = vmatpush.bf16.msra.mxu0 0
  %1406 = vmatpush.bf16.msra.mxu0 0
  %1407 = vmatpush.bf16.msra.mxu0 0
  %1408 = vmatpush.bf16.msra.mxu0 0
  %1409 = vmatpush.bf16.msra.mxu0 %v1033
  %1410 = vmatpush.bf16.msra.mxu0 %v735
  %1411 = vmatpush.bf16.msra.mxu0 %v671
  %1412 = vmatmul.bf16.gmra.mxu0 %v975
  %v1413 = vpop.f32.mrf.mxu0
  %v1414 = vadd.f32 0.0, %v1413
  %v1415 = vpop.f32.mrf.mxu0
  %1416 = vdwg.mxu0
  %1417 = vmatpush.bf16.msra.mxu0 0
  %1418 = vmatpush.bf16.msra.mxu0 0
  %1419 = vmatpush.bf16.msra.mxu0 0
  %1420 = vmatpush.bf16.msra.mxu0 0
  %1421 = vmatpush.bf16.msra.mxu0 0
  %1422 = vmatpush.bf16.msra.mxu0 %v1036
  %1423 = vmatpush.bf16.msra.mxu0 %v736
  %1424 = vmatpush.bf16.msra.mxu0 %v672
  %1425 = vmatmul.bf16.gmra.mxu0 %v975
  %v1426 = vpop.f32.mrf.mxu0
  %v1427 = vadd.f32 0.0, %v1426
  %v1428 = vpop.f32.mrf.mxu0
  %1429 = vdwg.mxu0
  %1430 = vmatpush.bf16.msra.mxu0 0
  %1431 = vmatpush.bf16.msra.mxu0 0
  %1432 = vmatpush.bf16.msra.mxu0 0
  %1433 = vmatpush.bf16.msra.mxu0 0
  %1434 = vmatpush.bf16.msra.mxu0 0
  %1435 = vmatpush.bf16.msra.mxu0 %v1039
  %1436 = vmatpush.bf16.msra.mxu0 %v737
  %1437 = vmatpush.bf16.msra.mxu0 %v673
  %1438 = vmatmul.bf16.gmra.mxu0 %v975
  %v1439 = vpop.f32.mrf.mxu0
  %v1440 = vadd.f32 0.0, %v1439
  %v1441 = vpop.f32.mrf.mxu0
  %1442 = vdwg.mxu0
  %1443 = vmatpush.bf16.msra.mxu0 0
  %1444 = vmatpush.bf16.msra.mxu0 0
  %1445 = vmatpush.bf16.msra.mxu0 0
  %1446 = vmatpush.bf16.msra.mxu0 0
  %1447 = vmatpush.bf16.msra.mxu0 0
  %1448 = vmatpush.bf16.msra.mxu0 %v1042
  %1449 = vmatpush.bf16.msra.mxu0 %v738
  %1450 = vmatpush.bf16.msra.mxu0 %v674
  %1451 = vmatmul.bf16.gmra.mxu0 %v975
  %v1452 = vpop.f32.mrf.mxu0
  %v1453 = vadd.f32 0.0, %v1452
  %v1454 = vpop.f32.mrf.mxu0
  %1455 = vdwg.mxu0
  %1456 = vmatpush.bf16.msra.mxu0 0
  %1457 = vmatpush.bf16.msra.mxu0 0
  %1458 = vmatpush.bf16.msra.mxu0 0
  %1459 = vmatpush.bf16.msra.mxu0 0
  %1460 = vmatpush.bf16.msra.mxu0 0
  %1461 = vmatpush.bf16.msra.mxu0 %v1045
  %1462 = vmatpush.bf16.msra.mxu0 %v739
  %1463 = vmatpush.bf16.msra.mxu0 %v675
  %1464 = vmatmul.bf16.gmra.mxu0 %v975
  %v1465 = vpop.f32.mrf.mxu0
  %v1466 = vadd.f32 0.0, %v1465
  %v1467 = vpop.f32.mrf.mxu0
  %1468 = vdwg.mxu0
  %1469 = vmatpush.bf16.msra.mxu0 0
  %1470 = vmatpush.bf16.msra.mxu0 0
  %1471 = vmatpush.bf16.msra.mxu0 0
  %1472 = vmatpush.bf16.msra.mxu0 0
  %1473 = vmatpush.bf16.msra.mxu0 0
  %1474 = vmatpush.bf16.msra.mxu0 %v1048
  %1475 = vmatpush.bf16.msra.mxu0 %v740
  %1476 = vmatpush.bf16.msra.mxu0 %v676
  %1477 = vmatmul.bf16.gmra.mxu0 %v975
  %v1478 = vpop.f32.mrf.mxu0
  %v1479 = vadd.f32 0.0, %v1478
  %v1480 = vpop.f32.mrf.mxu0
  %1481 = vdwg.mxu0
  %1482 = vmatpush.bf16.msra.mxu0 0
  %1483 = vmatpush.bf16.msra.mxu0 0
  %1484 = vmatpush.bf16.msra.mxu0 0
  %1485 = vmatpush.bf16.msra.mxu0 0
  %1486 = vmatpush.bf16.msra.mxu0 0
  %1487 = vmatpush.bf16.msra.mxu0 %v1051
  %1488 = vmatpush.bf16.msra.mxu0 %v741
  %1489 = vmatpush.bf16.msra.mxu0 %v677
  %1490 = vmatmul.bf16.gmra.mxu0 %v975
  %v1491 = vpop.f32.mrf.mxu0
  %v1492 = vadd.f32 0.0, %v1491
  %v1493 = vpop.f32.mrf.mxu0
  %1494 = vdwg.mxu0
  %1495 = vmatpush.bf16.msra.mxu0 0
  %1496 = vmatpush.bf16.msra.mxu0 0
  %1497 = vmatpush.bf16.msra.mxu0 0
  %1498 = vmatpush.bf16.msra.mxu0 0
  %1499 = vmatpush.bf16.msra.mxu0 0
  %1500 = vmatpush.bf16.msra.mxu0 %v1054
  %1501 = vmatpush.bf16.msra.mxu0 %v742
  %1502 = vmatpush.bf16.msra.mxu0 %v678
  %1503 = vmatmul.bf16.gmra.mxu0 %v975
  %v1504 = vpop.f32.mrf.mxu0
  %v1505 = vadd.f32 0.0, %v1504
  %v1506 = vpop.f32.mrf.mxu0
  %1507 = vdwg.mxu0
  %1508 = vmatpush.bf16.msra.mxu0 0
  %1509 = vmatpush.bf16.msra.mxu0 0
  %1510 = vmatpush.bf16.msra.mxu0 0
  %1511 = vmatpush.bf16.msra.mxu0 0
  %1512 = vmatpush.bf16.msra.mxu0 0
  %1513 = vmatpush.bf16.msra.mxu0 %v1057
  %1514 = vmatpush.bf16.msra.mxu0 %v743
  %1515 = vmatpush.bf16.msra.mxu0 %v679
  %1516 = vmatmul.bf16.gmra.mxu0 %v975
  %v1517 = vpop.f32.mrf.mxu0
  %v1518 = vadd.f32 0.0, %v1517
  %v1519 = vpop.f32.mrf.mxu0
  %1520 = vdwg.mxu0
  %1521 = vmatpush.bf16.msra.mxu0 0
  %1522 = vmatpush.bf16.msra.mxu0 0
  %1523 = vmatpush.bf16.msra.mxu0 0
  %1524 = vmatpush.bf16.msra.mxu0 0
  %1525 = vmatpush.bf16.msra.mxu0 0
  %1526 = vmatpush.bf16.msra.mxu0 %v1060
  %1527 = vmatpush.bf16.msra.mxu0 %v744
  %1528 = vmatpush.bf16.msra.mxu0 %v680
  %1529 = vmatmul.bf16.gmra.mxu0 %v975
  %v1530 = vpop.f32.mrf.mxu0
  %v1531 = vadd.f32 0.0, %v1530
  %v1532 = vpop.f32.mrf.mxu0
  %1533 = vdwg.mxu0
  %1534 = vmatpush.bf16.msra.mxu0 0
  %1535 = vmatpush.bf16.msra.mxu0 0
  %1536 = vmatpush.bf16.msra.mxu0 0
  %1537 = vmatpush.bf16.msra.mxu0 0
  %1538 = vmatpush.bf16.msra.mxu0 0
  %1539 = vmatpush.bf16.msra.mxu0 %v1063
  %1540 = vmatpush.bf16.msra.mxu0 %v745
  %1541 = vmatpush.bf16.msra.mxu0 %v681
  %1542 = vmatmul.bf16.gmra.mxu0 %v975
  %v1543 = vpop.f32.mrf.mxu0
  %v1544 = vadd.f32 0.0, %v1543
  %v1545 = vpop.f32.mrf.mxu0
  %1546 = vdwg.mxu0
  %1547 = vmatpush.bf16.msra.mxu0 0
  %1548 = vmatpush.bf16.msra.mxu0 0
  %1549 = vmatpush.bf16.msra.mxu0 0
  %1550 = vmatpush.bf16.msra.mxu0 0
  %1551 = vmatpush.bf16.msra.mxu0 0
  %1552 = vmatpush.bf16.msra.mxu0 %v1066
  %1553 = vmatpush.bf16.msra.mxu0 %v746
  %1554 = vmatpush.bf16.msra.mxu0 %v682
  %1555 = vmatmul.bf16.gmra.mxu0 %v975
  %v1556 = vpop.f32.mrf.mxu0
  %v1557 = vadd.f32 0.0, %v1556
  %v1558 = vpop.f32.mrf.mxu0
  %1559 = vdwg.mxu0
  %1560 = vmatpush.bf16.msra.mxu0 0
  %1561 = vmatpush.bf16.msra.mxu0 0
  %1562 = vmatpush.bf16.msra.mxu0 0
  %1563 = vmatpush.bf16.msra.mxu0 0
  %1564 = vmatpush.bf16.msra.mxu0 0
  %1565 = vmatpush.bf16.msra.mxu0 %v1069
  %1566 = vmatpush.bf16.msra.mxu0 %v747
  %1567 = vmatpush.bf16.msra.mxu0 %v683
  %1568 = vmatmul.bf16.gmra.mxu0 %v975
  %v1569 = vpop.f32.mrf.mxu0
  %v1570 = vadd.f32 0.0, %v1569
  %v1571 = vpop.f32.mrf.mxu0
  %1572 = vdwg.mxu0
  %1573 = vmatpush.bf16.msra.mxu0 0
  %1574 = vmatpush.bf16.msra.mxu0 0
  %1575 = vmatpush.bf16.msra.mxu0 0
  %1576 = vmatpush.bf16.msra.mxu0 0
  %1577 = vmatpush.bf16.msra.mxu0 0
  %1578 = vmatpush.bf16.msra.mxu0 %v1072
  %1579 = vmatpush.bf16.msra.mxu0 %v748
  %1580 = vmatpush.bf16.msra.mxu0 %v684
  %1581 = vmatmul.bf16.gmra.mxu0 %v975
  %v1582 = vpop.f32.mrf.mxu0
  %v1583 = vadd.f32 0.0, %v1582
  %v1584 = vpop.f32.mrf.mxu0
  %1585 = vdwg.mxu0
  %1586 = vmatpush.bf16.msra.mxu0 0
  %1587 = vmatpush.bf16.msra.mxu0 0
  %1588 = vmatpush.bf16.msra.mxu0 0
  %1589 = vmatpush.bf16.msra.mxu0 0
  %1590 = vmatpush.bf16.msra.mxu0 0
  %1591 = vmatpush.bf16.msra.mxu0 %v1075
  %1592 = vmatpush.bf16.msra.mxu0 %v749
  %1593 = vmatpush.bf16.msra.mxu0 %v685
  %1594 = vmatmul.bf16.gmra.mxu0 %v975
  %v1595 = vpop.f32.mrf.mxu0
  %v1596 = vadd.f32 0.0, %v1595
  %v1597 = vpop.f32.mrf.mxu0
  %1598 = vdwg.mxu0
  %1599 = vmatpush.bf16.msra.mxu0 0
  %1600 = vmatpush.bf16.msra.mxu0 0
  %1601 = vmatpush.bf16.msra.mxu0 0
  %1602 = vmatpush.bf16.msra.mxu0 0
  %1603 = vmatpush.bf16.msra.mxu0 0
  %1604 = vmatpush.bf16.msra.mxu0 %v1078
  %1605 = vmatpush.bf16.msra.mxu0 %v750
  %1606 = vmatpush.bf16.msra.mxu0 %v686
  %1607 = vmatmul.bf16.gmra.mxu0 %v975
  %v1608 = vpop.f32.mrf.mxu0
  %v1609 = vadd.f32 0.0, %v1608
  %v1610 = vpop.f32.mrf.mxu0
  %1611 = vdwg.mxu0
  %1612 = vmatpush.bf16.msra.mxu0 0
  %1613 = vmatpush.bf16.msra.mxu0 0
  %1614 = vmatpush.bf16.msra.mxu0 0
  %1615 = vmatpush.bf16.msra.mxu0 0
  %1616 = vmatpush.bf16.msra.mxu0 0
  %1617 = vmatpush.bf16.msra.mxu0 %v1081
  %1618 = vmatpush.bf16.msra.mxu0 %v751
  %1619 = vmatpush.bf16.msra.mxu0 %v687
  %1620 = vmatmul.bf16.gmra.mxu0 %v975
  %v1621 = vpop.f32.mrf.mxu0
  %v1622 = vadd.f32 0.0, %v1621
  %v1623 = vpop.f32.mrf.mxu0
  %1624 = vdwg.mxu0
  %1625 = vmatpush.bf16.msra.mxu0 0
  %1626 = vmatpush.bf16.msra.mxu0 0
  %1627 = vmatpush.bf16.msra.mxu0 0
  %1628 = vmatpush.bf16.msra.mxu0 0
  %1629 = vmatpush.bf16.msra.mxu0 0
  %1630 = vmatpush.bf16.msra.mxu0 %v1084
  %1631 = vmatpush.bf16.msra.mxu0 %v752
  %1632 = vmatpush.bf16.msra.mxu0 %v688
  %1633 = vmatmul.bf16.gmra.mxu0 %v975
  %v1634 = vpop.f32.mrf.mxu0
  %v1635 = vadd.f32 0.0, %v1634
  %v1636 = vpop.f32.mrf.mxu0
  %1637 = vdwg.mxu0
  %1638 = vmatpush.bf16.msra.mxu0 0
  %1639 = vmatpush.bf16.msra.mxu0 0
  %1640 = vmatpush.bf16.msra.mxu0 0
  %1641 = vmatpush.bf16.msra.mxu0 0
  %1642 = vmatpush.bf16.msra.mxu0 0
  %1643 = vmatpush.bf16.msra.mxu0 %v1087
  %1644 = vmatpush.bf16.msra.mxu0 %v753
  %1645 = vmatpush.bf16.msra.mxu0 %v689
  %1646 = vmatmul.bf16.gmra.mxu0 %v975
  %v1647 = vpop.f32.mrf.mxu0
  %v1648 = vadd.f32 0.0, %v1647
  %v1649 = vpop.f32.mrf.mxu0
  %1650 = vdwg.mxu0
  %1651 = vmatpush.bf16.msra.mxu0 0
  %1652 = vmatpush.bf16.msra.mxu0 0
  %1653 = vmatpush.bf16.msra.mxu0 0
  %1654 = vmatpush.bf16.msra.mxu0 0
  %1655 = vmatpush.bf16.msra.mxu0 0
  %1656 = vmatpush.bf16.msra.mxu0 %v1090
  %1657 = vmatpush.bf16.msra.mxu0 %v754
  %1658 = vmatpush.bf16.msra.mxu0 %v690
  %1659 = vmatmul.bf16.gmra.mxu0 %v975
  %v1660 = vpop.f32.mrf.mxu0
  %v1661 = vadd.f32 0.0, %v1660
  %v1662 = vpop.f32.mrf.mxu0
  %1663 = vdwg.mxu0
  %1664 = vmatpush.bf16.msra.mxu0 0
  %1665 = vmatpush.bf16.msra.mxu0 0
  %1666 = vmatpush.bf16.msra.mxu0 0
  %1667 = vmatpush.bf16.msra.mxu0 0
  %1668 = vmatpush.bf16.msra.mxu0 0
  %1669 = vmatpush.bf16.msra.mxu0 %v1093
  %1670 = vmatpush.bf16.msra.mxu0 %v755
  %1671 = vmatpush.bf16.msra.mxu0 %v691
  %1672 = vmatmul.bf16.gmra.mxu0 %v975
  %v1673 = vpop.f32.mrf.mxu0
  %v1674 = vadd.f32 0.0, %v1673
  %v1675 = vpop.f32.mrf.mxu0
  %1676 = vdwg.mxu0
  %1677 = vmatpush.bf16.msra.mxu0 0
  %1678 = vmatpush.bf16.msra.mxu0 0
  %1679 = vmatpush.bf16.msra.mxu0 0
  %1680 = vmatpush.bf16.msra.mxu0 0
  %1681 = vmatpush.bf16.msra.mxu0 0
  %1682 = vmatpush.bf16.msra.mxu0 %v1096
  %1683 = vmatpush.bf16.msra.mxu0 %v756
  %1684 = vmatpush.bf16.msra.mxu0 %v692
  %1685 = vmatmul.bf16.gmra.mxu0 %v975
  %v1686 = vpop.f32.mrf.mxu0
  %v1687 = vadd.f32 0.0, %v1686
  %v1688 = vpop.f32.mrf.mxu0
  %1689 = vdwg.mxu0
  %1690 = vmatpush.bf16.msra.mxu0 0
  %1691 = vmatpush.bf16.msra.mxu0 0
  %1692 = vmatpush.bf16.msra.mxu0 0
  %1693 = vmatpush.bf16.msra.mxu0 0
  %1694 = vmatpush.bf16.msra.mxu0 0
  %1695 = vmatpush.bf16.msra.mxu0 %v1099
  %1696 = vmatpush.bf16.msra.mxu0 %v757
  %1697 = vmatpush.bf16.msra.mxu0 %v693
  %1698 = vmatmul.bf16.gmra.mxu0 %v975
  %v1699 = vpop.f32.mrf.mxu0
  %v1700 = vadd.f32 0.0, %v1699
  %v1701 = vpop.f32.mrf.mxu0
  %1702 = vdwg.mxu0
  %1703 = vmatpush.bf16.msra.mxu0 0
  %1704 = vmatpush.bf16.msra.mxu0 0
  %1705 = vmatpush.bf16.msra.mxu0 0
  %1706 = vmatpush.bf16.msra.mxu0 0
  %1707 = vmatpush.bf16.msra.mxu0 0
  %1708 = vmatpush.bf16.msra.mxu0 %v1102
  %1709 = vmatpush.bf16.msra.mxu0 %v758
  %1710 = vmatpush.bf16.msra.mxu0 %v694
  %1711 = vmatmul.bf16.gmra.mxu0 %v975
  %v1712 = vpop.f32.mrf.mxu0
  %v1713 = vadd.f32 0.0, %v1712
  %v1714 = vpop.f32.mrf.mxu0
  %1715 = vdwg.mxu0
  %1716 = vmatpush.bf16.msra.mxu0 0
  %1717 = vmatpush.bf16.msra.mxu0 0
  %1718 = vmatpush.bf16.msra.mxu0 0
  %1719 = vmatpush.bf16.msra.mxu0 0
  %1720 = vmatpush.bf16.msra.mxu0 0
  %1721 = vmatpush.bf16.msra.mxu0 %v1105
  %1722 = vmatpush.bf16.msra.mxu0 %v759
  %1723 = vmatpush.bf16.msra.mxu0 %v695
  %1724 = vmatmul.bf16.gmra.mxu0 %v975
  %v1725 = vpop.f32.mrf.mxu0
  %v1726 = vadd.f32 0.0, %v1725
  %v1727 = vpop.f32.mrf.mxu0
  %1728 = vdwg.mxu0
  %1729 = vmatpush.bf16.msra.mxu0 0
  %1730 = vmatpush.bf16.msra.mxu0 0
  %1731 = vmatpush.bf16.msra.mxu0 0
  %1732 = vmatpush.bf16.msra.mxu0 0
  %1733 = vmatpush.bf16.msra.mxu0 0
  %1734 = vmatpush.bf16.msra.mxu0 %v1108
  %1735 = vmatpush.bf16.msra.mxu0 %v760
  %1736 = vmatpush.bf16.msra.mxu0 %v696
  %1737 = vmatmul.bf16.gmra.mxu0 %v975
  %v1738 = vpop.f32.mrf.mxu0
  %v1739 = vadd.f32 0.0, %v1738
  %v1740 = vpop.f32.mrf.mxu0
  %1741 = vdwg.mxu0
  %1742 = vmatpush.bf16.msra.mxu0 0
  %1743 = vmatpush.bf16.msra.mxu0 0
  %1744 = vmatpush.bf16.msra.mxu0 0
  %1745 = vmatpush.bf16.msra.mxu0 0
  %1746 = vmatpush.bf16.msra.mxu0 0
  %1747 = vmatpush.bf16.msra.mxu0 %v1111
  %1748 = vmatpush.bf16.msra.mxu0 %v761
  %1749 = vmatpush.bf16.msra.mxu0 %v697
  %1750 = vmatmul.bf16.gmra.mxu0 %v975
  %v1751 = vpop.f32.mrf.mxu0
  %v1752 = vadd.f32 0.0, %v1751
  %v1753 = vpop.f32.mrf.mxu0
  %1754 = vdwg.mxu0
  %1755 = vmatpush.bf16.msra.mxu0 0
  %1756 = vmatpush.bf16.msra.mxu0 0
  %1757 = vmatpush.bf16.msra.mxu0 0
  %1758 = vmatpush.bf16.msra.mxu0 0
  %1759 = vmatpush.bf16.msra.mxu0 0
  %1760 = vmatpush.bf16.msra.mxu0 %v1114
  %1761 = vmatpush.bf16.msra.mxu0 %v762
  %1762 = vmatpush.bf16.msra.mxu0 %v698
  %1763 = vmatmul.bf16.gmra.mxu0 %v975
  %v1764 = vpop.f32.mrf.mxu0
  %v1765 = vadd.f32 0.0, %v1764
  %v1766 = vpop.f32.mrf.mxu0
  %1767 = vdwg.mxu0
  %1768 = vmatpush.bf16.msra.mxu0 0
  %1769 = vmatpush.bf16.msra.mxu0 0
  %1770 = vmatpush.bf16.msra.mxu0 0
  %1771 = vmatpush.bf16.msra.mxu0 0
  %1772 = vmatpush.bf16.msra.mxu0 0
  %1773 = vmatpush.bf16.msra.mxu0 %v1117
  %1774 = vmatpush.bf16.msra.mxu0 %v763
  %1775 = vmatpush.bf16.msra.mxu0 %v699
  %1776 = vmatmul.bf16.gmra.mxu0 %v975
  %v1777 = vpop.f32.mrf.mxu0
  %v1778 = vadd.f32 0.0, %v1777
  %v1779 = vpop.f32.mrf.mxu0
  %1780 = vdwg.mxu0
  %1781 = vmatpush.bf16.msra.mxu0 0
  %1782 = vmatpush.bf16.msra.mxu0 0
  %1783 = vmatpush.bf16.msra.mxu0 0
  %1784 = vmatpush.bf16.msra.mxu0 0
  %1785 = vmatpush.bf16.msra.mxu0 0
  %1786 = vmatpush.bf16.msra.mxu0 %v1120
  %1787 = vmatpush.bf16.msra.mxu0 %v764
  %1788 = vmatpush.bf16.msra.mxu0 %v700
  %1789 = vmatmul.bf16.gmra.mxu0 %v975
  %v1790 = vpop.f32.mrf.mxu0
  %v1791 = vadd.f32 0.0, %v1790
  %v1792 = vpop.f32.mrf.mxu0
  %1793 = vdwg.mxu0
  %1794 = vmatpush.bf16.msra.mxu0 0
  %1795 = vmatpush.bf16.msra.mxu0 0
  %1796 = vmatpush.bf16.msra.mxu0 0
  %1797 = vmatpush.bf16.msra.mxu0 0
  %1798 = vmatpush.bf16.msra.mxu0 0
  %1799 = vmatpush.bf16.msra.mxu0 %v1123
  %1800 = vmatpush.bf16.msra.mxu0 %v765
  %1801 = vmatpush.bf16.msra.mxu0 %v701
  %1802 = vmatmul.bf16.gmra.mxu0 %v975
  %v1803 = vpop.f32.mrf.mxu0
  %v1804 = vadd.f32 0.0, %v1803
  %v1805 = vpop.f32.mrf.mxu0
  %1806 = vdwg.mxu0
  %1807 = vmatpush.bf16.msra.mxu0 0
  %1808 = vmatpush.bf16.msra.mxu0 0
  %1809 = vmatpush.bf16.msra.mxu0 0
  %1810 = vmatpush.bf16.msra.mxu0 0
  %1811 = vmatpush.bf16.msra.mxu0 0
  %1812 = vmatpush.bf16.msra.mxu0 %v1126
  %1813 = vmatpush.bf16.msra.mxu0 %v766
  %1814 = vmatpush.bf16.msra.mxu0 %v702
  %1815 = vmatmul.bf16.gmra.mxu0 %v975
  %v1816 = vpop.f32.mrf.mxu0
  %v1817 = vadd.f32 0.0, %v1816
  %v1818 = vpop.f32.mrf.mxu0
  %1819 = vdwg.mxu0
  %1820 = vmatpush.bf16.msra.mxu0 0
  %1821 = vmatpush.bf16.msra.mxu0 0
  %1822 = vmatpush.bf16.msra.mxu0 0
  %1823 = vmatpush.bf16.msra.mxu0 0
  %1824 = vmatpush.bf16.msra.mxu0 0
  %1825 = vmatpush.bf16.msra.mxu0 %v1129
  %1826 = vmatpush.bf16.msra.mxu0 %v767
  %1827 = vmatpush.bf16.msra.mxu0 %v703
  %1828 = vmatmul.bf16.gmra.mxu0 %v975
  %v1829 = vpop.f32.mrf.mxu0
  %v1830 = vadd.f32 0.0, %v1829
  %v1831 = vpop.f32.mrf.mxu0
  %1832 = vdwg.mxu0
  %1833 = vmatpush.bf16.msra.mxu0 0
  %1834 = vmatpush.bf16.msra.mxu0 0
  %1835 = vmatpush.bf16.msra.mxu0 0
  %1836 = vmatpush.bf16.msra.mxu0 0
  %1837 = vmatpush.bf16.msra.mxu0 0
  %1838 = vmatpush.bf16.msra.mxu0 %v1132
  %1839 = vmatpush.bf16.msra.mxu0 %v768
  %1840 = vmatpush.bf16.msra.mxu0 %v704
  %1841 = vmatmul.bf16.gmra.mxu0 %v975
  %v1842 = vpop.f32.mrf.mxu0
  %v1843 = vadd.f32 0.0, %v1842
  %v1844 = vpop.f32.mrf.mxu0
  %1845 = vdwg.mxu0
  %1846 = vmatpush.bf16.msra.mxu0 0
  %1847 = vmatpush.bf16.msra.mxu0 0
  %1848 = vmatpush.bf16.msra.mxu0 0
  %1849 = vmatpush.bf16.msra.mxu0 0
  %1850 = vmatpush.bf16.msra.mxu0 0
  %1851 = vmatpush.bf16.msra.mxu0 %v1135
  %1852 = vmatpush.bf16.msra.mxu0 %v769
  %1853 = vmatpush.bf16.msra.mxu0 %v705
  %1854 = vmatmul.bf16.gmra.mxu0 %v975
  %v1855 = vpop.f32.mrf.mxu0
  %v1856 = vadd.f32 0.0, %v1855
  %v1857 = vpop.f32.mrf.mxu0
  %1858 = vdwg.mxu0
  %1859 = vmatpush.bf16.msra.mxu0 0
  %1860 = vmatpush.bf16.msra.mxu0 0
  %1861 = vmatpush.bf16.msra.mxu0 0
  %1862 = vmatpush.bf16.msra.mxu0 0
  %1863 = vmatpush.bf16.msra.mxu0 0
  %1864 = vmatpush.bf16.msra.mxu0 %v1138
  %1865 = vmatpush.bf16.msra.mxu0 %v770
  %1866 = vmatpush.bf16.msra.mxu0 %v706
  %1867 = vmatmul.bf16.gmra.mxu0 %v975
  %v1868 = vpop.f32.mrf.mxu0
  %v1869 = vadd.f32 0.0, %v1868
  %v1870 = vpop.f32.mrf.mxu0
  %1871 = vdwg.mxu0
  %1872 = vmatpush.bf16.msra.mxu0 0
  %1873 = vmatpush.bf16.msra.mxu0 0
  %1874 = vmatpush.bf16.msra.mxu0 0
  %1875 = vmatpush.bf16.msra.mxu0 0
  %1876 = vmatpush.bf16.msra.mxu0 0
  %1877 = vmatpush.bf16.msra.mxu0 %v1141
  %1878 = vmatpush.bf16.msra.mxu0 %v771
  %1879 = vmatpush.bf16.msra.mxu0 %v707
  %1880 = vmatmul.bf16.gmra.mxu0 %v975
  %v1881 = vpop.f32.mrf.mxu0
  %v1882 = vadd.f32 0.0, %v1881
  %v1883 = vpop.f32.mrf.mxu0
  %1884 = vdwg.mxu0
  %1885 = vmatpush.bf16.msra.mxu0 0
  %1886 = vmatpush.bf16.msra.mxu0 0
  %1887 = vmatpush.bf16.msra.mxu0 0
  %1888 = vmatpush.bf16.msra.mxu0 0
  %1889 = vmatpush.bf16.msra.mxu0 0
  %1890 = vmatpush.bf16.msra.mxu0 %v1144
  %1891 = vmatpush.bf16.msra.mxu0 %v772
  %1892 = vmatpush.bf16.msra.mxu0 %v708
  %1893 = vmatmul.bf16.gmra.mxu0 %v975
  %v1894 = vpop.f32.mrf.mxu0
  %v1895 = vadd.f32 0.0, %v1894
  %v1896 = vpop.f32.mrf.mxu0
  %1897 = vdwg.mxu0
  %1898 = vmatpush.bf16.msra.mxu0 0
  %1899 = vmatpush.bf16.msra.mxu0 0
  %1900 = vmatpush.bf16.msra.mxu0 0
  %1901 = vmatpush.bf16.msra.mxu0 0
  %1902 = vmatpush.bf16.msra.mxu0 0
  %1903 = vmatpush.bf16.msra.mxu0 %v1147
  %1904 = vmatpush.bf16.msra.mxu0 %v773
  %1905 = vmatpush.bf16.msra.mxu0 %v709
  %1906 = vmatmul.bf16.gmra.mxu0 %v975
  %v1907 = vpop.f32.mrf.mxu0
  %v1908 = vadd.f32 0.0, %v1907
  %v1909 = vpop.f32.mrf.mxu0
  %1910 = vdwg.mxu0
  %1911 = vmatpush.bf16.msra.mxu0 0
  %1912 = vmatpush.bf16.msra.mxu0 0
  %1913 = vmatpush.bf16.msra.mxu0 0
  %1914 = vmatpush.bf16.msra.mxu0 0
  %1915 = vmatpush.bf16.msra.mxu0 0
  %1916 = vmatpush.bf16.msra.mxu0 %v1150
  %1917 = vmatpush.bf16.msra.mxu0 %v774
  %1918 = vmatpush.bf16.msra.mxu0 %v710
  %1919 = vmatmul.bf16.gmra.mxu0 %v975
  %v1920 = vpop.f32.mrf.mxu0
  %v1921 = vadd.f32 0.0, %v1920
  %v1922 = vpop.f32.mrf.mxu0
  %1923 = vdwg.mxu0
  %1924 = vmatpush.bf16.msra.mxu0 0
  %1925 = vmatpush.bf16.msra.mxu0 0
  %1926 = vmatpush.bf16.msra.mxu0 0
  %1927 = vmatpush.bf16.msra.mxu0 0
  %1928 = vmatpush.bf16.msra.mxu0 0
  %1929 = vmatpush.bf16.msra.mxu0 %v1153
  %1930 = vmatpush.bf16.msra.mxu0 %v775
  %1931 = vmatpush.bf16.msra.mxu0 %v711
  %1932 = vmatmul.bf16.gmra.mxu0 %v975
  %v1933 = vpop.f32.mrf.mxu0
  %v1934 = vadd.f32 0.0, %v1933
  %v1935 = vpop.f32.mrf.mxu0
  %1936 = vdwg.mxu0
  %1937 = vmatpush.bf16.msra.mxu0 0
  %1938 = vmatpush.bf16.msra.mxu0 0
  %1939 = vmatpush.bf16.msra.mxu0 0
  %1940 = vmatpush.bf16.msra.mxu0 0
  %1941 = vmatpush.bf16.msra.mxu0 0
  %1942 = vmatpush.bf16.msra.mxu0 %v1156
  %1943 = vmatpush.bf16.msra.mxu0 %v776
  %1944 = vmatpush.bf16.msra.mxu0 %v712
  %1945 = vmatmul.bf16.gmra.mxu0 %v975
  %v1946 = vpop.f32.mrf.mxu0
  %v1947 = vadd.f32 0.0, %v1946
  %v1948 = vpop.f32.mrf.mxu0
  %1949 = vdwg.mxu0
  %1950 = vmatpush.bf16.msra.mxu0 0
  %1951 = vmatpush.bf16.msra.mxu0 0
  %1952 = vmatpush.bf16.msra.mxu0 0
  %1953 = vmatpush.bf16.msra.mxu0 0
  %1954 = vmatpush.bf16.msra.mxu0 0
  %1955 = vmatpush.bf16.msra.mxu0 %v1159
  %1956 = vmatpush.bf16.msra.mxu0 %v777
  %1957 = vmatpush.bf16.msra.mxu0 %v713
  %1958 = vmatmul.bf16.gmra.mxu0 %v975
  %v1959 = vpop.f32.mrf.mxu0
  %v1960 = vadd.f32 0.0, %v1959
  %v1961 = vpop.f32.mrf.mxu0
  %1962 = vdwg.mxu0
  %1963 = vmatpush.bf16.msra.mxu0 0
  %1964 = vmatpush.bf16.msra.mxu0 0
  %1965 = vmatpush.bf16.msra.mxu0 0
  %1966 = vmatpush.bf16.msra.mxu0 0
  %1967 = vmatpush.bf16.msra.mxu0 0
  %1968 = vmatpush.bf16.msra.mxu0 %v1162
  %1969 = vmatpush.bf16.msra.mxu0 %v778
  %1970 = vmatpush.bf16.msra.mxu0 %v714
  %1971 = vmatmul.bf16.gmra.mxu0 %v975
  %v1972 = vpop.f32.mrf.mxu0
  %v1973 = vadd.f32 0.0, %v1972
  %v1974 = vpop.f32.mrf.mxu0
  %1975 = vdwg.mxu0
  %1976 = vmatpush.bf16.msra.mxu0 0
  %1977 = vmatpush.bf16.msra.mxu0 0
  %1978 = vmatpush.bf16.msra.mxu0 0
  %1979 = vmatpush.bf16.msra.mxu0 0
  %1980 = vmatpush.bf16.msra.mxu0 0
  %1981 = vmatpush.bf16.msra.mxu0 %v1165
  %1982 = vmatpush.bf16.msra.mxu0 %v779
  %1983 = vmatpush.bf16.msra.mxu0 %v715
  %1984 = vmatmul.bf16.gmra.mxu0 %v975
  %v1985 = vpop.f32.mrf.mxu0
  %v1986 = vadd.f32 0.0, %v1985
  %v1987 = vpop.f32.mrf.mxu0
  %1988 = vdwg.mxu0
  %1989 = vmatpush.bf16.msra.mxu0 0
  %1990 = vmatpush.bf16.msra.mxu0 0
  %1991 = vmatpush.bf16.msra.mxu0 0
  %1992 = vmatpush.bf16.msra.mxu0 0
  %1993 = vmatpush.bf16.msra.mxu0 0
  %1994 = vmatpush.bf16.msra.mxu0 %v1168
  %1995 = vmatpush.bf16.msra.mxu0 %v780
  %1996 = vmatpush.bf16.msra.mxu0 %v716
  %1997 = vmatmul.bf16.gmra.mxu0 %v975
  %v1998 = vpop.f32.mrf.mxu0
  %v1999 = vadd.f32 0.0, %v1998
  %v2000 = vpop.f32.mrf.mxu0
  %2001 = vdwg.mxu0
  %vm2002 = vcmask 1043456
  %v2003 = vsel %vm2002, %v1180, 0.0
  %v2004 = vsel %vm2002, %v1193, 0.0
  %v2005 = vadd.f32 %v2003, %v2004
  %v2006 = vsel %vm2002, %v1206, 0.0
  %v2007 = vadd.f32 %v2005, %v2006
  %v2008 = vsel %vm2002, %v1219, 0.0
  %v2009 = vadd.f32 %v2007, %v2008
  %v2010 = vsel %vm2002, %v1232, 0.0
  %v2011 = vadd.f32 %v2009, %v2010
  %v2012 = vsel %vm2002, %v1245, 0.0
  %v2013 = vadd.f32 %v2011, %v2012
  %v2014 = vsel %vm2002, %v1258, 0.0
  %v2015 = vadd.f32 %v2013, %v2014
  %v2016 = vsel %vm2002, %v1271, 0.0
  %v2017 = vadd.f32 %v2015, %v2016
  %v2018 = vsel %vm2002, %v1284, 0.0
  %v2019 = vadd.f32 %v2017, %v2018
  %v2020 = vsel %vm2002, %v1297, 0.0
  %v2021 = vadd.f32 %v2019, %v2020
  %v2022 = vsel %vm2002, %v1310, 0.0
  %v2023 = vadd.f32 %v2021, %v2022
  %v2024 = vsel %vm2002, %v1323, 0.0
  %v2025 = vadd.f32 %v2023, %v2024
  %v2026 = vsel %vm2002, %v1336, 0.0
  %v2027 = vadd.f32 %v2025, %v2026
  %v2028 = vsel %vm2002, %v1349, 0.0
  %v2029 = vadd.f32 %v2027, %v2028
  %v2030 = vsel %vm2002, %v1362, 0.0
  %v2031 = vadd.f32 %v2029, %v2030
  %v2032 = vsel %vm2002, %v1375, 0.0
  %v2033 = vadd.f32 %v2031, %v2032
  %v2034 = vsel %vm2002, %v1388, 0.0
  %v2035 = vadd.f32 %v2033, %v2034
  %v2036 = vsel %vm2002, %v1401, 0.0
  %v2037 = vadd.f32 %v2035, %v2036
  %v2038 = vsel %vm2002, %v1414, 0.0
  %v2039 = vadd.f32 %v2037, %v2038
  %v2040 = vsel %vm2002, %v1427, 0.0
  %v2041 = vadd.f32 %v2039, %v2040
  %v2042 = vsel %vm2002, %v1440, 0.0
  %v2043 = vadd.f32 %v2041, %v2042
  %v2044 = vsel %vm2002, %v1453, 0.0
  %v2045 = vadd.f32 %v2043, %v2044
  %v2046 = vsel %vm2002, %v1466, 0.0
  %v2047 = vadd.f32 %v2045, %v2046
  %v2048 = vsel %vm2002, %v1479, 0.0
  %v2049 = vadd.f32 %v2047, %v2048
  %v2050 = vsel %vm2002, %v1492, 0.0
  %v2051 = vadd.f32 %v2049, %v2050
  %v2052 = vsel %vm2002, %v1505, 0.0
  %v2053 = vadd.f32 %v2051, %v2052
  %v2054 = vsel %vm2002, %v1518, 0.0
  %v2055 = vadd.f32 %v2053, %v2054
  %v2056 = vsel %vm2002, %v1531, 0.0
  %v2057 = vadd.f32 %v2055, %v2056
  %v2058 = vsel %vm2002, %v1544, 0.0
  %v2059 = vadd.f32 %v2057, %v2058
  %v2060 = vsel %vm2002, %v1557, 0.0
  %v2061 = vadd.f32 %v2059, %v2060
  %v2062 = vsel %vm2002, %v1570, 0.0
  %v2063 = vadd.f32 %v2061, %v2062
  %v2064 = vsel %vm2002, %v1583, 0.0
  %v2065 = vadd.f32 %v2063, %v2064
  %v2066 = vsel %vm2002, %v1596, 0.0
  %v2067 = vadd.f32 %v2065, %v2066
  %v2068 = vsel %vm2002, %v1609, 0.0
  %v2069 = vadd.f32 %v2067, %v2068
  %v2070 = vsel %vm2002, %v1622, 0.0
  %v2071 = vadd.f32 %v2069, %v2070
  %v2072 = vsel %vm2002, %v1635, 0.0
  %v2073 = vadd.f32 %v2071, %v2072
  %v2074 = vsel %vm2002, %v1648, 0.0
  %v2075 = vadd.f32 %v2073, %v2074
  %v2076 = vsel %vm2002, %v1661, 0.0
  %v2077 = vadd.f32 %v2075, %v2076
  %v2078 = vsel %vm2002, %v1674, 0.0
  %v2079 = vadd.f32 %v2077, %v2078
  %v2080 = vsel %vm2002, %v1687, 0.0
  %v2081 = vadd.f32 %v2079, %v2080
  %v2082 = vsel %vm2002, %v1700, 0.0
  %v2083 = vadd.f32 %v2081, %v2082
  %v2084 = vsel %vm2002, %v1713, 0.0
  %v2085 = vadd.f32 %v2083, %v2084
  %v2086 = vsel %vm2002, %v1726, 0.0
  %v2087 = vadd.f32 %v2085, %v2086
  %v2088 = vsel %vm2002, %v1739, 0.0
  %v2089 = vadd.f32 %v2087, %v2088
  %v2090 = vsel %vm2002, %v1752, 0.0
  %v2091 = vadd.f32 %v2089, %v2090
  %v2092 = vsel %vm2002, %v1765, 0.0
  %v2093 = vadd.f32 %v2091, %v2092
  %v2094 = vsel %vm2002, %v1778, 0.0
  %v2095 = vadd.f32 %v2093, %v2094
  %v2096 = vsel %vm2002, %v1791, 0.0
  %v2097 = vadd.f32 %v2095, %v2096
  %v2098 = vsel %vm2002, %v1804, 0.0
  %v2099 = vadd.f32 %v2097, %v2098
  %v2100 = vsel %vm2002, %v1817, 0.0
  %v2101 = vadd.f32 %v2099, %v2100
  %v2102 = vsel %vm2002, %v1830, 0.0
  %v2103 = vadd.f32 %v2101, %v2102
  %v2104 = vsel %vm2002, %v1843, 0.0
  %v2105 = vadd.f32 %v2103, %v2104
  %v2106 = vsel %vm2002, %v1856, 0.0
  %v2107 = vadd.f32 %v2105, %v2106
  %v2108 = vsel %vm2002, %v1869, 0.0
  %v2109 = vadd.f32 %v2107, %v2108
  %v2110 = vsel %vm2002, %v1882, 0.0
  %v2111 = vadd.f32 %v2109, %v2110
  %v2112 = vsel %vm2002, %v1895, 0.0
  %v2113 = vadd.f32 %v2111, %v2112
  %v2114 = vsel %vm2002, %v1908, 0.0
  %v2115 = vadd.f32 %v2113, %v2114
  %v2116 = vsel %vm2002, %v1921, 0.0
  %v2117 = vadd.f32 %v2115, %v2116
  %v2118 = vsel %vm2002, %v1934, 0.0
  %v2119 = vadd.f32 %v2117, %v2118
  %v2120 = vsel %vm2002, %v1947, 0.0
  %v2121 = vadd.f32 %v2119, %v2120
  %v2122 = vsel %vm2002, %v1960, 0.0
  %v2123 = vadd.f32 %v2121, %v2122
  %v2124 = vsel %vm2002, %v1973, 0.0
  %v2125 = vadd.f32 %v2123, %v2124
  %v2126 = vsel %vm2002, %v1986, 0.0
  %v2127 = vadd.f32 %v2125, %v2126
  %v2128 = vsel %vm2002, %v1999, 0.0
  %v2129 = vadd.f32 %v2127, %v2128
  %2130 = vadd.xlane.f32.xlu0 %v2129
  %v2131 = vpop.xlane.xlu0 %2130
  %v2132 = vmul.f32 %v2131, 0.00012207031
  %v2133 = vmul.f32 %v1180, %v1180
  %v2134 = vmul.f32 %v1193, %v1193
  %v2135 = vmul.f32 %v1206, %v1206
  %v2136 = vmul.f32 %v1219, %v1219
  %v2137 = vmul.f32 %v1232, %v1232
  %v2138 = vmul.f32 %v1245, %v1245
  %v2139 = vmul.f32 %v1258, %v1258
  %v2140 = vmul.f32 %v1271, %v1271
  %v2141 = vmul.f32 %v1284, %v1284
  %v2142 = vmul.f32 %v1297, %v1297
  %v2143 = vmul.f32 %v1310, %v1310
  %v2144 = vmul.f32 %v1323, %v1323
  %v2145 = vmul.f32 %v1336, %v1336
  %v2146 = vmul.f32 %v1349, %v1349
  %v2147 = vmul.f32 %v1362, %v1362
  %v2148 = vmul.f32 %v1375, %v1375
  %v2149 = vmul.f32 %v1388, %v1388
  %v2150 = vmul.f32 %v1401, %v1401
  %v2151 = vmul.f32 %v1414, %v1414
  %v2152 = vmul.f32 %v1427, %v1427
  %v2153 = vmul.f32 %v1440, %v1440
  %v2154 = vmul.f32 %v1453, %v1453
  %v2155 = vmul.f32 %v1466, %v1466
  %v2156 = vmul.f32 %v1479, %v1479
  %v2157 = vmul.f32 %v1492, %v1492
  %v2158 = vmul.f32 %v1505, %v1505
  %v2159 = vmul.f32 %v1518, %v1518
  %v2160 = vmul.f32 %v1531, %v1531
  %v2161 = vmul.f32 %v1544, %v1544
  %v2162 = vmul.f32 %v1557, %v1557
  %v2163 = vmul.f32 %v1570, %v1570
  %v2164 = vmul.f32 %v1583, %v1583
  %v2165 = vmul.f32 %v1596, %v1596
  %v2166 = vmul.f32 %v1609, %v1609
  %v2167 = vmul.f32 %v1622, %v1622
  %v2168 = vmul.f32 %v1635, %v1635
  %v2169 = vmul.f32 %v1648, %v1648
  %v2170 = vmul.f32 %v1661, %v1661
  %v2171 = vmul.f32 %v1674, %v1674
  %v2172 = vmul.f32 %v1687, %v1687
  %v2173 = vmul.f32 %v1700, %v1700
  %v2174 = vmul.f32 %v1713, %v1713
  %v2175 = vmul.f32 %v1726, %v1726
  %v2176 = vmul.f32 %v1739, %v1739
  %v2177 = vmul.f32 %v1752, %v1752
  %v2178 = vmul.f32 %v1765, %v1765
  %v2179 = vmul.f32 %v1778, %v1778
  %v2180 = vmul.f32 %v1791, %v1791
  %v2181 = vmul.f32 %v1804, %v1804
  %v2182 = vmul.f32 %v1817, %v1817
  %v2183 = vmul.f32 %v1830, %v1830
  %v2184 = vmul.f32 %v1843, %v1843
  %v2185 = vmul.f32 %v1856, %v1856
  %v2186 = vmul.f32 %v1869, %v1869
  %v2187 = vmul.f32 %v1882, %v1882
  %v2188 = vmul.f32 %v1895, %v1895
  %v2189 = vmul.f32 %v1908, %v1908
  %v2190 = vmul.f32 %v1921, %v1921
  %v2191 = vmul.f32 %v1934, %v1934
  %v2192 = vmul.f32 %v1947, %v1947
  %v2193 = vmul.f32 %v1960, %v1960
  %v2194 = vmul.f32 %v1973, %v1973
  %v2195 = vmul.f32 %v1986, %v1986
  %v2196 = vmul.f32 %v1999, %v1999
  %v2197 = vsel %vm2002, %v2133, 0.0
  %v2198 = vsel %vm2002, %v2134, 0.0
  %v2199 = vadd.f32 %v2197, %v2198
  %v2200 = vsel %vm2002, %v2135, 0.0
  %v2201 = vadd.f32 %v2199, %v2200
  %v2202 = vsel %vm2002, %v2136, 0.0
  %v2203 = vadd.f32 %v2201, %v2202
  %v2204 = vsel %vm2002, %v2137, 0.0
  %v2205 = vadd.f32 %v2203, %v2204
  %v2206 = vsel %vm2002, %v2138, 0.0
  %v2207 = vadd.f32 %v2205, %v2206
  %v2208 = vsel %vm2002, %v2139, 0.0
  %v2209 = vadd.f32 %v2207, %v2208
  %v2210 = vsel %vm2002, %v2140, 0.0
  %v2211 = vadd.f32 %v2209, %v2210
  %v2212 = vsel %vm2002, %v2141, 0.0
  %v2213 = vadd.f32 %v2211, %v2212
  %v2214 = vsel %vm2002, %v2142, 0.0
  %v2215 = vadd.f32 %v2213, %v2214
  %v2216 = vsel %vm2002, %v2143, 0.0
  %v2217 = vadd.f32 %v2215, %v2216
  %v2218 = vsel %vm2002, %v2144, 0.0
  %v2219 = vadd.f32 %v2217, %v2218
  %v2220 = vsel %vm2002, %v2145, 0.0
  %v2221 = vadd.f32 %v2219, %v2220
  %v2222 = vsel %vm2002, %v2146, 0.0
  %v2223 = vadd.f32 %v2221, %v2222
  %v2224 = vsel %vm2002, %v2147, 0.0
  %v2225 = vadd.f32 %v2223, %v2224
  %v2226 = vsel %vm2002, %v2148, 0.0
  %v2227 = vadd.f32 %v2225, %v2226
  %v2228 = vsel %vm2002, %v2149, 0.0
  %v2229 = vadd.f32 %v2227, %v2228
  %v2230 = vsel %vm2002, %v2150, 0.0
  %v2231 = vadd.f32 %v2229, %v2230
  %v2232 = vsel %vm2002, %v2151, 0.0
  %v2233 = vadd.f32 %v2231, %v2232
  %v2234 = vsel %vm2002, %v2152, 0.0
  %v2235 = vadd.f32 %v2233, %v2234
  %v2236 = vsel %vm2002, %v2153, 0.0
  %v2237 = vadd.f32 %v2235, %v2236
  %v2238 = vsel %vm2002, %v2154, 0.0
  %v2239 = vadd.f32 %v2237, %v2238
  %v2240 = vsel %vm2002, %v2155, 0.0
  %v2241 = vadd.f32 %v2239, %v2240
  %v2242 = vsel %vm2002, %v2156, 0.0
  %v2243 = vadd.f32 %v2241, %v2242
  %v2244 = vsel %vm2002, %v2157, 0.0
  %v2245 = vadd.f32 %v2243, %v2244
  %v2246 = vsel %vm2002, %v2158, 0.0
  %v2247 = vadd.f32 %v2245, %v2246
  %v2248 = vsel %vm2002, %v2159, 0.0
  %v2249 = vadd.f32 %v2247, %v2248
  %v2250 = vsel %vm2002, %v2160, 0.0
  %v2251 = vadd.f32 %v2249, %v2250
  %v2252 = vsel %vm2002, %v2161, 0.0
  %v2253 = vadd.f32 %v2251, %v2252
  %v2254 = vsel %vm2002, %v2162, 0.0
  %v2255 = vadd.f32 %v2253, %v2254
  %v2256 = vsel %vm2002, %v2163, 0.0
  %v2257 = vadd.f32 %v2255, %v2256
  %v2258 = vsel %vm2002, %v2164, 0.0
  %v2259 = vadd.f32 %v2257, %v2258
  %v2260 = vsel %vm2002, %v2165, 0.0
  %v2261 = vadd.f32 %v2259, %v2260
  %v2262 = vsel %vm2002, %v2166, 0.0
  %v2263 = vadd.f32 %v2261, %v2262
  %v2264 = vsel %vm2002, %v2167, 0.0
  %v2265 = vadd.f32 %v2263, %v2264
  %v2266 = vsel %vm2002, %v2168, 0.0
  %v2267 = vadd.f32 %v2265, %v2266
  %v2268 = vsel %vm2002, %v2169, 0.0
  %v2269 = vadd.f32 %v2267, %v2268
  %v2270 = vsel %vm2002, %v2170, 0.0
  %v2271 = vadd.f32 %v2269, %v2270
  %v2272 = vsel %vm2002, %v2171, 0.0
  %v2273 = vadd.f32 %v2271, %v2272
  %v2274 = vsel %vm2002, %v2172, 0.0
  %v2275 = vadd.f32 %v2273, %v2274
  %v2276 = vsel %vm2002, %v2173, 0.0
  %v2277 = vadd.f32 %v2275, %v2276
  %v2278 = vsel %vm2002, %v2174, 0.0
  %v2279 = vadd.f32 %v2277, %v2278
  %v2280 = vsel %vm2002, %v2175, 0.0
  %v2281 = vadd.f32 %v2279, %v2280
  %v2282 = vsel %vm2002, %v2176, 0.0
  %v2283 = vadd.f32 %v2281, %v2282
  %v2284 = vsel %vm2002, %v2177, 0.0
  %v2285 = vadd.f32 %v2283, %v2284
  %v2286 = vsel %vm2002, %v2178, 0.0
  %v2287 = vadd.f32 %v2285, %v2286
  %v2288 = vsel %vm2002, %v2179, 0.0
  %v2289 = vadd.f32 %v2287, %v2288
  %v2290 = vsel %vm2002, %v2180, 0.0
  %v2291 = vadd.f32 %v2289, %v2290
  %v2292 = vsel %vm2002, %v2181, 0.0
  %v2293 = vadd.f32 %v2291, %v2292
  %v2294 = vsel %vm2002, %v2182, 0.0
  %v2295 = vadd.f32 %v2293, %v2294
  %v2296 = vsel %vm2002, %v2183, 0.0
  %v2297 = vadd.f32 %v2295, %v2296
  %v2298 = vsel %vm2002, %v2184, 0.0
  %v2299 = vadd.f32 %v2297, %v2298
  %v2300 = vsel %vm2002, %v2185, 0.0
  %v2301 = vadd.f32 %v2299, %v2300
  %v2302 = vsel %vm2002, %v2186, 0.0
  %v2303 = vadd.f32 %v2301, %v2302
  %v2304 = vsel %vm2002, %v2187, 0.0
  %v2305 = vadd.f32 %v2303, %v2304
  %v2306 = vsel %vm2002, %v2188, 0.0
  %v2307 = vadd.f32 %v2305, %v2306
  %v2308 = vsel %vm2002, %v2189, 0.0
  %v2309 = vadd.f32 %v2307, %v2308
  %v2310 = vsel %vm2002, %v2190, 0.0
  %v2311 = vadd.f32 %v2309, %v2310
  %v2312 = vsel %vm2002, %v2191, 0.0
  %v2313 = vadd.f32 %v2311, %v2312
  %v2314 = vsel %vm2002, %v2192, 0.0
  %v2315 = vadd.f32 %v2313, %v2314
  %v2316 = vsel %vm2002, %v2193, 0.0
  %v2317 = vadd.f32 %v2315, %v2316
  %v2318 = vsel %vm2002, %v2194, 0.0
  %v2319 = vadd.f32 %v2317, %v2318
  %v2320 = vsel %vm2002, %v2195, 0.0
  %v2321 = vadd.f32 %v2319, %v2320
  %v2322 = vsel %vm2002, %v2196, 0.0
  %v2323 = vadd.f32 %v2321, %v2322
  %2324 = vadd.xlane.f32.xlu0 %v2323
  %v2325 = vpop.xlane.xlu0 %2324
  %v2326 = vmul.f32 %v2325, 0.00012207031
  %v2327 = vmul.f32 %v2132, %v2132
  %v2328 = vsub.f32 %v2326, %v2327
  %v2329 = vsub.f32 %v1180, %v2132
  %v2330 = vsub.f32 %v1193, %v2132
  %v2331 = vsub.f32 %v1206, %v2132
  %v2332 = vsub.f32 %v1219, %v2132
  %v2333 = vsub.f32 %v1232, %v2132
  %v2334 = vsub.f32 %v1245, %v2132
  %v2335 = vsub.f32 %v1258, %v2132
  %v2336 = vsub.f32 %v1271, %v2132
  %v2337 = vsub.f32 %v1284, %v2132
  %v2338 = vsub.f32 %v1297, %v2132
  %v2339 = vsub.f32 %v1310, %v2132
  %v2340 = vsub.f32 %v1323, %v2132
  %v2341 = vsub.f32 %v1336, %v2132
  %v2342 = vsub.f32 %v1349, %v2132
  %v2343 = vsub.f32 %v1362, %v2132
  %v2344 = vsub.f32 %v1375, %v2132
  %v2345 = vsub.f32 %v1388, %v2132
  %v2346 = vsub.f32 %v1401, %v2132
  %v2347 = vsub.f32 %v1414, %v2132
  %v2348 = vsub.f32 %v1427, %v2132
  %v2349 = vsub.f32 %v1440, %v2132
  %v2350 = vsub.f32 %v1453, %v2132
  %v2351 = vsub.f32 %v1466, %v2132
  %v2352 = vsub.f32 %v1479, %v2132
  %v2353 = vsub.f32 %v1492, %v2132
  %v2354 = vsub.f32 %v1505, %v2132
  %v2355 = vsub.f32 %v1518, %v2132
  %v2356 = vsub.f32 %v1531, %v2132
  %v2357 = vsub.f32 %v1544, %v2132
  %v2358 = vsub.f32 %v1557, %v2132
  %v2359 = vsub.f32 %v1570, %v2132
  %v2360 = vsub.f32 %v1583, %v2132
  %v2361 = vsub.f32 %v1596, %v2132
  %v2362 = vsub.f32 %v1609, %v2132
  %v2363 = vsub.f32 %v1622, %v2132
  %v2364 = vsub.f32 %v1635, %v2132
  %v2365 = vsub.f32 %v1648, %v2132
  %v2366 = vsub.f32 %v1661, %v2132
  %v2367 = vsub.f32 %v1674, %v2132
  %v2368 = vsub.f32 %v1687, %v2132
  %v2369 = vsub.f32 %v1700, %v2132
  %v2370 = vsub.f32 %v1713, %v2132
  %v2371 = vsub.f32 %v1726, %v2132
  %v2372 = vsub.f32 %v1739, %v2132
  %v2373 = vsub.f32 %v1752, %v2132
  %v2374 = vsub.f32 %v1765, %v2132
  %v2375 = vsub.f32 %v1778, %v2132
  %v2376 = vsub.f32 %v1791, %v2132
  %v2377 = vsub.f32 %v1804, %v2132
  %v2378 = vsub.f32 %v1817, %v2132
  %v2379 = vsub.f32 %v1830, %v2132
  %v2380 = vsub.f32 %v1843, %v2132
  %v2381 = vsub.f32 %v1856, %v2132
  %v2382 = vsub.f32 %v1869, %v2132
  %v2383 = vsub.f32 %v1882, %v2132
  %v2384 = vsub.f32 %v1895, %v2132
  %v2385 = vsub.f32 %v1908, %v2132
  %v2386 = vsub.f32 %v1921, %v2132
  %v2387 = vsub.f32 %v1934, %v2132
  %v2388 = vsub.f32 %v1947, %v2132
  %v2389 = vsub.f32 %v1960, %v2132
  %v2390 = vsub.f32 %v1973, %v2132
  %v2391 = vsub.f32 %v1986, %v2132
  %v2392 = vsub.f32 %v1999, %v2132
  %v2393 = vadd.f32 %v2328, 1e-05
  %v2394 = vrsqrt.pop %v2393
  %v2395 = vmul.f32 %v2394, %v2393
  %v2396 = vmul.f32 %v2395, %v2394
  %v2397 = vmul.f32 0.5, %v2396
  %v2398 = vsub.f32 1.5, %v2397
  %v2399 = vmul.f32 %v2394, %v2398
  %vm2400 = vweird.f32 %v2393
  %vm2401 = vweird.f32 %v2394
  %vm2402 = vmor %vm2400, %vm2401
  %v2403 = vsel %vm2402, %v2394, %v2399
  %v2404 = vmul.f32 %v2329, %v2403
  %v2405 = vmul.f32 %v2330, %v2403
  %v2406 = vmul.f32 %v2331, %v2403
  %v2407 = vmul.f32 %v2332, %v2403
  %v2408 = vmul.f32 %v2333, %v2403
  %v2409 = vmul.f32 %v2334, %v2403
  %v2410 = vmul.f32 %v2335, %v2403
  %v2411 = vmul.f32 %v2336, %v2403
  %v2412 = vmul.f32 %v2337, %v2403
  %v2413 = vmul.f32 %v2338, %v2403
  %v2414 = vmul.f32 %v2339, %v2403
  %v2415 = vmul.f32 %v2340, %v2403
  %v2416 = vmul.f32 %v2341, %v2403
  %v2417 = vmul.f32 %v2342, %v2403
  %v2418 = vmul.f32 %v2343, %v2403
  %v2419 = vmul.f32 %v2344, %v2403
  %v2420 = vmul.f32 %v2345, %v2403
  %v2421 = vmul.f32 %v2346, %v2403
  %v2422 = vmul.f32 %v2347, %v2403
  %v2423 = vmul.f32 %v2348, %v2403
  %v2424 = vmul.f32 %v2349, %v2403
  %v2425 = vmul.f32 %v2350, %v2403
  %v2426 = vmul.f32 %v2351, %v2403
  %v2427 = vmul.f32 %v2352, %v2403
  %v2428 = vmul.f32 %v2353, %v2403
  %v2429 = vmul.f32 %v2354, %v2403
  %v2430 = vmul.f32 %v2355, %v2403
  %v2431 = vmul.f32 %v2356, %v2403
  %v2432 = vmul.f32 %v2357, %v2403
  %v2433 = vmul.f32 %v2358, %v2403
  %v2434 = vmul.f32 %v2359, %v2403
  %v2435 = vmul.f32 %v2360, %v2403
  %v2436 = vmul.f32 %v2361, %v2403
  %v2437 = vmul.f32 %v2362, %v2403
  %v2438 = vmul.f32 %v2363, %v2403
  %v2439 = vmul.f32 %v2364, %v2403
  %v2440 = vmul.f32 %v2365, %v2403
  %v2441 = vmul.f32 %v2366, %v2403
  %v2442 = vmul.f32 %v2367, %v2403
  %v2443 = vmul.f32 %v2368, %v2403
  %v2444 = vmul.f32 %v2369, %v2403
  %v2445 = vmul.f32 %v2370, %v2403
  %v2446 = vmul.f32 %v2371, %v2403
  %v2447 = vmul.f32 %v2372, %v2403
  %v2448 = vmul.f32 %v2373, %v2403
  %v2449 = vmul.f32 %v2374, %v2403
  %v2450 = vmul.f32 %v2375, %v2403
  %v2451 = vmul.f32 %v2376, %v2403
  %v2452 = vmul.f32 %v2377, %v2403
  %v2453 = vmul.f32 %v2378, %v2403
  %v2454 = vmul.f32 %v2379, %v2403
  %v2455 = vmul.f32 %v2380, %v2403
  %v2456 = vmul.f32 %v2381, %v2403
  %v2457 = vmul.f32 %v2382, %v2403
  %v2458 = vmul.f32 %v2383, %v2403
  %v2459 = vmul.f32 %v2384, %v2403
  %v2460 = vmul.f32 %v2385, %v2403
  %v2461 = vmul.f32 %v2386, %v2403
  %v2462 = vmul.f32 %v2387, %v2403
  %v2463 = vmul.f32 %v2388, %v2403
  %v2464 = vmul.f32 %v2389, %v2403
  %v2465 = vmul.f32 %v2390, %v2403
  %v2466 = vmul.f32 %v2391, %v2403
  %v2467 = vmul.f32 %v2392, %v2403
  %v2468 = vxor.u32 %v2404, 2147483648
  %v2469 = vxor.u32 %v2405, 2147483648
  %v2470 = vxor.u32 %v2406, 2147483648
  %v2471 = vxor.u32 %v2407, 2147483648
  %v2472 = vxor.u32 %v2408, 2147483648
  %v2473 = vxor.u32 %v2409, 2147483648
  %v2474 = vxor.u32 %v2410, 2147483648
  %v2475 = vxor.u32 %v2411, 2147483648
  %v2476 = vxor.u32 %v2412, 2147483648
  %v2477 = vxor.u32 %v2413, 2147483648
  %v2478 = vxor.u32 %v2414, 2147483648
  %v2479 = vxor.u32 %v2415, 2147483648
  %v2480 = vxor.u32 %v2416, 2147483648
  %v2481 = vxor.u32 %v2417, 2147483648
  %v2482 = vxor.u32 %v2418, 2147483648
  %v2483 = vxor.u32 %v2419, 2147483648
  %v2484 = vxor.u32 %v2420, 2147483648
  %v2485 = vxor.u32 %v2421, 2147483648
  %v2486 = vxor.u32 %v2422, 2147483648
  %v2487 = vxor.u32 %v2423, 2147483648
  %v2488 = vxor.u32 %v2424, 2147483648
  %v2489 = vxor.u32 %v2425, 2147483648
  %v2490 = vxor.u32 %v2426, 2147483648
  %v2491 = vxor.u32 %v2427, 2147483648
  %v2492 = vxor.u32 %v2428, 2147483648
  %v2493 = vxor.u32 %v2429, 2147483648
  %v2494 = vxor.u32 %v2430, 2147483648
  %v2495 = vxor.u32 %v2431, 2147483648
  %v2496 = vxor.u32 %v2432, 2147483648
  %v2497 = vxor.u32 %v2433, 2147483648
  %v2498 = vxor.u32 %v2434, 2147483648
  %v2499 = vxor.u32 %v2435, 2147483648
  %v2500 = vxor.u32 %v2436, 2147483648
  %v2501 = vxor.u32 %v2437, 2147483648
  %v2502 = vxor.u32 %v2438, 2147483648
  %v2503 = vxor.u32 %v2439, 2147483648
  %v2504 = vxor.u32 %v2440, 2147483648
  %v2505 = vxor.u32 %v2441, 2147483648
  %v2506 = vxor.u32 %v2442, 2147483648
  %v2507 = vxor.u32 %v2443, 2147483648
  %v2508 = vxor.u32 %v2444, 2147483648
  %v2509 = vxor.u32 %v2445, 2147483648
  %v2510 = vxor.u32 %v2446, 2147483648
  %v2511 = vxor.u32 %v2447, 2147483648
  %v2512 = vxor.u32 %v2448, 2147483648
  %v2513 = vxor.u32 %v2449, 2147483648
  %v2514 = vxor.u32 %v2450, 2147483648
  %v2515 = vxor.u32 %v2451, 2147483648
  %v2516 = vxor.u32 %v2452, 2147483648
  %v2517 = vxor.u32 %v2453, 2147483648
  %v2518 = vxor.u32 %v2454, 2147483648
  %v2519 = vxor.u32 %v2455, 2147483648
  %v2520 = vxor.u32 %v2456, 2147483648
  %v2521 = vxor.u32 %v2457, 2147483648
  %v2522 = vxor.u32 %v2458, 2147483648
  %v2523 = vxor.u32 %v2459, 2147483648
  %v2524 = vxor.u32 %v2460, 2147483648
  %v2525 = vxor.u32 %v2461, 2147483648
  %v2526 = vxor.u32 %v2462, 2147483648
  %v2527 = vxor.u32 %v2463, 2147483648
  %v2528 = vxor.u32 %v2464, 2147483648
  %v2529 = vxor.u32 %v2465, 2147483648
  %v2530 = vxor.u32 %v2466, 2147483648
  %v2531 = vxor.u32 %v2467, 2147483648
  %v2532 = vmul.f32 %v2468, 1.442695
  %v2533 = vpow.pop %v2532
  %v2534 = vmul.f32 %v2469, 1.442695
  %v2535 = vpow.pop %v2534
  %v2536 = vmul.f32 %v2470, 1.442695
  %v2537 = vpow.pop %v2536
  %v2538 = vmul.f32 %v2471, 1.442695
  %v2539 = vpow.pop %v2538
  %v2540 = vmul.f32 %v2472, 1.442695
  %v2541 = vpow.pop %v2540
  %v2542 = vmul.f32 %v2473, 1.442695
  %v2543 = vpow.pop %v2542
  %v2544 = vmul.f32 %v2474, 1.442695
  %v2545 = vpow.pop %v2544
  %v2546 = vmul.f32 %v2475, 1.442695
  %v2547 = vpow.pop %v2546
  %v2548 = vmul.f32 %v2476, 1.442695
  %v2549 = vpow.pop %v2548
  %v2550 = vmul.f32 %v2477, 1.442695
  %v2551 = vpow.pop %v2550
  %v2552 = vmul.f32 %v2478, 1.442695
  %v2553 = vpow.pop %v2552
  %v2554 = vmul.f32 %v2479, 1.442695
  %v2555 = vpow.pop %v2554
  %v2556 = vmul.f32 %v2480, 1.442695
  %v2557 = vpow.pop %v2556
  %v2558 = vmul.f32 %v2481, 1.442695
  %v2559 = vpow.pop %v2558
  %v2560 = vmul.f32 %v2482, 1.442695
  %v2561 = vpow.pop %v2560
  %v2562 = vmul.f32 %v2483, 1.442695
  %v2563 = vpow.pop %v2562
  %v2564 = vmul.f32 %v2484, 1.442695
  %v2565 = vpow.pop %v2564
  %v2566 = vmul.f32 %v2485, 1.442695
  %v2567 = vpow.pop %v2566
  %v2568 = vmul.f32 %v2486, 1.442695
  %v2569 = vpow.pop %v2568
  %v2570 = vmul.f32 %v2487, 1.442695
  %v2571 = vpow.pop %v2570
  %v2572 = vmul.f32 %v2488, 1.442695
  %v2573 = vpow.pop %v2572
  %v2574 = vmul.f32 %v2489, 1.442695
  %v2575 = vpow.pop %v2574
  %v2576 = vmul.f32 %v2490, 1.442695
  %v2577 = vpow.pop %v2576
  %v2578 = vmul.f32 %v2491, 1.442695
  %v2579 = vpow.pop %v2578
  %v2580 = vmul.f32 %v2492, 1.442695
  %v2581 = vpow.pop %v2580
  %v2582 = vmul.f32 %v2493, 1.442695
  %v2583 = vpow.pop %v2582
  %v2584 = vmul.f32 %v2494, 1.442695
  %v2585 = vpow.pop %v2584
  %v2586 = vmul.f32 %v2495, 1.442695
  %v2587 = vpow.pop %v2586
  %v2588 = vmul.f32 %v2496, 1.442695
  %v2589 = vpow.pop %v2588
  %v2590 = vmul.f32 %v2497, 1.442695
  %v2591 = vpow.pop %v2590
  %v2592 = vmul.f32 %v2498, 1.442695
  %v2593 = vpow.pop %v2592
  %v2594 = vmul.f32 %v2499, 1.442695
  %v2595 = vpow.pop %v2594
  %v2596 = vmul.f32 %v2500, 1.442695
  %v2597 = vpow.pop %v2596
  %v2598 = vmul.f32 %v2501, 1.442695
  %v2599 = vpow.pop %v2598
  %v2600 = vmul.f32 %v2502, 1.442695
  %v2601 = vpow.pop %v2600
  %v2602 = vmul.f32 %v2503, 1.442695
  %v2603 = vpow.pop %v2602
  %v2604 = vmul.f32 %v2504, 1.442695
  %v2605 = vpow.pop %v2604
  %v2606 = vmul.f32 %v2505, 1.442695
  %v2607 = vpow.pop %v2606
  %v2608 = vmul.f32 %v2506, 1.442695
  %v2609 = vpow.pop %v2608
  %v2610 = vmul.f32 %v2507, 1.442695
  %v2611 = vpow.pop %v2610
  %v2612 = vmul.f32 %v2508, 1.442695
  %v2613 = vpow.pop %v2612
  %v2614 = vmul.f32 %v2509, 1.442695
  %v2615 = vpow.pop %v2614
  %v2616 = vmul.f32 %v2510, 1.442695
  %v2617 = vpow.pop %v2616
  %v2618 = vmul.f32 %v2511, 1.442695
  %v2619 = vpow.pop %v2618
  %v2620 = vmul.f32 %v2512, 1.442695
  %v2621 = vpow.pop %v2620
  %v2622 = vmul.f32 %v2513, 1.442695
  %v2623 = vpow.pop %v2622
  %v2624 = vmul.f32 %v2514, 1.442695
  %v2625 = vpow.pop %v2624
  %v2626 = vmul.f32 %v2515, 1.442695
  %v2627 = vpow.pop %v2626
  %v2628 = vmul.f32 %v2516, 1.442695
  %v2629 = vpow.pop %v2628
  %v2630 = vmul.f32 %v2517, 1.442695
  %v2631 = vpow.pop %v2630
  %v2632 = vmul.f32 %v2518, 1.442695
  %v2633 = vpow.pop %v2632
  %v2634 = vmul.f32 %v2519, 1.442695
  %v2635 = vpow.pop %v2634
  %v2636 = vmul.f32 %v2520, 1.442695
  %v2637 = vpow.pop %v2636
  %v2638 = vmul.f32 %v2521, 1.442695
  %v2639 = vpow.pop %v2638
  %v2640 = vmul.f32 %v2522, 1.442695
  %v2641 = vpow.pop %v2640
  %v2642 = vmul.f32 %v2523, 1.442695
  %v2643 = vpow.pop %v2642
  %v2644 = vmul.f32 %v2524, 1.442695
  %v2645 = vpow.pop %v2644
  %v2646 = vmul.f32 %v2525, 1.442695
  %v2647 = vpow.pop %v2646
  %v2648 = vmul.f32 %v2526, 1.442695
  %v2649 = vpow.pop %v2648
  %v2650 = vmul.f32 %v2527, 1.442695
  %v2651 = vpow.pop %v2650
  %v2652 = vmul.f32 %v2528, 1.442695
  %v2653 = vpow.pop %v2652
  %v2654 = vmul.f32 %v2529, 1.442695
  %v2655 = vpow.pop %v2654
  %v2656 = vmul.f32 %v2530, 1.442695
  %v2657 = vpow.pop %v2656
  %v2658 = vmul.f32 %v2531, 1.442695
  %v2659 = vpow.pop %v2658
  %v2660 = vadd.f32 %v2533, 1.0
  %v2661 = vadd.f32 %v2535, 1.0
  %v2662 = vadd.f32 %v2537, 1.0
  %v2663 = vadd.f32 %v2539, 1.0
  %v2664 = vadd.f32 %v2541, 1.0
  %v2665 = vadd.f32 %v2543, 1.0
  %v2666 = vadd.f32 %v2545, 1.0
  %v2667 = vadd.f32 %v2547, 1.0
  %v2668 = vadd.f32 %v2549, 1.0
  %v2669 = vadd.f32 %v2551, 1.0
  %v2670 = vadd.f32 %v2553, 1.0
  %v2671 = vadd.f32 %v2555, 1.0
  %v2672 = vadd.f32 %v2557, 1.0
  %v2673 = vadd.f32 %v2559, 1.0
  %v2674 = vadd.f32 %v2561, 1.0
  %v2675 = vadd.f32 %v2563, 1.0
  %v2676 = vadd.f32 %v2565, 1.0
  %v2677 = vadd.f32 %v2567, 1.0
  %v2678 = vadd.f32 %v2569, 1.0
  %v2679 = vadd.f32 %v2571, 1.0
  %v2680 = vadd.f32 %v2573, 1.0
  %v2681 = vadd.f32 %v2575, 1.0
  %v2682 = vadd.f32 %v2577, 1.0
  %v2683 = vadd.f32 %v2579, 1.0
  %v2684 = vadd.f32 %v2581, 1.0
  %v2685 = vadd.f32 %v2583, 1.0
  %v2686 = vadd.f32 %v2585, 1.0
  %v2687 = vadd.f32 %v2587, 1.0
  %v2688 = vadd.f32 %v2589, 1.0
  %v2689 = vadd.f32 %v2591, 1.0
  %v2690 = vadd.f32 %v2593, 1.0
  %v2691 = vadd.f32 %v2595, 1.0
  %v2692 = vadd.f32 %v2597, 1.0
  %v2693 = vadd.f32 %v2599, 1.0
  %v2694 = vadd.f32 %v2601, 1.0
  %v2695 = vadd.f32 %v2603, 1.0
  %v2696 = vadd.f32 %v2605, 1.0
  %v2697 = vadd.f32 %v2607, 1.0
  %v2698 = vadd.f32 %v2609, 1.0
  %v2699 = vadd.f32 %v2611, 1.0
  %v2700 = vadd.f32 %v2613, 1.0
  %v2701 = vadd.f32 %v2615, 1.0
  %v2702 = vadd.f32 %v2617, 1.0
  %v2703 = vadd.f32 %v2619, 1.0
  %v2704 = vadd.f32 %v2621, 1.0
  %v2705 = vadd.f32 %v2623, 1.0
  %v2706 = vadd.f32 %v2625, 1.0
  %v2707 = vadd.f32 %v2627, 1.0
  %v2708 = vadd.f32 %v2629, 1.0
  %v2709 = vadd.f32 %v2631, 1.0
  %v2710 = vadd.f32 %v2633, 1.0
  %v2711 = vadd.f32 %v2635, 1.0
  %v2712 = vadd.f32 %v2637, 1.0
  %v2713 = vadd.f32 %v2639, 1.0
  %v2714 = vadd.f32 %v2641, 1.0
  %v2715 = vadd.f32 %v2643, 1.0
  %v2716 = vadd.f32 %v2645, 1.0
  %v2717 = vadd.f32 %v2647, 1.0
  %v2718 = vadd.f32 %v2649, 1.0
  %v2719 = vadd.f32 %v2651, 1.0
  %v2720 = vadd.f32 %v2653, 1.0
  %v2721 = vadd.f32 %v2655, 1.0
  %v2722 = vadd.f32 %v2657, 1.0
  %v2723 = vadd.f32 %v2659, 1.0
  %v2724 = vrcp.pop %v2660
  %v2725 = vmul.f32 %v2660, %v2724
  %v2726 = vsub.f32 1.0, %v2725
  %v2727 = vmul.f32 %v2724, %v2726
  %v2728 = vadd.f32 %v2724, %v2727
  %vm2729 = vweird.f32 %v2660
  %vm2730 = vweird.f32 %v2724
  %vm2731 = vmor %vm2729, %vm2730
  %v2732 = vsel %vm2731, %v2724, %v2728
  %v2733 = vand.u32 2147483647, %v2660
  %vm2734 = vcmp.eq.f32.partialorder %v2733, 8.507059e+37
  %v2735 = vand.u32 %v2660, 2147483648
  %v2736 = vor.u32 1.1754944e-38, %v2735
  %v2737 = vsel %vm2734, %v2736, %v2732
  %v2738 = vmul.f32 1.0, %v2737
  %v2739 = vrcp.pop %v2661
  %v2740 = vmul.f32 %v2661, %v2739
  %v2741 = vsub.f32 1.0, %v2740
  %v2742 = vmul.f32 %v2739, %v2741
  %v2743 = vadd.f32 %v2739, %v2742
  %vm2744 = vweird.f32 %v2661
  %vm2745 = vweird.f32 %v2739
  %vm2746 = vmor %vm2744, %vm2745
  %v2747 = vsel %vm2746, %v2739, %v2743
  %v2748 = vand.u32 2147483647, %v2661
  %vm2749 = vcmp.eq.f32.partialorder %v2748, 8.507059e+37
  %v2750 = vand.u32 %v2661, 2147483648
  %v2751 = vor.u32 1.1754944e-38, %v2750
  %v2752 = vsel %vm2749, %v2751, %v2747
  %v2753 = vmul.f32 1.0, %v2752
  %v2754 = vrcp.pop %v2662
  %v2755 = vmul.f32 %v2662, %v2754
  %v2756 = vsub.f32 1.0, %v2755
  %v2757 = vmul.f32 %v2754, %v2756
  %v2758 = vadd.f32 %v2754, %v2757
  %vm2759 = vweird.f32 %v2662
  %vm2760 = vweird.f32 %v2754
  %vm2761 = vmor %vm2759, %vm2760
  %v2762 = vsel %vm2761, %v2754, %v2758
  %v2763 = vand.u32 2147483647, %v2662
  %vm2764 = vcmp.eq.f32.partialorder %v2763, 8.507059e+37
  %v2765 = vand.u32 %v2662, 2147483648
  %v2766 = vor.u32 1.1754944e-38, %v2765
  %v2767 = vsel %vm2764, %v2766, %v2762
  %v2768 = vmul.f32 1.0, %v2767
  %v2769 = vrcp.pop %v2663
  %v2770 = vmul.f32 %v2663, %v2769
  %v2771 = vsub.f32 1.0, %v2770
  %v2772 = vmul.f32 %v2769, %v2771
  %v2773 = vadd.f32 %v2769, %v2772
  %vm2774 = vweird.f32 %v2663
  %vm2775 = vweird.f32 %v2769
  %vm2776 = vmor %vm2774, %vm2775
  %v2777 = vsel %vm2776, %v2769, %v2773
  %v2778 = vand.u32 2147483647, %v2663
  %vm2779 = vcmp.eq.f32.partialorder %v2778, 8.507059e+37
  %v2780 = vand.u32 %v2663, 2147483648
  %v2781 = vor.u32 1.1754944e-38, %v2780
  %v2782 = vsel %vm2779, %v2781, %v2777
  %v2783 = vmul.f32 1.0, %v2782
  %v2784 = vrcp.pop %v2664
  %v2785 = vmul.f32 %v2664, %v2784
  %v2786 = vsub.f32 1.0, %v2785
  %v2787 = vmul.f32 %v2784, %v2786
  %v2788 = vadd.f32 %v2784, %v2787
  %vm2789 = vweird.f32 %v2664
  %vm2790 = vweird.f32 %v2784
  %vm2791 = vmor %vm2789, %vm2790
  %v2792 = vsel %vm2791, %v2784, %v2788
  %v2793 = vand.u32 2147483647, %v2664
  %vm2794 = vcmp.eq.f32.partialorder %v2793, 8.507059e+37
  %v2795 = vand.u32 %v2664, 2147483648
  %v2796 = vor.u32 1.1754944e-38, %v2795
  %v2797 = vsel %vm2794, %v2796, %v2792
  %v2798 = vmul.f32 1.0, %v2797
  %v2799 = vrcp.pop %v2665
  %v2800 = vmul.f32 %v2665, %v2799
  %v2801 = vsub.f32 1.0, %v2800
  %v2802 = vmul.f32 %v2799, %v2801
  %v2803 = vadd.f32 %v2799, %v2802
  %vm2804 = vweird.f32 %v2665
  %vm2805 = vweird.f32 %v2799
  %vm2806 = vmor %vm2804, %vm2805
  %v2807 = vsel %vm2806, %v2799, %v2803
  %v2808 = vand.u32 2147483647, %v2665
  %vm2809 = vcmp.eq.f32.partialorder %v2808, 8.507059e+37
  %v2810 = vand.u32 %v2665, 2147483648
  %v2811 = vor.u32 1.1754944e-38, %v2810
  %v2812 = vsel %vm2809, %v2811, %v2807
  %v2813 = vmul.f32 1.0, %v2812
  %v2814 = vrcp.pop %v2666
  %v2815 = vmul.f32 %v2666, %v2814
  %v2816 = vsub.f32 1.0, %v2815
  %v2817 = vmul.f32 %v2814, %v2816
  %v2818 = vadd.f32 %v2814, %v2817
  %vm2819 = vweird.f32 %v2666
  %vm2820 = vweird.f32 %v2814
  %vm2821 = vmor %vm2819, %vm2820
  %v2822 = vsel %vm2821, %v2814, %v2818
  %v2823 = vand.u32 2147483647, %v2666
  %vm2824 = vcmp.eq.f32.partialorder %v2823, 8.507059e+37
  %v2825 = vand.u32 %v2666, 2147483648
  %v2826 = vor.u32 1.1754944e-38, %v2825
  %v2827 = vsel %vm2824, %v2826, %v2822
  %v2828 = vmul.f32 1.0, %v2827
  %v2829 = vrcp.pop %v2667
  %v2830 = vmul.f32 %v2667, %v2829
  %v2831 = vsub.f32 1.0, %v2830
  %v2832 = vmul.f32 %v2829, %v2831
  %v2833 = vadd.f32 %v2829, %v2832
  %vm2834 = vweird.f32 %v2667
  %vm2835 = vweird.f32 %v2829
  %vm2836 = vmor %vm2834, %vm2835
  %v2837 = vsel %vm2836, %v2829, %v2833
  %v2838 = vand.u32 2147483647, %v2667
  %vm2839 = vcmp.eq.f32.partialorder %v2838, 8.507059e+37
  %v2840 = vand.u32 %v2667, 2147483648
  %v2841 = vor.u32 1.1754944e-38, %v2840
  %v2842 = vsel %vm2839, %v2841, %v2837
  %v2843 = vmul.f32 1.0, %v2842
  %v2844 = vrcp.pop %v2668
  %v2845 = vmul.f32 %v2668, %v2844
  %v2846 = vsub.f32 1.0, %v2845
  %v2847 = vmul.f32 %v2844, %v2846
  %v2848 = vadd.f32 %v2844, %v2847
  %vm2849 = vweird.f32 %v2668
  %vm2850 = vweird.f32 %v2844
  %vm2851 = vmor %vm2849, %vm2850
  %v2852 = vsel %vm2851, %v2844, %v2848
  %v2853 = vand.u32 2147483647, %v2668
  %vm2854 = vcmp.eq.f32.partialorder %v2853, 8.507059e+37
  %v2855 = vand.u32 %v2668, 2147483648
  %v2856 = vor.u32 1.1754944e-38, %v2855
  %v2857 = vsel %vm2854, %v2856, %v2852
  %v2858 = vmul.f32 1.0, %v2857
  %v2859 = vrcp.pop %v2669
  %v2860 = vmul.f32 %v2669, %v2859
  %v2861 = vsub.f32 1.0, %v2860
  %v2862 = vmul.f32 %v2859, %v2861
  %v2863 = vadd.f32 %v2859, %v2862
  %vm2864 = vweird.f32 %v2669
  %vm2865 = vweird.f32 %v2859
  %vm2866 = vmor %vm2864, %vm2865
  %v2867 = vsel %vm2866, %v2859, %v2863
  %v2868 = vand.u32 2147483647, %v2669
  %vm2869 = vcmp.eq.f32.partialorder %v2868, 8.507059e+37
  %v2870 = vand.u32 %v2669, 2147483648
  %v2871 = vor.u32 1.1754944e-38, %v2870
  %v2872 = vsel %vm2869, %v2871, %v2867
  %v2873 = vmul.f32 1.0, %v2872
  %v2874 = vrcp.pop %v2670
  %v2875 = vmul.f32 %v2670, %v2874
  %v2876 = vsub.f32 1.0, %v2875
  %v2877 = vmul.f32 %v2874, %v2876
  %v2878 = vadd.f32 %v2874, %v2877
  %vm2879 = vweird.f32 %v2670
  %vm2880 = vweird.f32 %v2874
  %vm2881 = vmor %vm2879, %vm2880
  %v2882 = vsel %vm2881, %v2874, %v2878
  %v2883 = vand.u32 2147483647, %v2670
  %vm2884 = vcmp.eq.f32.partialorder %v2883, 8.507059e+37
  %v2885 = vand.u32 %v2670, 2147483648
  %v2886 = vor.u32 1.1754944e-38, %v2885
  %v2887 = vsel %vm2884, %v2886, %v2882
  %v2888 = vmul.f32 1.0, %v2887
  %v2889 = vrcp.pop %v2671
  %v2890 = vmul.f32 %v2671, %v2889
  %v2891 = vsub.f32 1.0, %v2890
  %v2892 = vmul.f32 %v2889, %v2891
  %v2893 = vadd.f32 %v2889, %v2892
  %vm2894 = vweird.f32 %v2671
  %vm2895 = vweird.f32 %v2889
  %vm2896 = vmor %vm2894, %vm2895
  %v2897 = vsel %vm2896, %v2889, %v2893
  %v2898 = vand.u32 2147483647, %v2671
  %vm2899 = vcmp.eq.f32.partialorder %v2898, 8.507059e+37
  %v2900 = vand.u32 %v2671, 2147483648
  %v2901 = vor.u32 1.1754944e-38, %v2900
  %v2902 = vsel %vm2899, %v2901, %v2897
  %v2903 = vmul.f32 1.0, %v2902
  %v2904 = vrcp.pop %v2672
  %v2905 = vmul.f32 %v2672, %v2904
  %v2906 = vsub.f32 1.0, %v2905
  %v2907 = vmul.f32 %v2904, %v2906
  %v2908 = vadd.f32 %v2904, %v2907
  %vm2909 = vweird.f32 %v2672
  %vm2910 = vweird.f32 %v2904
  %vm2911 = vmor %vm2909, %vm2910
  %v2912 = vsel %vm2911, %v2904, %v2908
  %v2913 = vand.u32 2147483647, %v2672
  %vm2914 = vcmp.eq.f32.partialorder %v2913, 8.507059e+37
  %v2915 = vand.u32 %v2672, 2147483648
  %v2916 = vor.u32 1.1754944e-38, %v2915
  %v2917 = vsel %vm2914, %v2916, %v2912
  %v2918 = vmul.f32 1.0, %v2917
  %v2919 = vrcp.pop %v2673
  %v2920 = vmul.f32 %v2673, %v2919
  %v2921 = vsub.f32 1.0, %v2920
  %v2922 = vmul.f32 %v2919, %v2921
  %v2923 = vadd.f32 %v2919, %v2922
  %vm2924 = vweird.f32 %v2673
  %vm2925 = vweird.f32 %v2919
  %vm2926 = vmor %vm2924, %vm2925
  %v2927 = vsel %vm2926, %v2919, %v2923
  %v2928 = vand.u32 2147483647, %v2673
  %vm2929 = vcmp.eq.f32.partialorder %v2928, 8.507059e+37
  %v2930 = vand.u32 %v2673, 2147483648
  %v2931 = vor.u32 1.1754944e-38, %v2930
  %v2932 = vsel %vm2929, %v2931, %v2927
  %v2933 = vmul.f32 1.0, %v2932
  %v2934 = vrcp.pop %v2674
  %v2935 = vmul.f32 %v2674, %v2934
  %v2936 = vsub.f32 1.0, %v2935
  %v2937 = vmul.f32 %v2934, %v2936
  %v2938 = vadd.f32 %v2934, %v2937
  %vm2939 = vweird.f32 %v2674
  %vm2940 = vweird.f32 %v2934
  %vm2941 = vmor %vm2939, %vm2940
  %v2942 = vsel %vm2941, %v2934, %v2938
  %v2943 = vand.u32 2147483647, %v2674
  %vm2944 = vcmp.eq.f32.partialorder %v2943, 8.507059e+37
  %v2945 = vand.u32 %v2674, 2147483648
  %v2946 = vor.u32 1.1754944e-38, %v2945
  %v2947 = vsel %vm2944, %v2946, %v2942
  %v2948 = vmul.f32 1.0, %v2947
  %v2949 = vrcp.pop %v2675
  %v2950 = vmul.f32 %v2675, %v2949
  %v2951 = vsub.f32 1.0, %v2950
  %v2952 = vmul.f32 %v2949, %v2951
  %v2953 = vadd.f32 %v2949, %v2952
  %vm2954 = vweird.f32 %v2675
  %vm2955 = vweird.f32 %v2949
  %vm2956 = vmor %vm2954, %vm2955
  %v2957 = vsel %vm2956, %v2949, %v2953
  %v2958 = vand.u32 2147483647, %v2675
  %vm2959 = vcmp.eq.f32.partialorder %v2958, 8.507059e+37
  %v2960 = vand.u32 %v2675, 2147483648
  %v2961 = vor.u32 1.1754944e-38, %v2960
  %v2962 = vsel %vm2959, %v2961, %v2957
  %v2963 = vmul.f32 1.0, %v2962
  %v2964 = vrcp.pop %v2676
  %v2965 = vmul.f32 %v2676, %v2964
  %v2966 = vsub.f32 1.0, %v2965
  %v2967 = vmul.f32 %v2964, %v2966
  %v2968 = vadd.f32 %v2964, %v2967
  %vm2969 = vweird.f32 %v2676
  %vm2970 = vweird.f32 %v2964
  %vm2971 = vmor %vm2969, %vm2970
  %v2972 = vsel %vm2971, %v2964, %v2968
  %v2973 = vand.u32 2147483647, %v2676
  %vm2974 = vcmp.eq.f32.partialorder %v2973, 8.507059e+37
  %v2975 = vand.u32 %v2676, 2147483648
  %v2976 = vor.u32 1.1754944e-38, %v2975
  %v2977 = vsel %vm2974, %v2976, %v2972
  %v2978 = vmul.f32 1.0, %v2977
  %v2979 = vrcp.pop %v2677
  %v2980 = vmul.f32 %v2677, %v2979
  %v2981 = vsub.f32 1.0, %v2980
  %v2982 = vmul.f32 %v2979, %v2981
  %v2983 = vadd.f32 %v2979, %v2982
  %vm2984 = vweird.f32 %v2677
  %vm2985 = vweird.f32 %v2979
  %vm2986 = vmor %vm2984, %vm2985
  %v2987 = vsel %vm2986, %v2979, %v2983
  %v2988 = vand.u32 2147483647, %v2677
  %vm2989 = vcmp.eq.f32.partialorder %v2988, 8.507059e+37
  %v2990 = vand.u32 %v2677, 2147483648
  %v2991 = vor.u32 1.1754944e-38, %v2990
  %v2992 = vsel %vm2989, %v2991, %v2987
  %v2993 = vmul.f32 1.0, %v2992
  %v2994 = vrcp.pop %v2678
  %v2995 = vmul.f32 %v2678, %v2994
  %v2996 = vsub.f32 1.0, %v2995
  %v2997 = vmul.f32 %v2994, %v2996
  %v2998 = vadd.f32 %v2994, %v2997
  %vm2999 = vweird.f32 %v2678
  %vm3000 = vweird.f32 %v2994
  %vm3001 = vmor %vm2999, %vm3000
  %v3002 = vsel %vm3001, %v2994, %v2998
  %v3003 = vand.u32 2147483647, %v2678
  %vm3004 = vcmp.eq.f32.partialorder %v3003, 8.507059e+37
  %v3005 = vand.u32 %v2678, 2147483648
  %v3006 = vor.u32 1.1754944e-38, %v3005
  %v3007 = vsel %vm3004, %v3006, %v3002
  %v3008 = vmul.f32 1.0, %v3007
  %v3009 = vrcp.pop %v2679
  %v3010 = vmul.f32 %v2679, %v3009
  %v3011 = vsub.f32 1.0, %v3010
  %v3012 = vmul.f32 %v3009, %v3011
  %v3013 = vadd.f32 %v3009, %v3012
  %vm3014 = vweird.f32 %v2679
  %vm3015 = vweird.f32 %v3009
  %vm3016 = vmor %vm3014, %vm3015
  %v3017 = vsel %vm3016, %v3009, %v3013
  %v3018 = vand.u32 2147483647, %v2679
  %vm3019 = vcmp.eq.f32.partialorder %v3018, 8.507059e+37
  %v3020 = vand.u32 %v2679, 2147483648
  %v3021 = vor.u32 1.1754944e-38, %v3020
  %v3022 = vsel %vm3019, %v3021, %v3017
  %v3023 = vmul.f32 1.0, %v3022
  %v3024 = vrcp.pop %v2680
  %v3025 = vmul.f32 %v2680, %v3024
  %v3026 = vsub.f32 1.0, %v3025
  %v3027 = vmul.f32 %v3024, %v3026
  %v3028 = vadd.f32 %v3024, %v3027
  %vm3029 = vweird.f32 %v2680
  %vm3030 = vweird.f32 %v3024
  %vm3031 = vmor %vm3029, %vm3030
  %v3032 = vsel %vm3031, %v3024, %v3028
  %v3033 = vand.u32 2147483647, %v2680
  %vm3034 = vcmp.eq.f32.partialorder %v3033, 8.507059e+37
  %v3035 = vand.u32 %v2680, 2147483648
  %v3036 = vor.u32 1.1754944e-38, %v3035
  %v3037 = vsel %vm3034, %v3036, %v3032
  %v3038 = vmul.f32 1.0, %v3037
  %v3039 = vrcp.pop %v2681
  %v3040 = vmul.f32 %v2681, %v3039
  %v3041 = vsub.f32 1.0, %v3040
  %v3042 = vmul.f32 %v3039, %v3041
  %v3043 = vadd.f32 %v3039, %v3042
  %vm3044 = vweird.f32 %v2681
  %vm3045 = vweird.f32 %v3039
  %vm3046 = vmor %vm3044, %vm3045
  %v3047 = vsel %vm3046, %v3039, %v3043
  %v3048 = vand.u32 2147483647, %v2681
  %vm3049 = vcmp.eq.f32.partialorder %v3048, 8.507059e+37
  %v3050 = vand.u32 %v2681, 2147483648
  %v3051 = vor.u32 1.1754944e-38, %v3050
  %v3052 = vsel %vm3049, %v3051, %v3047
  %v3053 = vmul.f32 1.0, %v3052
  %v3054 = vrcp.pop %v2682
  %v3055 = vmul.f32 %v2682, %v3054
  %v3056 = vsub.f32 1.0, %v3055
  %v3057 = vmul.f32 %v3054, %v3056
  %v3058 = vadd.f32 %v3054, %v3057
  %vm3059 = vweird.f32 %v2682
  %vm3060 = vweird.f32 %v3054
  %vm3061 = vmor %vm3059, %vm3060
  %v3062 = vsel %vm3061, %v3054, %v3058
  %v3063 = vand.u32 2147483647, %v2682
  %vm3064 = vcmp.eq.f32.partialorder %v3063, 8.507059e+37
  %v3065 = vand.u32 %v2682, 2147483648
  %v3066 = vor.u32 1.1754944e-38, %v3065
  %v3067 = vsel %vm3064, %v3066, %v3062
  %v3068 = vmul.f32 1.0, %v3067
  %v3069 = vrcp.pop %v2683
  %v3070 = vmul.f32 %v2683, %v3069
  %v3071 = vsub.f32 1.0, %v3070
  %v3072 = vmul.f32 %v3069, %v3071
  %v3073 = vadd.f32 %v3069, %v3072
  %vm3074 = vweird.f32 %v2683
  %vm3075 = vweird.f32 %v3069
  %vm3076 = vmor %vm3074, %vm3075
  %v3077 = vsel %vm3076, %v3069, %v3073
  %v3078 = vand.u32 2147483647, %v2683
  %vm3079 = vcmp.eq.f32.partialorder %v3078, 8.507059e+37
  %v3080 = vand.u32 %v2683, 2147483648
  %v3081 = vor.u32 1.1754944e-38, %v3080
  %v3082 = vsel %vm3079, %v3081, %v3077
  %v3083 = vmul.f32 1.0, %v3082
  %v3084 = vrcp.pop %v2684
  %v3085 = vmul.f32 %v2684, %v3084
  %v3086 = vsub.f32 1.0, %v3085
  %v3087 = vmul.f32 %v3084, %v3086
  %v3088 = vadd.f32 %v3084, %v3087
  %vm3089 = vweird.f32 %v2684
  %vm3090 = vweird.f32 %v3084
  %vm3091 = vmor %vm3089, %vm3090
  %v3092 = vsel %vm3091, %v3084, %v3088
  %v3093 = vand.u32 2147483647, %v2684
  %vm3094 = vcmp.eq.f32.partialorder %v3093, 8.507059e+37
  %v3095 = vand.u32 %v2684, 2147483648
  %v3096 = vor.u32 1.1754944e-38, %v3095
  %v3097 = vsel %vm3094, %v3096, %v3092
  %v3098 = vmul.f32 1.0, %v3097
  %v3099 = vrcp.pop %v2685
  %v3100 = vmul.f32 %v2685, %v3099
  %v3101 = vsub.f32 1.0, %v3100
  %v3102 = vmul.f32 %v3099, %v3101
  %v3103 = vadd.f32 %v3099, %v3102
  %vm3104 = vweird.f32 %v2685
  %vm3105 = vweird.f32 %v3099
  %vm3106 = vmor %vm3104, %vm3105
  %v3107 = vsel %vm3106, %v3099, %v3103
  %v3108 = vand.u32 2147483647, %v2685
  %vm3109 = vcmp.eq.f32.partialorder %v3108, 8.507059e+37
  %v3110 = vand.u32 %v2685, 2147483648
  %v3111 = vor.u32 1.1754944e-38, %v3110
  %v3112 = vsel %vm3109, %v3111, %v3107
  %v3113 = vmul.f32 1.0, %v3112
  %v3114 = vrcp.pop %v2686
  %v3115 = vmul.f32 %v2686, %v3114
  %v3116 = vsub.f32 1.0, %v3115
  %v3117 = vmul.f32 %v3114, %v3116
  %v3118 = vadd.f32 %v3114, %v3117
  %vm3119 = vweird.f32 %v2686
  %vm3120 = vweird.f32 %v3114
  %vm3121 = vmor %vm3119, %vm3120
  %v3122 = vsel %vm3121, %v3114, %v3118
  %v3123 = vand.u32 2147483647, %v2686
  %vm3124 = vcmp.eq.f32.partialorder %v3123, 8.507059e+37
  %v3125 = vand.u32 %v2686, 2147483648
  %v3126 = vor.u32 1.1754944e-38, %v3125
  %v3127 = vsel %vm3124, %v3126, %v3122
  %v3128 = vmul.f32 1.0, %v3127
  %v3129 = vrcp.pop %v2687
  %v3130 = vmul.f32 %v2687, %v3129
  %v3131 = vsub.f32 1.0, %v3130
  %v3132 = vmul.f32 %v3129, %v3131
  %v3133 = vadd.f32 %v3129, %v3132
  %vm3134 = vweird.f32 %v2687
  %vm3135 = vweird.f32 %v3129
  %vm3136 = vmor %vm3134, %vm3135
  %v3137 = vsel %vm3136, %v3129, %v3133
  %v3138 = vand.u32 2147483647, %v2687
  %vm3139 = vcmp.eq.f32.partialorder %v3138, 8.507059e+37
  %v3140 = vand.u32 %v2687, 2147483648
  %v3141 = vor.u32 1.1754944e-38, %v3140
  %v3142 = vsel %vm3139, %v3141, %v3137
  %v3143 = vmul.f32 1.0, %v3142
  %v3144 = vrcp.pop %v2688
  %v3145 = vmul.f32 %v2688, %v3144
  %v3146 = vsub.f32 1.0, %v3145
  %v3147 = vmul.f32 %v3144, %v3146
  %v3148 = vadd.f32 %v3144, %v3147
  %vm3149 = vweird.f32 %v2688
  %vm3150 = vweird.f32 %v3144
  %vm3151 = vmor %vm3149, %vm3150
  %v3152 = vsel %vm3151, %v3144, %v3148
  %v3153 = vand.u32 2147483647, %v2688
  %vm3154 = vcmp.eq.f32.partialorder %v3153, 8.507059e+37
  %v3155 = vand.u32 %v2688, 2147483648
  %v3156 = vor.u32 1.1754944e-38, %v3155
  %v3157 = vsel %vm3154, %v3156, %v3152
  %v3158 = vmul.f32 1.0, %v3157
  %v3159 = vrcp.pop %v2689
  %v3160 = vmul.f32 %v2689, %v3159
  %v3161 = vsub.f32 1.0, %v3160
  %v3162 = vmul.f32 %v3159, %v3161
  %v3163 = vadd.f32 %v3159, %v3162
  %vm3164 = vweird.f32 %v2689
  %vm3165 = vweird.f32 %v3159
  %vm3166 = vmor %vm3164, %vm3165
  %v3167 = vsel %vm3166, %v3159, %v3163
  %v3168 = vand.u32 2147483647, %v2689
  %vm3169 = vcmp.eq.f32.partialorder %v3168, 8.507059e+37
  %v3170 = vand.u32 %v2689, 2147483648
  %v3171 = vor.u32 1.1754944e-38, %v3170
  %v3172 = vsel %vm3169, %v3171, %v3167
  %v3173 = vmul.f32 1.0, %v3172
  %v3174 = vrcp.pop %v2690
  %v3175 = vmul.f32 %v2690, %v3174
  %v3176 = vsub.f32 1.0, %v3175
  %v3177 = vmul.f32 %v3174, %v3176
  %v3178 = vadd.f32 %v3174, %v3177
  %vm3179 = vweird.f32 %v2690
  %vm3180 = vweird.f32 %v3174
  %vm3181 = vmor %vm3179, %vm3180
  %v3182 = vsel %vm3181, %v3174, %v3178
  %v3183 = vand.u32 2147483647, %v2690
  %vm3184 = vcmp.eq.f32.partialorder %v3183, 8.507059e+37
  %v3185 = vand.u32 %v2690, 2147483648
  %v3186 = vor.u32 1.1754944e-38, %v3185
  %v3187 = vsel %vm3184, %v3186, %v3182
  %v3188 = vmul.f32 1.0, %v3187
  %v3189 = vrcp.pop %v2691
  %v3190 = vmul.f32 %v2691, %v3189
  %v3191 = vsub.f32 1.0, %v3190
  %v3192 = vmul.f32 %v3189, %v3191
  %v3193 = vadd.f32 %v3189, %v3192
  %vm3194 = vweird.f32 %v2691
  %vm3195 = vweird.f32 %v3189
  %vm3196 = vmor %vm3194, %vm3195
  %v3197 = vsel %vm3196, %v3189, %v3193
  %v3198 = vand.u32 2147483647, %v2691
  %vm3199 = vcmp.eq.f32.partialorder %v3198, 8.507059e+37
  %v3200 = vand.u32 %v2691, 2147483648
  %v3201 = vor.u32 1.1754944e-38, %v3200
  %v3202 = vsel %vm3199, %v3201, %v3197
  %v3203 = vmul.f32 1.0, %v3202
  %v3204 = vrcp.pop %v2692
  %v3205 = vmul.f32 %v2692, %v3204
  %v3206 = vsub.f32 1.0, %v3205
  %v3207 = vmul.f32 %v3204, %v3206
  %v3208 = vadd.f32 %v3204, %v3207
  %vm3209 = vweird.f32 %v2692
  %vm3210 = vweird.f32 %v3204
  %vm3211 = vmor %vm3209, %vm3210
  %v3212 = vsel %vm3211, %v3204, %v3208
  %v3213 = vand.u32 2147483647, %v2692
  %vm3214 = vcmp.eq.f32.partialorder %v3213, 8.507059e+37
  %v3215 = vand.u32 %v2692, 2147483648
  %v3216 = vor.u32 1.1754944e-38, %v3215
  %v3217 = vsel %vm3214, %v3216, %v3212
  %v3218 = vmul.f32 1.0, %v3217
  %v3219 = vrcp.pop %v2693
  %v3220 = vmul.f32 %v2693, %v3219
  %v3221 = vsub.f32 1.0, %v3220
  %v3222 = vmul.f32 %v3219, %v3221
  %v3223 = vadd.f32 %v3219, %v3222
  %vm3224 = vweird.f32 %v2693
  %vm3225 = vweird.f32 %v3219
  %vm3226 = vmor %vm3224, %vm3225
  %v3227 = vsel %vm3226, %v3219, %v3223
  %v3228 = vand.u32 2147483647, %v2693
  %vm3229 = vcmp.eq.f32.partialorder %v3228, 8.507059e+37
  %v3230 = vand.u32 %v2693, 2147483648
  %v3231 = vor.u32 1.1754944e-38, %v3230
  %v3232 = vsel %vm3229, %v3231, %v3227
  %v3233 = vmul.f32 1.0, %v3232
  %v3234 = vrcp.pop %v2694
  %v3235 = vmul.f32 %v2694, %v3234
  %v3236 = vsub.f32 1.0, %v3235
  %v3237 = vmul.f32 %v3234, %v3236
  %v3238 = vadd.f32 %v3234, %v3237
  %vm3239 = vweird.f32 %v2694
  %vm3240 = vweird.f32 %v3234
  %vm3241 = vmor %vm3239, %vm3240
  %v3242 = vsel %vm3241, %v3234, %v3238
  %v3243 = vand.u32 2147483647, %v2694
  %vm3244 = vcmp.eq.f32.partialorder %v3243, 8.507059e+37
  %v3245 = vand.u32 %v2694, 2147483648
  %v3246 = vor.u32 1.1754944e-38, %v3245
  %v3247 = vsel %vm3244, %v3246, %v3242
  %v3248 = vmul.f32 1.0, %v3247
  %v3249 = vrcp.pop %v2695
  %v3250 = vmul.f32 %v2695, %v3249
  %v3251 = vsub.f32 1.0, %v3250
  %v3252 = vmul.f32 %v3249, %v3251
  %v3253 = vadd.f32 %v3249, %v3252
  %vm3254 = vweird.f32 %v2695
  %vm3255 = vweird.f32 %v3249
  %vm3256 = vmor %vm3254, %vm3255
  %v3257 = vsel %vm3256, %v3249, %v3253
  %v3258 = vand.u32 2147483647, %v2695
  %vm3259 = vcmp.eq.f32.partialorder %v3258, 8.507059e+37
  %v3260 = vand.u32 %v2695, 2147483648
  %v3261 = vor.u32 1.1754944e-38, %v3260
  %v3262 = vsel %vm3259, %v3261, %v3257
  %v3263 = vmul.f32 1.0, %v3262
  %v3264 = vrcp.pop %v2696
  %v3265 = vmul.f32 %v2696, %v3264
  %v3266 = vsub.f32 1.0, %v3265
  %v3267 = vmul.f32 %v3264, %v3266
  %v3268 = vadd.f32 %v3264, %v3267
  %vm3269 = vweird.f32 %v2696
  %vm3270 = vweird.f32 %v3264
  %vm3271 = vmor %vm3269, %vm3270
  %v3272 = vsel %vm3271, %v3264, %v3268
  %v3273 = vand.u32 2147483647, %v2696
  %vm3274 = vcmp.eq.f32.partialorder %v3273, 8.507059e+37
  %v3275 = vand.u32 %v2696, 2147483648
  %v3276 = vor.u32 1.1754944e-38, %v3275
  %v3277 = vsel %vm3274, %v3276, %v3272
  %v3278 = vmul.f32 1.0, %v3277
  %v3279 = vrcp.pop %v2697
  %v3280 = vmul.f32 %v2697, %v3279
  %v3281 = vsub.f32 1.0, %v3280
  %v3282 = vmul.f32 %v3279, %v3281
  %v3283 = vadd.f32 %v3279, %v3282
  %vm3284 = vweird.f32 %v2697
  %vm3285 = vweird.f32 %v3279
  %vm3286 = vmor %vm3284, %vm3285
  %v3287 = vsel %vm3286, %v3279, %v3283
  %v3288 = vand.u32 2147483647, %v2697
  %vm3289 = vcmp.eq.f32.partialorder %v3288, 8.507059e+37
  %v3290 = vand.u32 %v2697, 2147483648
  %v3291 = vor.u32 1.1754944e-38, %v3290
  %v3292 = vsel %vm3289, %v3291, %v3287
  %v3293 = vmul.f32 1.0, %v3292
  %v3294 = vrcp.pop %v2698
  %v3295 = vmul.f32 %v2698, %v3294
  %v3296 = vsub.f32 1.0, %v3295
  %v3297 = vmul.f32 %v3294, %v3296
  %v3298 = vadd.f32 %v3294, %v3297
  %vm3299 = vweird.f32 %v2698
  %vm3300 = vweird.f32 %v3294
  %vm3301 = vmor %vm3299, %vm3300
  %v3302 = vsel %vm3301, %v3294, %v3298
  %v3303 = vand.u32 2147483647, %v2698
  %vm3304 = vcmp.eq.f32.partialorder %v3303, 8.507059e+37
  %v3305 = vand.u32 %v2698, 2147483648
  %v3306 = vor.u32 1.1754944e-38, %v3305
  %v3307 = vsel %vm3304, %v3306, %v3302
  %v3308 = vmul.f32 1.0, %v3307
  %v3309 = vrcp.pop %v2699
  %v3310 = vmul.f32 %v2699, %v3309
  %v3311 = vsub.f32 1.0, %v3310
  %v3312 = vmul.f32 %v3309, %v3311
  %v3313 = vadd.f32 %v3309, %v3312
  %vm3314 = vweird.f32 %v2699
  %vm3315 = vweird.f32 %v3309
  %vm3316 = vmor %vm3314, %vm3315
  %v3317 = vsel %vm3316, %v3309, %v3313
  %v3318 = vand.u32 2147483647, %v2699
  %vm3319 = vcmp.eq.f32.partialorder %v3318, 8.507059e+37
  %v3320 = vand.u32 %v2699, 2147483648
  %v3321 = vor.u32 1.1754944e-38, %v3320
  %v3322 = vsel %vm3319, %v3321, %v3317
  %v3323 = vmul.f32 1.0, %v3322
  %v3324 = vrcp.pop %v2700
  %v3325 = vmul.f32 %v2700, %v3324
  %v3326 = vsub.f32 1.0, %v3325
  %v3327 = vmul.f32 %v3324, %v3326
  %v3328 = vadd.f32 %v3324, %v3327
  %vm3329 = vweird.f32 %v2700
  %vm3330 = vweird.f32 %v3324
  %vm3331 = vmor %vm3329, %vm3330
  %v3332 = vsel %vm3331, %v3324, %v3328
  %v3333 = vand.u32 2147483647, %v2700
  %vm3334 = vcmp.eq.f32.partialorder %v3333, 8.507059e+37
  %v3335 = vand.u32 %v2700, 2147483648
  %v3336 = vor.u32 1.1754944e-38, %v3335
  %v3337 = vsel %vm3334, %v3336, %v3332
  %v3338 = vmul.f32 1.0, %v3337
  %v3339 = vrcp.pop %v2701
  %v3340 = vmul.f32 %v2701, %v3339
  %v3341 = vsub.f32 1.0, %v3340
  %v3342 = vmul.f32 %v3339, %v3341
  %v3343 = vadd.f32 %v3339, %v3342
  %vm3344 = vweird.f32 %v2701
  %vm3345 = vweird.f32 %v3339
  %vm3346 = vmor %vm3344, %vm3345
  %v3347 = vsel %vm3346, %v3339, %v3343
  %v3348 = vand.u32 2147483647, %v2701
  %vm3349 = vcmp.eq.f32.partialorder %v3348, 8.507059e+37
  %v3350 = vand.u32 %v2701, 2147483648
  %v3351 = vor.u32 1.1754944e-38, %v3350
  %v3352 = vsel %vm3349, %v3351, %v3347
  %v3353 = vmul.f32 1.0, %v3352
  %v3354 = vrcp.pop %v2702
  %v3355 = vmul.f32 %v2702, %v3354
  %v3356 = vsub.f32 1.0, %v3355
  %v3357 = vmul.f32 %v3354, %v3356
  %v3358 = vadd.f32 %v3354, %v3357
  %vm3359 = vweird.f32 %v2702
  %vm3360 = vweird.f32 %v3354
  %vm3361 = vmor %vm3359, %vm3360
  %v3362 = vsel %vm3361, %v3354, %v3358
  %v3363 = vand.u32 2147483647, %v2702
  %vm3364 = vcmp.eq.f32.partialorder %v3363, 8.507059e+37
  %v3365 = vand.u32 %v2702, 2147483648
  %v3366 = vor.u32 1.1754944e-38, %v3365
  %v3367 = vsel %vm3364, %v3366, %v3362
  %v3368 = vmul.f32 1.0, %v3367
  %v3369 = vrcp.pop %v2703
  %v3370 = vmul.f32 %v2703, %v3369
  %v3371 = vsub.f32 1.0, %v3370
  %v3372 = vmul.f32 %v3369, %v3371
  %v3373 = vadd.f32 %v3369, %v3372
  %vm3374 = vweird.f32 %v2703
  %vm3375 = vweird.f32 %v3369
  %vm3376 = vmor %vm3374, %vm3375
  %v3377 = vsel %vm3376, %v3369, %v3373
  %v3378 = vand.u32 2147483647, %v2703
  %vm3379 = vcmp.eq.f32.partialorder %v3378, 8.507059e+37
  %v3380 = vand.u32 %v2703, 2147483648
  %v3381 = vor.u32 1.1754944e-38, %v3380
  %v3382 = vsel %vm3379, %v3381, %v3377
  %v3383 = vmul.f32 1.0, %v3382
  %v3384 = vrcp.pop %v2704
  %v3385 = vmul.f32 %v2704, %v3384
  %v3386 = vsub.f32 1.0, %v3385
  %v3387 = vmul.f32 %v3384, %v3386
  %v3388 = vadd.f32 %v3384, %v3387
  %vm3389 = vweird.f32 %v2704
  %vm3390 = vweird.f32 %v3384
  %vm3391 = vmor %vm3389, %vm3390
  %v3392 = vsel %vm3391, %v3384, %v3388
  %v3393 = vand.u32 2147483647, %v2704
  %vm3394 = vcmp.eq.f32.partialorder %v3393, 8.507059e+37
  %v3395 = vand.u32 %v2704, 2147483648
  %v3396 = vor.u32 1.1754944e-38, %v3395
  %v3397 = vsel %vm3394, %v3396, %v3392
  %v3398 = vmul.f32 1.0, %v3397
  %v3399 = vrcp.pop %v2705
  %v3400 = vmul.f32 %v2705, %v3399
  %v3401 = vsub.f32 1.0, %v3400
  %v3402 = vmul.f32 %v3399, %v3401
  %v3403 = vadd.f32 %v3399, %v3402
  %vm3404 = vweird.f32 %v2705
  %vm3405 = vweird.f32 %v3399
  %vm3406 = vmor %vm3404, %vm3405
  %v3407 = vsel %vm3406, %v3399, %v3403
  %v3408 = vand.u32 2147483647, %v2705
  %vm3409 = vcmp.eq.f32.partialorder %v3408, 8.507059e+37
  %v3410 = vand.u32 %v2705, 2147483648
  %v3411 = vor.u32 1.1754944e-38, %v3410
  %v3412 = vsel %vm3409, %v3411, %v3407
  %v3413 = vmul.f32 1.0, %v3412
  %v3414 = vrcp.pop %v2706
  %v3415 = vmul.f32 %v2706, %v3414
  %v3416 = vsub.f32 1.0, %v3415
  %v3417 = vmul.f32 %v3414, %v3416
  %v3418 = vadd.f32 %v3414, %v3417
  %vm3419 = vweird.f32 %v2706
  %vm3420 = vweird.f32 %v3414
  %vm3421 = vmor %vm3419, %vm3420
  %v3422 = vsel %vm3421, %v3414, %v3418
  %v3423 = vand.u32 2147483647, %v2706
  %vm3424 = vcmp.eq.f32.partialorder %v3423, 8.507059e+37
  %v3425 = vand.u32 %v2706, 2147483648
  %v3426 = vor.u32 1.1754944e-38, %v3425
  %v3427 = vsel %vm3424, %v3426, %v3422
  %v3428 = vmul.f32 1.0, %v3427
  %v3429 = vrcp.pop %v2707
  %v3430 = vmul.f32 %v2707, %v3429
  %v3431 = vsub.f32 1.0, %v3430
  %v3432 = vmul.f32 %v3429, %v3431
  %v3433 = vadd.f32 %v3429, %v3432
  %vm3434 = vweird.f32 %v2707
  %vm3435 = vweird.f32 %v3429
  %vm3436 = vmor %vm3434, %vm3435
  %v3437 = vsel %vm3436, %v3429, %v3433
  %v3438 = vand.u32 2147483647, %v2707
  %vm3439 = vcmp.eq.f32.partialorder %v3438, 8.507059e+37
  %v3440 = vand.u32 %v2707, 2147483648
  %v3441 = vor.u32 1.1754944e-38, %v3440
  %v3442 = vsel %vm3439, %v3441, %v3437
  %v3443 = vmul.f32 1.0, %v3442
  %v3444 = vrcp.pop %v2708
  %v3445 = vmul.f32 %v2708, %v3444
  %v3446 = vsub.f32 1.0, %v3445
  %v3447 = vmul.f32 %v3444, %v3446
  %v3448 = vadd.f32 %v3444, %v3447
  %vm3449 = vweird.f32 %v2708
  %vm3450 = vweird.f32 %v3444
  %vm3451 = vmor %vm3449, %vm3450
  %v3452 = vsel %vm3451, %v3444, %v3448
  %v3453 = vand.u32 2147483647, %v2708
  %vm3454 = vcmp.eq.f32.partialorder %v3453, 8.507059e+37
  %v3455 = vand.u32 %v2708, 2147483648
  %v3456 = vor.u32 1.1754944e-38, %v3455
  %v3457 = vsel %vm3454, %v3456, %v3452
  %v3458 = vmul.f32 1.0, %v3457
  %v3459 = vrcp.pop %v2709
  %v3460 = vmul.f32 %v2709, %v3459
  %v3461 = vsub.f32 1.0, %v3460
  %v3462 = vmul.f32 %v3459, %v3461
  %v3463 = vadd.f32 %v3459, %v3462
  %vm3464 = vweird.f32 %v2709
  %vm3465 = vweird.f32 %v3459
  %vm3466 = vmor %vm3464, %vm3465
  %v3467 = vsel %vm3466, %v3459, %v3463
  %v3468 = vand.u32 2147483647, %v2709
  %vm3469 = vcmp.eq.f32.partialorder %v3468, 8.507059e+37
  %v3470 = vand.u32 %v2709, 2147483648
  %v3471 = vor.u32 1.1754944e-38, %v3470
  %v3472 = vsel %vm3469, %v3471, %v3467
  %v3473 = vmul.f32 1.0, %v3472
  %v3474 = vrcp.pop %v2710
  %v3475 = vmul.f32 %v2710, %v3474
  %v3476 = vsub.f32 1.0, %v3475
  %v3477 = vmul.f32 %v3474, %v3476
  %v3478 = vadd.f32 %v3474, %v3477
  %vm3479 = vweird.f32 %v2710
  %vm3480 = vweird.f32 %v3474
  %vm3481 = vmor %vm3479, %vm3480
  %v3482 = vsel %vm3481, %v3474, %v3478
  %v3483 = vand.u32 2147483647, %v2710
  %vm3484 = vcmp.eq.f32.partialorder %v3483, 8.507059e+37
  %v3485 = vand.u32 %v2710, 2147483648
  %v3486 = vor.u32 1.1754944e-38, %v3485
  %v3487 = vsel %vm3484, %v3486, %v3482
  %v3488 = vmul.f32 1.0, %v3487
  %v3489 = vrcp.pop %v2711
  %v3490 = vmul.f32 %v2711, %v3489
  %v3491 = vsub.f32 1.0, %v3490
  %v3492 = vmul.f32 %v3489, %v3491
  %v3493 = vadd.f32 %v3489, %v3492
  %vm3494 = vweird.f32 %v2711
  %vm3495 = vweird.f32 %v3489
  %vm3496 = vmor %vm3494, %vm3495
  %v3497 = vsel %vm3496, %v3489, %v3493
  %v3498 = vand.u32 2147483647, %v2711
  %vm3499 = vcmp.eq.f32.partialorder %v3498, 8.507059e+37
  %v3500 = vand.u32 %v2711, 2147483648
  %v3501 = vor.u32 1.1754944e-38, %v3500
  %v3502 = vsel %vm3499, %v3501, %v3497
  %v3503 = vmul.f32 1.0, %v3502
  %v3504 = vrcp.pop %v2712
  %v3505 = vmul.f32 %v2712, %v3504
  %v3506 = vsub.f32 1.0, %v3505
  %v3507 = vmul.f32 %v3504, %v3506
  %v3508 = vadd.f32 %v3504, %v3507
  %vm3509 = vweird.f32 %v2712
  %vm3510 = vweird.f32 %v3504
  %vm3511 = vmor %vm3509, %vm3510
  %v3512 = vsel %vm3511, %v3504, %v3508
  %v3513 = vand.u32 2147483647, %v2712
  %vm3514 = vcmp.eq.f32.partialorder %v3513, 8.507059e+37
  %v3515 = vand.u32 %v2712, 2147483648
  %v3516 = vor.u32 1.1754944e-38, %v3515
  %v3517 = vsel %vm3514, %v3516, %v3512
  %v3518 = vmul.f32 1.0, %v3517
  %v3519 = vrcp.pop %v2713
  %v3520 = vmul.f32 %v2713, %v3519
  %v3521 = vsub.f32 1.0, %v3520
  %v3522 = vmul.f32 %v3519, %v3521
  %v3523 = vadd.f32 %v3519, %v3522
  %vm3524 = vweird.f32 %v2713
  %vm3525 = vweird.f32 %v3519
  %vm3526 = vmor %vm3524, %vm3525
  %v3527 = vsel %vm3526, %v3519, %v3523
  %v3528 = vand.u32 2147483647, %v2713
  %vm3529 = vcmp.eq.f32.partialorder %v3528, 8.507059e+37
  %v3530 = vand.u32 %v2713, 2147483648
  %v3531 = vor.u32 1.1754944e-38, %v3530
  %v3532 = vsel %vm3529, %v3531, %v3527
  %v3533 = vmul.f32 1.0, %v3532
  %v3534 = vrcp.pop %v2714
  %v3535 = vmul.f32 %v2714, %v3534
  %v3536 = vsub.f32 1.0, %v3535
  %v3537 = vmul.f32 %v3534, %v3536
  %v3538 = vadd.f32 %v3534, %v3537
  %vm3539 = vweird.f32 %v2714
  %vm3540 = vweird.f32 %v3534
  %vm3541 = vmor %vm3539, %vm3540
  %v3542 = vsel %vm3541, %v3534, %v3538
  %v3543 = vand.u32 2147483647, %v2714
  %vm3544 = vcmp.eq.f32.partialorder %v3543, 8.507059e+37
  %v3545 = vand.u32 %v2714, 2147483648
  %v3546 = vor.u32 1.1754944e-38, %v3545
  %v3547 = vsel %vm3544, %v3546, %v3542
  %v3548 = vmul.f32 1.0, %v3547
  %v3549 = vrcp.pop %v2715
  %v3550 = vmul.f32 %v2715, %v3549
  %v3551 = vsub.f32 1.0, %v3550
  %v3552 = vmul.f32 %v3549, %v3551
  %v3553 = vadd.f32 %v3549, %v3552
  %vm3554 = vweird.f32 %v2715
  %vm3555 = vweird.f32 %v3549
  %vm3556 = vmor %vm3554, %vm3555
  %v3557 = vsel %vm3556, %v3549, %v3553
  %v3558 = vand.u32 2147483647, %v2715
  %vm3559 = vcmp.eq.f32.partialorder %v3558, 8.507059e+37
  %v3560 = vand.u32 %v2715, 2147483648
  %v3561 = vor.u32 1.1754944e-38, %v3560
  %v3562 = vsel %vm3559, %v3561, %v3557
  %v3563 = vmul.f32 1.0, %v3562
  %v3564 = vrcp.pop %v2716
  %v3565 = vmul.f32 %v2716, %v3564
  %v3566 = vsub.f32 1.0, %v3565
  %v3567 = vmul.f32 %v3564, %v3566
  %v3568 = vadd.f32 %v3564, %v3567
  %vm3569 = vweird.f32 %v2716
  %vm3570 = vweird.f32 %v3564
  %vm3571 = vmor %vm3569, %vm3570
  %v3572 = vsel %vm3571, %v3564, %v3568
  %v3573 = vand.u32 2147483647, %v2716
  %vm3574 = vcmp.eq.f32.partialorder %v3573, 8.507059e+37
  %v3575 = vand.u32 %v2716, 2147483648
  %v3576 = vor.u32 1.1754944e-38, %v3575
  %v3577 = vsel %vm3574, %v3576, %v3572
  %v3578 = vmul.f32 1.0, %v3577
  %v3579 = vrcp.pop %v2717
  %v3580 = vmul.f32 %v2717, %v3579
  %v3581 = vsub.f32 1.0, %v3580
  %v3582 = vmul.f32 %v3579, %v3581
  %v3583 = vadd.f32 %v3579, %v3582
  %vm3584 = vweird.f32 %v2717
  %vm3585 = vweird.f32 %v3579
  %vm3586 = vmor %vm3584, %vm3585
  %v3587 = vsel %vm3586, %v3579, %v3583
  %v3588 = vand.u32 2147483647, %v2717
  %vm3589 = vcmp.eq.f32.partialorder %v3588, 8.507059e+37
  %v3590 = vand.u32 %v2717, 2147483648
  %v3591 = vor.u32 1.1754944e-38, %v3590
  %v3592 = vsel %vm3589, %v3591, %v3587
  %v3593 = vmul.f32 1.0, %v3592
  %v3594 = vrcp.pop %v2718
  %v3595 = vmul.f32 %v2718, %v3594
  %v3596 = vsub.f32 1.0, %v3595
  %v3597 = vmul.f32 %v3594, %v3596
  %v3598 = vadd.f32 %v3594, %v3597
  %vm3599 = vweird.f32 %v2718
  %vm3600 = vweird.f32 %v3594
  %vm3601 = vmor %vm3599, %vm3600
  %v3602 = vsel %vm3601, %v3594, %v3598
  %v3603 = vand.u32 2147483647, %v2718
  %vm3604 = vcmp.eq.f32.partialorder %v3603, 8.507059e+37
  %v3605 = vand.u32 %v2718, 2147483648
  %v3606 = vor.u32 1.1754944e-38, %v3605
  %v3607 = vsel %vm3604, %v3606, %v3602
  %v3608 = vmul.f32 1.0, %v3607
  %v3609 = vrcp.pop %v2719
  %v3610 = vmul.f32 %v2719, %v3609
  %v3611 = vsub.f32 1.0, %v3610
  %v3612 = vmul.f32 %v3609, %v3611
  %v3613 = vadd.f32 %v3609, %v3612
  %vm3614 = vweird.f32 %v2719
  %vm3615 = vweird.f32 %v3609
  %vm3616 = vmor %vm3614, %vm3615
  %v3617 = vsel %vm3616, %v3609, %v3613
  %v3618 = vand.u32 2147483647, %v2719
  %vm3619 = vcmp.eq.f32.partialorder %v3618, 8.507059e+37
  %v3620 = vand.u32 %v2719, 2147483648
  %v3621 = vor.u32 1.1754944e-38, %v3620
  %v3622 = vsel %vm3619, %v3621, %v3617
  %v3623 = vmul.f32 1.0, %v3622
  %v3624 = vrcp.pop %v2720
  %v3625 = vmul.f32 %v2720, %v3624
  %v3626 = vsub.f32 1.0, %v3625
  %v3627 = vmul.f32 %v3624, %v3626
  %v3628 = vadd.f32 %v3624, %v3627
  %vm3629 = vweird.f32 %v2720
  %vm3630 = vweird.f32 %v3624
  %vm3631 = vmor %vm3629, %vm3630
  %v3632 = vsel %vm3631, %v3624, %v3628
  %v3633 = vand.u32 2147483647, %v2720
  %vm3634 = vcmp.eq.f32.partialorder %v3633, 8.507059e+37
  %v3635 = vand.u32 %v2720, 2147483648
  %v3636 = vor.u32 1.1754944e-38, %v3635
  %v3637 = vsel %vm3634, %v3636, %v3632
  %v3638 = vmul.f32 1.0, %v3637
  %v3639 = vrcp.pop %v2721
  %v3640 = vmul.f32 %v2721, %v3639
  %v3641 = vsub.f32 1.0, %v3640
  %v3642 = vmul.f32 %v3639, %v3641
  %v3643 = vadd.f32 %v3639, %v3642
  %vm3644 = vweird.f32 %v2721
  %vm3645 = vweird.f32 %v3639
  %vm3646 = vmor %vm3644, %vm3645
  %v3647 = vsel %vm3646, %v3639, %v3643
  %v3648 = vand.u32 2147483647, %v2721
  %vm3649 = vcmp.eq.f32.partialorder %v3648, 8.507059e+37
  %v3650 = vand.u32 %v2721, 2147483648
  %v3651 = vor.u32 1.1754944e-38, %v3650
  %v3652 = vsel %vm3649, %v3651, %v3647
  %v3653 = vmul.f32 1.0, %v3652
  %v3654 = vrcp.pop %v2722
  %v3655 = vmul.f32 %v2722, %v3654
  %v3656 = vsub.f32 1.0, %v3655
  %v3657 = vmul.f32 %v3654, %v3656
  %v3658 = vadd.f32 %v3654, %v3657
  %vm3659 = vweird.f32 %v2722
  %vm3660 = vweird.f32 %v3654
  %vm3661 = vmor %vm3659, %vm3660
  %v3662 = vsel %vm3661, %v3654, %v3658
  %v3663 = vand.u32 2147483647, %v2722
  %vm3664 = vcmp.eq.f32.partialorder %v3663, 8.507059e+37
  %v3665 = vand.u32 %v2722, 2147483648
  %v3666 = vor.u32 1.1754944e-38, %v3665
  %v3667 = vsel %vm3664, %v3666, %v3662
  %v3668 = vmul.f32 1.0, %v3667
  %v3669 = vrcp.pop %v2723
  %v3670 = vmul.f32 %v2723, %v3669
  %v3671 = vsub.f32 1.0, %v3670
  %v3672 = vmul.f32 %v3669, %v3671
  %v3673 = vadd.f32 %v3669, %v3672
  %vm3674 = vweird.f32 %v2723
  %vm3675 = vweird.f32 %v3669
  %vm3676 = vmor %vm3674, %vm3675
  %v3677 = vsel %vm3676, %v3669, %v3673
  %v3678 = vand.u32 2147483647, %v2723
  %vm3679 = vcmp.eq.f32.partialorder %v3678, 8.507059e+37
  %v3680 = vand.u32 %v2723, 2147483648
  %v3681 = vor.u32 1.1754944e-38, %v3680
  %v3682 = vsel %vm3679, %v3681, %v3677
  %v3683 = vmul.f32 1.0, %v3682
  %v3748 = vrot.slane %v2738, 2
  %v3749 = vrot.slane %v2753, 2
  %v3750 = vrot.slane %v2768, 2
  %v3751 = vrot.slane %v2783, 2
  %v3752 = vrot.slane %v2798, 2
  %v3753 = vrot.slane %v2813, 2
  %v3754 = vrot.slane %v2828, 2
  %v3755 = vrot.slane %v2843, 2
  %v3756 = vrot.slane %v2858, 2
  %v3757 = vrot.slane %v2873, 2
  %v3758 = vrot.slane %v2888, 2
  %v3759 = vrot.slane %v2903, 2
  %v3760 = vrot.slane %v2918, 2
  %v3761 = vrot.slane %v2933, 2
  %v3762 = vrot.slane %v2948, 2
  %v3763 = vrot.slane %v2963, 2
  %v3764 = vrot.slane %v2978, 2
  %v3765 = vrot.slane %v2993, 2
  %v3766 = vrot.slane %v3008, 2
  %v3767 = vrot.slane %v3023, 2
  %v3768 = vrot.slane %v3038, 2
  %v3769 = vrot.slane %v3053, 2
  %v3770 = vrot.slane %v3068, 2
  %v3771 = vrot.slane %v3083, 2
  %v3772 = vrot.slane %v3098, 2
  %v3773 = vrot.slane %v3113, 2
  %v3774 = vrot.slane %v3128, 2
  %v3775 = vrot.slane %v3143, 2
  %v3776 = vrot.slane %v3158, 2
  %v3777 = vrot.slane %v3173, 2
  %v3778 = vrot.slane %v3188, 2
  %v3779 = vrot.slane %v3203, 2
  %v3780 = vrot.slane %v3218, 2
  %v3781 = vrot.slane %v3233, 2
  %v3782 = vrot.slane %v3248, 2
  %v3783 = vrot.slane %v3263, 2
  %v3784 = vrot.slane %v3278, 2
  %v3785 = vrot.slane %v3293, 2
  %v3786 = vrot.slane %v3308, 2
  %v3787 = vrot.slane %v3323, 2
  %v3788 = vrot.slane %v3338, 2
  %v3789 = vrot.slane %v3353, 2
  %v3790 = vrot.slane %v3368, 2
  %v3791 = vrot.slane %v3383, 2
  %v3792 = vrot.slane %v3398, 2
  %v3793 = vrot.slane %v3413, 2
  %v3794 = vrot.slane %v3428, 2
  %v3795 = vrot.slane %v3443, 2
  %v3796 = vrot.slane %v3458, 2
  %v3797 = vrot.slane %v3473, 2
  %v3798 = vrot.slane %v3488, 2
  %v3799 = vrot.slane %v3503, 2
  %v3800 = vrot.slane %v3518, 2
  %v3801 = vrot.slane %v3533, 2
  %v3802 = vrot.slane %v3548, 2
  %v3803 = vrot.slane %v3563, 2
  %v3804 = vrot.slane %v3578, 2
  %v3805 = vrot.slane %v3593, 2
  %v3806 = vrot.slane %v3608, 2
  %v3807 = vrot.slane %v3623, 2
  %v3808 = vrot.slane %v3638, 2
  %v3809 = vrot.slane %v3653, 2
  %v3810 = vrot.slane %v3668, 2
  %v3811 = vrot.slane %v3683, 2
  %v3876 = vmul.f32 %v2404, %v3748
  %v3877 = vmul.f32 %v2405, %v3749
  %v3878 = vmul.f32 %v2406, %v3750
  %v3879 = vmul.f32 %v2407, %v3751
  %v3880 = vmul.f32 %v2408, %v3752
  %v3881 = vmul.f32 %v2409, %v3753
  %v3882 = vmul.f32 %v2410, %v3754
  %v3883 = vmul.f32 %v2411, %v3755
  %v3884 = vmul.f32 %v2412, %v3756
  %v3885 = vmul.f32 %v2413, %v3757
  %v3886 = vmul.f32 %v2414, %v3758
  %v3887 = vmul.f32 %v2415, %v3759
  %v3888 = vmul.f32 %v2416, %v3760
  %v3889 = vmul.f32 %v2417, %v3761
  %v3890 = vmul.f32 %v2418, %v3762
  %v3891 = vmul.f32 %v2419, %v3763
  %v3892 = vmul.f32 %v2420, %v3764
  %v3893 = vmul.f32 %v2421, %v3765
  %v3894 = vmul.f32 %v2422, %v3766
  %v3895 = vmul.f32 %v2423, %v3767
  %v3896 = vmul.f32 %v2424, %v3768
  %v3897 = vmul.f32 %v2425, %v3769
  %v3898 = vmul.f32 %v2426, %v3770
  %v3899 = vmul.f32 %v2427, %v3771
  %v3900 = vmul.f32 %v2428, %v3772
  %v3901 = vmul.f32 %v2429, %v3773
  %v3902 = vmul.f32 %v2430, %v3774
  %v3903 = vmul.f32 %v2431, %v3775
  %v3904 = vmul.f32 %v2432, %v3776
  %v3905 = vmul.f32 %v2433, %v3777
  %v3906 = vmul.f32 %v2434, %v3778
  %v3907 = vmul.f32 %v2435, %v3779
  %v3908 = vmul.f32 %v2436, %v3780
  %v3909 = vmul.f32 %v2437, %v3781
  %v3910 = vmul.f32 %v2438, %v3782
  %v3911 = vmul.f32 %v2439, %v3783
  %v3912 = vmul.f32 %v2440, %v3784
  %v3913 = vmul.f32 %v2441, %v3785
  %v3914 = vmul.f32 %v2442, %v3786
  %v3915 = vmul.f32 %v2443, %v3787
  %v3916 = vmul.f32 %v2444, %v3788
  %v3917 = vmul.f32 %v2445, %v3789
  %v3918 = vmul.f32 %v2446, %v3790
  %v3919 = vmul.f32 %v2447, %v3791
  %v3920 = vmul.f32 %v2448, %v3792
  %v3921 = vmul.f32 %v2449, %v3793
  %v3922 = vmul.f32 %v2450, %v3794
  %v3923 = vmul.f32 %v2451, %v3795
  %v3924 = vmul.f32 %v2452, %v3796
  %v3925 = vmul.f32 %v2453, %v3797
  %v3926 = vmul.f32 %v2454, %v3798
  %v3927 = vmul.f32 %v2455, %v3799
  %v3928 = vmul.f32 %v2456, %v3800
  %v3929 = vmul.f32 %v2457, %v3801
  %v3930 = vmul.f32 %v2458, %v3802
  %v3931 = vmul.f32 %v2459, %v3803
  %v3932 = vmul.f32 %v2460, %v3804
  %v3933 = vmul.f32 %v2461, %v3805
  %v3934 = vmul.f32 %v2462, %v3806
  %v3935 = vmul.f32 %v2463, %v3807
  %v3936 = vmul.f32 %v2464, %v3808
  %v3937 = vmul.f32 %v2465, %v3809
  %v3938 = vmul.f32 %v2466, %v3810
  %v3939 = vmul.f32 %v2467, %v3811
  %v3940 = vpack.c.bf16 %v3877, %v3876
  %v3941 = vpack.c.bf16 %v3879, %v3878
  %v3942 = vpack.c.bf16 %v3881, %v3880
  %v3943 = vpack.c.bf16 %v3883, %v3882
  %v3944 = vpack.c.bf16 %v3885, %v3884
  %v3945 = vpack.c.bf16 %v3887, %v3886
  %v3946 = vpack.c.bf16 %v3889, %v3888
  %v3947 = vpack.c.bf16 %v3891, %v3890
  %v3948 = vpack.c.bf16 %v3893, %v3892
  %v3949 = vpack.c.bf16 %v3895, %v3894
  %v3950 = vpack.c.bf16 %v3897, %v3896
  %v3951 = vpack.c.bf16 %v3899, %v3898
  %v3952 = vpack.c.bf16 %v3901, %v3900
  %v3953 = vpack.c.bf16 %v3903, %v3902
  %v3954 = vpack.c.bf16 %v3905, %v3904
  %v3955 = vpack.c.bf16 %v3907, %v3906
  %v3956 = vpack.c.bf16 %v3909, %v3908
  %v3957 = vpack.c.bf16 %v3911, %v3910
  %v3958 = vpack.c.bf16 %v3913, %v3912
  %v3959 = vpack.c.bf16 %v3915, %v3914
  %v3960 = vpack.c.bf16 %v3917, %v3916
  %v3961 = vpack.c.bf16 %v3919, %v3918
  %v3962 = vpack.c.bf16 %v3921, %v3920
  %v3963 = vpack.c.bf16 %v3923, %v3922
  %v3964 = vpack.c.bf16 %v3925, %v3924
  %v3965 = vpack.c.bf16 %v3927, %v3926
  %v3966 = vpack.c.bf16 %v3929, %v3928
  %v3967 = vpack.c.bf16 %v3931, %v3930
  %v3968 = vpack.c.bf16 %v3933, %v3932
  %v3969 = vpack.c.bf16 %v3935, %v3934
  %v3970 = vpack.c.bf16 %v3937, %v3936
  %v3971 = vpack.c.bf16 %v3939, %v3938
  %v4004 = vrot.slane %v3940, 3
  %v4005 = vrot.slane %v3941, 6
  %v4006 = vrot.slane %v3941, 1
  %v4007 = vrot.slane %v3942, 4
  %v4008 = vrot.slane %v3942, 7
  %v4009 = vrot.slane %v3943, 2
  %v4010 = vrot.slane %v3943, 5
  %v4011 = vrot.slane %v3944, 3
  %v4012 = vrot.slane %v3945, 6
  %v4013 = vrot.slane %v3945, 1
  %v4014 = vrot.slane %v3946, 4
  %v4015 = vrot.slane %v3946, 7
  %v4016 = vrot.slane %v3947, 2
  %v4017 = vrot.slane %v3947, 5
  %v4018 = vrot.slane %v3948, 3
  %v4019 = vrot.slane %v3949, 6
  %v4020 = vrot.slane %v3949, 1
  %v4021 = vrot.slane %v3950, 4
  %v4022 = vrot.slane %v3950, 7
  %v4023 = vrot.slane %v3951, 2
  %v4024 = vrot.slane %v3951, 5
  %v4025 = vrot.slane %v3952, 3
  %v4026 = vrot.slane %v3953, 6
  %v4027 = vrot.slane %v3953, 1
  %v4028 = vrot.slane %v3954, 4
  %v4029 = vrot.slane %v3954, 7
  %v4030 = vrot.slane %v3955, 2
  %v4031 = vrot.slane %v3955, 5
  %v4032 = vrot.slane %v3956, 3
  %v4033 = vrot.slane %v3957, 6
  %v4034 = vrot.slane %v3957, 1
  %v4035 = vrot.slane %v3958, 4
  %v4036 = vrot.slane %v3958, 7
  %v4037 = vrot.slane %v3959, 2
  %v4038 = vrot.slane %v3959, 5
  %v4039 = vrot.slane %v3960, 3
  %v4040 = vrot.slane %v3961, 6
  %v4041 = vrot.slane %v3961, 1
  %v4042 = vrot.slane %v3962, 4
  %v4043 = vrot.slane %v3962, 7
  %v4044 = vrot.slane %v3963, 2
  %v4045 = vrot.slane %v3963, 5
  %v4046 = vrot.slane %v3964, 3
  %v4047 = vrot.slane %v3965, 6
  %v4048 = vrot.slane %v3965, 1
  %v4049 = vrot.slane %v3966, 4
  %v4050 = vrot.slane %v3966, 7
  %v4051 = vrot.slane %v3967, 2
  %v4052 = vrot.slane %v3967, 5
  %v4053 = vrot.slane %v3968, 3
  %v4054 = vrot.slane %v3969, 6
  %v4055 = vrot.slane %v3969, 1
  %v4056 = vrot.slane %v3970, 4
  %v4057 = vrot.slane %v3970, 7
  %v4058 = vrot.slane %v3971, 2
  %v4059 = vrot.slane %v3971, 5
  %vm4060 = vcmask 1040384
  %v4063 = vsel %vm4060, %v3940, %v4004
  %vm4064 = vcmask 1042434
  %v4067 = vsel %vm4064, %v4005, %v4006
  %v4068 = vsel %vm977, %v4063, %v4067
  %vm4069 = vcmask 1044484
  %v4072 = vsel %vm4069, %v4007, %v4008
  %vm4073 = vcmask 1046534
  %v4076 = vsel %vm4073, %v4009, %v4010
  %vm4077 = vcmask 1045508
  %v4078 = vsel %vm4077, %v4072, %v4076
  %v4079 = vsel %vm2002, %v4068, %v4078
  %v4082 = vsel %vm4060, %v3944, %v4011
  %v4085 = vsel %vm4064, %v4012, %v4013
  %v4086 = vsel %vm977, %v4082, %v4085
  %v4089 = vsel %vm4069, %v4014, %v4015
  %v4092 = vsel %vm4073, %v4016, %v4017
  %v4093 = vsel %vm4077, %v4089, %v4092
  %v4094 = vsel %vm2002, %v4086, %v4093
  %v4097 = vsel %vm4060, %v3948, %v4018
  %v4100 = vsel %vm4064, %v4019, %v4020
  %v4101 = vsel %vm977, %v4097, %v4100
  %v4104 = vsel %vm4069, %v4021, %v4022
  %v4107 = vsel %vm4073, %v4023, %v4024
  %v4108 = vsel %vm4077, %v4104, %v4107
  %v4109 = vsel %vm2002, %v4101, %v4108
  %v4112 = vsel %vm4060, %v3952, %v4025
  %v4115 = vsel %vm4064, %v4026, %v4027
  %v4116 = vsel %vm977, %v4112, %v4115
  %v4119 = vsel %vm4069, %v4028, %v4029
  %v4122 = vsel %vm4073, %v4030, %v4031
  %v4123 = vsel %vm4077, %v4119, %v4122
  %v4124 = vsel %vm2002, %v4116, %v4123
  %v4127 = vsel %vm4060, %v3956, %v4032
  %v4130 = vsel %vm4064, %v4033, %v4034
  %v4131 = vsel %vm977, %v4127, %v4130
  %v4134 = vsel %vm4069, %v4035, %v4036
  %v4137 = vsel %vm4073, %v4037, %v4038
  %v4138 = vsel %vm4077, %v4134, %v4137
  %v4139 = vsel %vm2002, %v4131, %v4138
  %v4142 = vsel %vm4060, %v3960, %v4039
  %v4145 = vsel %vm4064, %v4040, %v4041
  %v4146 = vsel %vm977, %v4142, %v4145
  %v4149 = vsel %vm4069, %v4042, %v4043
  %v4152 = vsel %vm4073, %v4044, %v4045
  %v4153 = vsel %vm4077, %v4149, %v4152
  %v4154 = vsel %vm2002, %v4146, %v4153
  %v4157 = vsel %vm4060, %v3964, %v4046
  %v4160 = vsel %vm4064, %v4047, %v4048
  %v4161 = vsel %vm977, %v4157, %v4160
  %v4164 = vsel %vm4069, %v4049, %v4050
  %v4167 = vsel %vm4073, %v4051, %v4052
  %v4168 = vsel %vm4077, %v4164, %v4167
  %v4169 = vsel %vm2002, %v4161, %v4168
  %v4172 = vsel %vm4060, %v3968, %v4053
  %v4175 = vsel %vm4064, %v4054, %v4055
  %v4176 = vsel %vm977, %v4172, %v4175
  %v4179 = vsel %vm4069, %v4056, %v4057
  %v4182 = vsel %vm4073, %v4058, %v4059
  %v4183 = vsel %vm4077, %v4179, %v4182
  %v4184 = vsel %vm2002, %v4176, %v4183
  %4193 = vst [vmem:[%s2] sm:$0xff] %v4079
  %4194 = vst [vmem:[%s2 + $0x8] sm:$0xff] %v4094
  %4195 = vst [vmem:[%s2 + $0x10] sm:$0xff] %v4109
  %4196 = vst [vmem:[%s2 + $0x18] sm:$0xff] %v4124
  %4197 = vst [vmem:[%s2 + $0x20] sm:$0xff] %v4139
  %4198 = vst [vmem:[%s2 + $0x28] sm:$0xff] %v4154
  %4199 = vst [vmem:[%s2 + $0x30] sm:$0xff] %v4169
  %4200 = vst [vmem:[%s2 + $0x38] sm:$0xff] %v4184
  // Predicated region
  $region10: #{init_stage_g_forward.9} parent=0 // pred_check
    _
  $region11: #{init_stage_g_forward.9} parent=0 // pred_check_branch
    %4202 = sbr.rel (0) target = $region13
  $region12: #{init_stage_g_forward.9} parent=0 // pred_region
    _
  $region13: #{init_stage_g_forward.9} parent=0 // pred_fallthru
    _
  // Predicated region
  $region14: #{init_stage_g_forward.9} parent=0 // pred_check
    _
  $region15: #{init_stage_g_forward.9} parent=0 // pred_check_branch
    %4204 = sbr.rel (0) target = $region17
  $region16: #{init_stage_g_forward.9} parent=0 // pred_region
    _
  $region17: #{init_stage_g_forward.9} parent=0 // pred_fallthru
    _

</llo_original>
